<compile_context>
chip_gen: v7x
topology: tpu7x:2x2x1
jax: 0.10.0
libtpu: 0.0.40
codegen_flags: <defaults>
</compile_context>

<pallas_src>
import jax
import jax.numpy as jnp
from jax import lax
from jax.experimental import pallas as pl
from jax.experimental.pallas import tpu as pltpu

VMEM = pltpu.MemorySpace.VMEM


# ------------------------------ Pallas kernel ------------------------------ #

def _net_kernel(p1_ref, w1_ref, b1_ref, w2_ref, b2_ref,
                fc1w_ref, fc1b_ref, fc2w_ref, fc2b_ref,
                logits_ref, sm_ref):
    f32 = jnp.float32
    B = logits_ref.shape[0]
    C1 = w1_ref.shape[1]          # 32 conv1 output channels
    C2 = w2_ref.shape[1]          # 64 conv2 output channels
    H1 = p1_ref.shape[1]          # 12 conv1 output spatial

    # ---- conv1 (1->32, k=4, s=2, p=1) + ReLU, on the VPU -------------------
    # p1 carries the 16 im2col taps in its last dim (Cin == 1).  With K=16 the
    # MXU contraction would be ~94% zeros, so use 16 broadcast multiply-adds.
    p1 = p1_ref[...]                                        # (B, 12, 12, 16)
    h1 = jnp.zeros((B, H1, H1, C1), f32)
    for t in range(16):
        h1 = h1 + p1[:, :, :, t:t + 1] * w1_ref[t:t + 1, :]
    h1 = jnp.maximum(h1 + b1_ref[...], 0.0)                 # (B, 12, 12, 32)

    # ---- zero-pad to (B, 14, 14, 32) for conv2's padding=1 -----------------
    zr = jnp.zeros((B, 1, H1, C1), f32)
    h1 = jnp.concatenate([zr, h1, zr], axis=1)              # (B, 14, 12, 32)
    zc = jnp.zeros((B, H1 + 2, 1, C1), f32)
    h1p = jnp.concatenate([zc, h1, zc], axis=2)             # (B, 14, 14, 32)

    # ---- conv2 (32->64, k=4, s=3, p=1) + ReLU ------------------------------
    # Assemble the (B, 4, 4, 512) patch tensor entirely in VMEM (contiguous
    # slices + concats, no strided loads), then one K=512 MXU GEMM.
    tap_feats = []
    for dh in range(4):
        rows = jnp.concatenate(
            [h1p[:, dh + 3 * i:dh + 3 * i + 1] for i in range(4)],
            axis=1)                                          # (B, 4, 14, 32)
        for dw in range(4):
            tap_feats.append(jnp.concatenate(
                [rows[:, :, dw + 3 * j:dw + 3 * j + 1] for j in range(4)],
                axis=2))                                     # (B, 4, 4, 32)
    patches2 = jnp.concatenate(tap_feats, axis=3)            # (B, 4, 4, 512)

    h2 = jnp.dot(patches2.reshape(B * 16, 16 * C1), w2_ref[...],
                 preferred_element_type=f32)                 # (B*16, 64)
    h2 = jnp.maximum(h2 + b2_ref[...], 0.0)
    h2 = h2.reshape(B, 4, 4, C2)

    # ---- MaxPool2d(2, 2) + flatten + fc1 + ReLU ----------------------------
    # The NCHW flatten permutation is already folded into fc1w (rows ordered
    # (pooled_position, channel)), so we just concatenate the 4 pooled
    # channel blocks along lanes.
    pooled = []
    for ph in range(2):
        for pw in range(2):
            m = jnp.maximum(
                jnp.maximum(h2[:, 2 * ph:2 * ph + 1, 2 * pw:2 * pw + 1, :],
                            h2[:, 2 * ph:2 * ph + 1, 2 * pw + 1:2 * pw + 2, :]),
                jnp.maximum(h2[:, 2 * ph + 1:2 * ph + 2, 2 * pw:2 * pw + 1, :],
                            h2[:, 2 * ph + 1:2 * ph + 2, 2 * pw + 1:2 * pw + 2, :]))
            pooled.append(m.reshape(B, C2))                  # (B, 64)
    flat = jnp.concatenate(pooled, axis=-1)                  # (B, 256)

    h3 = jnp.dot(flat, fc1w_ref[...], preferred_element_type=f32)
    h3 = jnp.maximum(h3 + fc1b_ref[...], 0.0)                # (B, 1024)

    # ---- fc2 (padded to 128 lanes) + softmax -------------------------------
    # Padded columns have zero weights and a -1e30 bias, so they contribute
    # exp(...) == 0 to the lane-dense reductions.
    logits = jnp.dot(h3, fc2w_ref[...], preferred_element_type=f32)
    logits = logits + fc2b_ref[...]                          # (B, 128)
    logits_ref[...] = logits[:, :logits_ref.shape[1]]

    mx = jnp.max(logits, axis=-1, keepdims=True)
    e = jnp.exp(logits - mx)
    s = jnp.sum(e, axis=-1, keepdims=True)
    sm = e * pl.reciprocal(s, approx=False)
    sm_ref[...] = sm[:, :sm_ref.shape[1]]


# --------------------------- wrapper / parameters --------------------------- #

def prepare_params(params):
    """One-time (outside jit) weight repacking: transposes, im2col ordering,
    NCHW-flatten permutation folded into fc1, fc2 padded to 128 lanes."""
    f32 = jnp.float32
    # conv taps ordered (dh, dw, cin) -> matches the in-kernel patch order.
    w1 = jnp.transpose(params["conv1_w"], (2, 3, 1, 0)).reshape(16, 32)
    w2 = jnp.transpose(params["conv2_w"], (2, 3, 1, 0)).reshape(512, 64)
    # PyTorch flatten index of pooled (B,64,2,2) is c*4 + p ; kernel produces
    # features ordered p*64 + c, so permute fc1 rows accordingly.
    fc1w = jnp.transpose(params["fc1_w"].reshape(1024, 64, 4),
                         (2, 1, 0)).reshape(256, 1024)
    fc2w = jnp.zeros((1024, 128), f32).at[:, :10].set(params["fc2_w"].T)
    fc2b = jnp.full((1, 128), -1e30, f32).at[0, :10].set(params["fc2_b"])
    return dict(
        w1=w1.astype(f32), b1=params["conv1_b"].reshape(1, 32).astype(f32),
        w2=w2.astype(f32), b2=params["conv2_b"].reshape(1, 64).astype(f32),
        fc1w=fc1w.astype(f32),
        fc1b=params["fc1_b"].reshape(1, 1024).astype(f32),
        fc2w=fc2w, fc2b=fc2b)


def net_forward(prepped, x_nchw):
    """x_nchw: (B, 1, 24, 24) float32.  Returns (logits, softmax)."""
    B = x_nchw.shape[0]
    # conv1 im2col on the raw input (tiny XLA glue); everything downstream
    # runs inside the single fused Pallas kernel.
    xp = jnp.pad(x_nchw[:, 0, :, :], ((0, 0), (1, 1), (1, 1)))   # (B, 26, 26)
    taps = [xp[:, dh::2, dw::2][:, :12, :12]
            for dh in range(4) for dw in range(4)]
    p1 = jnp.stack(taps, axis=-1).astype(jnp.float32)            # (B,12,12,16)

    return pl.pallas_call(
        _net_kernel,
        out_shape=(jax.ShapeDtypeStruct((B, 10), jnp.float32),
                   jax.ShapeDtypeStruct((B, 10), jnp.float32)),
        in_specs=[pl.BlockSpec(memory_space=VMEM)] * 9,
        out_specs=(pl.BlockSpec(memory_space=VMEM),
                   pl.BlockSpec(memory_space=VMEM)),
    )(p1, prepped["w1"], prepped["b1"], prepped["w2"], prepped["b2"],
      prepped["fc1w"], prepped["fc1b"], prepped["fc2w"], prepped["fc2b"])


def init_params(key):
    """Deterministic synthetic parameters matching the PyTorch module shapes."""
    ks = jax.random.split(key, 8)

    def u(k, shape, fan_in):
        bound = 1.0 / jnp.sqrt(jnp.float32(fan_in))
        return jax.random.uniform(k, shape, jnp.float32, -bound, bound)

    return dict(
        conv1_w=u(ks[0], (32, 1, 4, 4), 1 * 4 * 4),
        conv1_b=u(ks[1], (32,), 1 * 4 * 4),
        conv2_w=u(ks[2], (64, 32, 4, 4), 32 * 4 * 4),
        conv2_b=u(ks[3], (64,), 32 * 4 * 4),
        fc1_w=u(ks[4], (1024, 256), 256),
        fc1_b=u(ks[5], (1024,), 256),
        fc2_w=u(ks[6], (10, 1024), 1024),
        fc2_b=u(ks[7], (10,), 1024),
    )


def reference_forward(params, x):
    """Plain-JAX reference mirroring the PyTorch forward (for verification)."""
    y = lax.conv_general_dilated(x, params["conv1_w"], (2, 2), ((1, 1), (1, 1)),
                                 dimension_numbers=("NCHW", "OIHW", "NCHW"))
    y = jnp.maximum(y + params["conv1_b"][None, :, None, None], 0.0)
    y = lax.conv_general_dilated(y, params["conv2_w"], (3, 3), ((1, 1), (1, 1)),
                                 dimension_numbers=("NCHW", "OIHW", "NCHW"))
    y = jnp.maximum(y + params["conv2_b"][None, :, None, None], 0.0)
    y = lax.reduce_window(y, -jnp.inf, lax.max, (1, 1, 2, 2), (1, 1, 2, 2),
                          "VALID")
    v = y.reshape(y.shape[0], -1)
    h = jnp.maximum(v @ params["fc1_w"].T + params["fc1_b"], 0.0)
    logits = h @ params["fc2_w"].T + params["fc2_b"]
    return logits, jax.nn.softmax(logits, axis=1)


if __name__ == "__main__":
    key = jax.random.PRNGKey(0)
    pkey, xkey = jax.random.split(key)
    params = init_params(pkey)
    prepped = prepare_params(params)
    # Spatial 24: conv1(s=2)->12, conv2(s=3)->4, pool2->2, flatten 64*2*2=256.
    x = jax.random.normal(xkey, (2, 1, 24, 24), jnp.float32)

    logits, sm = jax.jit(net_forward)(prepped, x)
    jax.block_until_ready((logits, sm))

    assert logits.shape == (2, 10) and sm.shape == (2, 10)
    assert bool(jnp.allclose(jnp.sum(sm, axis=1), 1.0, atol=1e-4))

    ref_logits, ref_sm = reference_forward(params, x)
    assert bool(jnp.allclose(logits, ref_logits, atol=2e-2, rtol=2e-2))
    assert bool(jnp.allclose(sm, ref_sm, atol=2e-2, rtol=2e-2))
    print("KERNEL_OK")
</pallas_src>

<mosaic_0001>
module attributes {stable_mosaic.version = 11 : i64} {
  func.func @_net_kernel(%arg0: memref<2x12x12x16xf32, #tpu.memory_space<vmem>>, %arg1: memref<16x32xf32, #tpu.memory_space<vmem>>, %arg2: memref<1x32xf32, #tpu.memory_space<vmem>>, %arg3: memref<512x64xf32, #tpu.memory_space<vmem>>, %arg4: memref<1x64xf32, #tpu.memory_space<vmem>>, %arg5: memref<256x1024xf32, #tpu.memory_space<vmem>>, %arg6: memref<1x1024xf32, #tpu.memory_space<vmem>>, %arg7: memref<1024x128xf32, #tpu.memory_space<vmem>>, %arg8: memref<1x128xf32, #tpu.memory_space<vmem>>, %arg9: memref<2x10xf32, #tpu.memory_space<vmem>>, %arg10: memref<2x10xf32, #tpu.memory_space<vmem>>) attributes {dimension_semantics = [], scalar_prefetch = 0 : i64, scratch_operands = 0 : i64, tpu.core_type = #tpu.core_type<tc>} {
    %c0 = arith.constant 0 : index
    %c0_0 = arith.constant 0 : index
    %c0_1 = arith.constant 0 : index
    %c0_2 = arith.constant 0 : index
    %0 = vector.load %arg0[%c0, %c0_0, %c0_1, %c0_2] : memref<2x12x12x16xf32, #tpu.memory_space<vmem>>, vector<2x12x12x16xf32>
    %cst = arith.constant 0.000000e+00 : f32
    %1 = vector.broadcast %cst : f32 to vector<2x12x12x32xf32>
    %2 = vector.extract_strided_slice %0 {offsets = [0, 0, 0, 0], sizes = [2, 12, 12, 1], strides = [1, 1, 1, 1]} : vector<2x12x12x16xf32> to vector<2x12x12x1xf32>
    %c0_3 = arith.constant 0 : index
    %c0_4 = arith.constant 0 : index
    %3 = vector.load %arg1[%c0_3, %c0_4] : memref<16x32xf32, #tpu.memory_space<vmem>>, vector<1x32xf32>
    %4 = vector.shape_cast %3 : vector<1x32xf32> to vector<1x1x1x32xf32>
    %5 = vector.broadcast %2 : vector<2x12x12x1xf32> to vector<2x12x12x32xf32>
    %6 = vector.broadcast %4 : vector<1x1x1x32xf32> to vector<2x12x12x32xf32>
    %7 = arith.mulf %5, %6 : vector<2x12x12x32xf32>
    %8 = arith.addf %1, %7 : vector<2x12x12x32xf32>
    %9 = vector.extract_strided_slice %0 {offsets = [0, 0, 0, 1], sizes = [2, 12, 12, 1], strides = [1, 1, 1, 1]} : vector<2x12x12x16xf32> to vector<2x12x12x1xf32>
    %c1 = arith.constant 1 : index
    %c0_5 = arith.constant 0 : index
    %10 = vector.load %arg1[%c1, %c0_5] : memref<16x32xf32, #tpu.memory_space<vmem>>, vector<1x32xf32>
    %11 = vector.shape_cast %10 : vector<1x32xf32> to vector<1x1x1x32xf32>
    %12 = vector.broadcast %9 : vector<2x12x12x1xf32> to vector<2x12x12x32xf32>
    %13 = vector.broadcast %11 : vector<1x1x1x32xf32> to vector<2x12x12x32xf32>
    %14 = arith.mulf %12, %13 : vector<2x12x12x32xf32>
    %15 = arith.addf %8, %14 : vector<2x12x12x32xf32>
    %16 = vector.extract_strided_slice %0 {offsets = [0, 0, 0, 2], sizes = [2, 12, 12, 1], strides = [1, 1, 1, 1]} : vector<2x12x12x16xf32> to vector<2x12x12x1xf32>
    %c2 = arith.constant 2 : index
    %c0_6 = arith.constant 0 : index
    %17 = vector.load %arg1[%c2, %c0_6] : memref<16x32xf32, #tpu.memory_space<vmem>>, vector<1x32xf32>
    %18 = vector.shape_cast %17 : vector<1x32xf32> to vector<1x1x1x32xf32>
    %19 = vector.broadcast %16 : vector<2x12x12x1xf32> to vector<2x12x12x32xf32>
    %20 = vector.broadcast %18 : vector<1x1x1x32xf32> to vector<2x12x12x32xf32>
    %21 = arith.mulf %19, %20 : vector<2x12x12x32xf32>
    %22 = arith.addf %15, %21 : vector<2x12x12x32xf32>
    %23 = vector.extract_strided_slice %0 {offsets = [0, 0, 0, 3], sizes = [2, 12, 12, 1], strides = [1, 1, 1, 1]} : vector<2x12x12x16xf32> to vector<2x12x12x1xf32>
    %c3 = arith.constant 3 : index
    %c0_7 = arith.constant 0 : index
    %24 = vector.load %arg1[%c3, %c0_7] : memref<16x32xf32, #tpu.memory_space<vmem>>, vector<1x32xf32>
    %25 = vector.shape_cast %24 : vector<1x32xf32> to vector<1x1x1x32xf32>
    %26 = vector.broadcast %23 : vector<2x12x12x1xf32> to vector<2x12x12x32xf32>
    %27 = vector.broadcast %25 : vector<1x1x1x32xf32> to vector<2x12x12x32xf32>
    %28 = arith.mulf %26, %27 : vector<2x12x12x32xf32>
    %29 = arith.addf %22, %28 : vector<2x12x12x32xf32>
    %30 = vector.extract_strided_slice %0 {offsets = [0, 0, 0, 4], sizes = [2, 12, 12, 1], strides = [1, 1, 1, 1]} : vector<2x12x12x16xf32> to vector<2x12x12x1xf32>
    %c4 = arith.constant 4 : index
    %c0_8 = arith.constant 0 : index
    %31 = vector.load %arg1[%c4, %c0_8] : memref<16x32xf32, #tpu.memory_space<vmem>>, vector<1x32xf32>
    %32 = vector.shape_cast %31 : vector<1x32xf32> to vector<1x1x1x32xf32>
    %33 = vector.broadcast %30 : vector<2x12x12x1xf32> to vector<2x12x12x32xf32>
    %34 = vector.broadcast %32 : vector<1x1x1x32xf32> to vector<2x12x12x32xf32>
    %35 = arith.mulf %33, %34 : vector<2x12x12x32xf32>
    %36 = arith.addf %29, %35 : vector<2x12x12x32xf32>
    %37 = vector.extract_strided_slice %0 {offsets = [0, 0, 0, 5], sizes = [2, 12, 12, 1], strides = [1, 1, 1, 1]} : vector<2x12x12x16xf32> to vector<2x12x12x1xf32>
    %c5 = arith.constant 5 : index
    %c0_9 = arith.constant 0 : index
    %38 = vector.load %arg1[%c5, %c0_9] : memref<16x32xf32, #tpu.memory_space<vmem>>, vector<1x32xf32>
    %39 = vector.shape_cast %38 : vector<1x32xf32> to vector<1x1x1x32xf32>
    %40 = vector.broadcast %37 : vector<2x12x12x1xf32> to vector<2x12x12x32xf32>
    %41 = vector.broadcast %39 : vector<1x1x1x32xf32> to vector<2x12x12x32xf32>
    %42 = arith.mulf %40, %41 : vector<2x12x12x32xf32>
    %43 = arith.addf %36, %42 : vector<2x12x12x32xf32>
    %44 = vector.extract_strided_slice %0 {offsets = [0, 0, 0, 6], sizes = [2, 12, 12, 1], strides = [1, 1, 1, 1]} : vector<2x12x12x16xf32> to vector<2x12x12x1xf32>
    %c6 = arith.constant 6 : index
    %c0_10 = arith.constant 0 : index
    %45 = vector.load %arg1[%c6, %c0_10] : memref<16x32xf32, #tpu.memory_space<vmem>>, vector<1x32xf32>
    %46 = vector.shape_cast %45 : vector<1x32xf32> to vector<1x1x1x32xf32>
    %47 = vector.broadcast %44 : vector<2x12x12x1xf32> to vector<2x12x12x32xf32>
    %48 = vector.broadcast %46 : vector<1x1x1x32xf32> to vector<2x12x12x32xf32>
    %49 = arith.mulf %47, %48 : vector<2x12x12x32xf32>
    %50 = arith.addf %43, %49 : vector<2x12x12x32xf32>
    %51 = vector.extract_strided_slice %0 {offsets = [0, 0, 0, 7], sizes = [2, 12, 12, 1], strides = [1, 1, 1, 1]} : vector<2x12x12x16xf32> to vector<2x12x12x1xf32>
    %c7 = arith.constant 7 : index
    %c0_11 = arith.constant 0 : index
    %52 = vector.load %arg1[%c7, %c0_11] : memref<16x32xf32, #tpu.memory_space<vmem>>, vector<1x32xf32>
    %53 = vector.shape_cast %52 : vector<1x32xf32> to vector<1x1x1x32xf32>
    %54 = vector.broadcast %51 : vector<2x12x12x1xf32> to vector<2x12x12x32xf32>
    %55 = vector.broadcast %53 : vector<1x1x1x32xf32> to vector<2x12x12x32xf32>
    %56 = arith.mulf %54, %55 : vector<2x12x12x32xf32>
    %57 = arith.addf %50, %56 : vector<2x12x12x32xf32>
    %58 = vector.extract_strided_slice %0 {offsets = [0, 0, 0, 8], sizes = [2, 12, 12, 1], strides = [1, 1, 1, 1]} : vector<2x12x12x16xf32> to vector<2x12x12x1xf32>
    %c8 = arith.constant 8 : index
    %c0_12 = arith.constant 0 : index
    %59 = vector.load %arg1[%c8, %c0_12] : memref<16x32xf32, #tpu.memory_space<vmem>>, vector<1x32xf32>
    %60 = vector.shape_cast %59 : vector<1x32xf32> to vector<1x1x1x32xf32>
    %61 = vector.broadcast %58 : vector<2x12x12x1xf32> to vector<2x12x12x32xf32>
    %62 = vector.broadcast %60 : vector<1x1x1x32xf32> to vector<2x12x12x32xf32>
    %63 = arith.mulf %61, %62 : vector<2x12x12x32xf32>
    %64 = arith.addf %57, %63 : vector<2x12x12x32xf32>
    %65 = vector.extract_strided_slice %0 {offsets = [0, 0, 0, 9], sizes = [2, 12, 12, 1], strides = [1, 1, 1, 1]} : vector<2x12x12x16xf32> to vector<2x12x12x1xf32>
    %c9 = arith.constant 9 : index
    %c0_13 = arith.constant 0 : index
    %66 = vector.load %arg1[%c9, %c0_13] : memref<16x32xf32, #tpu.memory_space<vmem>>, vector<1x32xf32>
    %67 = vector.shape_cast %66 : vector<1x32xf32> to vector<1x1x1x32xf32>
    %68 = vector.broadcast %65 : vector<2x12x12x1xf32> to vector<2x12x12x32xf32>
    %69 = vector.broadcast %67 : vector<1x1x1x32xf32> to vector<2x12x12x32xf32>
    %70 = arith.mulf %68, %69 : vector<2x12x12x32xf32>
    %71 = arith.addf %64, %70 : vector<2x12x12x32xf32>
    %72 = vector.extract_strided_slice %0 {offsets = [0, 0, 0, 10], sizes = [2, 12, 12, 1], strides = [1, 1, 1, 1]} : vector<2x12x12x16xf32> to vector<2x12x12x1xf32>
    %c10 = arith.constant 10 : index
    %c0_14 = arith.constant 0 : index
    %73 = vector.load %arg1[%c10, %c0_14] : memref<16x32xf32, #tpu.memory_space<vmem>>, vector<1x32xf32>
    %74 = vector.shape_cast %73 : vector<1x32xf32> to vector<1x1x1x32xf32>
    %75 = vector.broadcast %72 : vector<2x12x12x1xf32> to vector<2x12x12x32xf32>
    %76 = vector.broadcast %74 : vector<1x1x1x32xf32> to vector<2x12x12x32xf32>
    %77 = arith.mulf %75, %76 : vector<2x12x12x32xf32>
    %78 = arith.addf %71, %77 : vector<2x12x12x32xf32>
    %79 = vector.extract_strided_slice %0 {offsets = [0, 0, 0, 11], sizes = [2, 12, 12, 1], strides = [1, 1, 1, 1]} : vector<2x12x12x16xf32> to vector<2x12x12x1xf32>
    %c11 = arith.constant 11 : index
    %c0_15 = arith.constant 0 : index
    %80 = vector.load %arg1[%c11, %c0_15] : memref<16x32xf32, #tpu.memory_space<vmem>>, vector<1x32xf32>
    %81 = vector.shape_cast %80 : vector<1x32xf32> to vector<1x1x1x32xf32>
    %82 = vector.broadcast %79 : vector<2x12x12x1xf32> to vector<2x12x12x32xf32>
    %83 = vector.broadcast %81 : vector<1x1x1x32xf32> to vector<2x12x12x32xf32>
    %84 = arith.mulf %82, %83 : vector<2x12x12x32xf32>
    %85 = arith.addf %78, %84 : vector<2x12x12x32xf32>
    %86 = vector.extract_strided_slice %0 {offsets = [0, 0, 0, 12], sizes = [2, 12, 12, 1], strides = [1, 1, 1, 1]} : vector<2x12x12x16xf32> to vector<2x12x12x1xf32>
    %c12 = arith.constant 12 : index
    %c0_16 = arith.constant 0 : index
    %87 = vector.load %arg1[%c12, %c0_16] : memref<16x32xf32, #tpu.memory_space<vmem>>, vector<1x32xf32>
    %88 = vector.shape_cast %87 : vector<1x32xf32> to vector<1x1x1x32xf32>
    %89 = vector.broadcast %86 : vector<2x12x12x1xf32> to vector<2x12x12x32xf32>
    %90 = vector.broadcast %88 : vector<1x1x1x32xf32> to vector<2x12x12x32xf32>
    %91 = arith.mulf %89, %90 : vector<2x12x12x32xf32>
    %92 = arith.addf %85, %91 : vector<2x12x12x32xf32>
    %93 = vector.extract_strided_slice %0 {offsets = [0, 0, 0, 13], sizes = [2, 12, 12, 1], strides = [1, 1, 1, 1]} : vector<2x12x12x16xf32> to vector<2x12x12x1xf32>
    %c13 = arith.constant 13 : index
    %c0_17 = arith.constant 0 : index
    %94 = vector.load %arg1[%c13, %c0_17] : memref<16x32xf32, #tpu.memory_space<vmem>>, vector<1x32xf32>
    %95 = vector.shape_cast %94 : vector<1x32xf32> to vector<1x1x1x32xf32>
    %96 = vector.broadcast %93 : vector<2x12x12x1xf32> to vector<2x12x12x32xf32>
    %97 = vector.broadcast %95 : vector<1x1x1x32xf32> to vector<2x12x12x32xf32>
    %98 = arith.mulf %96, %97 : vector<2x12x12x32xf32>
    %99 = arith.addf %92, %98 : vector<2x12x12x32xf32>
    %100 = vector.extract_strided_slice %0 {offsets = [0, 0, 0, 14], sizes = [2, 12, 12, 1], strides = [1, 1, 1, 1]} : vector<2x12x12x16xf32> to vector<2x12x12x1xf32>
    %c14 = arith.constant 14 : index
    %c0_18 = arith.constant 0 : index
    %101 = vector.load %arg1[%c14, %c0_18] : memref<16x32xf32, #tpu.memory_space<vmem>>, vector<1x32xf32>
    %102 = vector.shape_cast %101 : vector<1x32xf32> to vector<1x1x1x32xf32>
    %103 = vector.broadcast %100 : vector<2x12x12x1xf32> to vector<2x12x12x32xf32>
    %104 = vector.broadcast %102 : vector<1x1x1x32xf32> to vector<2x12x12x32xf32>
    %105 = arith.mulf %103, %104 : vector<2x12x12x32xf32>
    %106 = arith.addf %99, %105 : vector<2x12x12x32xf32>
    %107 = vector.extract_strided_slice %0 {offsets = [0, 0, 0, 15], sizes = [2, 12, 12, 1], strides = [1, 1, 1, 1]} : vector<2x12x12x16xf32> to vector<2x12x12x1xf32>
    %c15 = arith.constant 15 : index
    %c0_19 = arith.constant 0 : index
    %108 = vector.load %arg1[%c15, %c0_19] : memref<16x32xf32, #tpu.memory_space<vmem>>, vector<1x32xf32>
    %109 = vector.shape_cast %108 : vector<1x32xf32> to vector<1x1x1x32xf32>
    %110 = vector.broadcast %107 : vector<2x12x12x1xf32> to vector<2x12x12x32xf32>
    %111 = vector.broadcast %109 : vector<1x1x1x32xf32> to vector<2x12x12x32xf32>
    %112 = arith.mulf %110, %111 : vector<2x12x12x32xf32>
    %113 = arith.addf %106, %112 : vector<2x12x12x32xf32>
    %c0_20 = arith.constant 0 : index
    %c0_21 = arith.constant 0 : index
    %114 = vector.load %arg2[%c0_20, %c0_21] : memref<1x32xf32, #tpu.memory_space<vmem>>, vector<1x32xf32>
    %115 = vector.shape_cast %114 : vector<1x32xf32> to vector<1x1x1x32xf32>
    %116 = vector.broadcast %115 : vector<1x1x1x32xf32> to vector<2x12x12x32xf32>
    %117 = arith.addf %113, %116 : vector<2x12x12x32xf32>
    %cst_22 = arith.constant 0.000000e+00 : f32
    %118 = vector.broadcast %cst_22 : f32 to vector<2x12x12x32xf32>
    %119 = arith.maximumf %117, %118 : vector<2x12x12x32xf32>
    %cst_23 = arith.constant 0.000000e+00 : f32
    %120 = vector.broadcast %cst_23 : f32 to vector<2x1x12x32xf32>
    %121 = tpu.concatenate %120, %119, %120 in 1 : vector<2x1x12x32xf32>, vector<2x12x12x32xf32>, vector<2x1x12x32xf32> -> vector<2x14x12x32xf32>
    %cst_24 = arith.constant 0.000000e+00 : f32
    %122 = vector.broadcast %cst_24 : f32 to vector<2x14x1x32xf32>
    %123 = tpu.concatenate %122, %121, %122 in 2 : vector<2x14x1x32xf32>, vector<2x14x12x32xf32>, vector<2x14x1x32xf32> -> vector<2x14x14x32xf32>
    %124 = vector.extract_strided_slice %123 {offsets = [0, 0, 0, 0], sizes = [2, 1, 14, 32], strides = [1, 1, 1, 1]} : vector<2x14x14x32xf32> to vector<2x1x14x32xf32>
    %125 = vector.extract_strided_slice %123 {offsets = [0, 3, 0, 0], sizes = [2, 1, 14, 32], strides = [1, 1, 1, 1]} : vector<2x14x14x32xf32> to vector<2x1x14x32xf32>
    %126 = vector.extract_strided_slice %123 {offsets = [0, 6, 0, 0], sizes = [2, 1, 14, 32], strides = [1, 1, 1, 1]} : vector<2x14x14x32xf32> to vector<2x1x14x32xf32>
    %127 = vector.extract_strided_slice %123 {offsets = [0, 9, 0, 0], sizes = [2, 1, 14, 32], strides = [1, 1, 1, 1]} : vector<2x14x14x32xf32> to vector<2x1x14x32xf32>
    %128 = tpu.concatenate %124, %125, %126, %127 in 1 : vector<2x1x14x32xf32>, vector<2x1x14x32xf32>, vector<2x1x14x32xf32>, vector<2x1x14x32xf32> -> vector<2x4x14x32xf32>
    %129 = vector.extract_strided_slice %128 {offsets = [0, 0, 0, 0], sizes = [2, 4, 1, 32], strides = [1, 1, 1, 1]} : vector<2x4x14x32xf32> to vector<2x4x1x32xf32>
    %130 = vector.extract_strided_slice %128 {offsets = [0, 0, 3, 0], sizes = [2, 4, 1, 32], strides = [1, 1, 1, 1]} : vector<2x4x14x32xf32> to vector<2x4x1x32xf32>
    %131 = vector.extract_strided_slice %128 {offsets = [0, 0, 6, 0], sizes = [2, 4, 1, 32], strides = [1, 1, 1, 1]} : vector<2x4x14x32xf32> to vector<2x4x1x32xf32>
    %132 = vector.extract_strided_slice %128 {offsets = [0, 0, 9, 0], sizes = [2, 4, 1, 32], strides = [1, 1, 1, 1]} : vector<2x4x14x32xf32> to vector<2x4x1x32xf32>
    %133 = tpu.concatenate %129, %130, %131, %132 in 2 : vector<2x4x1x32xf32>, vector<2x4x1x32xf32>, vector<2x4x1x32xf32>, vector<2x4x1x32xf32> -> vector<2x4x4x32xf32>
    %134 = vector.extract_strided_slice %128 {offsets = [0, 0, 1, 0], sizes = [2, 4, 1, 32], strides = [1, 1, 1, 1]} : vector<2x4x14x32xf32> to vector<2x4x1x32xf32>
    %135 = vector.extract_strided_slice %128 {offsets = [0, 0, 4, 0], sizes = [2, 4, 1, 32], strides = [1, 1, 1, 1]} : vector<2x4x14x32xf32> to vector<2x4x1x32xf32>
    %136 = vector.extract_strided_slice %128 {offsets = [0, 0, 7, 0], sizes = [2, 4, 1, 32], strides = [1, 1, 1, 1]} : vector<2x4x14x32xf32> to vector<2x4x1x32xf32>
    %137 = vector.extract_strided_slice %128 {offsets = [0, 0, 10, 0], sizes = [2, 4, 1, 32], strides = [1, 1, 1, 1]} : vector<2x4x14x32xf32> to vector<2x4x1x32xf32>
    %138 = tpu.concatenate %134, %135, %136, %137 in 2 : vector<2x4x1x32xf32>, vector<2x4x1x32xf32>, vector<2x4x1x32xf32>, vector<2x4x1x32xf32> -> vector<2x4x4x32xf32>
    %139 = vector.extract_strided_slice %128 {offsets = [0, 0, 2, 0], sizes = [2, 4, 1, 32], strides = [1, 1, 1, 1]} : vector<2x4x14x32xf32> to vector<2x4x1x32xf32>
    %140 = vector.extract_strided_slice %128 {offsets = [0, 0, 5, 0], sizes = [2, 4, 1, 32], strides = [1, 1, 1, 1]} : vector<2x4x14x32xf32> to vector<2x4x1x32xf32>
    %141 = vector.extract_strided_slice %128 {offsets = [0, 0, 8, 0], sizes = [2, 4, 1, 32], strides = [1, 1, 1, 1]} : vector<2x4x14x32xf32> to vector<2x4x1x32xf32>
    %142 = vector.extract_strided_slice %128 {offsets = [0, 0, 11, 0], sizes = [2, 4, 1, 32], strides = [1, 1, 1, 1]} : vector<2x4x14x32xf32> to vector<2x4x1x32xf32>
    %143 = tpu.concatenate %139, %140, %141, %142 in 2 : vector<2x4x1x32xf32>, vector<2x4x1x32xf32>, vector<2x4x1x32xf32>, vector<2x4x1x32xf32> -> vector<2x4x4x32xf32>
    %144 = vector.extract_strided_slice %128 {offsets = [0, 0, 3, 0], sizes = [2, 4, 1, 32], strides = [1, 1, 1, 1]} : vector<2x4x14x32xf32> to vector<2x4x1x32xf32>
    %145 = vector.extract_strided_slice %128 {offsets = [0, 0, 6, 0], sizes = [2, 4, 1, 32], strides = [1, 1, 1, 1]} : vector<2x4x14x32xf32> to vector<2x4x1x32xf32>
    %146 = vector.extract_strided_slice %128 {offsets = [0, 0, 9, 0], sizes = [2, 4, 1, 32], strides = [1, 1, 1, 1]} : vector<2x4x14x32xf32> to vector<2x4x1x32xf32>
    %147 = vector.extract_strided_slice %128 {offsets = [0, 0, 12, 0], sizes = [2, 4, 1, 32], strides = [1, 1, 1, 1]} : vector<2x4x14x32xf32> to vector<2x4x1x32xf32>
    %148 = tpu.concatenate %144, %145, %146, %147 in 2 : vector<2x4x1x32xf32>, vector<2x4x1x32xf32>, vector<2x4x1x32xf32>, vector<2x4x1x32xf32> -> vector<2x4x4x32xf32>
    %149 = vector.extract_strided_slice %123 {offsets = [0, 1, 0, 0], sizes = [2, 1, 14, 32], strides = [1, 1, 1, 1]} : vector<2x14x14x32xf32> to vector<2x1x14x32xf32>
    %150 = vector.extract_strided_slice %123 {offsets = [0, 4, 0, 0], sizes = [2, 1, 14, 32], strides = [1, 1, 1, 1]} : vector<2x14x14x32xf32> to vector<2x1x14x32xf32>
    %151 = vector.extract_strided_slice %123 {offsets = [0, 7, 0, 0], sizes = [2, 1, 14, 32], strides = [1, 1, 1, 1]} : vector<2x14x14x32xf32> to vector<2x1x14x32xf32>
    %152 = vector.extract_strided_slice %123 {offsets = [0, 10, 0, 0], sizes = [2, 1, 14, 32], strides = [1, 1, 1, 1]} : vector<2x14x14x32xf32> to vector<2x1x14x32xf32>
    %153 = tpu.concatenate %149, %150, %151, %152 in 1 : vector<2x1x14x32xf32>, vector<2x1x14x32xf32>, vector<2x1x14x32xf32>, vector<2x1x14x32xf32> -> vector<2x4x14x32xf32>
    %154 = vector.extract_strided_slice %153 {offsets = [0, 0, 0, 0], sizes = [2, 4, 1, 32], strides = [1, 1, 1, 1]} : vector<2x4x14x32xf32> to vector<2x4x1x32xf32>
    %155 = vector.extract_strided_slice %153 {offsets = [0, 0, 3, 0], sizes = [2, 4, 1, 32], strides = [1, 1, 1, 1]} : vector<2x4x14x32xf32> to vector<2x4x1x32xf32>
    %156 = vector.extract_strided_slice %153 {offsets = [0, 0, 6, 0], sizes = [2, 4, 1, 32], strides = [1, 1, 1, 1]} : vector<2x4x14x32xf32> to vector<2x4x1x32xf32>
    %157 = vector.extract_strided_slice %153 {offsets = [0, 0, 9, 0], sizes = [2, 4, 1, 32], strides = [1, 1, 1, 1]} : vector<2x4x14x32xf32> to vector<2x4x1x32xf32>
    %158 = tpu.concatenate %154, %155, %156, %157 in 2 : vector<2x4x1x32xf32>, vector<2x4x1x32xf32>, vector<2x4x1x32xf32>, vector<2x4x1x32xf32> -> vector<2x4x4x32xf32>
    %159 = vector.extract_strided_slice %153 {offsets = [0, 0, 1, 0], sizes = [2, 4, 1, 32], strides = [1, 1, 1, 1]} : vector<2x4x14x32xf32> to vector<2x4x1x32xf32>
    %160 = vector.extract_strided_slice %153 {offsets = [0, 0, 4, 0], sizes = [2, 4, 1, 32], strides = [1, 1, 1, 1]} : vector<2x4x14x32xf32> to vector<2x4x1x32xf32>
    %161 = vector.extract_strided_slice %153 {offsets = [0, 0, 7, 0], sizes = [2, 4, 1, 32], strides = [1, 1, 1, 1]} : vector<2x4x14x32xf32> to vector<2x4x1x32xf32>
    %162 = vector.extract_strided_slice %153 {offsets = [0, 0, 10, 0], sizes = [2, 4, 1, 32], strides = [1, 1, 1, 1]} : vector<2x4x14x32xf32> to vector<2x4x1x32xf32>
    %163 = tpu.concatenate %159, %160, %161, %162 in 2 : vector<2x4x1x32xf32>, vector<2x4x1x32xf32>, vector<2x4x1x32xf32>, vector<2x4x1x32xf32> -> vector<2x4x4x32xf32>
    %164 = vector.extract_strided_slice %153 {offsets = [0, 0, 2, 0], sizes = [2, 4, 1, 32], strides = [1, 1, 1, 1]} : vector<2x4x14x32xf32> to vector<2x4x1x32xf32>
    %165 = vector.extract_strided_slice %153 {offsets = [0, 0, 5, 0], sizes = [2, 4, 1, 32], strides = [1, 1, 1, 1]} : vector<2x4x14x32xf32> to vector<2x4x1x32xf32>
    %166 = vector.extract_strided_slice %153 {offsets = [0, 0, 8, 0], sizes = [2, 4, 1, 32], strides = [1, 1, 1, 1]} : vector<2x4x14x32xf32> to vector<2x4x1x32xf32>
    %167 = vector.extract_strided_slice %153 {offsets = [0, 0, 11, 0], sizes = [2, 4, 1, 32], strides = [1, 1, 1, 1]} : vector<2x4x14x32xf32> to vector<2x4x1x32xf32>
    %168 = tpu.concatenate %164, %165, %166, %167 in 2 : vector<2x4x1x32xf32>, vector<2x4x1x32xf32>, vector<2x4x1x32xf32>, vector<2x4x1x32xf32> -> vector<2x4x4x32xf32>
    %169 = vector.extract_strided_slice %153 {offsets = [0, 0, 3, 0], sizes = [2, 4, 1, 32], strides = [1, 1, 1, 1]} : vector<2x4x14x32xf32> to vector<2x4x1x32xf32>
    %170 = vector.extract_strided_slice %153 {offsets = [0, 0, 6, 0], sizes = [2, 4, 1, 32], strides = [1, 1, 1, 1]} : vector<2x4x14x32xf32> to vector<2x4x1x32xf32>
    %171 = vector.extract_strided_slice %153 {offsets = [0, 0, 9, 0], sizes = [2, 4, 1, 32], strides = [1, 1, 1, 1]} : vector<2x4x14x32xf32> to vector<2x4x1x32xf32>
    %172 = vector.extract_strided_slice %153 {offsets = [0, 0, 12, 0], sizes = [2, 4, 1, 32], strides = [1, 1, 1, 1]} : vector<2x4x14x32xf32> to vector<2x4x1x32xf32>
    %173 = tpu.concatenate %169, %170, %171, %172 in 2 : vector<2x4x1x32xf32>, vector<2x4x1x32xf32>, vector<2x4x1x32xf32>, vector<2x4x1x32xf32> -> vector<2x4x4x32xf32>
    %174 = vector.extract_strided_slice %123 {offsets = [0, 2, 0, 0], sizes = [2, 1, 14, 32], strides = [1, 1, 1, 1]} : vector<2x14x14x32xf32> to vector<2x1x14x32xf32>
    %175 = vector.extract_strided_slice %123 {offsets = [0, 5, 0, 0], sizes = [2, 1, 14, 32], strides = [1, 1, 1, 1]} : vector<2x14x14x32xf32> to vector<2x1x14x32xf32>
    %176 = vector.extract_strided_slice %123 {offsets = [0, 8, 0, 0], sizes = [2, 1, 14, 32], strides = [1, 1, 1, 1]} : vector<2x14x14x32xf32> to vector<2x1x14x32xf32>
    %177 = vector.extract_strided_slice %123 {offsets = [0, 11, 0, 0], sizes = [2, 1, 14, 32], strides = [1, 1, 1, 1]} : vector<2x14x14x32xf32> to vector<2x1x14x32xf32>
    %178 = tpu.concatenate %174, %175, %176, %177 in 1 : vector<2x1x14x32xf32>, vector<2x1x14x32xf32>, vector<2x1x14x32xf32>, vector<2x1x14x32xf32> -> vector<2x4x14x32xf32>
    %179 = vector.extract_strided_slice %178 {offsets = [0, 0, 0, 0], sizes = [2, 4, 1, 32], strides = [1, 1, 1, 1]} : vector<2x4x14x32xf32> to vector<2x4x1x32xf32>
    %180 = vector.extract_strided_slice %178 {offsets = [0, 0, 3, 0], sizes = [2, 4, 1, 32], strides = [1, 1, 1, 1]} : vector<2x4x14x32xf32> to vector<2x4x1x32xf32>
    %181 = vector.extract_strided_slice %178 {offsets = [0, 0, 6, 0], sizes = [2, 4, 1, 32], strides = [1, 1, 1, 1]} : vector<2x4x14x32xf32> to vector<2x4x1x32xf32>
    %182 = vector.extract_strided_slice %178 {offsets = [0, 0, 9, 0], sizes = [2, 4, 1, 32], strides = [1, 1, 1, 1]} : vector<2x4x14x32xf32> to vector<2x4x1x32xf32>
    %183 = tpu.concatenate %179, %180, %181, %182 in 2 : vector<2x4x1x32xf32>, vector<2x4x1x32xf32>, vector<2x4x1x32xf32>, vector<2x4x1x32xf32> -> vector<2x4x4x32xf32>
    %184 = vector.extract_strided_slice %178 {offsets = [0, 0, 1, 0], sizes = [2, 4, 1, 32], strides = [1, 1, 1, 1]} : vector<2x4x14x32xf32> to vector<2x4x1x32xf32>
    %185 = vector.extract_strided_slice %178 {offsets = [0, 0, 4, 0], sizes = [2, 4, 1, 32], strides = [1, 1, 1, 1]} : vector<2x4x14x32xf32> to vector<2x4x1x32xf32>
    %186 = vector.extract_strided_slice %178 {offsets = [0, 0, 7, 0], sizes = [2, 4, 1, 32], strides = [1, 1, 1, 1]} : vector<2x4x14x32xf32> to vector<2x4x1x32xf32>
    %187 = vector.extract_strided_slice %178 {offsets = [0, 0, 10, 0], sizes = [2, 4, 1, 32], strides = [1, 1, 1, 1]} : vector<2x4x14x32xf32> to vector<2x4x1x32xf32>
    %188 = tpu.concatenate %184, %185, %186, %187 in 2 : vector<2x4x1x32xf32>, vector<2x4x1x32xf32>, vector<2x4x1x32xf32>, vector<2x4x1x32xf32> -> vector<2x4x4x32xf32>
    %189 = vector.extract_strided_slice %178 {offsets = [0, 0, 2, 0], sizes = [2, 4, 1, 32], strides = [1, 1, 1, 1]} : vector<2x4x14x32xf32> to vector<2x4x1x32xf32>
    %190 = vector.extract_strided_slice %178 {offsets = [0, 0, 5, 0], sizes = [2, 4, 1, 32], strides = [1, 1, 1, 1]} : vector<2x4x14x32xf32> to vector<2x4x1x32xf32>
    %191 = vector.extract_strided_slice %178 {offsets = [0, 0, 8, 0], sizes = [2, 4, 1, 32], strides = [1, 1, 1, 1]} : vector<2x4x14x32xf32> to vector<2x4x1x32xf32>
    %192 = vector.extract_strided_slice %178 {offsets = [0, 0, 11, 0], sizes = [2, 4, 1, 32], strides = [1, 1, 1, 1]} : vector<2x4x14x32xf32> to vector<2x4x1x32xf32>
    %193 = tpu.concatenate %189, %190, %191, %192 in 2 : vector<2x4x1x32xf32>, vector<2x4x1x32xf32>, vector<2x4x1x32xf32>, vector<2x4x1x32xf32> -> vector<2x4x4x32xf32>
    %194 = vector.extract_strided_slice %178 {offsets = [0, 0, 3, 0], sizes = [2, 4, 1, 32], strides = [1, 1, 1, 1]} : vector<2x4x14x32xf32> to vector<2x4x1x32xf32>
    %195 = vector.extract_strided_slice %178 {offsets = [0, 0, 6, 0], sizes = [2, 4, 1, 32], strides = [1, 1, 1, 1]} : vector<2x4x14x32xf32> to vector<2x4x1x32xf32>
    %196 = vector.extract_strided_slice %178 {offsets = [0, 0, 9, 0], sizes = [2, 4, 1, 32], strides = [1, 1, 1, 1]} : vector<2x4x14x32xf32> to vector<2x4x1x32xf32>
    %197 = vector.extract_strided_slice %178 {offsets = [0, 0, 12, 0], sizes = [2, 4, 1, 32], strides = [1, 1, 1, 1]} : vector<2x4x14x32xf32> to vector<2x4x1x32xf32>
    %198 = tpu.concatenate %194, %195, %196, %197 in 2 : vector<2x4x1x32xf32>, vector<2x4x1x32xf32>, vector<2x4x1x32xf32>, vector<2x4x1x32xf32> -> vector<2x4x4x32xf32>
    %199 = vector.extract_strided_slice %123 {offsets = [0, 3, 0, 0], sizes = [2, 1, 14, 32], strides = [1, 1, 1, 1]} : vector<2x14x14x32xf32> to vector<2x1x14x32xf32>
    %200 = vector.extract_strided_slice %123 {offsets = [0, 6, 0, 0], sizes = [2, 1, 14, 32], strides = [1, 1, 1, 1]} : vector<2x14x14x32xf32> to vector<2x1x14x32xf32>
    %201 = vector.extract_strided_slice %123 {offsets = [0, 9, 0, 0], sizes = [2, 1, 14, 32], strides = [1, 1, 1, 1]} : vector<2x14x14x32xf32> to vector<2x1x14x32xf32>
    %202 = vector.extract_strided_slice %123 {offsets = [0, 12, 0, 0], sizes = [2, 1, 14, 32], strides = [1, 1, 1, 1]} : vector<2x14x14x32xf32> to vector<2x1x14x32xf32>
    %203 = tpu.concatenate %199, %200, %201, %202 in 1 : vector<2x1x14x32xf32>, vector<2x1x14x32xf32>, vector<2x1x14x32xf32>, vector<2x1x14x32xf32> -> vector<2x4x14x32xf32>
    %204 = vector.extract_strided_slice %203 {offsets = [0, 0, 0, 0], sizes = [2, 4, 1, 32], strides = [1, 1, 1, 1]} : vector<2x4x14x32xf32> to vector<2x4x1x32xf32>
    %205 = vector.extract_strided_slice %203 {offsets = [0, 0, 3, 0], sizes = [2, 4, 1, 32], strides = [1, 1, 1, 1]} : vector<2x4x14x32xf32> to vector<2x4x1x32xf32>
    %206 = vector.extract_strided_slice %203 {offsets = [0, 0, 6, 0], sizes = [2, 4, 1, 32], strides = [1, 1, 1, 1]} : vector<2x4x14x32xf32> to vector<2x4x1x32xf32>
    %207 = vector.extract_strided_slice %203 {offsets = [0, 0, 9, 0], sizes = [2, 4, 1, 32], strides = [1, 1, 1, 1]} : vector<2x4x14x32xf32> to vector<2x4x1x32xf32>
    %208 = tpu.concatenate %204, %205, %206, %207 in 2 : vector<2x4x1x32xf32>, vector<2x4x1x32xf32>, vector<2x4x1x32xf32>, vector<2x4x1x32xf32> -> vector<2x4x4x32xf32>
    %209 = vector.extract_strided_slice %203 {offsets = [0, 0, 1, 0], sizes = [2, 4, 1, 32], strides = [1, 1, 1, 1]} : vector<2x4x14x32xf32> to vector<2x4x1x32xf32>
    %210 = vector.extract_strided_slice %203 {offsets = [0, 0, 4, 0], sizes = [2, 4, 1, 32], strides = [1, 1, 1, 1]} : vector<2x4x14x32xf32> to vector<2x4x1x32xf32>
    %211 = vector.extract_strided_slice %203 {offsets = [0, 0, 7, 0], sizes = [2, 4, 1, 32], strides = [1, 1, 1, 1]} : vector<2x4x14x32xf32> to vector<2x4x1x32xf32>
    %212 = vector.extract_strided_slice %203 {offsets = [0, 0, 10, 0], sizes = [2, 4, 1, 32], strides = [1, 1, 1, 1]} : vector<2x4x14x32xf32> to vector<2x4x1x32xf32>
    %213 = tpu.concatenate %209, %210, %211, %212 in 2 : vector<2x4x1x32xf32>, vector<2x4x1x32xf32>, vector<2x4x1x32xf32>, vector<2x4x1x32xf32> -> vector<2x4x4x32xf32>
    %214 = vector.extract_strided_slice %203 {offsets = [0, 0, 2, 0], sizes = [2, 4, 1, 32], strides = [1, 1, 1, 1]} : vector<2x4x14x32xf32> to vector<2x4x1x32xf32>
    %215 = vector.extract_strided_slice %203 {offsets = [0, 0, 5, 0], sizes = [2, 4, 1, 32], strides = [1, 1, 1, 1]} : vector<2x4x14x32xf32> to vector<2x4x1x32xf32>
    %216 = vector.extract_strided_slice %203 {offsets = [0, 0, 8, 0], sizes = [2, 4, 1, 32], strides = [1, 1, 1, 1]} : vector<2x4x14x32xf32> to vector<2x4x1x32xf32>
    %217 = vector.extract_strided_slice %203 {offsets = [0, 0, 11, 0], sizes = [2, 4, 1, 32], strides = [1, 1, 1, 1]} : vector<2x4x14x32xf32> to vector<2x4x1x32xf32>
    %218 = tpu.concatenate %214, %215, %216, %217 in 2 : vector<2x4x1x32xf32>, vector<2x4x1x32xf32>, vector<2x4x1x32xf32>, vector<2x4x1x32xf32> -> vector<2x4x4x32xf32>
    %219 = vector.extract_strided_slice %203 {offsets = [0, 0, 3, 0], sizes = [2, 4, 1, 32], strides = [1, 1, 1, 1]} : vector<2x4x14x32xf32> to vector<2x4x1x32xf32>
    %220 = vector.extract_strided_slice %203 {offsets = [0, 0, 6, 0], sizes = [2, 4, 1, 32], strides = [1, 1, 1, 1]} : vector<2x4x14x32xf32> to vector<2x4x1x32xf32>
    %221 = vector.extract_strided_slice %203 {offsets = [0, 0, 9, 0], sizes = [2, 4, 1, 32], strides = [1, 1, 1, 1]} : vector<2x4x14x32xf32> to vector<2x4x1x32xf32>
    %222 = vector.extract_strided_slice %203 {offsets = [0, 0, 12, 0], sizes = [2, 4, 1, 32], strides = [1, 1, 1, 1]} : vector<2x4x14x32xf32> to vector<2x4x1x32xf32>
    %223 = tpu.concatenate %219, %220, %221, %222 in 2 : vector<2x4x1x32xf32>, vector<2x4x1x32xf32>, vector<2x4x1x32xf32>, vector<2x4x1x32xf32> -> vector<2x4x4x32xf32>
    %224 = tpu.concatenate %133, %138, %143, %148, %158, %163, %168, %173, %183, %188, %193, %198, %208, %213, %218, %223 in 3 : vector<2x4x4x32xf32>, vector<2x4x4x32xf32>, vector<2x4x4x32xf32>, vector<2x4x4x32xf32>, vector<2x4x4x32xf32>, vector<2x4x4x32xf32>, vector<2x4x4x32xf32>, vector<2x4x4x32xf32>, vector<2x4x4x32xf32>, vector<2x4x4x32xf32>, vector<2x4x4x32xf32>, vector<2x4x4x32xf32>, vector<2x4x4x32xf32>, vector<2x4x4x32xf32>, vector<2x4x4x32xf32>, vector<2x4x4x32xf32> -> vector<2x4x4x512xf32>
    %225 = vector.shape_cast %224 : vector<2x4x4x512xf32> to vector<32x512xf32>
    %c0_25 = arith.constant 0 : index
    %c0_26 = arith.constant 0 : index
    %226 = vector.load %arg3[%c0_25, %c0_26] : memref<512x64xf32, #tpu.memory_space<vmem>>, vector<512x64xf32>
    %cst_27 = arith.constant dense<0.000000e+00> : vector<32x64xf32>
    %227 = tpu.matmul %225, %226, %cst_27 {dimension_numbers = #tpu.dot_dimension_numbers<[1], [0], [0], [1], [0, 0, 1, 1], [], []>} : vector<32x512xf32>, vector<512x64xf32>, vector<32x64xf32> -> vector<32x64xf32>
    %c0_28 = arith.constant 0 : index
    %c0_29 = arith.constant 0 : index
    %228 = vector.load %arg4[%c0_28, %c0_29] : memref<1x64xf32, #tpu.memory_space<vmem>>, vector<1x64xf32>
    %229 = vector.broadcast %228 : vector<1x64xf32> to vector<32x64xf32>
    %230 = arith.addf %227, %229 : vector<32x64xf32>
    %cst_30 = arith.constant 0.000000e+00 : f32
    %231 = vector.broadcast %cst_30 : f32 to vector<32x64xf32>
    %232 = arith.maximumf %230, %231 : vector<32x64xf32>
    %233 = vector.shape_cast %232 : vector<32x64xf32> to vector<2x4x4x64xf32>
    %234 = vector.extract_strided_slice %233 {offsets = [0, 0, 0, 0], sizes = [2, 1, 1, 64], strides = [1, 1, 1, 1]} : vector<2x4x4x64xf32> to vector<2x1x1x64xf32>
    %235 = vector.extract_strided_slice %233 {offsets = [0, 0, 1, 0], sizes = [2, 1, 1, 64], strides = [1, 1, 1, 1]} : vector<2x4x4x64xf32> to vector<2x1x1x64xf32>
    %236 = arith.maximumf %234, %235 : vector<2x1x1x64xf32>
    %237 = vector.extract_strided_slice %233 {offsets = [0, 1, 0, 0], sizes = [2, 1, 1, 64], strides = [1, 1, 1, 1]} : vector<2x4x4x64xf32> to vector<2x1x1x64xf32>
    %238 = vector.extract_strided_slice %233 {offsets = [0, 1, 1, 0], sizes = [2, 1, 1, 64], strides = [1, 1, 1, 1]} : vector<2x4x4x64xf32> to vector<2x1x1x64xf32>
    %239 = arith.maximumf %237, %238 : vector<2x1x1x64xf32>
    %240 = arith.maximumf %236, %239 : vector<2x1x1x64xf32>
    %241 = vector.shape_cast %240 : vector<2x1x1x64xf32> to vector<2x64xf32>
    %242 = vector.extract_strided_slice %233 {offsets = [0, 0, 2, 0], sizes = [2, 1, 1, 64], strides = [1, 1, 1, 1]} : vector<2x4x4x64xf32> to vector<2x1x1x64xf32>
    %243 = vector.extract_strided_slice %233 {offsets = [0, 0, 3, 0], sizes = [2, 1, 1, 64], strides = [1, 1, 1, 1]} : vector<2x4x4x64xf32> to vector<2x1x1x64xf32>
    %244 = arith.maximumf %242, %243 : vector<2x1x1x64xf32>
    %245 = vector.extract_strided_slice %233 {offsets = [0, 1, 2, 0], sizes = [2, 1, 1, 64], strides = [1, 1, 1, 1]} : vector<2x4x4x64xf32> to vector<2x1x1x64xf32>
    %246 = vector.extract_strided_slice %233 {offsets = [0, 1, 3, 0], sizes = [2, 1, 1, 64], strides = [1, 1, 1, 1]} : vector<2x4x4x64xf32> to vector<2x1x1x64xf32>
    %247 = arith.maximumf %245, %246 : vector<2x1x1x64xf32>
    %248 = arith.maximumf %244, %247 : vector<2x1x1x64xf32>
    %249 = vector.shape_cast %248 : vector<2x1x1x64xf32> to vector<2x64xf32>
    %250 = vector.extract_strided_slice %233 {offsets = [0, 2, 0, 0], sizes = [2, 1, 1, 64], strides = [1, 1, 1, 1]} : vector<2x4x4x64xf32> to vector<2x1x1x64xf32>
    %251 = vector.extract_strided_slice %233 {offsets = [0, 2, 1, 0], sizes = [2, 1, 1, 64], strides = [1, 1, 1, 1]} : vector<2x4x4x64xf32> to vector<2x1x1x64xf32>
    %252 = arith.maximumf %250, %251 : vector<2x1x1x64xf32>
    %253 = vector.extract_strided_slice %233 {offsets = [0, 3, 0, 0], sizes = [2, 1, 1, 64], strides = [1, 1, 1, 1]} : vector<2x4x4x64xf32> to vector<2x1x1x64xf32>
    %254 = vector.extract_strided_slice %233 {offsets = [0, 3, 1, 0], sizes = [2, 1, 1, 64], strides = [1, 1, 1, 1]} : vector<2x4x4x64xf32> to vector<2x1x1x64xf32>
    %255 = arith.maximumf %253, %254 : vector<2x1x1x64xf32>
    %256 = arith.maximumf %252, %255 : vector<2x1x1x64xf32>
    %257 = vector.shape_cast %256 : vector<2x1x1x64xf32> to vector<2x64xf32>
    %258 = vector.extract_strided_slice %233 {offsets = [0, 2, 2, 0], sizes = [2, 1, 1, 64], strides = [1, 1, 1, 1]} : vector<2x4x4x64xf32> to vector<2x1x1x64xf32>
    %259 = vector.extract_strided_slice %233 {offsets = [0, 2, 3, 0], sizes = [2, 1, 1, 64], strides = [1, 1, 1, 1]} : vector<2x4x4x64xf32> to vector<2x1x1x64xf32>
    %260 = arith.maximumf %258, %259 : vector<2x1x1x64xf32>
    %261 = vector.extract_strided_slice %233 {offsets = [0, 3, 2, 0], sizes = [2, 1, 1, 64], strides = [1, 1, 1, 1]} : vector<2x4x4x64xf32> to vector<2x1x1x64xf32>
    %262 = vector.extract_strided_slice %233 {offsets = [0, 3, 3, 0], sizes = [2, 1, 1, 64], strides = [1, 1, 1, 1]} : vector<2x4x4x64xf32> to vector<2x1x1x64xf32>
    %263 = arith.maximumf %261, %262 : vector<2x1x1x64xf32>
    %264 = arith.maximumf %260, %263 : vector<2x1x1x64xf32>
    %265 = vector.shape_cast %264 : vector<2x1x1x64xf32> to vector<2x64xf32>
    %266 = tpu.concatenate %241, %249, %257, %265 in 1 : vector<2x64xf32>, vector<2x64xf32>, vector<2x64xf32>, vector<2x64xf32> -> vector<2x256xf32>
    %c0_31 = arith.constant 0 : index
    %c0_32 = arith.constant 0 : index
    %267 = vector.load %arg5[%c0_31, %c0_32] : memref<256x1024xf32, #tpu.memory_space<vmem>>, vector<256x1024xf32>
    %cst_33 = arith.constant dense<0.000000e+00> : vector<2x1024xf32>
    %268 = tpu.matmul %266, %267, %cst_33 {dimension_numbers = #tpu.dot_dimension_numbers<[1], [0], [0], [1], [0, 0, 1, 1], [], []>} : vector<2x256xf32>, vector<256x1024xf32>, vector<2x1024xf32> -> vector<2x1024xf32>
    %c0_34 = arith.constant 0 : index
    %c0_35 = arith.constant 0 : index
    %269 = vector.load %arg6[%c0_34, %c0_35] : memref<1x1024xf32, #tpu.memory_space<vmem>>, vector<1x1024xf32>
    %270 = vector.broadcast %269 : vector<1x1024xf32> to vector<2x1024xf32>
    %271 = arith.addf %268, %270 : vector<2x1024xf32>
    %cst_36 = arith.constant 0.000000e+00 : f32
    %272 = vector.broadcast %cst_36 : f32 to vector<2x1024xf32>
    %273 = arith.maximumf %271, %272 : vector<2x1024xf32>
    %c0_37 = arith.constant 0 : index
    %c0_38 = arith.constant 0 : index
    %274 = vector.load %arg7[%c0_37, %c0_38] : memref<1024x128xf32, #tpu.memory_space<vmem>>, vector<1024x128xf32>
    %cst_39 = arith.constant dense<0.000000e+00> : vector<2x128xf32>
    %275 = tpu.matmul %273, %274, %cst_39 {dimension_numbers = #tpu.dot_dimension_numbers<[1], [0], [0], [1], [0, 0, 1, 1], [], []>} : vector<2x1024xf32>, vector<1024x128xf32>, vector<2x128xf32> -> vector<2x128xf32>
    %c0_40 = arith.constant 0 : index
    %c0_41 = arith.constant 0 : index
    %276 = vector.load %arg8[%c0_40, %c0_41] : memref<1x128xf32, #tpu.memory_space<vmem>>, vector<1x128xf32>
    %277 = vector.broadcast %276 : vector<1x128xf32> to vector<2x128xf32>
    %278 = arith.addf %275, %277 : vector<2x128xf32>
    %279 = vector.extract_strided_slice %278 {offsets = [0, 0], sizes = [2, 10], strides = [1, 1]} : vector<2x128xf32> to vector<2x10xf32>
    %c0_42 = arith.constant 0 : index
    %c0_43 = arith.constant 0 : index
    %280 = vector.load %arg9[%c0_42, %c0_43] : memref<2x10xf32, #tpu.memory_space<vmem>>, vector<2x10xf32>
    tpu.vector_store %arg9[%c0_42, %c0_43], %279 {strides = array<i32>} : memref<2x10xf32, #tpu.memory_space<vmem>>, vector<2x10xf32>,
    %cst_44 = arith.constant dense<0xFF800000> : vector<2xf32>
    %281 = vector.multi_reduction <maximumf>, %278, %cst_44 [1] : vector<2x128xf32> to vector<2xf32>
    %282 = vector.shape_cast %281 : vector<2xf32> to vector<2x1xf32>
    %283 = vector.broadcast %282 : vector<2x1xf32> to vector<2x128xf32>
    %284 = arith.subf %278, %283 : vector<2x128xf32>
    %285 = math.exp %284 : vector<2x128xf32>
    %cst_45 = arith.constant dense<0.000000e+00> : vector<2xf32>
    %286 = vector.multi_reduction <add>, %285, %cst_45 [1] : vector<2x128xf32> to vector<2xf32>
    %287 = vector.shape_cast %286 : vector<2xf32> to vector<2x1xf32>
    %288 = tpu.reciprocal %287 : vector<2x1xf32> -> vector<2x1xf32>
    %289 = vector.broadcast %288 : vector<2x1xf32> to vector<2x128xf32>
    %290 = arith.mulf %285, %289 : vector<2x128xf32>
    %291 = vector.extract_strided_slice %290 {offsets = [0, 0], sizes = [2, 10], strides = [1, 1]} : vector<2x128xf32> to vector<2x10xf32>
    %c0_46 = arith.constant 0 : index
    %c0_47 = arith.constant 0 : index
    %292 = vector.load %arg10[%c0_46, %c0_47] : memref<2x10xf32, #tpu.memory_space<vmem>>, vector<2x10xf32>
    tpu.vector_store %arg10[%c0_46, %c0_47], %291 {strides = array<i32>} : memref<2x10xf32, #tpu.memory_space<vmem>>, vector<2x10xf32>,
    return
  }
}

</mosaic_0001>

<llo_original>
// kernel: net_forward.1
$region0: #{net_forward.1}
  #allocation0 [shape = 'u32[]', space=smem, size = 0x4, offset = 0x4, fixed_abs, tag = 'smem constant byte address 0x4 - core index']
  #allocation1 [shape = 'u32[144,128]{1,0:T(1,128)}', space=vmem, size = 0x12000, scoped, tag = 'internal scratch']
  %s0 = inlined_call_operand.vmem [shape: f32[2,12,12,16], index: 0, kind: input, shape index: {}]
  %s1 = inlined_call_operand.vmem [shape: f32[16,32], index: 1, kind: input, shape index: {}]
  %s2 = inlined_call_operand.vmem [shape: f32[1,32], index: 2, kind: input, shape index: {}]
  %s3 = inlined_call_operand.vmem [shape: f32[512,64], index: 3, kind: input, shape index: {}]
  %s4 = inlined_call_operand.vmem [shape: f32[1,64], index: 4, kind: input, shape index: {}]
  %s5 = inlined_call_operand.vmem [shape: f32[256,1024], index: 5, kind: input, shape index: {}]
  %s6 = inlined_call_operand.vmem [shape: f32[1,1024], index: 6, kind: input, shape index: {}]
  %s7 = inlined_call_operand.vmem [shape: f32[1024,128], index: 7, kind: input, shape index: {}]
  %s8 = inlined_call_operand.vmem [shape: f32[1,128], index: 8, kind: input, shape index: {}]
  %s9 = inlined_call_operand.hbm [shape: f32[2,10], index: 9, kind: output, shape index: {0}]
  %s10 = inlined_call_operand.hbm [shape: f32[2,10], index: 10, kind: output, shape index: {1}]
  %11 = xla_tuple %s9, %s10
  %s12 = sld [smem:[#allocation0]]
  $region54: #{net_forward.1} parent=0
    _
  %s14 = ssub.s32 1, %s12
  %s15 = scalar_select 0, %s14, %s12
  $region1: #{net_forward.1} parent=0
    #allocation2 [shape = 'u8[1024]{0}', space=vmem, size = 0x400, scoped, tag = 'output window, operand 0, single buffered']
    #allocation3 [shape = 's32[1]{0}', space=sflag, size = 0x4, scoped, tag = 'scoped memory for net_forward.1']
    #allocation4 [shape = 'u8[1024]{0}', space=vmem, size = 0x400, scoped, tag = 'output window, operand 1, single buffered']
    #allocation5 [shape = 's32[1]{0}', space=sflag, size = 0x4, scoped, tag = 'scoped memory for net_forward.1']
    %16 = vsyncpa [#allocation3], 0
    %17 = vsyncpa [#allocation5], 0
    // Predicated region
    $region2: #{net_forward.1} parent=1 // pred_check
      _
    $region3: #{net_forward.1} parent=1 // pred_check_branch
      %19 = sbr.rel (0) target = $region5
    $region4: #{net_forward.1} parent=1 // pred_region
      _
    $region5: #{net_forward.1} parent=1 // pred_fallthru
      _
    // Predicated region
    $region6: #{net_forward.1} parent=1 // pred_check
      _
    $region7: #{net_forward.1} parent=1 // pred_check_branch
      %21 = sbr.rel (0) target = $region9
    $region8: #{net_forward.1} parent=1 // pred_region
      _
    $region9: #{net_forward.1} parent=1 // pred_fallthru
      _
    // Predicated region
    $region10: #{net_forward.1} parent=1 // pred_check
      _
    $region11: #{net_forward.1} parent=1 // pred_check_branch
      %23 = sbr.rel (0) target = $region13
    $region12: #{net_forward.1} parent=1 // pred_region
      _
    $region13: #{net_forward.1} parent=1 // pred_fallthru
      _
    // Predicated region
    $region14: #{net_forward.1} parent=1 // pred_check
      _
    $region15: #{net_forward.1} parent=1 // pred_check_branch
      %25 = sbr.rel (0) target = $region17
    $region16: #{net_forward.1} parent=1 // pred_region
      _
    $region17: #{net_forward.1} parent=1 // pred_fallthru
      _
    // Predicated region
    $region18: #{net_forward.1} parent=1 // pred_check
      _
    $region19: #{net_forward.1} parent=1 // pred_check_branch
      %27 = sbr.rel (0) target = $region21
    $region20: #{net_forward.1} parent=1 // pred_region
      _
    $region21: #{net_forward.1} parent=1 // pred_fallthru
      _
    // Predicated region
    $region22: #{net_forward.1} parent=1 // pred_check
      _
    $region23: #{net_forward.1} parent=1 // pred_check_branch
      %29 = sbr.rel (0) target = $region25
    $region24: #{net_forward.1} parent=1 // pred_region
      _
    $region25: #{net_forward.1} parent=1 // pred_fallthru
      _
    // Predicated region
    $region26: #{net_forward.1} parent=1 // pred_check
      _
    $region27: #{net_forward.1} parent=1 // pred_check_branch
      %31 = sbr.rel (0) target = $region29
    $region28: #{net_forward.1} parent=1 // pred_region
      _
    $region29: #{net_forward.1} parent=1 // pred_fallthru
      _
    // Predicated region
    $region30: #{net_forward.1} parent=1 // pred_check
      _
    $region31: #{net_forward.1} parent=1 // pred_check_branch
      %33 = sbr.rel (0) target = $region33
    $region32: #{net_forward.1} parent=1 // pred_region
      _
    $region33: #{net_forward.1} parent=1 // pred_fallthru
      _
    // Predicated region
    $region34: #{net_forward.1} parent=1 // pred_check
      _
    $region35: #{net_forward.1} parent=1 // pred_check_branch
      %35 = sbr.rel (0) target = $region37
    $region36: #{net_forward.1} parent=1 // pred_region
      _
    $region37: #{net_forward.1} parent=1 // pred_fallthru
      _
    %v36 = vld [vmem:[%s0] sm:$0xff]
    %v37 = vld [vmem:[%s0 + $0x8] sm:$0xf]
    %v38 = vld [vmem:[%s0 + $0x10] sm:$0xff]
    %v39 = vld [vmem:[%s0 + $0x18] sm:$0xf]
    %v40 = vld [vmem:[%s0 + $0x20] sm:$0xff]
    %v41 = vld [vmem:[%s0 + $0x28] sm:$0xf]
    %v42 = vld [vmem:[%s0 + $0x30] sm:$0xff]
    %v43 = vld [vmem:[%s0 + $0x38] sm:$0xf]
    %v44 = vld [vmem:[%s0 + $0x40] sm:$0xff]
    %v45 = vld [vmem:[%s0 + $0x48] sm:$0xf]
    %v46 = vld [vmem:[%s0 + $0x50] sm:$0xff]
    %v47 = vld [vmem:[%s0 + $0x58] sm:$0xf]
    %v48 = vld [vmem:[%s0 + $0x60] sm:$0xff]
    %v49 = vld [vmem:[%s0 + $0x68] sm:$0xf]
    %v50 = vld [vmem:[%s0 + $0x70] sm:$0xff]
    %v51 = vld [vmem:[%s0 + $0x78] sm:$0xf]
    %v52 = vld [vmem:[%s0 + $0x80] sm:$0xff]
    %v53 = vld [vmem:[%s0 + $0x88] sm:$0xf]
    %v54 = vld [vmem:[%s0 + $0x90] sm:$0xff]
    %v55 = vld [vmem:[%s0 + $0x98] sm:$0xf]
    %v56 = vld [vmem:[%s0 + $0xa0] sm:$0xff]
    %v57 = vld [vmem:[%s0 + $0xa8] sm:$0xf]
    %v58 = vld [vmem:[%s0 + $0xb0] sm:$0xff]
    %v59 = vld [vmem:[%s0 + $0xb8] sm:$0xf]
    %v60 = vld [vmem:[%s0 + $0xc0] sm:$0xff]
    %v61 = vld [vmem:[%s0 + $0xc8] sm:$0xf]
    %v62 = vld [vmem:[%s0 + $0xd0] sm:$0xff]
    %v63 = vld [vmem:[%s0 + $0xd8] sm:$0xf]
    %v64 = vld [vmem:[%s0 + $0xe0] sm:$0xff]
    %v65 = vld [vmem:[%s0 + $0xe8] sm:$0xf]
    %v66 = vld [vmem:[%s0 + $0xf0] sm:$0xff]
    %v67 = vld [vmem:[%s0 + $0xf8] sm:$0xf]
    %v68 = vld [vmem:[%s0 + $0x100] sm:$0xff]
    %v69 = vld [vmem:[%s0 + $0x108] sm:$0xf]
    %v70 = vld [vmem:[%s0 + $0x110] sm:$0xff]
    %v71 = vld [vmem:[%s0 + $0x118] sm:$0xf]
    %v72 = vld [vmem:[%s0 + $0x120] sm:$0xff]
    %v73 = vld [vmem:[%s0 + $0x128] sm:$0xf]
    %v74 = vld [vmem:[%s0 + $0x130] sm:$0xff]
    %v75 = vld [vmem:[%s0 + $0x138] sm:$0xf]
    %v76 = vld [vmem:[%s0 + $0x140] sm:$0xff]
    %v77 = vld [vmem:[%s0 + $0x148] sm:$0xf]
    %v78 = vld [vmem:[%s0 + $0x150] sm:$0xff]
    %v79 = vld [vmem:[%s0 + $0x158] sm:$0xf]
    %v80 = vld [vmem:[%s0 + $0x160] sm:$0xff]
    %v81 = vld [vmem:[%s0 + $0x168] sm:$0xf]
    %v82 = vld [vmem:[%s0 + $0x170] sm:$0xff]
    %v83 = vld [vmem:[%s0 + $0x178] sm:$0xf]
    %v84 = vld [vmem:[%s1] sm:$0x1]
    %86 = vset.pattern.permute.xlu0 0
    %87 = vperm.xlu0 %86, %v36
    %v88 = vpop.permute.xlu0 %87
    %91 = vset.pattern.permute.xlu0 0
    %92 = vperm.xlu0 %91, %v37
    %v93 = vpop.permute.xlu0 %92
    %96 = vset.pattern.permute.xlu0 0
    %97 = vperm.xlu0 %96, %v38
    %v98 = vpop.permute.xlu0 %97
    %101 = vset.pattern.permute.xlu0 0
    %102 = vperm.xlu0 %101, %v39
    %v103 = vpop.permute.xlu0 %102
    %106 = vset.pattern.permute.xlu0 0
    %107 = vperm.xlu0 %106, %v40
    %v108 = vpop.permute.xlu0 %107
    %111 = vset.pattern.permute.xlu0 0
    %112 = vperm.xlu0 %111, %v41
    %v113 = vpop.permute.xlu0 %112
    %116 = vset.pattern.permute.xlu0 0
    %117 = vperm.xlu0 %116, %v42
    %v118 = vpop.permute.xlu0 %117
    %121 = vset.pattern.permute.xlu0 0
    %122 = vperm.xlu0 %121, %v43
    %v123 = vpop.permute.xlu0 %122
    %126 = vset.pattern.permute.xlu0 0
    %127 = vperm.xlu0 %126, %v44
    %v128 = vpop.permute.xlu0 %127
    %131 = vset.pattern.permute.xlu0 0
    %132 = vperm.xlu0 %131, %v45
    %v133 = vpop.permute.xlu0 %132
    %136 = vset.pattern.permute.xlu0 0
    %137 = vperm.xlu0 %136, %v46
    %v138 = vpop.permute.xlu0 %137
    %141 = vset.pattern.permute.xlu0 0
    %142 = vperm.xlu0 %141, %v47
    %v143 = vpop.permute.xlu0 %142
    %146 = vset.pattern.permute.xlu0 0
    %147 = vperm.xlu0 %146, %v48
    %v148 = vpop.permute.xlu0 %147
    %151 = vset.pattern.permute.xlu0 0
    %152 = vperm.xlu0 %151, %v49
    %v153 = vpop.permute.xlu0 %152
    %156 = vset.pattern.permute.xlu0 0
    %157 = vperm.xlu0 %156, %v50
    %v158 = vpop.permute.xlu0 %157
    %161 = vset.pattern.permute.xlu0 0
    %162 = vperm.xlu0 %161, %v51
    %v163 = vpop.permute.xlu0 %162
    %166 = vset.pattern.permute.xlu0 0
    %167 = vperm.xlu0 %166, %v52
    %v168 = vpop.permute.xlu0 %167
    %171 = vset.pattern.permute.xlu0 0
    %172 = vperm.xlu0 %171, %v53
    %v173 = vpop.permute.xlu0 %172
    %176 = vset.pattern.permute.xlu0 0
    %177 = vperm.xlu0 %176, %v54
    %v178 = vpop.permute.xlu0 %177
    %181 = vset.pattern.permute.xlu0 0
    %182 = vperm.xlu0 %181, %v55
    %v183 = vpop.permute.xlu0 %182
    %186 = vset.pattern.permute.xlu0 0
    %187 = vperm.xlu0 %186, %v56
    %v188 = vpop.permute.xlu0 %187
    %191 = vset.pattern.permute.xlu0 0
    %192 = vperm.xlu0 %191, %v57
    %v193 = vpop.permute.xlu0 %192
    %196 = vset.pattern.permute.xlu0 0
    %197 = vperm.xlu0 %196, %v58
    %v198 = vpop.permute.xlu0 %197
    %201 = vset.pattern.permute.xlu0 0
    %202 = vperm.xlu0 %201, %v59
    %v203 = vpop.permute.xlu0 %202
    %206 = vset.pattern.permute.xlu0 0
    %207 = vperm.xlu0 %206, %v60
    %v208 = vpop.permute.xlu0 %207
    %211 = vset.pattern.permute.xlu0 0
    %212 = vperm.xlu0 %211, %v61
    %v213 = vpop.permute.xlu0 %212
    %216 = vset.pattern.permute.xlu0 0
    %217 = vperm.xlu0 %216, %v62
    %v218 = vpop.permute.xlu0 %217
    %221 = vset.pattern.permute.xlu0 0
    %222 = vperm.xlu0 %221, %v63
    %v223 = vpop.permute.xlu0 %222
    %226 = vset.pattern.permute.xlu0 0
    %227 = vperm.xlu0 %226, %v64
    %v228 = vpop.permute.xlu0 %227
    %231 = vset.pattern.permute.xlu0 0
    %232 = vperm.xlu0 %231, %v65
    %v233 = vpop.permute.xlu0 %232
    %236 = vset.pattern.permute.xlu0 0
    %237 = vperm.xlu0 %236, %v66
    %v238 = vpop.permute.xlu0 %237
    %241 = vset.pattern.permute.xlu0 0
    %242 = vperm.xlu0 %241, %v67
    %v243 = vpop.permute.xlu0 %242
    %246 = vset.pattern.permute.xlu0 0
    %247 = vperm.xlu0 %246, %v68
    %v248 = vpop.permute.xlu0 %247
    %251 = vset.pattern.permute.xlu0 0
    %252 = vperm.xlu0 %251, %v69
    %v253 = vpop.permute.xlu0 %252
    %256 = vset.pattern.permute.xlu0 0
    %257 = vperm.xlu0 %256, %v70
    %v258 = vpop.permute.xlu0 %257
    %261 = vset.pattern.permute.xlu0 0
    %262 = vperm.xlu0 %261, %v71
    %v263 = vpop.permute.xlu0 %262
    %266 = vset.pattern.permute.xlu0 0
    %267 = vperm.xlu0 %266, %v72
    %v268 = vpop.permute.xlu0 %267
    %271 = vset.pattern.permute.xlu0 0
    %272 = vperm.xlu0 %271, %v73
    %v273 = vpop.permute.xlu0 %272
    %276 = vset.pattern.permute.xlu0 0
    %277 = vperm.xlu0 %276, %v74
    %v278 = vpop.permute.xlu0 %277
    %281 = vset.pattern.permute.xlu0 0
    %282 = vperm.xlu0 %281, %v75
    %v283 = vpop.permute.xlu0 %282
    %286 = vset.pattern.permute.xlu0 0
    %287 = vperm.xlu0 %286, %v76
    %v288 = vpop.permute.xlu0 %287
    %291 = vset.pattern.permute.xlu0 0
    %292 = vperm.xlu0 %291, %v77
    %v293 = vpop.permute.xlu0 %292
    %296 = vset.pattern.permute.xlu0 0
    %297 = vperm.xlu0 %296, %v78
    %v298 = vpop.permute.xlu0 %297
    %301 = vset.pattern.permute.xlu0 0
    %302 = vperm.xlu0 %301, %v79
    %v303 = vpop.permute.xlu0 %302
    %306 = vset.pattern.permute.xlu0 0
    %307 = vperm.xlu0 %306, %v80
    %v308 = vpop.permute.xlu0 %307
    %311 = vset.pattern.permute.xlu0 0
    %312 = vperm.xlu0 %311, %v81
    %v313 = vpop.permute.xlu0 %312
    %316 = vset.pattern.permute.xlu0 0
    %317 = vperm.xlu0 %316, %v82
    %v318 = vpop.permute.xlu0 %317
    %321 = vset.pattern.permute.xlu0 0
    %322 = vperm.xlu0 %321, %v83
    %v323 = vpop.permute.xlu0 %322
    %v325 = vlaneseq
    %v326 = vshrl.u32 %v325, 7
    %v327 = vsub.s32 0, %v326
    %v328 = vrot.slane %v84, %v327
    %v329 = vmul.f32 %v88, %v328
    %v330 = vmul.f32 %v93, %v328
    %v331 = vmul.f32 %v98, %v328
    %v332 = vmul.f32 %v103, %v328
    %v333 = vmul.f32 %v108, %v328
    %v334 = vmul.f32 %v113, %v328
    %v335 = vmul.f32 %v118, %v328
    %v336 = vmul.f32 %v123, %v328
    %v337 = vmul.f32 %v128, %v328
    %v338 = vmul.f32 %v133, %v328
    %v339 = vmul.f32 %v138, %v328
    %v340 = vmul.f32 %v143, %v328
    %v341 = vmul.f32 %v148, %v328
    %v342 = vmul.f32 %v153, %v328
    %v343 = vmul.f32 %v158, %v328
    %v344 = vmul.f32 %v163, %v328
    %v345 = vmul.f32 %v168, %v328
    %v346 = vmul.f32 %v173, %v328
    %v347 = vmul.f32 %v178, %v328
    %v348 = vmul.f32 %v183, %v328
    %v349 = vmul.f32 %v188, %v328
    %v350 = vmul.f32 %v193, %v328
    %v351 = vmul.f32 %v198, %v328
    %v352 = vmul.f32 %v203, %v328
    %v353 = vmul.f32 %v208, %v328
    %v354 = vmul.f32 %v213, %v328
    %v355 = vmul.f32 %v218, %v328
    %v356 = vmul.f32 %v223, %v328
    %v357 = vmul.f32 %v228, %v328
    %v358 = vmul.f32 %v233, %v328
    %v359 = vmul.f32 %v238, %v328
    %v360 = vmul.f32 %v243, %v328
    %v361 = vmul.f32 %v248, %v328
    %v362 = vmul.f32 %v253, %v328
    %v363 = vmul.f32 %v258, %v328
    %v364 = vmul.f32 %v263, %v328
    %v365 = vmul.f32 %v268, %v328
    %v366 = vmul.f32 %v273, %v328
    %v367 = vmul.f32 %v278, %v328
    %v368 = vmul.f32 %v283, %v328
    %v369 = vmul.f32 %v288, %v328
    %v370 = vmul.f32 %v293, %v328
    %v371 = vmul.f32 %v298, %v328
    %v372 = vmul.f32 %v303, %v328
    %v373 = vmul.f32 %v308, %v328
    %v374 = vmul.f32 %v313, %v328
    %v375 = vmul.f32 %v318, %v328
    %v376 = vmul.f32 %v323, %v328
    %v377 = vadd.f32 %v329, 0.0
    %v378 = vadd.f32 %v330, 0.0
    %v379 = vadd.f32 %v331, 0.0
    %v380 = vadd.f32 %v332, 0.0
    %v381 = vadd.f32 %v333, 0.0
    %v382 = vadd.f32 %v334, 0.0
    %v383 = vadd.f32 %v335, 0.0
    %v384 = vadd.f32 %v336, 0.0
    %v385 = vadd.f32 %v337, 0.0
    %v386 = vadd.f32 %v338, 0.0
    %v387 = vadd.f32 %v339, 0.0
    %v388 = vadd.f32 %v340, 0.0
    %v389 = vadd.f32 %v341, 0.0
    %v390 = vadd.f32 %v342, 0.0
    %v391 = vadd.f32 %v343, 0.0
    %v392 = vadd.f32 %v344, 0.0
    %v393 = vadd.f32 %v345, 0.0
    %v394 = vadd.f32 %v346, 0.0
    %v395 = vadd.f32 %v347, 0.0
    %v396 = vadd.f32 %v348, 0.0
    %v397 = vadd.f32 %v349, 0.0
    %v398 = vadd.f32 %v350, 0.0
    %v399 = vadd.f32 %v351, 0.0
    %v400 = vadd.f32 %v352, 0.0
    %v401 = vadd.f32 %v353, 0.0
    %v402 = vadd.f32 %v354, 0.0
    %v403 = vadd.f32 %v355, 0.0
    %v404 = vadd.f32 %v356, 0.0
    %v405 = vadd.f32 %v357, 0.0
    %v406 = vadd.f32 %v358, 0.0
    %v407 = vadd.f32 %v359, 0.0
    %v408 = vadd.f32 %v360, 0.0
    %v409 = vadd.f32 %v361, 0.0
    %v410 = vadd.f32 %v362, 0.0
    %v411 = vadd.f32 %v363, 0.0
    %v412 = vadd.f32 %v364, 0.0
    %v413 = vadd.f32 %v365, 0.0
    %v414 = vadd.f32 %v366, 0.0
    %v415 = vadd.f32 %v367, 0.0
    %v416 = vadd.f32 %v368, 0.0
    %v417 = vadd.f32 %v369, 0.0
    %v418 = vadd.f32 %v370, 0.0
    %v419 = vadd.f32 %v371, 0.0
    %v420 = vadd.f32 %v372, 0.0
    %v421 = vadd.f32 %v373, 0.0
    %v422 = vadd.f32 %v374, 0.0
    %v423 = vadd.f32 %v375, 0.0
    %v424 = vadd.f32 %v376, 0.0
    %v425 = vld [vmem:[%s1 + $0x1] sm:$0x1]
    %426 = vset.pattern.permute.xlu0 1
    %427 = vperm.xlu0 %426, %v36
    %v428 = vpop.permute.xlu0 %427
    %430 = vset.pattern.permute.xlu0 1
    %431 = vperm.xlu0 %430, %v37
    %v432 = vpop.permute.xlu0 %431
    %434 = vset.pattern.permute.xlu0 1
    %435 = vperm.xlu0 %434, %v38
    %v436 = vpop.permute.xlu0 %435
    %438 = vset.pattern.permute.xlu0 1
    %439 = vperm.xlu0 %438, %v39
    %v440 = vpop.permute.xlu0 %439
    %442 = vset.pattern.permute.xlu0 1
    %443 = vperm.xlu0 %442, %v40
    %v444 = vpop.permute.xlu0 %443
    %446 = vset.pattern.permute.xlu0 1
    %447 = vperm.xlu0 %446, %v41
    %v448 = vpop.permute.xlu0 %447
    %450 = vset.pattern.permute.xlu0 1
    %451 = vperm.xlu0 %450, %v42
    %v452 = vpop.permute.xlu0 %451
    %454 = vset.pattern.permute.xlu0 1
    %455 = vperm.xlu0 %454, %v43
    %v456 = vpop.permute.xlu0 %455
    %458 = vset.pattern.permute.xlu0 1
    %459 = vperm.xlu0 %458, %v44
    %v460 = vpop.permute.xlu0 %459
    %462 = vset.pattern.permute.xlu0 1
    %463 = vperm.xlu0 %462, %v45
    %v464 = vpop.permute.xlu0 %463
    %466 = vset.pattern.permute.xlu0 1
    %467 = vperm.xlu0 %466, %v46
    %v468 = vpop.permute.xlu0 %467
    %470 = vset.pattern.permute.xlu0 1
    %471 = vperm.xlu0 %470, %v47
    %v472 = vpop.permute.xlu0 %471
    %474 = vset.pattern.permute.xlu0 1
    %475 = vperm.xlu0 %474, %v48
    %v476 = vpop.permute.xlu0 %475
    %478 = vset.pattern.permute.xlu0 1
    %479 = vperm.xlu0 %478, %v49
    %v480 = vpop.permute.xlu0 %479
    %482 = vset.pattern.permute.xlu0 1
    %483 = vperm.xlu0 %482, %v50
    %v484 = vpop.permute.xlu0 %483
    %486 = vset.pattern.permute.xlu0 1
    %487 = vperm.xlu0 %486, %v51
    %v488 = vpop.permute.xlu0 %487
    %490 = vset.pattern.permute.xlu0 1
    %491 = vperm.xlu0 %490, %v52
    %v492 = vpop.permute.xlu0 %491
    %494 = vset.pattern.permute.xlu0 1
    %495 = vperm.xlu0 %494, %v53
    %v496 = vpop.permute.xlu0 %495
    %498 = vset.pattern.permute.xlu0 1
    %499 = vperm.xlu0 %498, %v54
    %v500 = vpop.permute.xlu0 %499
    %502 = vset.pattern.permute.xlu0 1
    %503 = vperm.xlu0 %502, %v55
    %v504 = vpop.permute.xlu0 %503
    %506 = vset.pattern.permute.xlu0 1
    %507 = vperm.xlu0 %506, %v56
    %v508 = vpop.permute.xlu0 %507
    %510 = vset.pattern.permute.xlu0 1
    %511 = vperm.xlu0 %510, %v57
    %v512 = vpop.permute.xlu0 %511
    %514 = vset.pattern.permute.xlu0 1
    %515 = vperm.xlu0 %514, %v58
    %v516 = vpop.permute.xlu0 %515
    %518 = vset.pattern.permute.xlu0 1
    %519 = vperm.xlu0 %518, %v59
    %v520 = vpop.permute.xlu0 %519
    %522 = vset.pattern.permute.xlu0 1
    %523 = vperm.xlu0 %522, %v60
    %v524 = vpop.permute.xlu0 %523
    %526 = vset.pattern.permute.xlu0 1
    %527 = vperm.xlu0 %526, %v61
    %v528 = vpop.permute.xlu0 %527
    %530 = vset.pattern.permute.xlu0 1
    %531 = vperm.xlu0 %530, %v62
    %v532 = vpop.permute.xlu0 %531
    %534 = vset.pattern.permute.xlu0 1
    %535 = vperm.xlu0 %534, %v63
    %v536 = vpop.permute.xlu0 %535
    %538 = vset.pattern.permute.xlu0 1
    %539 = vperm.xlu0 %538, %v64
    %v540 = vpop.permute.xlu0 %539
    %542 = vset.pattern.permute.xlu0 1
    %543 = vperm.xlu0 %542, %v65
    %v544 = vpop.permute.xlu0 %543
    %546 = vset.pattern.permute.xlu0 1
    %547 = vperm.xlu0 %546, %v66
    %v548 = vpop.permute.xlu0 %547
    %550 = vset.pattern.permute.xlu0 1
    %551 = vperm.xlu0 %550, %v67
    %v552 = vpop.permute.xlu0 %551
    %554 = vset.pattern.permute.xlu0 1
    %555 = vperm.xlu0 %554, %v68
    %v556 = vpop.permute.xlu0 %555
    %558 = vset.pattern.permute.xlu0 1
    %559 = vperm.xlu0 %558, %v69
    %v560 = vpop.permute.xlu0 %559
    %562 = vset.pattern.permute.xlu0 1
    %563 = vperm.xlu0 %562, %v70
    %v564 = vpop.permute.xlu0 %563
    %566 = vset.pattern.permute.xlu0 1
    %567 = vperm.xlu0 %566, %v71
    %v568 = vpop.permute.xlu0 %567
    %570 = vset.pattern.permute.xlu0 1
    %571 = vperm.xlu0 %570, %v72
    %v572 = vpop.permute.xlu0 %571
    %574 = vset.pattern.permute.xlu0 1
    %575 = vperm.xlu0 %574, %v73
    %v576 = vpop.permute.xlu0 %575
    %578 = vset.pattern.permute.xlu0 1
    %579 = vperm.xlu0 %578, %v74
    %v580 = vpop.permute.xlu0 %579
    %582 = vset.pattern.permute.xlu0 1
    %583 = vperm.xlu0 %582, %v75
    %v584 = vpop.permute.xlu0 %583
    %586 = vset.pattern.permute.xlu0 1
    %587 = vperm.xlu0 %586, %v76
    %v588 = vpop.permute.xlu0 %587
    %590 = vset.pattern.permute.xlu0 1
    %591 = vperm.xlu0 %590, %v77
    %v592 = vpop.permute.xlu0 %591
    %594 = vset.pattern.permute.xlu0 1
    %595 = vperm.xlu0 %594, %v78
    %v596 = vpop.permute.xlu0 %595
    %598 = vset.pattern.permute.xlu0 1
    %599 = vperm.xlu0 %598, %v79
    %v600 = vpop.permute.xlu0 %599
    %602 = vset.pattern.permute.xlu0 1
    %603 = vperm.xlu0 %602, %v80
    %v604 = vpop.permute.xlu0 %603
    %606 = vset.pattern.permute.xlu0 1
    %607 = vperm.xlu0 %606, %v81
    %v608 = vpop.permute.xlu0 %607
    %610 = vset.pattern.permute.xlu0 1
    %611 = vperm.xlu0 %610, %v82
    %v612 = vpop.permute.xlu0 %611
    %614 = vset.pattern.permute.xlu0 1
    %615 = vperm.xlu0 %614, %v83
    %v616 = vpop.permute.xlu0 %615
    %v618 = vlaneseq
    %v619 = vshrl.u32 %v618, 7
    %v620 = vsub.s32 0, %v619
    %v621 = vrot.slane %v425, %v620
    %v622 = vmul.f32 %v428, %v621
    %v623 = vmul.f32 %v432, %v621
    %v624 = vmul.f32 %v436, %v621
    %v625 = vmul.f32 %v440, %v621
    %v626 = vmul.f32 %v444, %v621
    %v627 = vmul.f32 %v448, %v621
    %v628 = vmul.f32 %v452, %v621
    %v629 = vmul.f32 %v456, %v621
    %v630 = vmul.f32 %v460, %v621
    %v631 = vmul.f32 %v464, %v621
    %v632 = vmul.f32 %v468, %v621
    %v633 = vmul.f32 %v472, %v621
    %v634 = vmul.f32 %v476, %v621
    %v635 = vmul.f32 %v480, %v621
    %v636 = vmul.f32 %v484, %v621
    %v637 = vmul.f32 %v488, %v621
    %v638 = vmul.f32 %v492, %v621
    %v639 = vmul.f32 %v496, %v621
    %v640 = vmul.f32 %v500, %v621
    %v641 = vmul.f32 %v504, %v621
    %v642 = vmul.f32 %v508, %v621
    %v643 = vmul.f32 %v512, %v621
    %v644 = vmul.f32 %v516, %v621
    %v645 = vmul.f32 %v520, %v621
    %v646 = vmul.f32 %v524, %v621
    %v647 = vmul.f32 %v528, %v621
    %v648 = vmul.f32 %v532, %v621
    %v649 = vmul.f32 %v536, %v621
    %v650 = vmul.f32 %v540, %v621
    %v651 = vmul.f32 %v544, %v621
    %v652 = vmul.f32 %v548, %v621
    %v653 = vmul.f32 %v552, %v621
    %v654 = vmul.f32 %v556, %v621
    %v655 = vmul.f32 %v560, %v621
    %v656 = vmul.f32 %v564, %v621
    %v657 = vmul.f32 %v568, %v621
    %v658 = vmul.f32 %v572, %v621
    %v659 = vmul.f32 %v576, %v621
    %v660 = vmul.f32 %v580, %v621
    %v661 = vmul.f32 %v584, %v621
    %v662 = vmul.f32 %v588, %v621
    %v663 = vmul.f32 %v592, %v621
    %v664 = vmul.f32 %v596, %v621
    %v665 = vmul.f32 %v600, %v621
    %v666 = vmul.f32 %v604, %v621
    %v667 = vmul.f32 %v608, %v621
    %v668 = vmul.f32 %v612, %v621
    %v669 = vmul.f32 %v616, %v621
    %v670 = vadd.f32 %v377, %v622
    %v671 = vadd.f32 %v378, %v623
    %v672 = vadd.f32 %v379, %v624
    %v673 = vadd.f32 %v380, %v625
    %v674 = vadd.f32 %v381, %v626
    %v675 = vadd.f32 %v382, %v627
    %v676 = vadd.f32 %v383, %v628
    %v677 = vadd.f32 %v384, %v629
    %v678 = vadd.f32 %v385, %v630
    %v679 = vadd.f32 %v386, %v631
    %v680 = vadd.f32 %v387, %v632
    %v681 = vadd.f32 %v388, %v633
    %v682 = vadd.f32 %v389, %v634
    %v683 = vadd.f32 %v390, %v635
    %v684 = vadd.f32 %v391, %v636
    %v685 = vadd.f32 %v392, %v637
    %v686 = vadd.f32 %v393, %v638
    %v687 = vadd.f32 %v394, %v639
    %v688 = vadd.f32 %v395, %v640
    %v689 = vadd.f32 %v396, %v641
    %v690 = vadd.f32 %v397, %v642
    %v691 = vadd.f32 %v398, %v643
    %v692 = vadd.f32 %v399, %v644
    %v693 = vadd.f32 %v400, %v645
    %v694 = vadd.f32 %v401, %v646
    %v695 = vadd.f32 %v402, %v647
    %v696 = vadd.f32 %v403, %v648
    %v697 = vadd.f32 %v404, %v649
    %v698 = vadd.f32 %v405, %v650
    %v699 = vadd.f32 %v406, %v651
    %v700 = vadd.f32 %v407, %v652
    %v701 = vadd.f32 %v408, %v653
    %v702 = vadd.f32 %v409, %v654
    %v703 = vadd.f32 %v410, %v655
    %v704 = vadd.f32 %v411, %v656
    %v705 = vadd.f32 %v412, %v657
    %v706 = vadd.f32 %v413, %v658
    %v707 = vadd.f32 %v414, %v659
    %v708 = vadd.f32 %v415, %v660
    %v709 = vadd.f32 %v416, %v661
    %v710 = vadd.f32 %v417, %v662
    %v711 = vadd.f32 %v418, %v663
    %v712 = vadd.f32 %v419, %v664
    %v713 = vadd.f32 %v420, %v665
    %v714 = vadd.f32 %v421, %v666
    %v715 = vadd.f32 %v422, %v667
    %v716 = vadd.f32 %v423, %v668
    %v717 = vadd.f32 %v424, %v669
    %v718 = vld [vmem:[%s1 + $0x2] sm:$0x1]
    %719 = vset.pattern.permute.xlu0 2
    %720 = vperm.xlu0 %719, %v36
    %v721 = vpop.permute.xlu0 %720
    %723 = vset.pattern.permute.xlu0 2
    %724 = vperm.xlu0 %723, %v37
    %v725 = vpop.permute.xlu0 %724
    %727 = vset.pattern.permute.xlu0 2
    %728 = vperm.xlu0 %727, %v38
    %v729 = vpop.permute.xlu0 %728
    %731 = vset.pattern.permute.xlu0 2
    %732 = vperm.xlu0 %731, %v39
    %v733 = vpop.permute.xlu0 %732
    %735 = vset.pattern.permute.xlu0 2
    %736 = vperm.xlu0 %735, %v40
    %v737 = vpop.permute.xlu0 %736
    %739 = vset.pattern.permute.xlu0 2
    %740 = vperm.xlu0 %739, %v41
    %v741 = vpop.permute.xlu0 %740
    %743 = vset.pattern.permute.xlu0 2
    %744 = vperm.xlu0 %743, %v42
    %v745 = vpop.permute.xlu0 %744
    %747 = vset.pattern.permute.xlu0 2
    %748 = vperm.xlu0 %747, %v43
    %v749 = vpop.permute.xlu0 %748
    %751 = vset.pattern.permute.xlu0 2
    %752 = vperm.xlu0 %751, %v44
    %v753 = vpop.permute.xlu0 %752
    %755 = vset.pattern.permute.xlu0 2
    %756 = vperm.xlu0 %755, %v45
    %v757 = vpop.permute.xlu0 %756
    %759 = vset.pattern.permute.xlu0 2
    %760 = vperm.xlu0 %759, %v46
    %v761 = vpop.permute.xlu0 %760
    %763 = vset.pattern.permute.xlu0 2
    %764 = vperm.xlu0 %763, %v47
    %v765 = vpop.permute.xlu0 %764
    %767 = vset.pattern.permute.xlu0 2
    %768 = vperm.xlu0 %767, %v48
    %v769 = vpop.permute.xlu0 %768
    %771 = vset.pattern.permute.xlu0 2
    %772 = vperm.xlu0 %771, %v49
    %v773 = vpop.permute.xlu0 %772
    %775 = vset.pattern.permute.xlu0 2
    %776 = vperm.xlu0 %775, %v50
    %v777 = vpop.permute.xlu0 %776
    %779 = vset.pattern.permute.xlu0 2
    %780 = vperm.xlu0 %779, %v51
    %v781 = vpop.permute.xlu0 %780
    %783 = vset.pattern.permute.xlu0 2
    %784 = vperm.xlu0 %783, %v52
    %v785 = vpop.permute.xlu0 %784
    %787 = vset.pattern.permute.xlu0 2
    %788 = vperm.xlu0 %787, %v53
    %v789 = vpop.permute.xlu0 %788
    %791 = vset.pattern.permute.xlu0 2
    %792 = vperm.xlu0 %791, %v54
    %v793 = vpop.permute.xlu0 %792
    %795 = vset.pattern.permute.xlu0 2
    %796 = vperm.xlu0 %795, %v55
    %v797 = vpop.permute.xlu0 %796
    %799 = vset.pattern.permute.xlu0 2
    %800 = vperm.xlu0 %799, %v56
    %v801 = vpop.permute.xlu0 %800
    %803 = vset.pattern.permute.xlu0 2
    %804 = vperm.xlu0 %803, %v57
    %v805 = vpop.permute.xlu0 %804
    %807 = vset.pattern.permute.xlu0 2
    %808 = vperm.xlu0 %807, %v58
    %v809 = vpop.permute.xlu0 %808
    %811 = vset.pattern.permute.xlu0 2
    %812 = vperm.xlu0 %811, %v59
    %v813 = vpop.permute.xlu0 %812
    %815 = vset.pattern.permute.xlu0 2
    %816 = vperm.xlu0 %815, %v60
    %v817 = vpop.permute.xlu0 %816
    %819 = vset.pattern.permute.xlu0 2
    %820 = vperm.xlu0 %819, %v61
    %v821 = vpop.permute.xlu0 %820
    %823 = vset.pattern.permute.xlu0 2
    %824 = vperm.xlu0 %823, %v62
    %v825 = vpop.permute.xlu0 %824
    %827 = vset.pattern.permute.xlu0 2
    %828 = vperm.xlu0 %827, %v63
    %v829 = vpop.permute.xlu0 %828
    %831 = vset.pattern.permute.xlu0 2
    %832 = vperm.xlu0 %831, %v64
    %v833 = vpop.permute.xlu0 %832
    %835 = vset.pattern.permute.xlu0 2
    %836 = vperm.xlu0 %835, %v65
    %v837 = vpop.permute.xlu0 %836
    %839 = vset.pattern.permute.xlu0 2
    %840 = vperm.xlu0 %839, %v66
    %v841 = vpop.permute.xlu0 %840
    %843 = vset.pattern.permute.xlu0 2
    %844 = vperm.xlu0 %843, %v67
    %v845 = vpop.permute.xlu0 %844
    %847 = vset.pattern.permute.xlu0 2
    %848 = vperm.xlu0 %847, %v68
    %v849 = vpop.permute.xlu0 %848
    %851 = vset.pattern.permute.xlu0 2
    %852 = vperm.xlu0 %851, %v69
    %v853 = vpop.permute.xlu0 %852
    %855 = vset.pattern.permute.xlu0 2
    %856 = vperm.xlu0 %855, %v70
    %v857 = vpop.permute.xlu0 %856
    %859 = vset.pattern.permute.xlu0 2
    %860 = vperm.xlu0 %859, %v71
    %v861 = vpop.permute.xlu0 %860
    %863 = vset.pattern.permute.xlu0 2
    %864 = vperm.xlu0 %863, %v72
    %v865 = vpop.permute.xlu0 %864
    %867 = vset.pattern.permute.xlu0 2
    %868 = vperm.xlu0 %867, %v73
    %v869 = vpop.permute.xlu0 %868
    %871 = vset.pattern.permute.xlu0 2
    %872 = vperm.xlu0 %871, %v74
    %v873 = vpop.permute.xlu0 %872
    %875 = vset.pattern.permute.xlu0 2
    %876 = vperm.xlu0 %875, %v75
    %v877 = vpop.permute.xlu0 %876
    %879 = vset.pattern.permute.xlu0 2
    %880 = vperm.xlu0 %879, %v76
    %v881 = vpop.permute.xlu0 %880
    %883 = vset.pattern.permute.xlu0 2
    %884 = vperm.xlu0 %883, %v77
    %v885 = vpop.permute.xlu0 %884
    %887 = vset.pattern.permute.xlu0 2
    %888 = vperm.xlu0 %887, %v78
    %v889 = vpop.permute.xlu0 %888
    %891 = vset.pattern.permute.xlu0 2
    %892 = vperm.xlu0 %891, %v79
    %v893 = vpop.permute.xlu0 %892
    %895 = vset.pattern.permute.xlu0 2
    %896 = vperm.xlu0 %895, %v80
    %v897 = vpop.permute.xlu0 %896
    %899 = vset.pattern.permute.xlu0 2
    %900 = vperm.xlu0 %899, %v81
    %v901 = vpop.permute.xlu0 %900
    %903 = vset.pattern.permute.xlu0 2
    %904 = vperm.xlu0 %903, %v82
    %v905 = vpop.permute.xlu0 %904
    %907 = vset.pattern.permute.xlu0 2
    %908 = vperm.xlu0 %907, %v83
    %v909 = vpop.permute.xlu0 %908
    %v911 = vlaneseq
    %v912 = vshrl.u32 %v911, 7
    %v913 = vsub.s32 0, %v912
    %v914 = vrot.slane %v718, %v913
    %v915 = vmul.f32 %v721, %v914
    %v916 = vmul.f32 %v725, %v914
    %v917 = vmul.f32 %v729, %v914
    %v918 = vmul.f32 %v733, %v914
    %v919 = vmul.f32 %v737, %v914
    %v920 = vmul.f32 %v741, %v914
    %v921 = vmul.f32 %v745, %v914
    %v922 = vmul.f32 %v749, %v914
    %v923 = vmul.f32 %v753, %v914
    %v924 = vmul.f32 %v757, %v914
    %v925 = vmul.f32 %v761, %v914
    %v926 = vmul.f32 %v765, %v914
    %v927 = vmul.f32 %v769, %v914
    %v928 = vmul.f32 %v773, %v914
    %v929 = vmul.f32 %v777, %v914
    %v930 = vmul.f32 %v781, %v914
    %v931 = vmul.f32 %v785, %v914
    %v932 = vmul.f32 %v789, %v914
    %v933 = vmul.f32 %v793, %v914
    %v934 = vmul.f32 %v797, %v914
    %v935 = vmul.f32 %v801, %v914
    %v936 = vmul.f32 %v805, %v914
    %v937 = vmul.f32 %v809, %v914
    %v938 = vmul.f32 %v813, %v914
    %v939 = vmul.f32 %v817, %v914
    %v940 = vmul.f32 %v821, %v914
    %v941 = vmul.f32 %v825, %v914
    %v942 = vmul.f32 %v829, %v914
    %v943 = vmul.f32 %v833, %v914
    %v944 = vmul.f32 %v837, %v914
    %v945 = vmul.f32 %v841, %v914
    %v946 = vmul.f32 %v845, %v914
    %v947 = vmul.f32 %v849, %v914
    %v948 = vmul.f32 %v853, %v914
    %v949 = vmul.f32 %v857, %v914
    %v950 = vmul.f32 %v861, %v914
    %v951 = vmul.f32 %v865, %v914
    %v952 = vmul.f32 %v869, %v914
    %v953 = vmul.f32 %v873, %v914
    %v954 = vmul.f32 %v877, %v914
    %v955 = vmul.f32 %v881, %v914
    %v956 = vmul.f32 %v885, %v914
    %v957 = vmul.f32 %v889, %v914
    %v958 = vmul.f32 %v893, %v914
    %v959 = vmul.f32 %v897, %v914
    %v960 = vmul.f32 %v901, %v914
    %v961 = vmul.f32 %v905, %v914
    %v962 = vmul.f32 %v909, %v914
    %v963 = vadd.f32 %v670, %v915
    %v964 = vadd.f32 %v671, %v916
    %v965 = vadd.f32 %v672, %v917
    %v966 = vadd.f32 %v673, %v918
    %v967 = vadd.f32 %v674, %v919
    %v968 = vadd.f32 %v675, %v920
    %v969 = vadd.f32 %v676, %v921
    %v970 = vadd.f32 %v677, %v922
    %v971 = vadd.f32 %v678, %v923
    %v972 = vadd.f32 %v679, %v924
    %v973 = vadd.f32 %v680, %v925
    %v974 = vadd.f32 %v681, %v926
    %v975 = vadd.f32 %v682, %v927
    %v976 = vadd.f32 %v683, %v928
    %v977 = vadd.f32 %v684, %v929
    %v978 = vadd.f32 %v685, %v930
    %v979 = vadd.f32 %v686, %v931
    %v980 = vadd.f32 %v687, %v932
    %v981 = vadd.f32 %v688, %v933
    %v982 = vadd.f32 %v689, %v934
    %v983 = vadd.f32 %v690, %v935
    %v984 = vadd.f32 %v691, %v936
    %v985 = vadd.f32 %v692, %v937
    %v986 = vadd.f32 %v693, %v938
    %v987 = vadd.f32 %v694, %v939
    %v988 = vadd.f32 %v695, %v940
    %v989 = vadd.f32 %v696, %v941
    %v990 = vadd.f32 %v697, %v942
    %v991 = vadd.f32 %v698, %v943
    %v992 = vadd.f32 %v699, %v944
    %v993 = vadd.f32 %v700, %v945
    %v994 = vadd.f32 %v701, %v946
    %v995 = vadd.f32 %v702, %v947
    %v996 = vadd.f32 %v703, %v948
    %v997 = vadd.f32 %v704, %v949
    %v998 = vadd.f32 %v705, %v950
    %v999 = vadd.f32 %v706, %v951
    %v1000 = vadd.f32 %v707, %v952
    %v1001 = vadd.f32 %v708, %v953
    %v1002 = vadd.f32 %v709, %v954
    %v1003 = vadd.f32 %v710, %v955
    %v1004 = vadd.f32 %v711, %v956
    %v1005 = vadd.f32 %v712, %v957
    %v1006 = vadd.f32 %v713, %v958
    %v1007 = vadd.f32 %v714, %v959
    %v1008 = vadd.f32 %v715, %v960
    %v1009 = vadd.f32 %v716, %v961
    %v1010 = vadd.f32 %v717, %v962
    %v1011 = vld [vmem:[%s1 + $0x3] sm:$0x1]
    %1012 = vset.pattern.permute.xlu0 3
    %1013 = vperm.xlu0 %1012, %v36
    %v1014 = vpop.permute.xlu0 %1013
    %1016 = vset.pattern.permute.xlu0 3
    %1017 = vperm.xlu0 %1016, %v37
    %v1018 = vpop.permute.xlu0 %1017
    %1020 = vset.pattern.permute.xlu0 3
    %1021 = vperm.xlu0 %1020, %v38
    %v1022 = vpop.permute.xlu0 %1021
    %1024 = vset.pattern.permute.xlu0 3
    %1025 = vperm.xlu0 %1024, %v39
    %v1026 = vpop.permute.xlu0 %1025
    %1028 = vset.pattern.permute.xlu0 3
    %1029 = vperm.xlu0 %1028, %v40
    %v1030 = vpop.permute.xlu0 %1029
    %1032 = vset.pattern.permute.xlu0 3
    %1033 = vperm.xlu0 %1032, %v41
    %v1034 = vpop.permute.xlu0 %1033
    %1036 = vset.pattern.permute.xlu0 3
    %1037 = vperm.xlu0 %1036, %v42
    %v1038 = vpop.permute.xlu0 %1037
    %1040 = vset.pattern.permute.xlu0 3
    %1041 = vperm.xlu0 %1040, %v43
    %v1042 = vpop.permute.xlu0 %1041
    %1044 = vset.pattern.permute.xlu0 3
    %1045 = vperm.xlu0 %1044, %v44
    %v1046 = vpop.permute.xlu0 %1045
    %1048 = vset.pattern.permute.xlu0 3
    %1049 = vperm.xlu0 %1048, %v45
    %v1050 = vpop.permute.xlu0 %1049
    %1052 = vset.pattern.permute.xlu0 3
    %1053 = vperm.xlu0 %1052, %v46
    %v1054 = vpop.permute.xlu0 %1053
    %1056 = vset.pattern.permute.xlu0 3
    %1057 = vperm.xlu0 %1056, %v47
    %v1058 = vpop.permute.xlu0 %1057
    %1060 = vset.pattern.permute.xlu0 3
    %1061 = vperm.xlu0 %1060, %v48
    %v1062 = vpop.permute.xlu0 %1061
    %1064 = vset.pattern.permute.xlu0 3
    %1065 = vperm.xlu0 %1064, %v49
    %v1066 = vpop.permute.xlu0 %1065
    %1068 = vset.pattern.permute.xlu0 3
    %1069 = vperm.xlu0 %1068, %v50
    %v1070 = vpop.permute.xlu0 %1069
    %1072 = vset.pattern.permute.xlu0 3
    %1073 = vperm.xlu0 %1072, %v51
    %v1074 = vpop.permute.xlu0 %1073
    %1076 = vset.pattern.permute.xlu0 3
    %1077 = vperm.xlu0 %1076, %v52
    %v1078 = vpop.permute.xlu0 %1077
    %1080 = vset.pattern.permute.xlu0 3
    %1081 = vperm.xlu0 %1080, %v53
    %v1082 = vpop.permute.xlu0 %1081
    %1084 = vset.pattern.permute.xlu0 3
    %1085 = vperm.xlu0 %1084, %v54
    %v1086 = vpop.permute.xlu0 %1085
    %1088 = vset.pattern.permute.xlu0 3
    %1089 = vperm.xlu0 %1088, %v55
    %v1090 = vpop.permute.xlu0 %1089
    %1092 = vset.pattern.permute.xlu0 3
    %1093 = vperm.xlu0 %1092, %v56
    %v1094 = vpop.permute.xlu0 %1093
    %1096 = vset.pattern.permute.xlu0 3
    %1097 = vperm.xlu0 %1096, %v57
    %v1098 = vpop.permute.xlu0 %1097
    %1100 = vset.pattern.permute.xlu0 3
    %1101 = vperm.xlu0 %1100, %v58
    %v1102 = vpop.permute.xlu0 %1101
    %1104 = vset.pattern.permute.xlu0 3
    %1105 = vperm.xlu0 %1104, %v59
    %v1106 = vpop.permute.xlu0 %1105
    %1108 = vset.pattern.permute.xlu0 3
    %1109 = vperm.xlu0 %1108, %v60
    %v1110 = vpop.permute.xlu0 %1109
    %1112 = vset.pattern.permute.xlu0 3
    %1113 = vperm.xlu0 %1112, %v61
    %v1114 = vpop.permute.xlu0 %1113
    %1116 = vset.pattern.permute.xlu0 3
    %1117 = vperm.xlu0 %1116, %v62
    %v1118 = vpop.permute.xlu0 %1117
    %1120 = vset.pattern.permute.xlu0 3
    %1121 = vperm.xlu0 %1120, %v63
    %v1122 = vpop.permute.xlu0 %1121
    %1124 = vset.pattern.permute.xlu0 3
    %1125 = vperm.xlu0 %1124, %v64
    %v1126 = vpop.permute.xlu0 %1125
    %1128 = vset.pattern.permute.xlu0 3
    %1129 = vperm.xlu0 %1128, %v65
    %v1130 = vpop.permute.xlu0 %1129
    %1132 = vset.pattern.permute.xlu0 3
    %1133 = vperm.xlu0 %1132, %v66
    %v1134 = vpop.permute.xlu0 %1133
    %1136 = vset.pattern.permute.xlu0 3
    %1137 = vperm.xlu0 %1136, %v67
    %v1138 = vpop.permute.xlu0 %1137
    %1140 = vset.pattern.permute.xlu0 3
    %1141 = vperm.xlu0 %1140, %v68
    %v1142 = vpop.permute.xlu0 %1141
    %1144 = vset.pattern.permute.xlu0 3
    %1145 = vperm.xlu0 %1144, %v69
    %v1146 = vpop.permute.xlu0 %1145
    %1148 = vset.pattern.permute.xlu0 3
    %1149 = vperm.xlu0 %1148, %v70
    %v1150 = vpop.permute.xlu0 %1149
    %1152 = vset.pattern.permute.xlu0 3
    %1153 = vperm.xlu0 %1152, %v71
    %v1154 = vpop.permute.xlu0 %1153
    %1156 = vset.pattern.permute.xlu0 3
    %1157 = vperm.xlu0 %1156, %v72
    %v1158 = vpop.permute.xlu0 %1157
    %1160 = vset.pattern.permute.xlu0 3
    %1161 = vperm.xlu0 %1160, %v73
    %v1162 = vpop.permute.xlu0 %1161
    %1164 = vset.pattern.permute.xlu0 3
    %1165 = vperm.xlu0 %1164, %v74
    %v1166 = vpop.permute.xlu0 %1165
    %1168 = vset.pattern.permute.xlu0 3
    %1169 = vperm.xlu0 %1168, %v75
    %v1170 = vpop.permute.xlu0 %1169
    %1172 = vset.pattern.permute.xlu0 3
    %1173 = vperm.xlu0 %1172, %v76
    %v1174 = vpop.permute.xlu0 %1173
    %1176 = vset.pattern.permute.xlu0 3
    %1177 = vperm.xlu0 %1176, %v77
    %v1178 = vpop.permute.xlu0 %1177
    %1180 = vset.pattern.permute.xlu0 3
    %1181 = vperm.xlu0 %1180, %v78
    %v1182 = vpop.permute.xlu0 %1181
    %1184 = vset.pattern.permute.xlu0 3
    %1185 = vperm.xlu0 %1184, %v79
    %v1186 = vpop.permute.xlu0 %1185
    %1188 = vset.pattern.permute.xlu0 3
    %1189 = vperm.xlu0 %1188, %v80
    %v1190 = vpop.permute.xlu0 %1189
    %1192 = vset.pattern.permute.xlu0 3
    %1193 = vperm.xlu0 %1192, %v81
    %v1194 = vpop.permute.xlu0 %1193
    %1196 = vset.pattern.permute.xlu0 3
    %1197 = vperm.xlu0 %1196, %v82
    %v1198 = vpop.permute.xlu0 %1197
    %1200 = vset.pattern.permute.xlu0 3
    %1201 = vperm.xlu0 %1200, %v83
    %v1202 = vpop.permute.xlu0 %1201
    %v1204 = vlaneseq
    %v1205 = vshrl.u32 %v1204, 7
    %v1206 = vsub.s32 0, %v1205
    %v1207 = vrot.slane %v1011, %v1206
    %v1208 = vmul.f32 %v1014, %v1207
    %v1209 = vmul.f32 %v1018, %v1207
    %v1210 = vmul.f32 %v1022, %v1207
    %v1211 = vmul.f32 %v1026, %v1207
    %v1212 = vmul.f32 %v1030, %v1207
    %v1213 = vmul.f32 %v1034, %v1207
    %v1214 = vmul.f32 %v1038, %v1207
    %v1215 = vmul.f32 %v1042, %v1207
    %v1216 = vmul.f32 %v1046, %v1207
    %v1217 = vmul.f32 %v1050, %v1207
    %v1218 = vmul.f32 %v1054, %v1207
    %v1219 = vmul.f32 %v1058, %v1207
    %v1220 = vmul.f32 %v1062, %v1207
    %v1221 = vmul.f32 %v1066, %v1207
    %v1222 = vmul.f32 %v1070, %v1207
    %v1223 = vmul.f32 %v1074, %v1207
    %v1224 = vmul.f32 %v1078, %v1207
    %v1225 = vmul.f32 %v1082, %v1207
    %v1226 = vmul.f32 %v1086, %v1207
    %v1227 = vmul.f32 %v1090, %v1207
    %v1228 = vmul.f32 %v1094, %v1207
    %v1229 = vmul.f32 %v1098, %v1207
    %v1230 = vmul.f32 %v1102, %v1207
    %v1231 = vmul.f32 %v1106, %v1207
    %v1232 = vmul.f32 %v1110, %v1207
    %v1233 = vmul.f32 %v1114, %v1207
    %v1234 = vmul.f32 %v1118, %v1207
    %v1235 = vmul.f32 %v1122, %v1207
    %v1236 = vmul.f32 %v1126, %v1207
    %v1237 = vmul.f32 %v1130, %v1207
    %v1238 = vmul.f32 %v1134, %v1207
    %v1239 = vmul.f32 %v1138, %v1207
    %v1240 = vmul.f32 %v1142, %v1207
    %v1241 = vmul.f32 %v1146, %v1207
    %v1242 = vmul.f32 %v1150, %v1207
    %v1243 = vmul.f32 %v1154, %v1207
    %v1244 = vmul.f32 %v1158, %v1207
    %v1245 = vmul.f32 %v1162, %v1207
    %v1246 = vmul.f32 %v1166, %v1207
    %v1247 = vmul.f32 %v1170, %v1207
    %v1248 = vmul.f32 %v1174, %v1207
    %v1249 = vmul.f32 %v1178, %v1207
    %v1250 = vmul.f32 %v1182, %v1207
    %v1251 = vmul.f32 %v1186, %v1207
    %v1252 = vmul.f32 %v1190, %v1207
    %v1253 = vmul.f32 %v1194, %v1207
    %v1254 = vmul.f32 %v1198, %v1207
    %v1255 = vmul.f32 %v1202, %v1207
    %v1256 = vadd.f32 %v963, %v1208
    %v1257 = vadd.f32 %v964, %v1209
    %v1258 = vadd.f32 %v965, %v1210
    %v1259 = vadd.f32 %v966, %v1211
    %v1260 = vadd.f32 %v967, %v1212
    %v1261 = vadd.f32 %v968, %v1213
    %v1262 = vadd.f32 %v969, %v1214
    %v1263 = vadd.f32 %v970, %v1215
    %v1264 = vadd.f32 %v971, %v1216
    %v1265 = vadd.f32 %v972, %v1217
    %v1266 = vadd.f32 %v973, %v1218
    %v1267 = vadd.f32 %v974, %v1219
    %v1268 = vadd.f32 %v975, %v1220
    %v1269 = vadd.f32 %v976, %v1221
    %v1270 = vadd.f32 %v977, %v1222
    %v1271 = vadd.f32 %v978, %v1223
    %v1272 = vadd.f32 %v979, %v1224
    %v1273 = vadd.f32 %v980, %v1225
    %v1274 = vadd.f32 %v981, %v1226
    %v1275 = vadd.f32 %v982, %v1227
    %v1276 = vadd.f32 %v983, %v1228
    %v1277 = vadd.f32 %v984, %v1229
    %v1278 = vadd.f32 %v985, %v1230
    %v1279 = vadd.f32 %v986, %v1231
    %v1280 = vadd.f32 %v987, %v1232
    %v1281 = vadd.f32 %v988, %v1233
    %v1282 = vadd.f32 %v989, %v1234
    %v1283 = vadd.f32 %v990, %v1235
    %v1284 = vadd.f32 %v991, %v1236
    %v1285 = vadd.f32 %v992, %v1237
    %v1286 = vadd.f32 %v993, %v1238
    %v1287 = vadd.f32 %v994, %v1239
    %v1288 = vadd.f32 %v995, %v1240
    %v1289 = vadd.f32 %v996, %v1241
    %v1290 = vadd.f32 %v997, %v1242
    %v1291 = vadd.f32 %v998, %v1243
    %v1292 = vadd.f32 %v999, %v1244
    %v1293 = vadd.f32 %v1000, %v1245
    %v1294 = vadd.f32 %v1001, %v1246
    %v1295 = vadd.f32 %v1002, %v1247
    %v1296 = vadd.f32 %v1003, %v1248
    %v1297 = vadd.f32 %v1004, %v1249
    %v1298 = vadd.f32 %v1005, %v1250
    %v1299 = vadd.f32 %v1006, %v1251
    %v1300 = vadd.f32 %v1007, %v1252
    %v1301 = vadd.f32 %v1008, %v1253
    %v1302 = vadd.f32 %v1009, %v1254
    %v1303 = vadd.f32 %v1010, %v1255
    %v1304 = vld [vmem:[%s1 + $0x4] sm:$0x1]
    %1305 = vset.pattern.permute.xlu0 4
    %1306 = vperm.xlu0 %1305, %v36
    %v1307 = vpop.permute.xlu0 %1306
    %1309 = vset.pattern.permute.xlu0 4
    %1310 = vperm.xlu0 %1309, %v37
    %v1311 = vpop.permute.xlu0 %1310
    %1313 = vset.pattern.permute.xlu0 4
    %1314 = vperm.xlu0 %1313, %v38
    %v1315 = vpop.permute.xlu0 %1314
    %1317 = vset.pattern.permute.xlu0 4
    %1318 = vperm.xlu0 %1317, %v39
    %v1319 = vpop.permute.xlu0 %1318
    %1321 = vset.pattern.permute.xlu0 4
    %1322 = vperm.xlu0 %1321, %v40
    %v1323 = vpop.permute.xlu0 %1322
    %1325 = vset.pattern.permute.xlu0 4
    %1326 = vperm.xlu0 %1325, %v41
    %v1327 = vpop.permute.xlu0 %1326
    %1329 = vset.pattern.permute.xlu0 4
    %1330 = vperm.xlu0 %1329, %v42
    %v1331 = vpop.permute.xlu0 %1330
    %1333 = vset.pattern.permute.xlu0 4
    %1334 = vperm.xlu0 %1333, %v43
    %v1335 = vpop.permute.xlu0 %1334
    %1337 = vset.pattern.permute.xlu0 4
    %1338 = vperm.xlu0 %1337, %v44
    %v1339 = vpop.permute.xlu0 %1338
    %1341 = vset.pattern.permute.xlu0 4
    %1342 = vperm.xlu0 %1341, %v45
    %v1343 = vpop.permute.xlu0 %1342
    %1345 = vset.pattern.permute.xlu0 4
    %1346 = vperm.xlu0 %1345, %v46
    %v1347 = vpop.permute.xlu0 %1346
    %1349 = vset.pattern.permute.xlu0 4
    %1350 = vperm.xlu0 %1349, %v47
    %v1351 = vpop.permute.xlu0 %1350
    %1353 = vset.pattern.permute.xlu0 4
    %1354 = vperm.xlu0 %1353, %v48
    %v1355 = vpop.permute.xlu0 %1354
    %1357 = vset.pattern.permute.xlu0 4
    %1358 = vperm.xlu0 %1357, %v49
    %v1359 = vpop.permute.xlu0 %1358
    %1361 = vset.pattern.permute.xlu0 4
    %1362 = vperm.xlu0 %1361, %v50
    %v1363 = vpop.permute.xlu0 %1362
    %1365 = vset.pattern.permute.xlu0 4
    %1366 = vperm.xlu0 %1365, %v51
    %v1367 = vpop.permute.xlu0 %1366
    %1369 = vset.pattern.permute.xlu0 4
    %1370 = vperm.xlu0 %1369, %v52
    %v1371 = vpop.permute.xlu0 %1370
    %1373 = vset.pattern.permute.xlu0 4
    %1374 = vperm.xlu0 %1373, %v53
    %v1375 = vpop.permute.xlu0 %1374
    %1377 = vset.pattern.permute.xlu0 4
    %1378 = vperm.xlu0 %1377, %v54
    %v1379 = vpop.permute.xlu0 %1378
    %1381 = vset.pattern.permute.xlu0 4
    %1382 = vperm.xlu0 %1381, %v55
    %v1383 = vpop.permute.xlu0 %1382
    %1385 = vset.pattern.permute.xlu0 4
    %1386 = vperm.xlu0 %1385, %v56
    %v1387 = vpop.permute.xlu0 %1386
    %1389 = vset.pattern.permute.xlu0 4
    %1390 = vperm.xlu0 %1389, %v57
    %v1391 = vpop.permute.xlu0 %1390
    %1393 = vset.pattern.permute.xlu0 4
    %1394 = vperm.xlu0 %1393, %v58
    %v1395 = vpop.permute.xlu0 %1394
    %1397 = vset.pattern.permute.xlu0 4
    %1398 = vperm.xlu0 %1397, %v59
    %v1399 = vpop.permute.xlu0 %1398
    %1401 = vset.pattern.permute.xlu0 4
    %1402 = vperm.xlu0 %1401, %v60
    %v1403 = vpop.permute.xlu0 %1402
    %1405 = vset.pattern.permute.xlu0 4
    %1406 = vperm.xlu0 %1405, %v61
    %v1407 = vpop.permute.xlu0 %1406
    %1409 = vset.pattern.permute.xlu0 4
    %1410 = vperm.xlu0 %1409, %v62
    %v1411 = vpop.permute.xlu0 %1410
    %1413 = vset.pattern.permute.xlu0 4
    %1414 = vperm.xlu0 %1413, %v63
    %v1415 = vpop.permute.xlu0 %1414
    %1417 = vset.pattern.permute.xlu0 4
    %1418 = vperm.xlu0 %1417, %v64
    %v1419 = vpop.permute.xlu0 %1418
    %1421 = vset.pattern.permute.xlu0 4
    %1422 = vperm.xlu0 %1421, %v65
    %v1423 = vpop.permute.xlu0 %1422
    %1425 = vset.pattern.permute.xlu0 4
    %1426 = vperm.xlu0 %1425, %v66
    %v1427 = vpop.permute.xlu0 %1426
    %1429 = vset.pattern.permute.xlu0 4
    %1430 = vperm.xlu0 %1429, %v67
    %v1431 = vpop.permute.xlu0 %1430
    %1433 = vset.pattern.permute.xlu0 4
    %1434 = vperm.xlu0 %1433, %v68
    %v1435 = vpop.permute.xlu0 %1434
    %1437 = vset.pattern.permute.xlu0 4
    %1438 = vperm.xlu0 %1437, %v69
    %v1439 = vpop.permute.xlu0 %1438
    %1441 = vset.pattern.permute.xlu0 4
    %1442 = vperm.xlu0 %1441, %v70
    %v1443 = vpop.permute.xlu0 %1442
    %1445 = vset.pattern.permute.xlu0 4
    %1446 = vperm.xlu0 %1445, %v71
    %v1447 = vpop.permute.xlu0 %1446
    %1449 = vset.pattern.permute.xlu0 4
    %1450 = vperm.xlu0 %1449, %v72
    %v1451 = vpop.permute.xlu0 %1450
    %1453 = vset.pattern.permute.xlu0 4
    %1454 = vperm.xlu0 %1453, %v73
    %v1455 = vpop.permute.xlu0 %1454
    %1457 = vset.pattern.permute.xlu0 4
    %1458 = vperm.xlu0 %1457, %v74
    %v1459 = vpop.permute.xlu0 %1458
    %1461 = vset.pattern.permute.xlu0 4
    %1462 = vperm.xlu0 %1461, %v75
    %v1463 = vpop.permute.xlu0 %1462
    %1465 = vset.pattern.permute.xlu0 4
    %1466 = vperm.xlu0 %1465, %v76
    %v1467 = vpop.permute.xlu0 %1466
    %1469 = vset.pattern.permute.xlu0 4
    %1470 = vperm.xlu0 %1469, %v77
    %v1471 = vpop.permute.xlu0 %1470
    %1473 = vset.pattern.permute.xlu0 4
    %1474 = vperm.xlu0 %1473, %v78
    %v1475 = vpop.permute.xlu0 %1474
    %1477 = vset.pattern.permute.xlu0 4
    %1478 = vperm.xlu0 %1477, %v79
    %v1479 = vpop.permute.xlu0 %1478
    %1481 = vset.pattern.permute.xlu0 4
    %1482 = vperm.xlu0 %1481, %v80
    %v1483 = vpop.permute.xlu0 %1482
    %1485 = vset.pattern.permute.xlu0 4
    %1486 = vperm.xlu0 %1485, %v81
    %v1487 = vpop.permute.xlu0 %1486
    %1489 = vset.pattern.permute.xlu0 4
    %1490 = vperm.xlu0 %1489, %v82
    %v1491 = vpop.permute.xlu0 %1490
    %1493 = vset.pattern.permute.xlu0 4
    %1494 = vperm.xlu0 %1493, %v83
    %v1495 = vpop.permute.xlu0 %1494
    %v1497 = vlaneseq
    %v1498 = vshrl.u32 %v1497, 7
    %v1499 = vsub.s32 0, %v1498
    %v1500 = vrot.slane %v1304, %v1499
    %v1501 = vmul.f32 %v1307, %v1500
    %v1502 = vmul.f32 %v1311, %v1500
    %v1503 = vmul.f32 %v1315, %v1500
    %v1504 = vmul.f32 %v1319, %v1500
    %v1505 = vmul.f32 %v1323, %v1500
    %v1506 = vmul.f32 %v1327, %v1500
    %v1507 = vmul.f32 %v1331, %v1500
    %v1508 = vmul.f32 %v1335, %v1500
    %v1509 = vmul.f32 %v1339, %v1500
    %v1510 = vmul.f32 %v1343, %v1500
    %v1511 = vmul.f32 %v1347, %v1500
    %v1512 = vmul.f32 %v1351, %v1500
    %v1513 = vmul.f32 %v1355, %v1500
    %v1514 = vmul.f32 %v1359, %v1500
    %v1515 = vmul.f32 %v1363, %v1500
    %v1516 = vmul.f32 %v1367, %v1500
    %v1517 = vmul.f32 %v1371, %v1500
    %v1518 = vmul.f32 %v1375, %v1500
    %v1519 = vmul.f32 %v1379, %v1500
    %v1520 = vmul.f32 %v1383, %v1500
    %v1521 = vmul.f32 %v1387, %v1500
    %v1522 = vmul.f32 %v1391, %v1500
    %v1523 = vmul.f32 %v1395, %v1500
    %v1524 = vmul.f32 %v1399, %v1500
    %v1525 = vmul.f32 %v1403, %v1500
    %v1526 = vmul.f32 %v1407, %v1500
    %v1527 = vmul.f32 %v1411, %v1500
    %v1528 = vmul.f32 %v1415, %v1500
    %v1529 = vmul.f32 %v1419, %v1500
    %v1530 = vmul.f32 %v1423, %v1500
    %v1531 = vmul.f32 %v1427, %v1500
    %v1532 = vmul.f32 %v1431, %v1500
    %v1533 = vmul.f32 %v1435, %v1500
    %v1534 = vmul.f32 %v1439, %v1500
    %v1535 = vmul.f32 %v1443, %v1500
    %v1536 = vmul.f32 %v1447, %v1500
    %v1537 = vmul.f32 %v1451, %v1500
    %v1538 = vmul.f32 %v1455, %v1500
    %v1539 = vmul.f32 %v1459, %v1500
    %v1540 = vmul.f32 %v1463, %v1500
    %v1541 = vmul.f32 %v1467, %v1500
    %v1542 = vmul.f32 %v1471, %v1500
    %v1543 = vmul.f32 %v1475, %v1500
    %v1544 = vmul.f32 %v1479, %v1500
    %v1545 = vmul.f32 %v1483, %v1500
    %v1546 = vmul.f32 %v1487, %v1500
    %v1547 = vmul.f32 %v1491, %v1500
    %v1548 = vmul.f32 %v1495, %v1500
    %v1549 = vadd.f32 %v1256, %v1501
    %v1550 = vadd.f32 %v1257, %v1502
    %v1551 = vadd.f32 %v1258, %v1503
    %v1552 = vadd.f32 %v1259, %v1504
    %v1553 = vadd.f32 %v1260, %v1505
    %v1554 = vadd.f32 %v1261, %v1506
    %v1555 = vadd.f32 %v1262, %v1507
    %v1556 = vadd.f32 %v1263, %v1508
    %v1557 = vadd.f32 %v1264, %v1509
    %v1558 = vadd.f32 %v1265, %v1510
    %v1559 = vadd.f32 %v1266, %v1511
    %v1560 = vadd.f32 %v1267, %v1512
    %v1561 = vadd.f32 %v1268, %v1513
    %v1562 = vadd.f32 %v1269, %v1514
    %v1563 = vadd.f32 %v1270, %v1515
    %v1564 = vadd.f32 %v1271, %v1516
    %v1565 = vadd.f32 %v1272, %v1517
    %v1566 = vadd.f32 %v1273, %v1518
    %v1567 = vadd.f32 %v1274, %v1519
    %v1568 = vadd.f32 %v1275, %v1520
    %v1569 = vadd.f32 %v1276, %v1521
    %v1570 = vadd.f32 %v1277, %v1522
    %v1571 = vadd.f32 %v1278, %v1523
    %v1572 = vadd.f32 %v1279, %v1524
    %v1573 = vadd.f32 %v1280, %v1525
    %v1574 = vadd.f32 %v1281, %v1526
    %v1575 = vadd.f32 %v1282, %v1527
    %v1576 = vadd.f32 %v1283, %v1528
    %v1577 = vadd.f32 %v1284, %v1529
    %v1578 = vadd.f32 %v1285, %v1530
    %v1579 = vadd.f32 %v1286, %v1531
    %v1580 = vadd.f32 %v1287, %v1532
    %v1581 = vadd.f32 %v1288, %v1533
    %v1582 = vadd.f32 %v1289, %v1534
    %v1583 = vadd.f32 %v1290, %v1535
    %v1584 = vadd.f32 %v1291, %v1536
    %v1585 = vadd.f32 %v1292, %v1537
    %v1586 = vadd.f32 %v1293, %v1538
    %v1587 = vadd.f32 %v1294, %v1539
    %v1588 = vadd.f32 %v1295, %v1540
    %v1589 = vadd.f32 %v1296, %v1541
    %v1590 = vadd.f32 %v1297, %v1542
    %v1591 = vadd.f32 %v1298, %v1543
    %v1592 = vadd.f32 %v1299, %v1544
    %v1593 = vadd.f32 %v1300, %v1545
    %v1594 = vadd.f32 %v1301, %v1546
    %v1595 = vadd.f32 %v1302, %v1547
    %v1596 = vadd.f32 %v1303, %v1548
    %v1597 = vld [vmem:[%s1 + $0x5] sm:$0x1]
    %1598 = vset.pattern.permute.xlu0 5
    %1599 = vperm.xlu0 %1598, %v36
    %v1600 = vpop.permute.xlu0 %1599
    %1602 = vset.pattern.permute.xlu0 5
    %1603 = vperm.xlu0 %1602, %v37
    %v1604 = vpop.permute.xlu0 %1603
    %1606 = vset.pattern.permute.xlu0 5
    %1607 = vperm.xlu0 %1606, %v38
    %v1608 = vpop.permute.xlu0 %1607
    %1610 = vset.pattern.permute.xlu0 5
    %1611 = vperm.xlu0 %1610, %v39
    %v1612 = vpop.permute.xlu0 %1611
    %1614 = vset.pattern.permute.xlu0 5
    %1615 = vperm.xlu0 %1614, %v40
    %v1616 = vpop.permute.xlu0 %1615
    %1618 = vset.pattern.permute.xlu0 5
    %1619 = vperm.xlu0 %1618, %v41
    %v1620 = vpop.permute.xlu0 %1619
    %1622 = vset.pattern.permute.xlu0 5
    %1623 = vperm.xlu0 %1622, %v42
    %v1624 = vpop.permute.xlu0 %1623
    %1626 = vset.pattern.permute.xlu0 5
    %1627 = vperm.xlu0 %1626, %v43
    %v1628 = vpop.permute.xlu0 %1627
    %1630 = vset.pattern.permute.xlu0 5
    %1631 = vperm.xlu0 %1630, %v44
    %v1632 = vpop.permute.xlu0 %1631
    %1634 = vset.pattern.permute.xlu0 5
    %1635 = vperm.xlu0 %1634, %v45
    %v1636 = vpop.permute.xlu0 %1635
    %1638 = vset.pattern.permute.xlu0 5
    %1639 = vperm.xlu0 %1638, %v46
    %v1640 = vpop.permute.xlu0 %1639
    %1642 = vset.pattern.permute.xlu0 5
    %1643 = vperm.xlu0 %1642, %v47
    %v1644 = vpop.permute.xlu0 %1643
    %1646 = vset.pattern.permute.xlu0 5
    %1647 = vperm.xlu0 %1646, %v48
    %v1648 = vpop.permute.xlu0 %1647
    %1650 = vset.pattern.permute.xlu0 5
    %1651 = vperm.xlu0 %1650, %v49
    %v1652 = vpop.permute.xlu0 %1651
    %1654 = vset.pattern.permute.xlu0 5
    %1655 = vperm.xlu0 %1654, %v50
    %v1656 = vpop.permute.xlu0 %1655
    %1658 = vset.pattern.permute.xlu0 5
    %1659 = vperm.xlu0 %1658, %v51
    %v1660 = vpop.permute.xlu0 %1659
    %1662 = vset.pattern.permute.xlu0 5
    %1663 = vperm.xlu0 %1662, %v52
    %v1664 = vpop.permute.xlu0 %1663
    %1666 = vset.pattern.permute.xlu0 5
    %1667 = vperm.xlu0 %1666, %v53
    %v1668 = vpop.permute.xlu0 %1667
    %1670 = vset.pattern.permute.xlu0 5
    %1671 = vperm.xlu0 %1670, %v54
    %v1672 = vpop.permute.xlu0 %1671
    %1674 = vset.pattern.permute.xlu0 5
    %1675 = vperm.xlu0 %1674, %v55
    %v1676 = vpop.permute.xlu0 %1675
    %1678 = vset.pattern.permute.xlu0 5
    %1679 = vperm.xlu0 %1678, %v56
    %v1680 = vpop.permute.xlu0 %1679
    %1682 = vset.pattern.permute.xlu0 5
    %1683 = vperm.xlu0 %1682, %v57
    %v1684 = vpop.permute.xlu0 %1683
    %1686 = vset.pattern.permute.xlu0 5
    %1687 = vperm.xlu0 %1686, %v58
    %v1688 = vpop.permute.xlu0 %1687
    %1690 = vset.pattern.permute.xlu0 5
    %1691 = vperm.xlu0 %1690, %v59
    %v1692 = vpop.permute.xlu0 %1691
    %1694 = vset.pattern.permute.xlu0 5
    %1695 = vperm.xlu0 %1694, %v60
    %v1696 = vpop.permute.xlu0 %1695
    %1698 = vset.pattern.permute.xlu0 5
    %1699 = vperm.xlu0 %1698, %v61
    %v1700 = vpop.permute.xlu0 %1699
    %1702 = vset.pattern.permute.xlu0 5
    %1703 = vperm.xlu0 %1702, %v62
    %v1704 = vpop.permute.xlu0 %1703
    %1706 = vset.pattern.permute.xlu0 5
    %1707 = vperm.xlu0 %1706, %v63
    %v1708 = vpop.permute.xlu0 %1707
    %1710 = vset.pattern.permute.xlu0 5
    %1711 = vperm.xlu0 %1710, %v64
    %v1712 = vpop.permute.xlu0 %1711
    %1714 = vset.pattern.permute.xlu0 5
    %1715 = vperm.xlu0 %1714, %v65
    %v1716 = vpop.permute.xlu0 %1715
    %1718 = vset.pattern.permute.xlu0 5
    %1719 = vperm.xlu0 %1718, %v66
    %v1720 = vpop.permute.xlu0 %1719
    %1722 = vset.pattern.permute.xlu0 5
    %1723 = vperm.xlu0 %1722, %v67
    %v1724 = vpop.permute.xlu0 %1723
    %1726 = vset.pattern.permute.xlu0 5
    %1727 = vperm.xlu0 %1726, %v68
    %v1728 = vpop.permute.xlu0 %1727
    %1730 = vset.pattern.permute.xlu0 5
    %1731 = vperm.xlu0 %1730, %v69
    %v1732 = vpop.permute.xlu0 %1731
    %1734 = vset.pattern.permute.xlu0 5
    %1735 = vperm.xlu0 %1734, %v70
    %v1736 = vpop.permute.xlu0 %1735
    %1738 = vset.pattern.permute.xlu0 5
    %1739 = vperm.xlu0 %1738, %v71
    %v1740 = vpop.permute.xlu0 %1739
    %1742 = vset.pattern.permute.xlu0 5
    %1743 = vperm.xlu0 %1742, %v72
    %v1744 = vpop.permute.xlu0 %1743
    %1746 = vset.pattern.permute.xlu0 5
    %1747 = vperm.xlu0 %1746, %v73
    %v1748 = vpop.permute.xlu0 %1747
    %1750 = vset.pattern.permute.xlu0 5
    %1751 = vperm.xlu0 %1750, %v74
    %v1752 = vpop.permute.xlu0 %1751
    %1754 = vset.pattern.permute.xlu0 5
    %1755 = vperm.xlu0 %1754, %v75
    %v1756 = vpop.permute.xlu0 %1755
    %1758 = vset.pattern.permute.xlu0 5
    %1759 = vperm.xlu0 %1758, %v76
    %v1760 = vpop.permute.xlu0 %1759
    %1762 = vset.pattern.permute.xlu0 5
    %1763 = vperm.xlu0 %1762, %v77
    %v1764 = vpop.permute.xlu0 %1763
    %1766 = vset.pattern.permute.xlu0 5
    %1767 = vperm.xlu0 %1766, %v78
    %v1768 = vpop.permute.xlu0 %1767
    %1770 = vset.pattern.permute.xlu0 5
    %1771 = vperm.xlu0 %1770, %v79
    %v1772 = vpop.permute.xlu0 %1771
    %1774 = vset.pattern.permute.xlu0 5
    %1775 = vperm.xlu0 %1774, %v80
    %v1776 = vpop.permute.xlu0 %1775
    %1778 = vset.pattern.permute.xlu0 5
    %1779 = vperm.xlu0 %1778, %v81
    %v1780 = vpop.permute.xlu0 %1779
    %1782 = vset.pattern.permute.xlu0 5
    %1783 = vperm.xlu0 %1782, %v82
    %v1784 = vpop.permute.xlu0 %1783
    %1786 = vset.pattern.permute.xlu0 5
    %1787 = vperm.xlu0 %1786, %v83
    %v1788 = vpop.permute.xlu0 %1787
    %v1790 = vlaneseq
    %v1791 = vshrl.u32 %v1790, 7
    %v1792 = vsub.s32 0, %v1791
    %v1793 = vrot.slane %v1597, %v1792
    %v1794 = vmul.f32 %v1600, %v1793
    %v1795 = vmul.f32 %v1604, %v1793
    %v1796 = vmul.f32 %v1608, %v1793
    %v1797 = vmul.f32 %v1612, %v1793
    %v1798 = vmul.f32 %v1616, %v1793
    %v1799 = vmul.f32 %v1620, %v1793
    %v1800 = vmul.f32 %v1624, %v1793
    %v1801 = vmul.f32 %v1628, %v1793
    %v1802 = vmul.f32 %v1632, %v1793
    %v1803 = vmul.f32 %v1636, %v1793
    %v1804 = vmul.f32 %v1640, %v1793
    %v1805 = vmul.f32 %v1644, %v1793
    %v1806 = vmul.f32 %v1648, %v1793
    %v1807 = vmul.f32 %v1652, %v1793
    %v1808 = vmul.f32 %v1656, %v1793
    %v1809 = vmul.f32 %v1660, %v1793
    %v1810 = vmul.f32 %v1664, %v1793
    %v1811 = vmul.f32 %v1668, %v1793
    %v1812 = vmul.f32 %v1672, %v1793
    %v1813 = vmul.f32 %v1676, %v1793
    %v1814 = vmul.f32 %v1680, %v1793
    %v1815 = vmul.f32 %v1684, %v1793
    %v1816 = vmul.f32 %v1688, %v1793
    %v1817 = vmul.f32 %v1692, %v1793
    %v1818 = vmul.f32 %v1696, %v1793
    %v1819 = vmul.f32 %v1700, %v1793
    %v1820 = vmul.f32 %v1704, %v1793
    %v1821 = vmul.f32 %v1708, %v1793
    %v1822 = vmul.f32 %v1712, %v1793
    %v1823 = vmul.f32 %v1716, %v1793
    %v1824 = vmul.f32 %v1720, %v1793
    %v1825 = vmul.f32 %v1724, %v1793
    %v1826 = vmul.f32 %v1728, %v1793
    %v1827 = vmul.f32 %v1732, %v1793
    %v1828 = vmul.f32 %v1736, %v1793
    %v1829 = vmul.f32 %v1740, %v1793
    %v1830 = vmul.f32 %v1744, %v1793
    %v1831 = vmul.f32 %v1748, %v1793
    %v1832 = vmul.f32 %v1752, %v1793
    %v1833 = vmul.f32 %v1756, %v1793
    %v1834 = vmul.f32 %v1760, %v1793
    %v1835 = vmul.f32 %v1764, %v1793
    %v1836 = vmul.f32 %v1768, %v1793
    %v1837 = vmul.f32 %v1772, %v1793
    %v1838 = vmul.f32 %v1776, %v1793
    %v1839 = vmul.f32 %v1780, %v1793
    %v1840 = vmul.f32 %v1784, %v1793
    %v1841 = vmul.f32 %v1788, %v1793
    %v1842 = vadd.f32 %v1549, %v1794
    %v1843 = vadd.f32 %v1550, %v1795
    %v1844 = vadd.f32 %v1551, %v1796
    %v1845 = vadd.f32 %v1552, %v1797
    %v1846 = vadd.f32 %v1553, %v1798
    %v1847 = vadd.f32 %v1554, %v1799
    %v1848 = vadd.f32 %v1555, %v1800
    %v1849 = vadd.f32 %v1556, %v1801
    %v1850 = vadd.f32 %v1557, %v1802
    %v1851 = vadd.f32 %v1558, %v1803
    %v1852 = vadd.f32 %v1559, %v1804
    %v1853 = vadd.f32 %v1560, %v1805
    %v1854 = vadd.f32 %v1561, %v1806
    %v1855 = vadd.f32 %v1562, %v1807
    %v1856 = vadd.f32 %v1563, %v1808
    %v1857 = vadd.f32 %v1564, %v1809
    %v1858 = vadd.f32 %v1565, %v1810
    %v1859 = vadd.f32 %v1566, %v1811
    %v1860 = vadd.f32 %v1567, %v1812
    %v1861 = vadd.f32 %v1568, %v1813
    %v1862 = vadd.f32 %v1569, %v1814
    %v1863 = vadd.f32 %v1570, %v1815
    %v1864 = vadd.f32 %v1571, %v1816
    %v1865 = vadd.f32 %v1572, %v1817
    %v1866 = vadd.f32 %v1573, %v1818
    %v1867 = vadd.f32 %v1574, %v1819
    %v1868 = vadd.f32 %v1575, %v1820
    %v1869 = vadd.f32 %v1576, %v1821
    %v1870 = vadd.f32 %v1577, %v1822
    %v1871 = vadd.f32 %v1578, %v1823
    %v1872 = vadd.f32 %v1579, %v1824
    %v1873 = vadd.f32 %v1580, %v1825
    %v1874 = vadd.f32 %v1581, %v1826
    %v1875 = vadd.f32 %v1582, %v1827
    %v1876 = vadd.f32 %v1583, %v1828
    %v1877 = vadd.f32 %v1584, %v1829
    %v1878 = vadd.f32 %v1585, %v1830
    %v1879 = vadd.f32 %v1586, %v1831
    %v1880 = vadd.f32 %v1587, %v1832
    %v1881 = vadd.f32 %v1588, %v1833
    %v1882 = vadd.f32 %v1589, %v1834
    %v1883 = vadd.f32 %v1590, %v1835
    %v1884 = vadd.f32 %v1591, %v1836
    %v1885 = vadd.f32 %v1592, %v1837
    %v1886 = vadd.f32 %v1593, %v1838
    %v1887 = vadd.f32 %v1594, %v1839
    %v1888 = vadd.f32 %v1595, %v1840
    %v1889 = vadd.f32 %v1596, %v1841
    %v1890 = vld [vmem:[%s1 + $0x6] sm:$0x1]
    %1891 = vset.pattern.permute.xlu0 6
    %1892 = vperm.xlu0 %1891, %v36
    %v1893 = vpop.permute.xlu0 %1892
    %1895 = vset.pattern.permute.xlu0 6
    %1896 = vperm.xlu0 %1895, %v37
    %v1897 = vpop.permute.xlu0 %1896
    %1899 = vset.pattern.permute.xlu0 6
    %1900 = vperm.xlu0 %1899, %v38
    %v1901 = vpop.permute.xlu0 %1900
    %1903 = vset.pattern.permute.xlu0 6
    %1904 = vperm.xlu0 %1903, %v39
    %v1905 = vpop.permute.xlu0 %1904
    %1907 = vset.pattern.permute.xlu0 6
    %1908 = vperm.xlu0 %1907, %v40
    %v1909 = vpop.permute.xlu0 %1908
    %1911 = vset.pattern.permute.xlu0 6
    %1912 = vperm.xlu0 %1911, %v41
    %v1913 = vpop.permute.xlu0 %1912
    %1915 = vset.pattern.permute.xlu0 6
    %1916 = vperm.xlu0 %1915, %v42
    %v1917 = vpop.permute.xlu0 %1916
    %1919 = vset.pattern.permute.xlu0 6
    %1920 = vperm.xlu0 %1919, %v43
    %v1921 = vpop.permute.xlu0 %1920
    %1923 = vset.pattern.permute.xlu0 6
    %1924 = vperm.xlu0 %1923, %v44
    %v1925 = vpop.permute.xlu0 %1924
    %1927 = vset.pattern.permute.xlu0 6
    %1928 = vperm.xlu0 %1927, %v45
    %v1929 = vpop.permute.xlu0 %1928
    %1931 = vset.pattern.permute.xlu0 6
    %1932 = vperm.xlu0 %1931, %v46
    %v1933 = vpop.permute.xlu0 %1932
    %1935 = vset.pattern.permute.xlu0 6
    %1936 = vperm.xlu0 %1935, %v47
    %v1937 = vpop.permute.xlu0 %1936
    %1939 = vset.pattern.permute.xlu0 6
    %1940 = vperm.xlu0 %1939, %v48
    %v1941 = vpop.permute.xlu0 %1940
    %1943 = vset.pattern.permute.xlu0 6
    %1944 = vperm.xlu0 %1943, %v49
    %v1945 = vpop.permute.xlu0 %1944
    %1947 = vset.pattern.permute.xlu0 6
    %1948 = vperm.xlu0 %1947, %v50
    %v1949 = vpop.permute.xlu0 %1948
    %1951 = vset.pattern.permute.xlu0 6
    %1952 = vperm.xlu0 %1951, %v51
    %v1953 = vpop.permute.xlu0 %1952
    %1955 = vset.pattern.permute.xlu0 6
    %1956 = vperm.xlu0 %1955, %v52
    %v1957 = vpop.permute.xlu0 %1956
    %1959 = vset.pattern.permute.xlu0 6
    %1960 = vperm.xlu0 %1959, %v53
    %v1961 = vpop.permute.xlu0 %1960
    %1963 = vset.pattern.permute.xlu0 6
    %1964 = vperm.xlu0 %1963, %v54
    %v1965 = vpop.permute.xlu0 %1964
    %1967 = vset.pattern.permute.xlu0 6
    %1968 = vperm.xlu0 %1967, %v55
    %v1969 = vpop.permute.xlu0 %1968
    %1971 = vset.pattern.permute.xlu0 6
    %1972 = vperm.xlu0 %1971, %v56
    %v1973 = vpop.permute.xlu0 %1972
    %1975 = vset.pattern.permute.xlu0 6
    %1976 = vperm.xlu0 %1975, %v57
    %v1977 = vpop.permute.xlu0 %1976
    %1979 = vset.pattern.permute.xlu0 6
    %1980 = vperm.xlu0 %1979, %v58
    %v1981 = vpop.permute.xlu0 %1980
    %1983 = vset.pattern.permute.xlu0 6
    %1984 = vperm.xlu0 %1983, %v59
    %v1985 = vpop.permute.xlu0 %1984
    %1987 = vset.pattern.permute.xlu0 6
    %1988 = vperm.xlu0 %1987, %v60
    %v1989 = vpop.permute.xlu0 %1988
    %1991 = vset.pattern.permute.xlu0 6
    %1992 = vperm.xlu0 %1991, %v61
    %v1993 = vpop.permute.xlu0 %1992
    %1995 = vset.pattern.permute.xlu0 6
    %1996 = vperm.xlu0 %1995, %v62
    %v1997 = vpop.permute.xlu0 %1996
    %1999 = vset.pattern.permute.xlu0 6
    %2000 = vperm.xlu0 %1999, %v63
    %v2001 = vpop.permute.xlu0 %2000
    %2003 = vset.pattern.permute.xlu0 6
    %2004 = vperm.xlu0 %2003, %v64
    %v2005 = vpop.permute.xlu0 %2004
    %2007 = vset.pattern.permute.xlu0 6
    %2008 = vperm.xlu0 %2007, %v65
    %v2009 = vpop.permute.xlu0 %2008
    %2011 = vset.pattern.permute.xlu0 6
    %2012 = vperm.xlu0 %2011, %v66
    %v2013 = vpop.permute.xlu0 %2012
    %2015 = vset.pattern.permute.xlu0 6
    %2016 = vperm.xlu0 %2015, %v67
    %v2017 = vpop.permute.xlu0 %2016
    %2019 = vset.pattern.permute.xlu0 6
    %2020 = vperm.xlu0 %2019, %v68
    %v2021 = vpop.permute.xlu0 %2020
    %2023 = vset.pattern.permute.xlu0 6
    %2024 = vperm.xlu0 %2023, %v69
    %v2025 = vpop.permute.xlu0 %2024
    %2027 = vset.pattern.permute.xlu0 6
    %2028 = vperm.xlu0 %2027, %v70
    %v2029 = vpop.permute.xlu0 %2028
    %2031 = vset.pattern.permute.xlu0 6
    %2032 = vperm.xlu0 %2031, %v71
    %v2033 = vpop.permute.xlu0 %2032
    %2035 = vset.pattern.permute.xlu0 6
    %2036 = vperm.xlu0 %2035, %v72
    %v2037 = vpop.permute.xlu0 %2036
    %2039 = vset.pattern.permute.xlu0 6
    %2040 = vperm.xlu0 %2039, %v73
    %v2041 = vpop.permute.xlu0 %2040
    %2043 = vset.pattern.permute.xlu0 6
    %2044 = vperm.xlu0 %2043, %v74
    %v2045 = vpop.permute.xlu0 %2044
    %2047 = vset.pattern.permute.xlu0 6
    %2048 = vperm.xlu0 %2047, %v75
    %v2049 = vpop.permute.xlu0 %2048
    %2051 = vset.pattern.permute.xlu0 6
    %2052 = vperm.xlu0 %2051, %v76
    %v2053 = vpop.permute.xlu0 %2052
    %2055 = vset.pattern.permute.xlu0 6
    %2056 = vperm.xlu0 %2055, %v77
    %v2057 = vpop.permute.xlu0 %2056
    %2059 = vset.pattern.permute.xlu0 6
    %2060 = vperm.xlu0 %2059, %v78
    %v2061 = vpop.permute.xlu0 %2060
    %2063 = vset.pattern.permute.xlu0 6
    %2064 = vperm.xlu0 %2063, %v79
    %v2065 = vpop.permute.xlu0 %2064
    %2067 = vset.pattern.permute.xlu0 6
    %2068 = vperm.xlu0 %2067, %v80
    %v2069 = vpop.permute.xlu0 %2068
    %2071 = vset.pattern.permute.xlu0 6
    %2072 = vperm.xlu0 %2071, %v81
    %v2073 = vpop.permute.xlu0 %2072
    %2075 = vset.pattern.permute.xlu0 6
    %2076 = vperm.xlu0 %2075, %v82
    %v2077 = vpop.permute.xlu0 %2076
    %2079 = vset.pattern.permute.xlu0 6
    %2080 = vperm.xlu0 %2079, %v83
    %v2081 = vpop.permute.xlu0 %2080
    %v2083 = vlaneseq
    %v2084 = vshrl.u32 %v2083, 7
    %v2085 = vsub.s32 0, %v2084
    %v2086 = vrot.slane %v1890, %v2085
    %v2087 = vmul.f32 %v1893, %v2086
    %v2088 = vmul.f32 %v1897, %v2086
    %v2089 = vmul.f32 %v1901, %v2086
    %v2090 = vmul.f32 %v1905, %v2086
    %v2091 = vmul.f32 %v1909, %v2086
    %v2092 = vmul.f32 %v1913, %v2086
    %v2093 = vmul.f32 %v1917, %v2086
    %v2094 = vmul.f32 %v1921, %v2086
    %v2095 = vmul.f32 %v1925, %v2086
    %v2096 = vmul.f32 %v1929, %v2086
    %v2097 = vmul.f32 %v1933, %v2086
    %v2098 = vmul.f32 %v1937, %v2086
    %v2099 = vmul.f32 %v1941, %v2086
    %v2100 = vmul.f32 %v1945, %v2086
    %v2101 = vmul.f32 %v1949, %v2086
    %v2102 = vmul.f32 %v1953, %v2086
    %v2103 = vmul.f32 %v1957, %v2086
    %v2104 = vmul.f32 %v1961, %v2086
    %v2105 = vmul.f32 %v1965, %v2086
    %v2106 = vmul.f32 %v1969, %v2086
    %v2107 = vmul.f32 %v1973, %v2086
    %v2108 = vmul.f32 %v1977, %v2086
    %v2109 = vmul.f32 %v1981, %v2086
    %v2110 = vmul.f32 %v1985, %v2086
    %v2111 = vmul.f32 %v1989, %v2086
    %v2112 = vmul.f32 %v1993, %v2086
    %v2113 = vmul.f32 %v1997, %v2086
    %v2114 = vmul.f32 %v2001, %v2086
    %v2115 = vmul.f32 %v2005, %v2086
    %v2116 = vmul.f32 %v2009, %v2086
    %v2117 = vmul.f32 %v2013, %v2086
    %v2118 = vmul.f32 %v2017, %v2086
    %v2119 = vmul.f32 %v2021, %v2086
    %v2120 = vmul.f32 %v2025, %v2086
    %v2121 = vmul.f32 %v2029, %v2086
    %v2122 = vmul.f32 %v2033, %v2086
    %v2123 = vmul.f32 %v2037, %v2086
    %v2124 = vmul.f32 %v2041, %v2086
    %v2125 = vmul.f32 %v2045, %v2086
    %v2126 = vmul.f32 %v2049, %v2086
    %v2127 = vmul.f32 %v2053, %v2086
    %v2128 = vmul.f32 %v2057, %v2086
    %v2129 = vmul.f32 %v2061, %v2086
    %v2130 = vmul.f32 %v2065, %v2086
    %v2131 = vmul.f32 %v2069, %v2086
    %v2132 = vmul.f32 %v2073, %v2086
    %v2133 = vmul.f32 %v2077, %v2086
    %v2134 = vmul.f32 %v2081, %v2086
    %v2135 = vadd.f32 %v1842, %v2087
    %v2136 = vadd.f32 %v1843, %v2088
    %v2137 = vadd.f32 %v1844, %v2089
    %v2138 = vadd.f32 %v1845, %v2090
    %v2139 = vadd.f32 %v1846, %v2091
    %v2140 = vadd.f32 %v1847, %v2092
    %v2141 = vadd.f32 %v1848, %v2093
    %v2142 = vadd.f32 %v1849, %v2094
    %v2143 = vadd.f32 %v1850, %v2095
    %v2144 = vadd.f32 %v1851, %v2096
    %v2145 = vadd.f32 %v1852, %v2097
    %v2146 = vadd.f32 %v1853, %v2098
    %v2147 = vadd.f32 %v1854, %v2099
    %v2148 = vadd.f32 %v1855, %v2100
    %v2149 = vadd.f32 %v1856, %v2101
    %v2150 = vadd.f32 %v1857, %v2102
    %v2151 = vadd.f32 %v1858, %v2103
    %v2152 = vadd.f32 %v1859, %v2104
    %v2153 = vadd.f32 %v1860, %v2105
    %v2154 = vadd.f32 %v1861, %v2106
    %v2155 = vadd.f32 %v1862, %v2107
    %v2156 = vadd.f32 %v1863, %v2108
    %v2157 = vadd.f32 %v1864, %v2109
    %v2158 = vadd.f32 %v1865, %v2110
    %v2159 = vadd.f32 %v1866, %v2111
    %v2160 = vadd.f32 %v1867, %v2112
    %v2161 = vadd.f32 %v1868, %v2113
    %v2162 = vadd.f32 %v1869, %v2114
    %v2163 = vadd.f32 %v1870, %v2115
    %v2164 = vadd.f32 %v1871, %v2116
    %v2165 = vadd.f32 %v1872, %v2117
    %v2166 = vadd.f32 %v1873, %v2118
    %v2167 = vadd.f32 %v1874, %v2119
    %v2168 = vadd.f32 %v1875, %v2120
    %v2169 = vadd.f32 %v1876, %v2121
    %v2170 = vadd.f32 %v1877, %v2122
    %v2171 = vadd.f32 %v1878, %v2123
    %v2172 = vadd.f32 %v1879, %v2124
    %v2173 = vadd.f32 %v1880, %v2125
    %v2174 = vadd.f32 %v1881, %v2126
    %v2175 = vadd.f32 %v1882, %v2127
    %v2176 = vadd.f32 %v1883, %v2128
    %v2177 = vadd.f32 %v1884, %v2129
    %v2178 = vadd.f32 %v1885, %v2130
    %v2179 = vadd.f32 %v1886, %v2131
    %v2180 = vadd.f32 %v1887, %v2132
    %v2181 = vadd.f32 %v1888, %v2133
    %v2182 = vadd.f32 %v1889, %v2134
    %v2183 = vld [vmem:[%s1 + $0x7] sm:$0x1]
    %2184 = vset.pattern.permute.xlu0 7
    %2185 = vperm.xlu0 %2184, %v36
    %v2186 = vpop.permute.xlu0 %2185
    %2188 = vset.pattern.permute.xlu0 7
    %2189 = vperm.xlu0 %2188, %v37
    %v2190 = vpop.permute.xlu0 %2189
    %2192 = vset.pattern.permute.xlu0 7
    %2193 = vperm.xlu0 %2192, %v38
    %v2194 = vpop.permute.xlu0 %2193
    %2196 = vset.pattern.permute.xlu0 7
    %2197 = vperm.xlu0 %2196, %v39
    %v2198 = vpop.permute.xlu0 %2197
    %2200 = vset.pattern.permute.xlu0 7
    %2201 = vperm.xlu0 %2200, %v40
    %v2202 = vpop.permute.xlu0 %2201
    %2204 = vset.pattern.permute.xlu0 7
    %2205 = vperm.xlu0 %2204, %v41
    %v2206 = vpop.permute.xlu0 %2205
    %2208 = vset.pattern.permute.xlu0 7
    %2209 = vperm.xlu0 %2208, %v42
    %v2210 = vpop.permute.xlu0 %2209
    %2212 = vset.pattern.permute.xlu0 7
    %2213 = vperm.xlu0 %2212, %v43
    %v2214 = vpop.permute.xlu0 %2213
    %2216 = vset.pattern.permute.xlu0 7
    %2217 = vperm.xlu0 %2216, %v44
    %v2218 = vpop.permute.xlu0 %2217
    %2220 = vset.pattern.permute.xlu0 7
    %2221 = vperm.xlu0 %2220, %v45
    %v2222 = vpop.permute.xlu0 %2221
    %2224 = vset.pattern.permute.xlu0 7
    %2225 = vperm.xlu0 %2224, %v46
    %v2226 = vpop.permute.xlu0 %2225
    %2228 = vset.pattern.permute.xlu0 7
    %2229 = vperm.xlu0 %2228, %v47
    %v2230 = vpop.permute.xlu0 %2229
    %2232 = vset.pattern.permute.xlu0 7
    %2233 = vperm.xlu0 %2232, %v48
    %v2234 = vpop.permute.xlu0 %2233
    %2236 = vset.pattern.permute.xlu0 7
    %2237 = vperm.xlu0 %2236, %v49
    %v2238 = vpop.permute.xlu0 %2237
    %2240 = vset.pattern.permute.xlu0 7
    %2241 = vperm.xlu0 %2240, %v50
    %v2242 = vpop.permute.xlu0 %2241
    %2244 = vset.pattern.permute.xlu0 7
    %2245 = vperm.xlu0 %2244, %v51
    %v2246 = vpop.permute.xlu0 %2245
    %2248 = vset.pattern.permute.xlu0 7
    %2249 = vperm.xlu0 %2248, %v52
    %v2250 = vpop.permute.xlu0 %2249
    %2252 = vset.pattern.permute.xlu0 7
    %2253 = vperm.xlu0 %2252, %v53
    %v2254 = vpop.permute.xlu0 %2253
    %2256 = vset.pattern.permute.xlu0 7
    %2257 = vperm.xlu0 %2256, %v54
    %v2258 = vpop.permute.xlu0 %2257
    %2260 = vset.pattern.permute.xlu0 7
    %2261 = vperm.xlu0 %2260, %v55
    %v2262 = vpop.permute.xlu0 %2261
    %2264 = vset.pattern.permute.xlu0 7
    %2265 = vperm.xlu0 %2264, %v56
    %v2266 = vpop.permute.xlu0 %2265
    %2268 = vset.pattern.permute.xlu0 7
    %2269 = vperm.xlu0 %2268, %v57
    %v2270 = vpop.permute.xlu0 %2269
    %2272 = vset.pattern.permute.xlu0 7
    %2273 = vperm.xlu0 %2272, %v58
    %v2274 = vpop.permute.xlu0 %2273
    %2276 = vset.pattern.permute.xlu0 7
    %2277 = vperm.xlu0 %2276, %v59
    %v2278 = vpop.permute.xlu0 %2277
    %2280 = vset.pattern.permute.xlu0 7
    %2281 = vperm.xlu0 %2280, %v60
    %v2282 = vpop.permute.xlu0 %2281
    %2284 = vset.pattern.permute.xlu0 7
    %2285 = vperm.xlu0 %2284, %v61
    %v2286 = vpop.permute.xlu0 %2285
    %2288 = vset.pattern.permute.xlu0 7
    %2289 = vperm.xlu0 %2288, %v62
    %v2290 = vpop.permute.xlu0 %2289
    %2292 = vset.pattern.permute.xlu0 7
    %2293 = vperm.xlu0 %2292, %v63
    %v2294 = vpop.permute.xlu0 %2293
    %2296 = vset.pattern.permute.xlu0 7
    %2297 = vperm.xlu0 %2296, %v64
    %v2298 = vpop.permute.xlu0 %2297
    %2300 = vset.pattern.permute.xlu0 7
    %2301 = vperm.xlu0 %2300, %v65
    %v2302 = vpop.permute.xlu0 %2301
    %2304 = vset.pattern.permute.xlu0 7
    %2305 = vperm.xlu0 %2304, %v66
    %v2306 = vpop.permute.xlu0 %2305
    %2308 = vset.pattern.permute.xlu0 7
    %2309 = vperm.xlu0 %2308, %v67
    %v2310 = vpop.permute.xlu0 %2309
    %2312 = vset.pattern.permute.xlu0 7
    %2313 = vperm.xlu0 %2312, %v68
    %v2314 = vpop.permute.xlu0 %2313
    %2316 = vset.pattern.permute.xlu0 7
    %2317 = vperm.xlu0 %2316, %v69
    %v2318 = vpop.permute.xlu0 %2317
    %2320 = vset.pattern.permute.xlu0 7
    %2321 = vperm.xlu0 %2320, %v70
    %v2322 = vpop.permute.xlu0 %2321
    %2324 = vset.pattern.permute.xlu0 7
    %2325 = vperm.xlu0 %2324, %v71
    %v2326 = vpop.permute.xlu0 %2325
    %2328 = vset.pattern.permute.xlu0 7
    %2329 = vperm.xlu0 %2328, %v72
    %v2330 = vpop.permute.xlu0 %2329
    %2332 = vset.pattern.permute.xlu0 7
    %2333 = vperm.xlu0 %2332, %v73
    %v2334 = vpop.permute.xlu0 %2333
    %2336 = vset.pattern.permute.xlu0 7
    %2337 = vperm.xlu0 %2336, %v74
    %v2338 = vpop.permute.xlu0 %2337
    %2340 = vset.pattern.permute.xlu0 7
    %2341 = vperm.xlu0 %2340, %v75
    %v2342 = vpop.permute.xlu0 %2341
    %2344 = vset.pattern.permute.xlu0 7
    %2345 = vperm.xlu0 %2344, %v76
    %v2346 = vpop.permute.xlu0 %2345
    %2348 = vset.pattern.permute.xlu0 7
    %2349 = vperm.xlu0 %2348, %v77
    %v2350 = vpop.permute.xlu0 %2349
    %2352 = vset.pattern.permute.xlu0 7
    %2353 = vperm.xlu0 %2352, %v78
    %v2354 = vpop.permute.xlu0 %2353
    %2356 = vset.pattern.permute.xlu0 7
    %2357 = vperm.xlu0 %2356, %v79
    %v2358 = vpop.permute.xlu0 %2357
    %2360 = vset.pattern.permute.xlu0 7
    %2361 = vperm.xlu0 %2360, %v80
    %v2362 = vpop.permute.xlu0 %2361
    %2364 = vset.pattern.permute.xlu0 7
    %2365 = vperm.xlu0 %2364, %v81
    %v2366 = vpop.permute.xlu0 %2365
    %2368 = vset.pattern.permute.xlu0 7
    %2369 = vperm.xlu0 %2368, %v82
    %v2370 = vpop.permute.xlu0 %2369
    %2372 = vset.pattern.permute.xlu0 7
    %2373 = vperm.xlu0 %2372, %v83
    %v2374 = vpop.permute.xlu0 %2373
    %v2376 = vlaneseq
    %v2377 = vshrl.u32 %v2376, 7
    %v2378 = vsub.s32 0, %v2377
    %v2379 = vrot.slane %v2183, %v2378
    %v2380 = vmul.f32 %v2186, %v2379
    %v2381 = vmul.f32 %v2190, %v2379
    %v2382 = vmul.f32 %v2194, %v2379
    %v2383 = vmul.f32 %v2198, %v2379
    %v2384 = vmul.f32 %v2202, %v2379
    %v2385 = vmul.f32 %v2206, %v2379
    %v2386 = vmul.f32 %v2210, %v2379
    %v2387 = vmul.f32 %v2214, %v2379
    %v2388 = vmul.f32 %v2218, %v2379
    %v2389 = vmul.f32 %v2222, %v2379
    %v2390 = vmul.f32 %v2226, %v2379
    %v2391 = vmul.f32 %v2230, %v2379
    %v2392 = vmul.f32 %v2234, %v2379
    %v2393 = vmul.f32 %v2238, %v2379
    %v2394 = vmul.f32 %v2242, %v2379
    %v2395 = vmul.f32 %v2246, %v2379
    %v2396 = vmul.f32 %v2250, %v2379
    %v2397 = vmul.f32 %v2254, %v2379
    %v2398 = vmul.f32 %v2258, %v2379
    %v2399 = vmul.f32 %v2262, %v2379
    %v2400 = vmul.f32 %v2266, %v2379
    %v2401 = vmul.f32 %v2270, %v2379
    %v2402 = vmul.f32 %v2274, %v2379
    %v2403 = vmul.f32 %v2278, %v2379
    %v2404 = vmul.f32 %v2282, %v2379
    %v2405 = vmul.f32 %v2286, %v2379
    %v2406 = vmul.f32 %v2290, %v2379
    %v2407 = vmul.f32 %v2294, %v2379
    %v2408 = vmul.f32 %v2298, %v2379
    %v2409 = vmul.f32 %v2302, %v2379
    %v2410 = vmul.f32 %v2306, %v2379
    %v2411 = vmul.f32 %v2310, %v2379
    %v2412 = vmul.f32 %v2314, %v2379
    %v2413 = vmul.f32 %v2318, %v2379
    %v2414 = vmul.f32 %v2322, %v2379
    %v2415 = vmul.f32 %v2326, %v2379
    %v2416 = vmul.f32 %v2330, %v2379
    %v2417 = vmul.f32 %v2334, %v2379
    %v2418 = vmul.f32 %v2338, %v2379
    %v2419 = vmul.f32 %v2342, %v2379
    %v2420 = vmul.f32 %v2346, %v2379
    %v2421 = vmul.f32 %v2350, %v2379
    %v2422 = vmul.f32 %v2354, %v2379
    %v2423 = vmul.f32 %v2358, %v2379
    %v2424 = vmul.f32 %v2362, %v2379
    %v2425 = vmul.f32 %v2366, %v2379
    %v2426 = vmul.f32 %v2370, %v2379
    %v2427 = vmul.f32 %v2374, %v2379
    %v2428 = vadd.f32 %v2135, %v2380
    %v2429 = vadd.f32 %v2136, %v2381
    %v2430 = vadd.f32 %v2137, %v2382
    %v2431 = vadd.f32 %v2138, %v2383
    %v2432 = vadd.f32 %v2139, %v2384
    %v2433 = vadd.f32 %v2140, %v2385
    %v2434 = vadd.f32 %v2141, %v2386
    %v2435 = vadd.f32 %v2142, %v2387
    %v2436 = vadd.f32 %v2143, %v2388
    %v2437 = vadd.f32 %v2144, %v2389
    %v2438 = vadd.f32 %v2145, %v2390
    %v2439 = vadd.f32 %v2146, %v2391
    %v2440 = vadd.f32 %v2147, %v2392
    %v2441 = vadd.f32 %v2148, %v2393
    %v2442 = vadd.f32 %v2149, %v2394
    %v2443 = vadd.f32 %v2150, %v2395
    %v2444 = vadd.f32 %v2151, %v2396
    %v2445 = vadd.f32 %v2152, %v2397
    %v2446 = vadd.f32 %v2153, %v2398
    %v2447 = vadd.f32 %v2154, %v2399
    %v2448 = vadd.f32 %v2155, %v2400
    %v2449 = vadd.f32 %v2156, %v2401
    %v2450 = vadd.f32 %v2157, %v2402
    %v2451 = vadd.f32 %v2158, %v2403
    %v2452 = vadd.f32 %v2159, %v2404
    %v2453 = vadd.f32 %v2160, %v2405
    %v2454 = vadd.f32 %v2161, %v2406
    %v2455 = vadd.f32 %v2162, %v2407
    %v2456 = vadd.f32 %v2163, %v2408
    %v2457 = vadd.f32 %v2164, %v2409
    %v2458 = vadd.f32 %v2165, %v2410
    %v2459 = vadd.f32 %v2166, %v2411
    %v2460 = vadd.f32 %v2167, %v2412
    %v2461 = vadd.f32 %v2168, %v2413
    %v2462 = vadd.f32 %v2169, %v2414
    %v2463 = vadd.f32 %v2170, %v2415
    %v2464 = vadd.f32 %v2171, %v2416
    %v2465 = vadd.f32 %v2172, %v2417
    %v2466 = vadd.f32 %v2173, %v2418
    %v2467 = vadd.f32 %v2174, %v2419
    %v2468 = vadd.f32 %v2175, %v2420
    %v2469 = vadd.f32 %v2176, %v2421
    %v2470 = vadd.f32 %v2177, %v2422
    %v2471 = vadd.f32 %v2178, %v2423
    %v2472 = vadd.f32 %v2179, %v2424
    %v2473 = vadd.f32 %v2180, %v2425
    %v2474 = vadd.f32 %v2181, %v2426
    %v2475 = vadd.f32 %v2182, %v2427
    %v2476 = vld [vmem:[%s1 + $0x8] sm:$0x1]
    %2477 = vset.pattern.permute.xlu0 8
    %2478 = vperm.xlu0 %2477, %v36
    %v2479 = vpop.permute.xlu0 %2478
    %2481 = vset.pattern.permute.xlu0 8
    %2482 = vperm.xlu0 %2481, %v37
    %v2483 = vpop.permute.xlu0 %2482
    %2485 = vset.pattern.permute.xlu0 8
    %2486 = vperm.xlu0 %2485, %v38
    %v2487 = vpop.permute.xlu0 %2486
    %2489 = vset.pattern.permute.xlu0 8
    %2490 = vperm.xlu0 %2489, %v39
    %v2491 = vpop.permute.xlu0 %2490
    %2493 = vset.pattern.permute.xlu0 8
    %2494 = vperm.xlu0 %2493, %v40
    %v2495 = vpop.permute.xlu0 %2494
    %2497 = vset.pattern.permute.xlu0 8
    %2498 = vperm.xlu0 %2497, %v41
    %v2499 = vpop.permute.xlu0 %2498
    %2501 = vset.pattern.permute.xlu0 8
    %2502 = vperm.xlu0 %2501, %v42
    %v2503 = vpop.permute.xlu0 %2502
    %2505 = vset.pattern.permute.xlu0 8
    %2506 = vperm.xlu0 %2505, %v43
    %v2507 = vpop.permute.xlu0 %2506
    %2509 = vset.pattern.permute.xlu0 8
    %2510 = vperm.xlu0 %2509, %v44
    %v2511 = vpop.permute.xlu0 %2510
    %2513 = vset.pattern.permute.xlu0 8
    %2514 = vperm.xlu0 %2513, %v45
    %v2515 = vpop.permute.xlu0 %2514
    %2517 = vset.pattern.permute.xlu0 8
    %2518 = vperm.xlu0 %2517, %v46
    %v2519 = vpop.permute.xlu0 %2518
    %2521 = vset.pattern.permute.xlu0 8
    %2522 = vperm.xlu0 %2521, %v47
    %v2523 = vpop.permute.xlu0 %2522
    %2525 = vset.pattern.permute.xlu0 8
    %2526 = vperm.xlu0 %2525, %v48
    %v2527 = vpop.permute.xlu0 %2526
    %2529 = vset.pattern.permute.xlu0 8
    %2530 = vperm.xlu0 %2529, %v49
    %v2531 = vpop.permute.xlu0 %2530
    %2533 = vset.pattern.permute.xlu0 8
    %2534 = vperm.xlu0 %2533, %v50
    %v2535 = vpop.permute.xlu0 %2534
    %2537 = vset.pattern.permute.xlu0 8
    %2538 = vperm.xlu0 %2537, %v51
    %v2539 = vpop.permute.xlu0 %2538
    %2541 = vset.pattern.permute.xlu0 8
    %2542 = vperm.xlu0 %2541, %v52
    %v2543 = vpop.permute.xlu0 %2542
    %2545 = vset.pattern.permute.xlu0 8
    %2546 = vperm.xlu0 %2545, %v53
    %v2547 = vpop.permute.xlu0 %2546
    %2549 = vset.pattern.permute.xlu0 8
    %2550 = vperm.xlu0 %2549, %v54
    %v2551 = vpop.permute.xlu0 %2550
    %2553 = vset.pattern.permute.xlu0 8
    %2554 = vperm.xlu0 %2553, %v55
    %v2555 = vpop.permute.xlu0 %2554
    %2557 = vset.pattern.permute.xlu0 8
    %2558 = vperm.xlu0 %2557, %v56
    %v2559 = vpop.permute.xlu0 %2558
    %2561 = vset.pattern.permute.xlu0 8
    %2562 = vperm.xlu0 %2561, %v57
    %v2563 = vpop.permute.xlu0 %2562
    %2565 = vset.pattern.permute.xlu0 8
    %2566 = vperm.xlu0 %2565, %v58
    %v2567 = vpop.permute.xlu0 %2566
    %2569 = vset.pattern.permute.xlu0 8
    %2570 = vperm.xlu0 %2569, %v59
    %v2571 = vpop.permute.xlu0 %2570
    %2573 = vset.pattern.permute.xlu0 8
    %2574 = vperm.xlu0 %2573, %v60
    %v2575 = vpop.permute.xlu0 %2574
    %2577 = vset.pattern.permute.xlu0 8
    %2578 = vperm.xlu0 %2577, %v61
    %v2579 = vpop.permute.xlu0 %2578
    %2581 = vset.pattern.permute.xlu0 8
    %2582 = vperm.xlu0 %2581, %v62
    %v2583 = vpop.permute.xlu0 %2582
    %2585 = vset.pattern.permute.xlu0 8
    %2586 = vperm.xlu0 %2585, %v63
    %v2587 = vpop.permute.xlu0 %2586
    %2589 = vset.pattern.permute.xlu0 8
    %2590 = vperm.xlu0 %2589, %v64
    %v2591 = vpop.permute.xlu0 %2590
    %2593 = vset.pattern.permute.xlu0 8
    %2594 = vperm.xlu0 %2593, %v65
    %v2595 = vpop.permute.xlu0 %2594
    %2597 = vset.pattern.permute.xlu0 8
    %2598 = vperm.xlu0 %2597, %v66
    %v2599 = vpop.permute.xlu0 %2598
    %2601 = vset.pattern.permute.xlu0 8
    %2602 = vperm.xlu0 %2601, %v67
    %v2603 = vpop.permute.xlu0 %2602
    %2605 = vset.pattern.permute.xlu0 8
    %2606 = vperm.xlu0 %2605, %v68
    %v2607 = vpop.permute.xlu0 %2606
    %2609 = vset.pattern.permute.xlu0 8
    %2610 = vperm.xlu0 %2609, %v69
    %v2611 = vpop.permute.xlu0 %2610
    %2613 = vset.pattern.permute.xlu0 8
    %2614 = vperm.xlu0 %2613, %v70
    %v2615 = vpop.permute.xlu0 %2614
    %2617 = vset.pattern.permute.xlu0 8
    %2618 = vperm.xlu0 %2617, %v71
    %v2619 = vpop.permute.xlu0 %2618
    %2621 = vset.pattern.permute.xlu0 8
    %2622 = vperm.xlu0 %2621, %v72
    %v2623 = vpop.permute.xlu0 %2622
    %2625 = vset.pattern.permute.xlu0 8
    %2626 = vperm.xlu0 %2625, %v73
    %v2627 = vpop.permute.xlu0 %2626
    %2629 = vset.pattern.permute.xlu0 8
    %2630 = vperm.xlu0 %2629, %v74
    %v2631 = vpop.permute.xlu0 %2630
    %2633 = vset.pattern.permute.xlu0 8
    %2634 = vperm.xlu0 %2633, %v75
    %v2635 = vpop.permute.xlu0 %2634
    %2637 = vset.pattern.permute.xlu0 8
    %2638 = vperm.xlu0 %2637, %v76
    %v2639 = vpop.permute.xlu0 %2638
    %2641 = vset.pattern.permute.xlu0 8
    %2642 = vperm.xlu0 %2641, %v77
    %v2643 = vpop.permute.xlu0 %2642
    %2645 = vset.pattern.permute.xlu0 8
    %2646 = vperm.xlu0 %2645, %v78
    %v2647 = vpop.permute.xlu0 %2646
    %2649 = vset.pattern.permute.xlu0 8
    %2650 = vperm.xlu0 %2649, %v79
    %v2651 = vpop.permute.xlu0 %2650
    %2653 = vset.pattern.permute.xlu0 8
    %2654 = vperm.xlu0 %2653, %v80
    %v2655 = vpop.permute.xlu0 %2654
    %2657 = vset.pattern.permute.xlu0 8
    %2658 = vperm.xlu0 %2657, %v81
    %v2659 = vpop.permute.xlu0 %2658
    %2661 = vset.pattern.permute.xlu0 8
    %2662 = vperm.xlu0 %2661, %v82
    %v2663 = vpop.permute.xlu0 %2662
    %2665 = vset.pattern.permute.xlu0 8
    %2666 = vperm.xlu0 %2665, %v83
    %v2667 = vpop.permute.xlu0 %2666
    %v2669 = vlaneseq
    %v2670 = vshrl.u32 %v2669, 7
    %v2671 = vsub.s32 0, %v2670
    %v2672 = vrot.slane %v2476, %v2671
    %v2673 = vmul.f32 %v2479, %v2672
    %v2674 = vmul.f32 %v2483, %v2672
    %v2675 = vmul.f32 %v2487, %v2672
    %v2676 = vmul.f32 %v2491, %v2672
    %v2677 = vmul.f32 %v2495, %v2672
    %v2678 = vmul.f32 %v2499, %v2672
    %v2679 = vmul.f32 %v2503, %v2672
    %v2680 = vmul.f32 %v2507, %v2672
    %v2681 = vmul.f32 %v2511, %v2672
    %v2682 = vmul.f32 %v2515, %v2672
    %v2683 = vmul.f32 %v2519, %v2672
    %v2684 = vmul.f32 %v2523, %v2672
    %v2685 = vmul.f32 %v2527, %v2672
    %v2686 = vmul.f32 %v2531, %v2672
    %v2687 = vmul.f32 %v2535, %v2672
    %v2688 = vmul.f32 %v2539, %v2672
    %v2689 = vmul.f32 %v2543, %v2672
    %v2690 = vmul.f32 %v2547, %v2672
    %v2691 = vmul.f32 %v2551, %v2672
    %v2692 = vmul.f32 %v2555, %v2672
    %v2693 = vmul.f32 %v2559, %v2672
    %v2694 = vmul.f32 %v2563, %v2672
    %v2695 = vmul.f32 %v2567, %v2672
    %v2696 = vmul.f32 %v2571, %v2672
    %v2697 = vmul.f32 %v2575, %v2672
    %v2698 = vmul.f32 %v2579, %v2672
    %v2699 = vmul.f32 %v2583, %v2672
    %v2700 = vmul.f32 %v2587, %v2672
    %v2701 = vmul.f32 %v2591, %v2672
    %v2702 = vmul.f32 %v2595, %v2672
    %v2703 = vmul.f32 %v2599, %v2672
    %v2704 = vmul.f32 %v2603, %v2672
    %v2705 = vmul.f32 %v2607, %v2672
    %v2706 = vmul.f32 %v2611, %v2672
    %v2707 = vmul.f32 %v2615, %v2672
    %v2708 = vmul.f32 %v2619, %v2672
    %v2709 = vmul.f32 %v2623, %v2672
    %v2710 = vmul.f32 %v2627, %v2672
    %v2711 = vmul.f32 %v2631, %v2672
    %v2712 = vmul.f32 %v2635, %v2672
    %v2713 = vmul.f32 %v2639, %v2672
    %v2714 = vmul.f32 %v2643, %v2672
    %v2715 = vmul.f32 %v2647, %v2672
    %v2716 = vmul.f32 %v2651, %v2672
    %v2717 = vmul.f32 %v2655, %v2672
    %v2718 = vmul.f32 %v2659, %v2672
    %v2719 = vmul.f32 %v2663, %v2672
    %v2720 = vmul.f32 %v2667, %v2672
    %v2721 = vadd.f32 %v2428, %v2673
    %v2722 = vadd.f32 %v2429, %v2674
    %v2723 = vadd.f32 %v2430, %v2675
    %v2724 = vadd.f32 %v2431, %v2676
    %v2725 = vadd.f32 %v2432, %v2677
    %v2726 = vadd.f32 %v2433, %v2678
    %v2727 = vadd.f32 %v2434, %v2679
    %v2728 = vadd.f32 %v2435, %v2680
    %v2729 = vadd.f32 %v2436, %v2681
    %v2730 = vadd.f32 %v2437, %v2682
    %v2731 = vadd.f32 %v2438, %v2683
    %v2732 = vadd.f32 %v2439, %v2684
    %v2733 = vadd.f32 %v2440, %v2685
    %v2734 = vadd.f32 %v2441, %v2686
    %v2735 = vadd.f32 %v2442, %v2687
    %v2736 = vadd.f32 %v2443, %v2688
    %v2737 = vadd.f32 %v2444, %v2689
    %v2738 = vadd.f32 %v2445, %v2690
    %v2739 = vadd.f32 %v2446, %v2691
    %v2740 = vadd.f32 %v2447, %v2692
    %v2741 = vadd.f32 %v2448, %v2693
    %v2742 = vadd.f32 %v2449, %v2694
    %v2743 = vadd.f32 %v2450, %v2695
    %v2744 = vadd.f32 %v2451, %v2696
    %v2745 = vadd.f32 %v2452, %v2697
    %v2746 = vadd.f32 %v2453, %v2698
    %v2747 = vadd.f32 %v2454, %v2699
    %v2748 = vadd.f32 %v2455, %v2700
    %v2749 = vadd.f32 %v2456, %v2701
    %v2750 = vadd.f32 %v2457, %v2702
    %v2751 = vadd.f32 %v2458, %v2703
    %v2752 = vadd.f32 %v2459, %v2704
    %v2753 = vadd.f32 %v2460, %v2705
    %v2754 = vadd.f32 %v2461, %v2706
    %v2755 = vadd.f32 %v2462, %v2707
    %v2756 = vadd.f32 %v2463, %v2708
    %v2757 = vadd.f32 %v2464, %v2709
    %v2758 = vadd.f32 %v2465, %v2710
    %v2759 = vadd.f32 %v2466, %v2711
    %v2760 = vadd.f32 %v2467, %v2712
    %v2761 = vadd.f32 %v2468, %v2713
    %v2762 = vadd.f32 %v2469, %v2714
    %v2763 = vadd.f32 %v2470, %v2715
    %v2764 = vadd.f32 %v2471, %v2716
    %v2765 = vadd.f32 %v2472, %v2717
    %v2766 = vadd.f32 %v2473, %v2718
    %v2767 = vadd.f32 %v2474, %v2719
    %v2768 = vadd.f32 %v2475, %v2720
    %v2769 = vld [vmem:[%s1 + $0x9] sm:$0x1]
    %2770 = vset.pattern.permute.xlu0 9
    %2771 = vperm.xlu0 %2770, %v36
    %v2772 = vpop.permute.xlu0 %2771
    %2774 = vset.pattern.permute.xlu0 9
    %2775 = vperm.xlu0 %2774, %v37
    %v2776 = vpop.permute.xlu0 %2775
    %2778 = vset.pattern.permute.xlu0 9
    %2779 = vperm.xlu0 %2778, %v38
    %v2780 = vpop.permute.xlu0 %2779
    %2782 = vset.pattern.permute.xlu0 9
    %2783 = vperm.xlu0 %2782, %v39
    %v2784 = vpop.permute.xlu0 %2783
    %2786 = vset.pattern.permute.xlu0 9
    %2787 = vperm.xlu0 %2786, %v40
    %v2788 = vpop.permute.xlu0 %2787
    %2790 = vset.pattern.permute.xlu0 9
    %2791 = vperm.xlu0 %2790, %v41
    %v2792 = vpop.permute.xlu0 %2791
    %2794 = vset.pattern.permute.xlu0 9
    %2795 = vperm.xlu0 %2794, %v42
    %v2796 = vpop.permute.xlu0 %2795
    %2798 = vset.pattern.permute.xlu0 9
    %2799 = vperm.xlu0 %2798, %v43
    %v2800 = vpop.permute.xlu0 %2799
    %2802 = vset.pattern.permute.xlu0 9
    %2803 = vperm.xlu0 %2802, %v44
    %v2804 = vpop.permute.xlu0 %2803
    %2806 = vset.pattern.permute.xlu0 9
    %2807 = vperm.xlu0 %2806, %v45
    %v2808 = vpop.permute.xlu0 %2807
    %2810 = vset.pattern.permute.xlu0 9
    %2811 = vperm.xlu0 %2810, %v46
    %v2812 = vpop.permute.xlu0 %2811
    %2814 = vset.pattern.permute.xlu0 9
    %2815 = vperm.xlu0 %2814, %v47
    %v2816 = vpop.permute.xlu0 %2815
    %2818 = vset.pattern.permute.xlu0 9
    %2819 = vperm.xlu0 %2818, %v48
    %v2820 = vpop.permute.xlu0 %2819
    %2822 = vset.pattern.permute.xlu0 9
    %2823 = vperm.xlu0 %2822, %v49
    %v2824 = vpop.permute.xlu0 %2823
    %2826 = vset.pattern.permute.xlu0 9
    %2827 = vperm.xlu0 %2826, %v50
    %v2828 = vpop.permute.xlu0 %2827
    %2830 = vset.pattern.permute.xlu0 9
    %2831 = vperm.xlu0 %2830, %v51
    %v2832 = vpop.permute.xlu0 %2831
    %2834 = vset.pattern.permute.xlu0 9
    %2835 = vperm.xlu0 %2834, %v52
    %v2836 = vpop.permute.xlu0 %2835
    %2838 = vset.pattern.permute.xlu0 9
    %2839 = vperm.xlu0 %2838, %v53
    %v2840 = vpop.permute.xlu0 %2839
    %2842 = vset.pattern.permute.xlu0 9
    %2843 = vperm.xlu0 %2842, %v54
    %v2844 = vpop.permute.xlu0 %2843
    %2846 = vset.pattern.permute.xlu0 9
    %2847 = vperm.xlu0 %2846, %v55
    %v2848 = vpop.permute.xlu0 %2847
    %2850 = vset.pattern.permute.xlu0 9
    %2851 = vperm.xlu0 %2850, %v56
    %v2852 = vpop.permute.xlu0 %2851
    %2854 = vset.pattern.permute.xlu0 9
    %2855 = vperm.xlu0 %2854, %v57
    %v2856 = vpop.permute.xlu0 %2855
    %2858 = vset.pattern.permute.xlu0 9
    %2859 = vperm.xlu0 %2858, %v58
    %v2860 = vpop.permute.xlu0 %2859
    %2862 = vset.pattern.permute.xlu0 9
    %2863 = vperm.xlu0 %2862, %v59
    %v2864 = vpop.permute.xlu0 %2863
    %2866 = vset.pattern.permute.xlu0 9
    %2867 = vperm.xlu0 %2866, %v60
    %v2868 = vpop.permute.xlu0 %2867
    %2870 = vset.pattern.permute.xlu0 9
    %2871 = vperm.xlu0 %2870, %v61
    %v2872 = vpop.permute.xlu0 %2871
    %2874 = vset.pattern.permute.xlu0 9
    %2875 = vperm.xlu0 %2874, %v62
    %v2876 = vpop.permute.xlu0 %2875
    %2878 = vset.pattern.permute.xlu0 9
    %2879 = vperm.xlu0 %2878, %v63
    %v2880 = vpop.permute.xlu0 %2879
    %2882 = vset.pattern.permute.xlu0 9
    %2883 = vperm.xlu0 %2882, %v64
    %v2884 = vpop.permute.xlu0 %2883
    %2886 = vset.pattern.permute.xlu0 9
    %2887 = vperm.xlu0 %2886, %v65
    %v2888 = vpop.permute.xlu0 %2887
    %2890 = vset.pattern.permute.xlu0 9
    %2891 = vperm.xlu0 %2890, %v66
    %v2892 = vpop.permute.xlu0 %2891
    %2894 = vset.pattern.permute.xlu0 9
    %2895 = vperm.xlu0 %2894, %v67
    %v2896 = vpop.permute.xlu0 %2895
    %2898 = vset.pattern.permute.xlu0 9
    %2899 = vperm.xlu0 %2898, %v68
    %v2900 = vpop.permute.xlu0 %2899
    %2902 = vset.pattern.permute.xlu0 9
    %2903 = vperm.xlu0 %2902, %v69
    %v2904 = vpop.permute.xlu0 %2903
    %2906 = vset.pattern.permute.xlu0 9
    %2907 = vperm.xlu0 %2906, %v70
    %v2908 = vpop.permute.xlu0 %2907
    %2910 = vset.pattern.permute.xlu0 9
    %2911 = vperm.xlu0 %2910, %v71
    %v2912 = vpop.permute.xlu0 %2911
    %2914 = vset.pattern.permute.xlu0 9
    %2915 = vperm.xlu0 %2914, %v72
    %v2916 = vpop.permute.xlu0 %2915
    %2918 = vset.pattern.permute.xlu0 9
    %2919 = vperm.xlu0 %2918, %v73
    %v2920 = vpop.permute.xlu0 %2919
    %2922 = vset.pattern.permute.xlu0 9
    %2923 = vperm.xlu0 %2922, %v74
    %v2924 = vpop.permute.xlu0 %2923
    %2926 = vset.pattern.permute.xlu0 9
    %2927 = vperm.xlu0 %2926, %v75
    %v2928 = vpop.permute.xlu0 %2927
    %2930 = vset.pattern.permute.xlu0 9
    %2931 = vperm.xlu0 %2930, %v76
    %v2932 = vpop.permute.xlu0 %2931
    %2934 = vset.pattern.permute.xlu0 9
    %2935 = vperm.xlu0 %2934, %v77
    %v2936 = vpop.permute.xlu0 %2935
    %2938 = vset.pattern.permute.xlu0 9
    %2939 = vperm.xlu0 %2938, %v78
    %v2940 = vpop.permute.xlu0 %2939
    %2942 = vset.pattern.permute.xlu0 9
    %2943 = vperm.xlu0 %2942, %v79
    %v2944 = vpop.permute.xlu0 %2943
    %2946 = vset.pattern.permute.xlu0 9
    %2947 = vperm.xlu0 %2946, %v80
    %v2948 = vpop.permute.xlu0 %2947
    %2950 = vset.pattern.permute.xlu0 9
    %2951 = vperm.xlu0 %2950, %v81
    %v2952 = vpop.permute.xlu0 %2951
    %2954 = vset.pattern.permute.xlu0 9
    %2955 = vperm.xlu0 %2954, %v82
    %v2956 = vpop.permute.xlu0 %2955
    %2958 = vset.pattern.permute.xlu0 9
    %2959 = vperm.xlu0 %2958, %v83
    %v2960 = vpop.permute.xlu0 %2959
    %v2962 = vlaneseq
    %v2963 = vshrl.u32 %v2962, 7
    %v2964 = vsub.s32 0, %v2963
    %v2965 = vrot.slane %v2769, %v2964
    %v2966 = vmul.f32 %v2772, %v2965
    %v2967 = vmul.f32 %v2776, %v2965
    %v2968 = vmul.f32 %v2780, %v2965
    %v2969 = vmul.f32 %v2784, %v2965
    %v2970 = vmul.f32 %v2788, %v2965
    %v2971 = vmul.f32 %v2792, %v2965
    %v2972 = vmul.f32 %v2796, %v2965
    %v2973 = vmul.f32 %v2800, %v2965
    %v2974 = vmul.f32 %v2804, %v2965
    %v2975 = vmul.f32 %v2808, %v2965
    %v2976 = vmul.f32 %v2812, %v2965
    %v2977 = vmul.f32 %v2816, %v2965
    %v2978 = vmul.f32 %v2820, %v2965
    %v2979 = vmul.f32 %v2824, %v2965
    %v2980 = vmul.f32 %v2828, %v2965
    %v2981 = vmul.f32 %v2832, %v2965
    %v2982 = vmul.f32 %v2836, %v2965
    %v2983 = vmul.f32 %v2840, %v2965
    %v2984 = vmul.f32 %v2844, %v2965
    %v2985 = vmul.f32 %v2848, %v2965
    %v2986 = vmul.f32 %v2852, %v2965
    %v2987 = vmul.f32 %v2856, %v2965
    %v2988 = vmul.f32 %v2860, %v2965
    %v2989 = vmul.f32 %v2864, %v2965
    %v2990 = vmul.f32 %v2868, %v2965
    %v2991 = vmul.f32 %v2872, %v2965
    %v2992 = vmul.f32 %v2876, %v2965
    %v2993 = vmul.f32 %v2880, %v2965
    %v2994 = vmul.f32 %v2884, %v2965
    %v2995 = vmul.f32 %v2888, %v2965
    %v2996 = vmul.f32 %v2892, %v2965
    %v2997 = vmul.f32 %v2896, %v2965
    %v2998 = vmul.f32 %v2900, %v2965
    %v2999 = vmul.f32 %v2904, %v2965
    %v3000 = vmul.f32 %v2908, %v2965
    %v3001 = vmul.f32 %v2912, %v2965
    %v3002 = vmul.f32 %v2916, %v2965
    %v3003 = vmul.f32 %v2920, %v2965
    %v3004 = vmul.f32 %v2924, %v2965
    %v3005 = vmul.f32 %v2928, %v2965
    %v3006 = vmul.f32 %v2932, %v2965
    %v3007 = vmul.f32 %v2936, %v2965
    %v3008 = vmul.f32 %v2940, %v2965
    %v3009 = vmul.f32 %v2944, %v2965
    %v3010 = vmul.f32 %v2948, %v2965
    %v3011 = vmul.f32 %v2952, %v2965
    %v3012 = vmul.f32 %v2956, %v2965
    %v3013 = vmul.f32 %v2960, %v2965
    %v3014 = vadd.f32 %v2721, %v2966
    %v3015 = vadd.f32 %v2722, %v2967
    %v3016 = vadd.f32 %v2723, %v2968
    %v3017 = vadd.f32 %v2724, %v2969
    %v3018 = vadd.f32 %v2725, %v2970
    %v3019 = vadd.f32 %v2726, %v2971
    %v3020 = vadd.f32 %v2727, %v2972
    %v3021 = vadd.f32 %v2728, %v2973
    %v3022 = vadd.f32 %v2729, %v2974
    %v3023 = vadd.f32 %v2730, %v2975
    %v3024 = vadd.f32 %v2731, %v2976
    %v3025 = vadd.f32 %v2732, %v2977
    %v3026 = vadd.f32 %v2733, %v2978
    %v3027 = vadd.f32 %v2734, %v2979
    %v3028 = vadd.f32 %v2735, %v2980
    %v3029 = vadd.f32 %v2736, %v2981
    %v3030 = vadd.f32 %v2737, %v2982
    %v3031 = vadd.f32 %v2738, %v2983
    %v3032 = vadd.f32 %v2739, %v2984
    %v3033 = vadd.f32 %v2740, %v2985
    %v3034 = vadd.f32 %v2741, %v2986
    %v3035 = vadd.f32 %v2742, %v2987
    %v3036 = vadd.f32 %v2743, %v2988
    %v3037 = vadd.f32 %v2744, %v2989
    %v3038 = vadd.f32 %v2745, %v2990
    %v3039 = vadd.f32 %v2746, %v2991
    %v3040 = vadd.f32 %v2747, %v2992
    %v3041 = vadd.f32 %v2748, %v2993
    %v3042 = vadd.f32 %v2749, %v2994
    %v3043 = vadd.f32 %v2750, %v2995
    %v3044 = vadd.f32 %v2751, %v2996
    %v3045 = vadd.f32 %v2752, %v2997
    %v3046 = vadd.f32 %v2753, %v2998
    %v3047 = vadd.f32 %v2754, %v2999
    %v3048 = vadd.f32 %v2755, %v3000
    %v3049 = vadd.f32 %v2756, %v3001
    %v3050 = vadd.f32 %v2757, %v3002
    %v3051 = vadd.f32 %v2758, %v3003
    %v3052 = vadd.f32 %v2759, %v3004
    %v3053 = vadd.f32 %v2760, %v3005
    %v3054 = vadd.f32 %v2761, %v3006
    %v3055 = vadd.f32 %v2762, %v3007
    %v3056 = vadd.f32 %v2763, %v3008
    %v3057 = vadd.f32 %v2764, %v3009
    %v3058 = vadd.f32 %v2765, %v3010
    %v3059 = vadd.f32 %v2766, %v3011
    %v3060 = vadd.f32 %v2767, %v3012
    %v3061 = vadd.f32 %v2768, %v3013
    %v3062 = vld [vmem:[%s1 + $0xa] sm:$0x1]
    %3063 = vset.pattern.permute.xlu0 10
    %3064 = vperm.xlu0 %3063, %v36
    %v3065 = vpop.permute.xlu0 %3064
    %3067 = vset.pattern.permute.xlu0 10
    %3068 = vperm.xlu0 %3067, %v37
    %v3069 = vpop.permute.xlu0 %3068
    %3071 = vset.pattern.permute.xlu0 10
    %3072 = vperm.xlu0 %3071, %v38
    %v3073 = vpop.permute.xlu0 %3072
    %3075 = vset.pattern.permute.xlu0 10
    %3076 = vperm.xlu0 %3075, %v39
    %v3077 = vpop.permute.xlu0 %3076
    %3079 = vset.pattern.permute.xlu0 10
    %3080 = vperm.xlu0 %3079, %v40
    %v3081 = vpop.permute.xlu0 %3080
    %3083 = vset.pattern.permute.xlu0 10
    %3084 = vperm.xlu0 %3083, %v41
    %v3085 = vpop.permute.xlu0 %3084
    %3087 = vset.pattern.permute.xlu0 10
    %3088 = vperm.xlu0 %3087, %v42
    %v3089 = vpop.permute.xlu0 %3088
    %3091 = vset.pattern.permute.xlu0 10
    %3092 = vperm.xlu0 %3091, %v43
    %v3093 = vpop.permute.xlu0 %3092
    %3095 = vset.pattern.permute.xlu0 10
    %3096 = vperm.xlu0 %3095, %v44
    %v3097 = vpop.permute.xlu0 %3096
    %3099 = vset.pattern.permute.xlu0 10
    %3100 = vperm.xlu0 %3099, %v45
    %v3101 = vpop.permute.xlu0 %3100
    %3103 = vset.pattern.permute.xlu0 10
    %3104 = vperm.xlu0 %3103, %v46
    %v3105 = vpop.permute.xlu0 %3104
    %3107 = vset.pattern.permute.xlu0 10
    %3108 = vperm.xlu0 %3107, %v47
    %v3109 = vpop.permute.xlu0 %3108
    %3111 = vset.pattern.permute.xlu0 10
    %3112 = vperm.xlu0 %3111, %v48
    %v3113 = vpop.permute.xlu0 %3112
    %3115 = vset.pattern.permute.xlu0 10
    %3116 = vperm.xlu0 %3115, %v49
    %v3117 = vpop.permute.xlu0 %3116
    %3119 = vset.pattern.permute.xlu0 10
    %3120 = vperm.xlu0 %3119, %v50
    %v3121 = vpop.permute.xlu0 %3120
    %3123 = vset.pattern.permute.xlu0 10
    %3124 = vperm.xlu0 %3123, %v51
    %v3125 = vpop.permute.xlu0 %3124
    %3127 = vset.pattern.permute.xlu0 10
    %3128 = vperm.xlu0 %3127, %v52
    %v3129 = vpop.permute.xlu0 %3128
    %3131 = vset.pattern.permute.xlu0 10
    %3132 = vperm.xlu0 %3131, %v53
    %v3133 = vpop.permute.xlu0 %3132
    %3135 = vset.pattern.permute.xlu0 10
    %3136 = vperm.xlu0 %3135, %v54
    %v3137 = vpop.permute.xlu0 %3136
    %3139 = vset.pattern.permute.xlu0 10
    %3140 = vperm.xlu0 %3139, %v55
    %v3141 = vpop.permute.xlu0 %3140
    %3143 = vset.pattern.permute.xlu0 10
    %3144 = vperm.xlu0 %3143, %v56
    %v3145 = vpop.permute.xlu0 %3144
    %3147 = vset.pattern.permute.xlu0 10
    %3148 = vperm.xlu0 %3147, %v57
    %v3149 = vpop.permute.xlu0 %3148
    %3151 = vset.pattern.permute.xlu0 10
    %3152 = vperm.xlu0 %3151, %v58
    %v3153 = vpop.permute.xlu0 %3152
    %3155 = vset.pattern.permute.xlu0 10
    %3156 = vperm.xlu0 %3155, %v59
    %v3157 = vpop.permute.xlu0 %3156
    %3159 = vset.pattern.permute.xlu0 10
    %3160 = vperm.xlu0 %3159, %v60
    %v3161 = vpop.permute.xlu0 %3160
    %3163 = vset.pattern.permute.xlu0 10
    %3164 = vperm.xlu0 %3163, %v61
    %v3165 = vpop.permute.xlu0 %3164
    %3167 = vset.pattern.permute.xlu0 10
    %3168 = vperm.xlu0 %3167, %v62
    %v3169 = vpop.permute.xlu0 %3168
    %3171 = vset.pattern.permute.xlu0 10
    %3172 = vperm.xlu0 %3171, %v63
    %v3173 = vpop.permute.xlu0 %3172
    %3175 = vset.pattern.permute.xlu0 10
    %3176 = vperm.xlu0 %3175, %v64
    %v3177 = vpop.permute.xlu0 %3176
    %3179 = vset.pattern.permute.xlu0 10
    %3180 = vperm.xlu0 %3179, %v65
    %v3181 = vpop.permute.xlu0 %3180
    %3183 = vset.pattern.permute.xlu0 10
    %3184 = vperm.xlu0 %3183, %v66
    %v3185 = vpop.permute.xlu0 %3184
    %3187 = vset.pattern.permute.xlu0 10
    %3188 = vperm.xlu0 %3187, %v67
    %v3189 = vpop.permute.xlu0 %3188
    %3191 = vset.pattern.permute.xlu0 10
    %3192 = vperm.xlu0 %3191, %v68
    %v3193 = vpop.permute.xlu0 %3192
    %3195 = vset.pattern.permute.xlu0 10
    %3196 = vperm.xlu0 %3195, %v69
    %v3197 = vpop.permute.xlu0 %3196
    %3199 = vset.pattern.permute.xlu0 10
    %3200 = vperm.xlu0 %3199, %v70
    %v3201 = vpop.permute.xlu0 %3200
    %3203 = vset.pattern.permute.xlu0 10
    %3204 = vperm.xlu0 %3203, %v71
    %v3205 = vpop.permute.xlu0 %3204
    %3207 = vset.pattern.permute.xlu0 10
    %3208 = vperm.xlu0 %3207, %v72
    %v3209 = vpop.permute.xlu0 %3208
    %3211 = vset.pattern.permute.xlu0 10
    %3212 = vperm.xlu0 %3211, %v73
    %v3213 = vpop.permute.xlu0 %3212
    %3215 = vset.pattern.permute.xlu0 10
    %3216 = vperm.xlu0 %3215, %v74
    %v3217 = vpop.permute.xlu0 %3216
    %3219 = vset.pattern.permute.xlu0 10
    %3220 = vperm.xlu0 %3219, %v75
    %v3221 = vpop.permute.xlu0 %3220
    %3223 = vset.pattern.permute.xlu0 10
    %3224 = vperm.xlu0 %3223, %v76
    %v3225 = vpop.permute.xlu0 %3224
    %3227 = vset.pattern.permute.xlu0 10
    %3228 = vperm.xlu0 %3227, %v77
    %v3229 = vpop.permute.xlu0 %3228
    %3231 = vset.pattern.permute.xlu0 10
    %3232 = vperm.xlu0 %3231, %v78
    %v3233 = vpop.permute.xlu0 %3232
    %3235 = vset.pattern.permute.xlu0 10
    %3236 = vperm.xlu0 %3235, %v79
    %v3237 = vpop.permute.xlu0 %3236
    %3239 = vset.pattern.permute.xlu0 10
    %3240 = vperm.xlu0 %3239, %v80
    %v3241 = vpop.permute.xlu0 %3240
    %3243 = vset.pattern.permute.xlu0 10
    %3244 = vperm.xlu0 %3243, %v81
    %v3245 = vpop.permute.xlu0 %3244
    %3247 = vset.pattern.permute.xlu0 10
    %3248 = vperm.xlu0 %3247, %v82
    %v3249 = vpop.permute.xlu0 %3248
    %3251 = vset.pattern.permute.xlu0 10
    %3252 = vperm.xlu0 %3251, %v83
    %v3253 = vpop.permute.xlu0 %3252
    %v3255 = vlaneseq
    %v3256 = vshrl.u32 %v3255, 7
    %v3257 = vsub.s32 0, %v3256
    %v3258 = vrot.slane %v3062, %v3257
    %v3259 = vmul.f32 %v3065, %v3258
    %v3260 = vmul.f32 %v3069, %v3258
    %v3261 = vmul.f32 %v3073, %v3258
    %v3262 = vmul.f32 %v3077, %v3258
    %v3263 = vmul.f32 %v3081, %v3258
    %v3264 = vmul.f32 %v3085, %v3258
    %v3265 = vmul.f32 %v3089, %v3258
    %v3266 = vmul.f32 %v3093, %v3258
    %v3267 = vmul.f32 %v3097, %v3258
    %v3268 = vmul.f32 %v3101, %v3258
    %v3269 = vmul.f32 %v3105, %v3258
    %v3270 = vmul.f32 %v3109, %v3258
    %v3271 = vmul.f32 %v3113, %v3258
    %v3272 = vmul.f32 %v3117, %v3258
    %v3273 = vmul.f32 %v3121, %v3258
    %v3274 = vmul.f32 %v3125, %v3258
    %v3275 = vmul.f32 %v3129, %v3258
    %v3276 = vmul.f32 %v3133, %v3258
    %v3277 = vmul.f32 %v3137, %v3258
    %v3278 = vmul.f32 %v3141, %v3258
    %v3279 = vmul.f32 %v3145, %v3258
    %v3280 = vmul.f32 %v3149, %v3258
    %v3281 = vmul.f32 %v3153, %v3258
    %v3282 = vmul.f32 %v3157, %v3258
    %v3283 = vmul.f32 %v3161, %v3258
    %v3284 = vmul.f32 %v3165, %v3258
    %v3285 = vmul.f32 %v3169, %v3258
    %v3286 = vmul.f32 %v3173, %v3258
    %v3287 = vmul.f32 %v3177, %v3258
    %v3288 = vmul.f32 %v3181, %v3258
    %v3289 = vmul.f32 %v3185, %v3258
    %v3290 = vmul.f32 %v3189, %v3258
    %v3291 = vmul.f32 %v3193, %v3258
    %v3292 = vmul.f32 %v3197, %v3258
    %v3293 = vmul.f32 %v3201, %v3258
    %v3294 = vmul.f32 %v3205, %v3258
    %v3295 = vmul.f32 %v3209, %v3258
    %v3296 = vmul.f32 %v3213, %v3258
    %v3297 = vmul.f32 %v3217, %v3258
    %v3298 = vmul.f32 %v3221, %v3258
    %v3299 = vmul.f32 %v3225, %v3258
    %v3300 = vmul.f32 %v3229, %v3258
    %v3301 = vmul.f32 %v3233, %v3258
    %v3302 = vmul.f32 %v3237, %v3258
    %v3303 = vmul.f32 %v3241, %v3258
    %v3304 = vmul.f32 %v3245, %v3258
    %v3305 = vmul.f32 %v3249, %v3258
    %v3306 = vmul.f32 %v3253, %v3258
    %v3307 = vadd.f32 %v3014, %v3259
    %v3308 = vadd.f32 %v3015, %v3260
    %v3309 = vadd.f32 %v3016, %v3261
    %v3310 = vadd.f32 %v3017, %v3262
    %v3311 = vadd.f32 %v3018, %v3263
    %v3312 = vadd.f32 %v3019, %v3264
    %v3313 = vadd.f32 %v3020, %v3265
    %v3314 = vadd.f32 %v3021, %v3266
    %v3315 = vadd.f32 %v3022, %v3267
    %v3316 = vadd.f32 %v3023, %v3268
    %v3317 = vadd.f32 %v3024, %v3269
    %v3318 = vadd.f32 %v3025, %v3270
    %v3319 = vadd.f32 %v3026, %v3271
    %v3320 = vadd.f32 %v3027, %v3272
    %v3321 = vadd.f32 %v3028, %v3273
    %v3322 = vadd.f32 %v3029, %v3274
    %v3323 = vadd.f32 %v3030, %v3275
    %v3324 = vadd.f32 %v3031, %v3276
    %v3325 = vadd.f32 %v3032, %v3277
    %v3326 = vadd.f32 %v3033, %v3278
    %v3327 = vadd.f32 %v3034, %v3279
    %v3328 = vadd.f32 %v3035, %v3280
    %v3329 = vadd.f32 %v3036, %v3281
    %v3330 = vadd.f32 %v3037, %v3282
    %v3331 = vadd.f32 %v3038, %v3283
    %v3332 = vadd.f32 %v3039, %v3284
    %v3333 = vadd.f32 %v3040, %v3285
    %v3334 = vadd.f32 %v3041, %v3286
    %v3335 = vadd.f32 %v3042, %v3287
    %v3336 = vadd.f32 %v3043, %v3288
    %v3337 = vadd.f32 %v3044, %v3289
    %v3338 = vadd.f32 %v3045, %v3290
    %v3339 = vadd.f32 %v3046, %v3291
    %v3340 = vadd.f32 %v3047, %v3292
    %v3341 = vadd.f32 %v3048, %v3293
    %v3342 = vadd.f32 %v3049, %v3294
    %v3343 = vadd.f32 %v3050, %v3295
    %v3344 = vadd.f32 %v3051, %v3296
    %v3345 = vadd.f32 %v3052, %v3297
    %v3346 = vadd.f32 %v3053, %v3298
    %v3347 = vadd.f32 %v3054, %v3299
    %v3348 = vadd.f32 %v3055, %v3300
    %v3349 = vadd.f32 %v3056, %v3301
    %v3350 = vadd.f32 %v3057, %v3302
    %v3351 = vadd.f32 %v3058, %v3303
    %v3352 = vadd.f32 %v3059, %v3304
    %v3353 = vadd.f32 %v3060, %v3305
    %v3354 = vadd.f32 %v3061, %v3306
    %v3355 = vld [vmem:[%s1 + $0xb] sm:$0x1]
    %3356 = vset.pattern.permute.xlu0 11
    %3357 = vperm.xlu0 %3356, %v36
    %v3358 = vpop.permute.xlu0 %3357
    %3360 = vset.pattern.permute.xlu0 11
    %3361 = vperm.xlu0 %3360, %v37
    %v3362 = vpop.permute.xlu0 %3361
    %3364 = vset.pattern.permute.xlu0 11
    %3365 = vperm.xlu0 %3364, %v38
    %v3366 = vpop.permute.xlu0 %3365
    %3368 = vset.pattern.permute.xlu0 11
    %3369 = vperm.xlu0 %3368, %v39
    %v3370 = vpop.permute.xlu0 %3369
    %3372 = vset.pattern.permute.xlu0 11
    %3373 = vperm.xlu0 %3372, %v40
    %v3374 = vpop.permute.xlu0 %3373
    %3376 = vset.pattern.permute.xlu0 11
    %3377 = vperm.xlu0 %3376, %v41
    %v3378 = vpop.permute.xlu0 %3377
    %3380 = vset.pattern.permute.xlu0 11
    %3381 = vperm.xlu0 %3380, %v42
    %v3382 = vpop.permute.xlu0 %3381
    %3384 = vset.pattern.permute.xlu0 11
    %3385 = vperm.xlu0 %3384, %v43
    %v3386 = vpop.permute.xlu0 %3385
    %3388 = vset.pattern.permute.xlu0 11
    %3389 = vperm.xlu0 %3388, %v44
    %v3390 = vpop.permute.xlu0 %3389
    %3392 = vset.pattern.permute.xlu0 11
    %3393 = vperm.xlu0 %3392, %v45
    %v3394 = vpop.permute.xlu0 %3393
    %3396 = vset.pattern.permute.xlu0 11
    %3397 = vperm.xlu0 %3396, %v46
    %v3398 = vpop.permute.xlu0 %3397
    %3400 = vset.pattern.permute.xlu0 11
    %3401 = vperm.xlu0 %3400, %v47
    %v3402 = vpop.permute.xlu0 %3401
    %3404 = vset.pattern.permute.xlu0 11
    %3405 = vperm.xlu0 %3404, %v48
    %v3406 = vpop.permute.xlu0 %3405
    %3408 = vset.pattern.permute.xlu0 11
    %3409 = vperm.xlu0 %3408, %v49
    %v3410 = vpop.permute.xlu0 %3409
    %3412 = vset.pattern.permute.xlu0 11
    %3413 = vperm.xlu0 %3412, %v50
    %v3414 = vpop.permute.xlu0 %3413
    %3416 = vset.pattern.permute.xlu0 11
    %3417 = vperm.xlu0 %3416, %v51
    %v3418 = vpop.permute.xlu0 %3417
    %3420 = vset.pattern.permute.xlu0 11
    %3421 = vperm.xlu0 %3420, %v52
    %v3422 = vpop.permute.xlu0 %3421
    %3424 = vset.pattern.permute.xlu0 11
    %3425 = vperm.xlu0 %3424, %v53
    %v3426 = vpop.permute.xlu0 %3425
    %3428 = vset.pattern.permute.xlu0 11
    %3429 = vperm.xlu0 %3428, %v54
    %v3430 = vpop.permute.xlu0 %3429
    %3432 = vset.pattern.permute.xlu0 11
    %3433 = vperm.xlu0 %3432, %v55
    %v3434 = vpop.permute.xlu0 %3433
    %3436 = vset.pattern.permute.xlu0 11
    %3437 = vperm.xlu0 %3436, %v56
    %v3438 = vpop.permute.xlu0 %3437
    %3440 = vset.pattern.permute.xlu0 11
    %3441 = vperm.xlu0 %3440, %v57
    %v3442 = vpop.permute.xlu0 %3441
    %3444 = vset.pattern.permute.xlu0 11
    %3445 = vperm.xlu0 %3444, %v58
    %v3446 = vpop.permute.xlu0 %3445
    %3448 = vset.pattern.permute.xlu0 11
    %3449 = vperm.xlu0 %3448, %v59
    %v3450 = vpop.permute.xlu0 %3449
    %3452 = vset.pattern.permute.xlu0 11
    %3453 = vperm.xlu0 %3452, %v60
    %v3454 = vpop.permute.xlu0 %3453
    %3456 = vset.pattern.permute.xlu0 11
    %3457 = vperm.xlu0 %3456, %v61
    %v3458 = vpop.permute.xlu0 %3457
    %3460 = vset.pattern.permute.xlu0 11
    %3461 = vperm.xlu0 %3460, %v62
    %v3462 = vpop.permute.xlu0 %3461
    %3464 = vset.pattern.permute.xlu0 11
    %3465 = vperm.xlu0 %3464, %v63
    %v3466 = vpop.permute.xlu0 %3465
    %3468 = vset.pattern.permute.xlu0 11
    %3469 = vperm.xlu0 %3468, %v64
    %v3470 = vpop.permute.xlu0 %3469
    %3472 = vset.pattern.permute.xlu0 11
    %3473 = vperm.xlu0 %3472, %v65
    %v3474 = vpop.permute.xlu0 %3473
    %3476 = vset.pattern.permute.xlu0 11
    %3477 = vperm.xlu0 %3476, %v66
    %v3478 = vpop.permute.xlu0 %3477
    %3480 = vset.pattern.permute.xlu0 11
    %3481 = vperm.xlu0 %3480, %v67
    %v3482 = vpop.permute.xlu0 %3481
    %3484 = vset.pattern.permute.xlu0 11
    %3485 = vperm.xlu0 %3484, %v68
    %v3486 = vpop.permute.xlu0 %3485
    %3488 = vset.pattern.permute.xlu0 11
    %3489 = vperm.xlu0 %3488, %v69
    %v3490 = vpop.permute.xlu0 %3489
    %3492 = vset.pattern.permute.xlu0 11
    %3493 = vperm.xlu0 %3492, %v70
    %v3494 = vpop.permute.xlu0 %3493
    %3496 = vset.pattern.permute.xlu0 11
    %3497 = vperm.xlu0 %3496, %v71
    %v3498 = vpop.permute.xlu0 %3497
    %3500 = vset.pattern.permute.xlu0 11
    %3501 = vperm.xlu0 %3500, %v72
    %v3502 = vpop.permute.xlu0 %3501
    %3504 = vset.pattern.permute.xlu0 11
    %3505 = vperm.xlu0 %3504, %v73
    %v3506 = vpop.permute.xlu0 %3505
    %3508 = vset.pattern.permute.xlu0 11
    %3509 = vperm.xlu0 %3508, %v74
    %v3510 = vpop.permute.xlu0 %3509
    %3512 = vset.pattern.permute.xlu0 11
    %3513 = vperm.xlu0 %3512, %v75
    %v3514 = vpop.permute.xlu0 %3513
    %3516 = vset.pattern.permute.xlu0 11
    %3517 = vperm.xlu0 %3516, %v76
    %v3518 = vpop.permute.xlu0 %3517
    %3520 = vset.pattern.permute.xlu0 11
    %3521 = vperm.xlu0 %3520, %v77
    %v3522 = vpop.permute.xlu0 %3521
    %3524 = vset.pattern.permute.xlu0 11
    %3525 = vperm.xlu0 %3524, %v78
    %v3526 = vpop.permute.xlu0 %3525
    %3528 = vset.pattern.permute.xlu0 11
    %3529 = vperm.xlu0 %3528, %v79
    %v3530 = vpop.permute.xlu0 %3529
    %3532 = vset.pattern.permute.xlu0 11
    %3533 = vperm.xlu0 %3532, %v80
    %v3534 = vpop.permute.xlu0 %3533
    %3536 = vset.pattern.permute.xlu0 11
    %3537 = vperm.xlu0 %3536, %v81
    %v3538 = vpop.permute.xlu0 %3537
    %3540 = vset.pattern.permute.xlu0 11
    %3541 = vperm.xlu0 %3540, %v82
    %v3542 = vpop.permute.xlu0 %3541
    %3544 = vset.pattern.permute.xlu0 11
    %3545 = vperm.xlu0 %3544, %v83
    %v3546 = vpop.permute.xlu0 %3545
    %v3548 = vlaneseq
    %v3549 = vshrl.u32 %v3548, 7
    %v3550 = vsub.s32 0, %v3549
    %v3551 = vrot.slane %v3355, %v3550
    %v3552 = vmul.f32 %v3358, %v3551
    %v3553 = vmul.f32 %v3362, %v3551
    %v3554 = vmul.f32 %v3366, %v3551
    %v3555 = vmul.f32 %v3370, %v3551
    %v3556 = vmul.f32 %v3374, %v3551
    %v3557 = vmul.f32 %v3378, %v3551
    %v3558 = vmul.f32 %v3382, %v3551
    %v3559 = vmul.f32 %v3386, %v3551
    %v3560 = vmul.f32 %v3390, %v3551
    %v3561 = vmul.f32 %v3394, %v3551
    %v3562 = vmul.f32 %v3398, %v3551
    %v3563 = vmul.f32 %v3402, %v3551
    %v3564 = vmul.f32 %v3406, %v3551
    %v3565 = vmul.f32 %v3410, %v3551
    %v3566 = vmul.f32 %v3414, %v3551
    %v3567 = vmul.f32 %v3418, %v3551
    %v3568 = vmul.f32 %v3422, %v3551
    %v3569 = vmul.f32 %v3426, %v3551
    %v3570 = vmul.f32 %v3430, %v3551
    %v3571 = vmul.f32 %v3434, %v3551
    %v3572 = vmul.f32 %v3438, %v3551
    %v3573 = vmul.f32 %v3442, %v3551
    %v3574 = vmul.f32 %v3446, %v3551
    %v3575 = vmul.f32 %v3450, %v3551
    %v3576 = vmul.f32 %v3454, %v3551
    %v3577 = vmul.f32 %v3458, %v3551
    %v3578 = vmul.f32 %v3462, %v3551
    %v3579 = vmul.f32 %v3466, %v3551
    %v3580 = vmul.f32 %v3470, %v3551
    %v3581 = vmul.f32 %v3474, %v3551
    %v3582 = vmul.f32 %v3478, %v3551
    %v3583 = vmul.f32 %v3482, %v3551
    %v3584 = vmul.f32 %v3486, %v3551
    %v3585 = vmul.f32 %v3490, %v3551
    %v3586 = vmul.f32 %v3494, %v3551
    %v3587 = vmul.f32 %v3498, %v3551
    %v3588 = vmul.f32 %v3502, %v3551
    %v3589 = vmul.f32 %v3506, %v3551
    %v3590 = vmul.f32 %v3510, %v3551
    %v3591 = vmul.f32 %v3514, %v3551
    %v3592 = vmul.f32 %v3518, %v3551
    %v3593 = vmul.f32 %v3522, %v3551
    %v3594 = vmul.f32 %v3526, %v3551
    %v3595 = vmul.f32 %v3530, %v3551
    %v3596 = vmul.f32 %v3534, %v3551
    %v3597 = vmul.f32 %v3538, %v3551
    %v3598 = vmul.f32 %v3542, %v3551
    %v3599 = vmul.f32 %v3546, %v3551
    %v3600 = vadd.f32 %v3307, %v3552
    %v3601 = vadd.f32 %v3308, %v3553
    %v3602 = vadd.f32 %v3309, %v3554
    %v3603 = vadd.f32 %v3310, %v3555
    %v3604 = vadd.f32 %v3311, %v3556
    %v3605 = vadd.f32 %v3312, %v3557
    %v3606 = vadd.f32 %v3313, %v3558
    %v3607 = vadd.f32 %v3314, %v3559
    %v3608 = vadd.f32 %v3315, %v3560
    %v3609 = vadd.f32 %v3316, %v3561
    %v3610 = vadd.f32 %v3317, %v3562
    %v3611 = vadd.f32 %v3318, %v3563
    %v3612 = vadd.f32 %v3319, %v3564
    %v3613 = vadd.f32 %v3320, %v3565
    %v3614 = vadd.f32 %v3321, %v3566
    %v3615 = vadd.f32 %v3322, %v3567
    %v3616 = vadd.f32 %v3323, %v3568
    %v3617 = vadd.f32 %v3324, %v3569
    %v3618 = vadd.f32 %v3325, %v3570
    %v3619 = vadd.f32 %v3326, %v3571
    %v3620 = vadd.f32 %v3327, %v3572
    %v3621 = vadd.f32 %v3328, %v3573
    %v3622 = vadd.f32 %v3329, %v3574
    %v3623 = vadd.f32 %v3330, %v3575
    %v3624 = vadd.f32 %v3331, %v3576
    %v3625 = vadd.f32 %v3332, %v3577
    %v3626 = vadd.f32 %v3333, %v3578
    %v3627 = vadd.f32 %v3334, %v3579
    %v3628 = vadd.f32 %v3335, %v3580
    %v3629 = vadd.f32 %v3336, %v3581
    %v3630 = vadd.f32 %v3337, %v3582
    %v3631 = vadd.f32 %v3338, %v3583
    %v3632 = vadd.f32 %v3339, %v3584
    %v3633 = vadd.f32 %v3340, %v3585
    %v3634 = vadd.f32 %v3341, %v3586
    %v3635 = vadd.f32 %v3342, %v3587
    %v3636 = vadd.f32 %v3343, %v3588
    %v3637 = vadd.f32 %v3344, %v3589
    %v3638 = vadd.f32 %v3345, %v3590
    %v3639 = vadd.f32 %v3346, %v3591
    %v3640 = vadd.f32 %v3347, %v3592
    %v3641 = vadd.f32 %v3348, %v3593
    %v3642 = vadd.f32 %v3349, %v3594
    %v3643 = vadd.f32 %v3350, %v3595
    %v3644 = vadd.f32 %v3351, %v3596
    %v3645 = vadd.f32 %v3352, %v3597
    %v3646 = vadd.f32 %v3353, %v3598
    %v3647 = vadd.f32 %v3354, %v3599
    %v3648 = vld [vmem:[%s1 + $0xc] sm:$0x1]
    %3649 = vset.pattern.permute.xlu0 12
    %3650 = vperm.xlu0 %3649, %v36
    %v3651 = vpop.permute.xlu0 %3650
    %3653 = vset.pattern.permute.xlu0 12
    %3654 = vperm.xlu0 %3653, %v37
    %v3655 = vpop.permute.xlu0 %3654
    %3657 = vset.pattern.permute.xlu0 12
    %3658 = vperm.xlu0 %3657, %v38
    %v3659 = vpop.permute.xlu0 %3658
    %3661 = vset.pattern.permute.xlu0 12
    %3662 = vperm.xlu0 %3661, %v39
    %v3663 = vpop.permute.xlu0 %3662
    %3665 = vset.pattern.permute.xlu0 12
    %3666 = vperm.xlu0 %3665, %v40
    %v3667 = vpop.permute.xlu0 %3666
    %3669 = vset.pattern.permute.xlu0 12
    %3670 = vperm.xlu0 %3669, %v41
    %v3671 = vpop.permute.xlu0 %3670
    %3673 = vset.pattern.permute.xlu0 12
    %3674 = vperm.xlu0 %3673, %v42
    %v3675 = vpop.permute.xlu0 %3674
    %3677 = vset.pattern.permute.xlu0 12
    %3678 = vperm.xlu0 %3677, %v43
    %v3679 = vpop.permute.xlu0 %3678
    %3681 = vset.pattern.permute.xlu0 12
    %3682 = vperm.xlu0 %3681, %v44
    %v3683 = vpop.permute.xlu0 %3682
    %3685 = vset.pattern.permute.xlu0 12
    %3686 = vperm.xlu0 %3685, %v45
    %v3687 = vpop.permute.xlu0 %3686
    %3689 = vset.pattern.permute.xlu0 12
    %3690 = vperm.xlu0 %3689, %v46
    %v3691 = vpop.permute.xlu0 %3690
    %3693 = vset.pattern.permute.xlu0 12
    %3694 = vperm.xlu0 %3693, %v47
    %v3695 = vpop.permute.xlu0 %3694
    %3697 = vset.pattern.permute.xlu0 12
    %3698 = vperm.xlu0 %3697, %v48
    %v3699 = vpop.permute.xlu0 %3698
    %3701 = vset.pattern.permute.xlu0 12
    %3702 = vperm.xlu0 %3701, %v49
    %v3703 = vpop.permute.xlu0 %3702
    %3705 = vset.pattern.permute.xlu0 12
    %3706 = vperm.xlu0 %3705, %v50
    %v3707 = vpop.permute.xlu0 %3706
    %3709 = vset.pattern.permute.xlu0 12
    %3710 = vperm.xlu0 %3709, %v51
    %v3711 = vpop.permute.xlu0 %3710
    %3713 = vset.pattern.permute.xlu0 12
    %3714 = vperm.xlu0 %3713, %v52
    %v3715 = vpop.permute.xlu0 %3714
    %3717 = vset.pattern.permute.xlu0 12
    %3718 = vperm.xlu0 %3717, %v53
    %v3719 = vpop.permute.xlu0 %3718
    %3721 = vset.pattern.permute.xlu0 12
    %3722 = vperm.xlu0 %3721, %v54
    %v3723 = vpop.permute.xlu0 %3722
    %3725 = vset.pattern.permute.xlu0 12
    %3726 = vperm.xlu0 %3725, %v55
    %v3727 = vpop.permute.xlu0 %3726
    %3729 = vset.pattern.permute.xlu0 12
    %3730 = vperm.xlu0 %3729, %v56
    %v3731 = vpop.permute.xlu0 %3730
    %3733 = vset.pattern.permute.xlu0 12
    %3734 = vperm.xlu0 %3733, %v57
    %v3735 = vpop.permute.xlu0 %3734
    %3737 = vset.pattern.permute.xlu0 12
    %3738 = vperm.xlu0 %3737, %v58
    %v3739 = vpop.permute.xlu0 %3738
    %3741 = vset.pattern.permute.xlu0 12
    %3742 = vperm.xlu0 %3741, %v59
    %v3743 = vpop.permute.xlu0 %3742
    %3745 = vset.pattern.permute.xlu0 12
    %3746 = vperm.xlu0 %3745, %v60
    %v3747 = vpop.permute.xlu0 %3746
    %3749 = vset.pattern.permute.xlu0 12
    %3750 = vperm.xlu0 %3749, %v61
    %v3751 = vpop.permute.xlu0 %3750
    %3753 = vset.pattern.permute.xlu0 12
    %3754 = vperm.xlu0 %3753, %v62
    %v3755 = vpop.permute.xlu0 %3754
    %3757 = vset.pattern.permute.xlu0 12
    %3758 = vperm.xlu0 %3757, %v63
    %v3759 = vpop.permute.xlu0 %3758
    %3761 = vset.pattern.permute.xlu0 12
    %3762 = vperm.xlu0 %3761, %v64
    %v3763 = vpop.permute.xlu0 %3762
    %3765 = vset.pattern.permute.xlu0 12
    %3766 = vperm.xlu0 %3765, %v65
    %v3767 = vpop.permute.xlu0 %3766
    %3769 = vset.pattern.permute.xlu0 12
    %3770 = vperm.xlu0 %3769, %v66
    %v3771 = vpop.permute.xlu0 %3770
    %3773 = vset.pattern.permute.xlu0 12
    %3774 = vperm.xlu0 %3773, %v67
    %v3775 = vpop.permute.xlu0 %3774
    %3777 = vset.pattern.permute.xlu0 12
    %3778 = vperm.xlu0 %3777, %v68
    %v3779 = vpop.permute.xlu0 %3778
    %3781 = vset.pattern.permute.xlu0 12
    %3782 = vperm.xlu0 %3781, %v69
    %v3783 = vpop.permute.xlu0 %3782
    %3785 = vset.pattern.permute.xlu0 12
    %3786 = vperm.xlu0 %3785, %v70
    %v3787 = vpop.permute.xlu0 %3786
    %3789 = vset.pattern.permute.xlu0 12
    %3790 = vperm.xlu0 %3789, %v71
    %v3791 = vpop.permute.xlu0 %3790
    %3793 = vset.pattern.permute.xlu0 12
    %3794 = vperm.xlu0 %3793, %v72
    %v3795 = vpop.permute.xlu0 %3794
    %3797 = vset.pattern.permute.xlu0 12
    %3798 = vperm.xlu0 %3797, %v73
    %v3799 = vpop.permute.xlu0 %3798
    %3801 = vset.pattern.permute.xlu0 12
    %3802 = vperm.xlu0 %3801, %v74
    %v3803 = vpop.permute.xlu0 %3802
    %3805 = vset.pattern.permute.xlu0 12
    %3806 = vperm.xlu0 %3805, %v75
    %v3807 = vpop.permute.xlu0 %3806
    %3809 = vset.pattern.permute.xlu0 12
    %3810 = vperm.xlu0 %3809, %v76
    %v3811 = vpop.permute.xlu0 %3810
    %3813 = vset.pattern.permute.xlu0 12
    %3814 = vperm.xlu0 %3813, %v77
    %v3815 = vpop.permute.xlu0 %3814
    %3817 = vset.pattern.permute.xlu0 12
    %3818 = vperm.xlu0 %3817, %v78
    %v3819 = vpop.permute.xlu0 %3818
    %3821 = vset.pattern.permute.xlu0 12
    %3822 = vperm.xlu0 %3821, %v79
    %v3823 = vpop.permute.xlu0 %3822
    %3825 = vset.pattern.permute.xlu0 12
    %3826 = vperm.xlu0 %3825, %v80
    %v3827 = vpop.permute.xlu0 %3826
    %3829 = vset.pattern.permute.xlu0 12
    %3830 = vperm.xlu0 %3829, %v81
    %v3831 = vpop.permute.xlu0 %3830
    %3833 = vset.pattern.permute.xlu0 12
    %3834 = vperm.xlu0 %3833, %v82
    %v3835 = vpop.permute.xlu0 %3834
    %3837 = vset.pattern.permute.xlu0 12
    %3838 = vperm.xlu0 %3837, %v83
    %v3839 = vpop.permute.xlu0 %3838
    %v3841 = vlaneseq
    %v3842 = vshrl.u32 %v3841, 7
    %v3843 = vsub.s32 0, %v3842
    %v3844 = vrot.slane %v3648, %v3843
    %v3845 = vmul.f32 %v3651, %v3844
    %v3846 = vmul.f32 %v3655, %v3844
    %v3847 = vmul.f32 %v3659, %v3844
    %v3848 = vmul.f32 %v3663, %v3844
    %v3849 = vmul.f32 %v3667, %v3844
    %v3850 = vmul.f32 %v3671, %v3844
    %v3851 = vmul.f32 %v3675, %v3844
    %v3852 = vmul.f32 %v3679, %v3844
    %v3853 = vmul.f32 %v3683, %v3844
    %v3854 = vmul.f32 %v3687, %v3844
    %v3855 = vmul.f32 %v3691, %v3844
    %v3856 = vmul.f32 %v3695, %v3844
    %v3857 = vmul.f32 %v3699, %v3844
    %v3858 = vmul.f32 %v3703, %v3844
    %v3859 = vmul.f32 %v3707, %v3844
    %v3860 = vmul.f32 %v3711, %v3844
    %v3861 = vmul.f32 %v3715, %v3844
    %v3862 = vmul.f32 %v3719, %v3844
    %v3863 = vmul.f32 %v3723, %v3844
    %v3864 = vmul.f32 %v3727, %v3844
    %v3865 = vmul.f32 %v3731, %v3844
    %v3866 = vmul.f32 %v3735, %v3844
    %v3867 = vmul.f32 %v3739, %v3844
    %v3868 = vmul.f32 %v3743, %v3844
    %v3869 = vmul.f32 %v3747, %v3844
    %v3870 = vmul.f32 %v3751, %v3844
    %v3871 = vmul.f32 %v3755, %v3844
    %v3872 = vmul.f32 %v3759, %v3844
    %v3873 = vmul.f32 %v3763, %v3844
    %v3874 = vmul.f32 %v3767, %v3844
    %v3875 = vmul.f32 %v3771, %v3844
    %v3876 = vmul.f32 %v3775, %v3844
    %v3877 = vmul.f32 %v3779, %v3844
    %v3878 = vmul.f32 %v3783, %v3844
    %v3879 = vmul.f32 %v3787, %v3844
    %v3880 = vmul.f32 %v3791, %v3844
    %v3881 = vmul.f32 %v3795, %v3844
    %v3882 = vmul.f32 %v3799, %v3844
    %v3883 = vmul.f32 %v3803, %v3844
    %v3884 = vmul.f32 %v3807, %v3844
    %v3885 = vmul.f32 %v3811, %v3844
    %v3886 = vmul.f32 %v3815, %v3844
    %v3887 = vmul.f32 %v3819, %v3844
    %v3888 = vmul.f32 %v3823, %v3844
    %v3889 = vmul.f32 %v3827, %v3844
    %v3890 = vmul.f32 %v3831, %v3844
    %v3891 = vmul.f32 %v3835, %v3844
    %v3892 = vmul.f32 %v3839, %v3844
    %v3893 = vadd.f32 %v3600, %v3845
    %v3894 = vadd.f32 %v3601, %v3846
    %v3895 = vadd.f32 %v3602, %v3847
    %v3896 = vadd.f32 %v3603, %v3848
    %v3897 = vadd.f32 %v3604, %v3849
    %v3898 = vadd.f32 %v3605, %v3850
    %v3899 = vadd.f32 %v3606, %v3851
    %v3900 = vadd.f32 %v3607, %v3852
    %v3901 = vadd.f32 %v3608, %v3853
    %v3902 = vadd.f32 %v3609, %v3854
    %v3903 = vadd.f32 %v3610, %v3855
    %v3904 = vadd.f32 %v3611, %v3856
    %v3905 = vadd.f32 %v3612, %v3857
    %v3906 = vadd.f32 %v3613, %v3858
    %v3907 = vadd.f32 %v3614, %v3859
    %v3908 = vadd.f32 %v3615, %v3860
    %v3909 = vadd.f32 %v3616, %v3861
    %v3910 = vadd.f32 %v3617, %v3862
    %v3911 = vadd.f32 %v3618, %v3863
    %v3912 = vadd.f32 %v3619, %v3864
    %v3913 = vadd.f32 %v3620, %v3865
    %v3914 = vadd.f32 %v3621, %v3866
    %v3915 = vadd.f32 %v3622, %v3867
    %v3916 = vadd.f32 %v3623, %v3868
    %v3917 = vadd.f32 %v3624, %v3869
    %v3918 = vadd.f32 %v3625, %v3870
    %v3919 = vadd.f32 %v3626, %v3871
    %v3920 = vadd.f32 %v3627, %v3872
    %v3921 = vadd.f32 %v3628, %v3873
    %v3922 = vadd.f32 %v3629, %v3874
    %v3923 = vadd.f32 %v3630, %v3875
    %v3924 = vadd.f32 %v3631, %v3876
    %v3925 = vadd.f32 %v3632, %v3877
    %v3926 = vadd.f32 %v3633, %v3878
    %v3927 = vadd.f32 %v3634, %v3879
    %v3928 = vadd.f32 %v3635, %v3880
    %v3929 = vadd.f32 %v3636, %v3881
    %v3930 = vadd.f32 %v3637, %v3882
    %v3931 = vadd.f32 %v3638, %v3883
    %v3932 = vadd.f32 %v3639, %v3884
    %v3933 = vadd.f32 %v3640, %v3885
    %v3934 = vadd.f32 %v3641, %v3886
    %v3935 = vadd.f32 %v3642, %v3887
    %v3936 = vadd.f32 %v3643, %v3888
    %v3937 = vadd.f32 %v3644, %v3889
    %v3938 = vadd.f32 %v3645, %v3890
    %v3939 = vadd.f32 %v3646, %v3891
    %v3940 = vadd.f32 %v3647, %v3892
    %v3941 = vld [vmem:[%s1 + $0xd] sm:$0x1]
    %3942 = vset.pattern.permute.xlu0 13
    %3943 = vperm.xlu0 %3942, %v36
    %v3944 = vpop.permute.xlu0 %3943
    %3946 = vset.pattern.permute.xlu0 13
    %3947 = vperm.xlu0 %3946, %v37
    %v3948 = vpop.permute.xlu0 %3947
    %3950 = vset.pattern.permute.xlu0 13
    %3951 = vperm.xlu0 %3950, %v38
    %v3952 = vpop.permute.xlu0 %3951
    %3954 = vset.pattern.permute.xlu0 13
    %3955 = vperm.xlu0 %3954, %v39
    %v3956 = vpop.permute.xlu0 %3955
    %3958 = vset.pattern.permute.xlu0 13
    %3959 = vperm.xlu0 %3958, %v40
    %v3960 = vpop.permute.xlu0 %3959
    %3962 = vset.pattern.permute.xlu0 13
    %3963 = vperm.xlu0 %3962, %v41
    %v3964 = vpop.permute.xlu0 %3963
    %3966 = vset.pattern.permute.xlu0 13
    %3967 = vperm.xlu0 %3966, %v42
    %v3968 = vpop.permute.xlu0 %3967
    %3970 = vset.pattern.permute.xlu0 13
    %3971 = vperm.xlu0 %3970, %v43
    %v3972 = vpop.permute.xlu0 %3971
    %3974 = vset.pattern.permute.xlu0 13
    %3975 = vperm.xlu0 %3974, %v44
    %v3976 = vpop.permute.xlu0 %3975
    %3978 = vset.pattern.permute.xlu0 13
    %3979 = vperm.xlu0 %3978, %v45
    %v3980 = vpop.permute.xlu0 %3979
    %3982 = vset.pattern.permute.xlu0 13
    %3983 = vperm.xlu0 %3982, %v46
    %v3984 = vpop.permute.xlu0 %3983
    %3986 = vset.pattern.permute.xlu0 13
    %3987 = vperm.xlu0 %3986, %v47
    %v3988 = vpop.permute.xlu0 %3987
    %3990 = vset.pattern.permute.xlu0 13
    %3991 = vperm.xlu0 %3990, %v48
    %v3992 = vpop.permute.xlu0 %3991
    %3994 = vset.pattern.permute.xlu0 13
    %3995 = vperm.xlu0 %3994, %v49
    %v3996 = vpop.permute.xlu0 %3995
    %3998 = vset.pattern.permute.xlu0 13
    %3999 = vperm.xlu0 %3998, %v50
    %v4000 = vpop.permute.xlu0 %3999
    %4002 = vset.pattern.permute.xlu0 13
    %4003 = vperm.xlu0 %4002, %v51
    %v4004 = vpop.permute.xlu0 %4003
    %4006 = vset.pattern.permute.xlu0 13
    %4007 = vperm.xlu0 %4006, %v52
    %v4008 = vpop.permute.xlu0 %4007
    %4010 = vset.pattern.permute.xlu0 13
    %4011 = vperm.xlu0 %4010, %v53
    %v4012 = vpop.permute.xlu0 %4011
    %4014 = vset.pattern.permute.xlu0 13
    %4015 = vperm.xlu0 %4014, %v54
    %v4016 = vpop.permute.xlu0 %4015
    %4018 = vset.pattern.permute.xlu0 13
    %4019 = vperm.xlu0 %4018, %v55
    %v4020 = vpop.permute.xlu0 %4019
    %4022 = vset.pattern.permute.xlu0 13
    %4023 = vperm.xlu0 %4022, %v56
    %v4024 = vpop.permute.xlu0 %4023
    %4026 = vset.pattern.permute.xlu0 13
    %4027 = vperm.xlu0 %4026, %v57
    %v4028 = vpop.permute.xlu0 %4027
    %4030 = vset.pattern.permute.xlu0 13
    %4031 = vperm.xlu0 %4030, %v58
    %v4032 = vpop.permute.xlu0 %4031
    %4034 = vset.pattern.permute.xlu0 13
    %4035 = vperm.xlu0 %4034, %v59
    %v4036 = vpop.permute.xlu0 %4035
    %4038 = vset.pattern.permute.xlu0 13
    %4039 = vperm.xlu0 %4038, %v60
    %v4040 = vpop.permute.xlu0 %4039
    %4042 = vset.pattern.permute.xlu0 13
    %4043 = vperm.xlu0 %4042, %v61
    %v4044 = vpop.permute.xlu0 %4043
    %4046 = vset.pattern.permute.xlu0 13
    %4047 = vperm.xlu0 %4046, %v62
    %v4048 = vpop.permute.xlu0 %4047
    %4050 = vset.pattern.permute.xlu0 13
    %4051 = vperm.xlu0 %4050, %v63
    %v4052 = vpop.permute.xlu0 %4051
    %4054 = vset.pattern.permute.xlu0 13
    %4055 = vperm.xlu0 %4054, %v64
    %v4056 = vpop.permute.xlu0 %4055
    %4058 = vset.pattern.permute.xlu0 13
    %4059 = vperm.xlu0 %4058, %v65
    %v4060 = vpop.permute.xlu0 %4059
    %4062 = vset.pattern.permute.xlu0 13
    %4063 = vperm.xlu0 %4062, %v66
    %v4064 = vpop.permute.xlu0 %4063
    %4066 = vset.pattern.permute.xlu0 13
    %4067 = vperm.xlu0 %4066, %v67
    %v4068 = vpop.permute.xlu0 %4067
    %4070 = vset.pattern.permute.xlu0 13
    %4071 = vperm.xlu0 %4070, %v68
    %v4072 = vpop.permute.xlu0 %4071
    %4074 = vset.pattern.permute.xlu0 13
    %4075 = vperm.xlu0 %4074, %v69
    %v4076 = vpop.permute.xlu0 %4075
    %4078 = vset.pattern.permute.xlu0 13
    %4079 = vperm.xlu0 %4078, %v70
    %v4080 = vpop.permute.xlu0 %4079
    %4082 = vset.pattern.permute.xlu0 13
    %4083 = vperm.xlu0 %4082, %v71
    %v4084 = vpop.permute.xlu0 %4083
    %4086 = vset.pattern.permute.xlu0 13
    %4087 = vperm.xlu0 %4086, %v72
    %v4088 = vpop.permute.xlu0 %4087
    %4090 = vset.pattern.permute.xlu0 13
    %4091 = vperm.xlu0 %4090, %v73
    %v4092 = vpop.permute.xlu0 %4091
    %4094 = vset.pattern.permute.xlu0 13
    %4095 = vperm.xlu0 %4094, %v74
    %v4096 = vpop.permute.xlu0 %4095
    %4098 = vset.pattern.permute.xlu0 13
    %4099 = vperm.xlu0 %4098, %v75
    %v4100 = vpop.permute.xlu0 %4099
    %4102 = vset.pattern.permute.xlu0 13
    %4103 = vperm.xlu0 %4102, %v76
    %v4104 = vpop.permute.xlu0 %4103
    %4106 = vset.pattern.permute.xlu0 13
    %4107 = vperm.xlu0 %4106, %v77
    %v4108 = vpop.permute.xlu0 %4107
    %4110 = vset.pattern.permute.xlu0 13
    %4111 = vperm.xlu0 %4110, %v78
    %v4112 = vpop.permute.xlu0 %4111
    %4114 = vset.pattern.permute.xlu0 13
    %4115 = vperm.xlu0 %4114, %v79
    %v4116 = vpop.permute.xlu0 %4115
    %4118 = vset.pattern.permute.xlu0 13
    %4119 = vperm.xlu0 %4118, %v80
    %v4120 = vpop.permute.xlu0 %4119
    %4122 = vset.pattern.permute.xlu0 13
    %4123 = vperm.xlu0 %4122, %v81
    %v4124 = vpop.permute.xlu0 %4123
    %4126 = vset.pattern.permute.xlu0 13
    %4127 = vperm.xlu0 %4126, %v82
    %v4128 = vpop.permute.xlu0 %4127
    %4130 = vset.pattern.permute.xlu0 13
    %4131 = vperm.xlu0 %4130, %v83
    %v4132 = vpop.permute.xlu0 %4131
    %v4134 = vlaneseq
    %v4135 = vshrl.u32 %v4134, 7
    %v4136 = vsub.s32 0, %v4135
    %v4137 = vrot.slane %v3941, %v4136
    %v4138 = vmul.f32 %v3944, %v4137
    %v4139 = vmul.f32 %v3948, %v4137
    %v4140 = vmul.f32 %v3952, %v4137
    %v4141 = vmul.f32 %v3956, %v4137
    %v4142 = vmul.f32 %v3960, %v4137
    %v4143 = vmul.f32 %v3964, %v4137
    %v4144 = vmul.f32 %v3968, %v4137
    %v4145 = vmul.f32 %v3972, %v4137
    %v4146 = vmul.f32 %v3976, %v4137
    %v4147 = vmul.f32 %v3980, %v4137
    %v4148 = vmul.f32 %v3984, %v4137
    %v4149 = vmul.f32 %v3988, %v4137
    %v4150 = vmul.f32 %v3992, %v4137
    %v4151 = vmul.f32 %v3996, %v4137
    %v4152 = vmul.f32 %v4000, %v4137
    %v4153 = vmul.f32 %v4004, %v4137
    %v4154 = vmul.f32 %v4008, %v4137
    %v4155 = vmul.f32 %v4012, %v4137
    %v4156 = vmul.f32 %v4016, %v4137
    %v4157 = vmul.f32 %v4020, %v4137
    %v4158 = vmul.f32 %v4024, %v4137
    %v4159 = vmul.f32 %v4028, %v4137
    %v4160 = vmul.f32 %v4032, %v4137
    %v4161 = vmul.f32 %v4036, %v4137
    %v4162 = vmul.f32 %v4040, %v4137
    %v4163 = vmul.f32 %v4044, %v4137
    %v4164 = vmul.f32 %v4048, %v4137
    %v4165 = vmul.f32 %v4052, %v4137
    %v4166 = vmul.f32 %v4056, %v4137
    %v4167 = vmul.f32 %v4060, %v4137
    %v4168 = vmul.f32 %v4064, %v4137
    %v4169 = vmul.f32 %v4068, %v4137
    %v4170 = vmul.f32 %v4072, %v4137
    %v4171 = vmul.f32 %v4076, %v4137
    %v4172 = vmul.f32 %v4080, %v4137
    %v4173 = vmul.f32 %v4084, %v4137
    %v4174 = vmul.f32 %v4088, %v4137
    %v4175 = vmul.f32 %v4092, %v4137
    %v4176 = vmul.f32 %v4096, %v4137
    %v4177 = vmul.f32 %v4100, %v4137
    %v4178 = vmul.f32 %v4104, %v4137
    %v4179 = vmul.f32 %v4108, %v4137
    %v4180 = vmul.f32 %v4112, %v4137
    %v4181 = vmul.f32 %v4116, %v4137
    %v4182 = vmul.f32 %v4120, %v4137
    %v4183 = vmul.f32 %v4124, %v4137
    %v4184 = vmul.f32 %v4128, %v4137
    %v4185 = vmul.f32 %v4132, %v4137
    %v4186 = vadd.f32 %v3893, %v4138
    %v4187 = vadd.f32 %v3894, %v4139
    %v4188 = vadd.f32 %v3895, %v4140
    %v4189 = vadd.f32 %v3896, %v4141
    %v4190 = vadd.f32 %v3897, %v4142
    %v4191 = vadd.f32 %v3898, %v4143
    %v4192 = vadd.f32 %v3899, %v4144
    %v4193 = vadd.f32 %v3900, %v4145
    %v4194 = vadd.f32 %v3901, %v4146
    %v4195 = vadd.f32 %v3902, %v4147
    %v4196 = vadd.f32 %v3903, %v4148
    %v4197 = vadd.f32 %v3904, %v4149
    %v4198 = vadd.f32 %v3905, %v4150
    %v4199 = vadd.f32 %v3906, %v4151
    %v4200 = vadd.f32 %v3907, %v4152
    %v4201 = vadd.f32 %v3908, %v4153
    %v4202 = vadd.f32 %v3909, %v4154
    %v4203 = vadd.f32 %v3910, %v4155
    %v4204 = vadd.f32 %v3911, %v4156
    %v4205 = vadd.f32 %v3912, %v4157
    %v4206 = vadd.f32 %v3913, %v4158
    %v4207 = vadd.f32 %v3914, %v4159
    %v4208 = vadd.f32 %v3915, %v4160
    %v4209 = vadd.f32 %v3916, %v4161
    %v4210 = vadd.f32 %v3917, %v4162
    %v4211 = vadd.f32 %v3918, %v4163
    %v4212 = vadd.f32 %v3919, %v4164
    %v4213 = vadd.f32 %v3920, %v4165
    %v4214 = vadd.f32 %v3921, %v4166
    %v4215 = vadd.f32 %v3922, %v4167
    %v4216 = vadd.f32 %v3923, %v4168
    %v4217 = vadd.f32 %v3924, %v4169
    %v4218 = vadd.f32 %v3925, %v4170
    %v4219 = vadd.f32 %v3926, %v4171
    %v4220 = vadd.f32 %v3927, %v4172
    %v4221 = vadd.f32 %v3928, %v4173
    %v4222 = vadd.f32 %v3929, %v4174
    %v4223 = vadd.f32 %v3930, %v4175
    %v4224 = vadd.f32 %v3931, %v4176
    %v4225 = vadd.f32 %v3932, %v4177
    %v4226 = vadd.f32 %v3933, %v4178
    %v4227 = vadd.f32 %v3934, %v4179
    %v4228 = vadd.f32 %v3935, %v4180
    %v4229 = vadd.f32 %v3936, %v4181
    %v4230 = vadd.f32 %v3937, %v4182
    %v4231 = vadd.f32 %v3938, %v4183
    %v4232 = vadd.f32 %v3939, %v4184
    %v4233 = vadd.f32 %v3940, %v4185
    %v4234 = vld [vmem:[%s1 + $0xe] sm:$0x1]
    %4235 = vset.pattern.permute.xlu0 14
    %4236 = vperm.xlu0 %4235, %v36
    %v4237 = vpop.permute.xlu0 %4236
    %4239 = vset.pattern.permute.xlu0 14
    %4240 = vperm.xlu0 %4239, %v37
    %v4241 = vpop.permute.xlu0 %4240
    %4243 = vset.pattern.permute.xlu0 14
    %4244 = vperm.xlu0 %4243, %v38
    %v4245 = vpop.permute.xlu0 %4244
    %4247 = vset.pattern.permute.xlu0 14
    %4248 = vperm.xlu0 %4247, %v39
    %v4249 = vpop.permute.xlu0 %4248
    %4251 = vset.pattern.permute.xlu0 14
    %4252 = vperm.xlu0 %4251, %v40
    %v4253 = vpop.permute.xlu0 %4252
    %4255 = vset.pattern.permute.xlu0 14
    %4256 = vperm.xlu0 %4255, %v41
    %v4257 = vpop.permute.xlu0 %4256
    %4259 = vset.pattern.permute.xlu0 14
    %4260 = vperm.xlu0 %4259, %v42
    %v4261 = vpop.permute.xlu0 %4260
    %4263 = vset.pattern.permute.xlu0 14
    %4264 = vperm.xlu0 %4263, %v43
    %v4265 = vpop.permute.xlu0 %4264
    %4267 = vset.pattern.permute.xlu0 14
    %4268 = vperm.xlu0 %4267, %v44
    %v4269 = vpop.permute.xlu0 %4268
    %4271 = vset.pattern.permute.xlu0 14
    %4272 = vperm.xlu0 %4271, %v45
    %v4273 = vpop.permute.xlu0 %4272
    %4275 = vset.pattern.permute.xlu0 14
    %4276 = vperm.xlu0 %4275, %v46
    %v4277 = vpop.permute.xlu0 %4276
    %4279 = vset.pattern.permute.xlu0 14
    %4280 = vperm.xlu0 %4279, %v47
    %v4281 = vpop.permute.xlu0 %4280
    %4283 = vset.pattern.permute.xlu0 14
    %4284 = vperm.xlu0 %4283, %v48
    %v4285 = vpop.permute.xlu0 %4284
    %4287 = vset.pattern.permute.xlu0 14
    %4288 = vperm.xlu0 %4287, %v49
    %v4289 = vpop.permute.xlu0 %4288
    %4291 = vset.pattern.permute.xlu0 14
    %4292 = vperm.xlu0 %4291, %v50
    %v4293 = vpop.permute.xlu0 %4292
    %4295 = vset.pattern.permute.xlu0 14
    %4296 = vperm.xlu0 %4295, %v51
    %v4297 = vpop.permute.xlu0 %4296
    %4299 = vset.pattern.permute.xlu0 14
    %4300 = vperm.xlu0 %4299, %v52
    %v4301 = vpop.permute.xlu0 %4300
    %4303 = vset.pattern.permute.xlu0 14
    %4304 = vperm.xlu0 %4303, %v53
    %v4305 = vpop.permute.xlu0 %4304
    %4307 = vset.pattern.permute.xlu0 14
    %4308 = vperm.xlu0 %4307, %v54
    %v4309 = vpop.permute.xlu0 %4308
    %4311 = vset.pattern.permute.xlu0 14
    %4312 = vperm.xlu0 %4311, %v55
    %v4313 = vpop.permute.xlu0 %4312
    %4315 = vset.pattern.permute.xlu0 14
    %4316 = vperm.xlu0 %4315, %v56
    %v4317 = vpop.permute.xlu0 %4316
    %4319 = vset.pattern.permute.xlu0 14
    %4320 = vperm.xlu0 %4319, %v57
    %v4321 = vpop.permute.xlu0 %4320
    %4323 = vset.pattern.permute.xlu0 14
    %4324 = vperm.xlu0 %4323, %v58
    %v4325 = vpop.permute.xlu0 %4324
    %4327 = vset.pattern.permute.xlu0 14
    %4328 = vperm.xlu0 %4327, %v59
    %v4329 = vpop.permute.xlu0 %4328
    %4331 = vset.pattern.permute.xlu0 14
    %4332 = vperm.xlu0 %4331, %v60
    %v4333 = vpop.permute.xlu0 %4332
    %4335 = vset.pattern.permute.xlu0 14
    %4336 = vperm.xlu0 %4335, %v61
    %v4337 = vpop.permute.xlu0 %4336
    %4339 = vset.pattern.permute.xlu0 14
    %4340 = vperm.xlu0 %4339, %v62
    %v4341 = vpop.permute.xlu0 %4340
    %4343 = vset.pattern.permute.xlu0 14
    %4344 = vperm.xlu0 %4343, %v63
    %v4345 = vpop.permute.xlu0 %4344
    %4347 = vset.pattern.permute.xlu0 14
    %4348 = vperm.xlu0 %4347, %v64
    %v4349 = vpop.permute.xlu0 %4348
    %4351 = vset.pattern.permute.xlu0 14
    %4352 = vperm.xlu0 %4351, %v65
    %v4353 = vpop.permute.xlu0 %4352
    %4355 = vset.pattern.permute.xlu0 14
    %4356 = vperm.xlu0 %4355, %v66
    %v4357 = vpop.permute.xlu0 %4356
    %4359 = vset.pattern.permute.xlu0 14
    %4360 = vperm.xlu0 %4359, %v67
    %v4361 = vpop.permute.xlu0 %4360
    %4363 = vset.pattern.permute.xlu0 14
    %4364 = vperm.xlu0 %4363, %v68
    %v4365 = vpop.permute.xlu0 %4364
    %4367 = vset.pattern.permute.xlu0 14
    %4368 = vperm.xlu0 %4367, %v69
    %v4369 = vpop.permute.xlu0 %4368
    %4371 = vset.pattern.permute.xlu0 14
    %4372 = vperm.xlu0 %4371, %v70
    %v4373 = vpop.permute.xlu0 %4372
    %4375 = vset.pattern.permute.xlu0 14
    %4376 = vperm.xlu0 %4375, %v71
    %v4377 = vpop.permute.xlu0 %4376
    %4379 = vset.pattern.permute.xlu0 14
    %4380 = vperm.xlu0 %4379, %v72
    %v4381 = vpop.permute.xlu0 %4380
    %4383 = vset.pattern.permute.xlu0 14
    %4384 = vperm.xlu0 %4383, %v73
    %v4385 = vpop.permute.xlu0 %4384
    %4387 = vset.pattern.permute.xlu0 14
    %4388 = vperm.xlu0 %4387, %v74
    %v4389 = vpop.permute.xlu0 %4388
    %4391 = vset.pattern.permute.xlu0 14
    %4392 = vperm.xlu0 %4391, %v75
    %v4393 = vpop.permute.xlu0 %4392
    %4395 = vset.pattern.permute.xlu0 14
    %4396 = vperm.xlu0 %4395, %v76
    %v4397 = vpop.permute.xlu0 %4396
    %4399 = vset.pattern.permute.xlu0 14
    %4400 = vperm.xlu0 %4399, %v77
    %v4401 = vpop.permute.xlu0 %4400
    %4403 = vset.pattern.permute.xlu0 14
    %4404 = vperm.xlu0 %4403, %v78
    %v4405 = vpop.permute.xlu0 %4404
    %4407 = vset.pattern.permute.xlu0 14
    %4408 = vperm.xlu0 %4407, %v79
    %v4409 = vpop.permute.xlu0 %4408
    %4411 = vset.pattern.permute.xlu0 14
    %4412 = vperm.xlu0 %4411, %v80
    %v4413 = vpop.permute.xlu0 %4412
    %4415 = vset.pattern.permute.xlu0 14
    %4416 = vperm.xlu0 %4415, %v81
    %v4417 = vpop.permute.xlu0 %4416
    %4419 = vset.pattern.permute.xlu0 14
    %4420 = vperm.xlu0 %4419, %v82
    %v4421 = vpop.permute.xlu0 %4420
    %4423 = vset.pattern.permute.xlu0 14
    %4424 = vperm.xlu0 %4423, %v83
    %v4425 = vpop.permute.xlu0 %4424
    %v4427 = vlaneseq
    %v4428 = vshrl.u32 %v4427, 7
    %v4429 = vsub.s32 0, %v4428
    %v4430 = vrot.slane %v4234, %v4429
    %v4431 = vmul.f32 %v4237, %v4430
    %v4432 = vmul.f32 %v4241, %v4430
    %v4433 = vmul.f32 %v4245, %v4430
    %v4434 = vmul.f32 %v4249, %v4430
    %v4435 = vmul.f32 %v4253, %v4430
    %v4436 = vmul.f32 %v4257, %v4430
    %v4437 = vmul.f32 %v4261, %v4430
    %v4438 = vmul.f32 %v4265, %v4430
    %v4439 = vmul.f32 %v4269, %v4430
    %v4440 = vmul.f32 %v4273, %v4430
    %v4441 = vmul.f32 %v4277, %v4430
    %v4442 = vmul.f32 %v4281, %v4430
    %v4443 = vmul.f32 %v4285, %v4430
    %v4444 = vmul.f32 %v4289, %v4430
    %v4445 = vmul.f32 %v4293, %v4430
    %v4446 = vmul.f32 %v4297, %v4430
    %v4447 = vmul.f32 %v4301, %v4430
    %v4448 = vmul.f32 %v4305, %v4430
    %v4449 = vmul.f32 %v4309, %v4430
    %v4450 = vmul.f32 %v4313, %v4430
    %v4451 = vmul.f32 %v4317, %v4430
    %v4452 = vmul.f32 %v4321, %v4430
    %v4453 = vmul.f32 %v4325, %v4430
    %v4454 = vmul.f32 %v4329, %v4430
    %v4455 = vmul.f32 %v4333, %v4430
    %v4456 = vmul.f32 %v4337, %v4430
    %v4457 = vmul.f32 %v4341, %v4430
    %v4458 = vmul.f32 %v4345, %v4430
    %v4459 = vmul.f32 %v4349, %v4430
    %v4460 = vmul.f32 %v4353, %v4430
    %v4461 = vmul.f32 %v4357, %v4430
    %v4462 = vmul.f32 %v4361, %v4430
    %v4463 = vmul.f32 %v4365, %v4430
    %v4464 = vmul.f32 %v4369, %v4430
    %v4465 = vmul.f32 %v4373, %v4430
    %v4466 = vmul.f32 %v4377, %v4430
    %v4467 = vmul.f32 %v4381, %v4430
    %v4468 = vmul.f32 %v4385, %v4430
    %v4469 = vmul.f32 %v4389, %v4430
    %v4470 = vmul.f32 %v4393, %v4430
    %v4471 = vmul.f32 %v4397, %v4430
    %v4472 = vmul.f32 %v4401, %v4430
    %v4473 = vmul.f32 %v4405, %v4430
    %v4474 = vmul.f32 %v4409, %v4430
    %v4475 = vmul.f32 %v4413, %v4430
    %v4476 = vmul.f32 %v4417, %v4430
    %v4477 = vmul.f32 %v4421, %v4430
    %v4478 = vmul.f32 %v4425, %v4430
    %v4479 = vadd.f32 %v4186, %v4431
    %v4480 = vadd.f32 %v4187, %v4432
    %v4481 = vadd.f32 %v4188, %v4433
    %v4482 = vadd.f32 %v4189, %v4434
    %v4483 = vadd.f32 %v4190, %v4435
    %v4484 = vadd.f32 %v4191, %v4436
    %v4485 = vadd.f32 %v4192, %v4437
    %v4486 = vadd.f32 %v4193, %v4438
    %v4487 = vadd.f32 %v4194, %v4439
    %v4488 = vadd.f32 %v4195, %v4440
    %v4489 = vadd.f32 %v4196, %v4441
    %v4490 = vadd.f32 %v4197, %v4442
    %v4491 = vadd.f32 %v4198, %v4443
    %v4492 = vadd.f32 %v4199, %v4444
    %v4493 = vadd.f32 %v4200, %v4445
    %v4494 = vadd.f32 %v4201, %v4446
    %v4495 = vadd.f32 %v4202, %v4447
    %v4496 = vadd.f32 %v4203, %v4448
    %v4497 = vadd.f32 %v4204, %v4449
    %v4498 = vadd.f32 %v4205, %v4450
    %v4499 = vadd.f32 %v4206, %v4451
    %v4500 = vadd.f32 %v4207, %v4452
    %v4501 = vadd.f32 %v4208, %v4453
    %v4502 = vadd.f32 %v4209, %v4454
    %v4503 = vadd.f32 %v4210, %v4455
    %v4504 = vadd.f32 %v4211, %v4456
    %v4505 = vadd.f32 %v4212, %v4457
    %v4506 = vadd.f32 %v4213, %v4458
    %v4507 = vadd.f32 %v4214, %v4459
    %v4508 = vadd.f32 %v4215, %v4460
    %v4509 = vadd.f32 %v4216, %v4461
    %v4510 = vadd.f32 %v4217, %v4462
    %v4511 = vadd.f32 %v4218, %v4463
    %v4512 = vadd.f32 %v4219, %v4464
    %v4513 = vadd.f32 %v4220, %v4465
    %v4514 = vadd.f32 %v4221, %v4466
    %v4515 = vadd.f32 %v4222, %v4467
    %v4516 = vadd.f32 %v4223, %v4468
    %v4517 = vadd.f32 %v4224, %v4469
    %v4518 = vadd.f32 %v4225, %v4470
    %v4519 = vadd.f32 %v4226, %v4471
    %v4520 = vadd.f32 %v4227, %v4472
    %v4521 = vadd.f32 %v4228, %v4473
    %v4522 = vadd.f32 %v4229, %v4474
    %v4523 = vadd.f32 %v4230, %v4475
    %v4524 = vadd.f32 %v4231, %v4476
    %v4525 = vadd.f32 %v4232, %v4477
    %v4526 = vadd.f32 %v4233, %v4478
    %v4527 = vld [vmem:[%s1 + $0xf] sm:$0x1]
    %4528 = vset.pattern.permute.xlu0 15
    %4529 = vperm.xlu0 %4528, %v36
    %v4530 = vpop.permute.xlu0 %4529
    %4532 = vset.pattern.permute.xlu0 15
    %4533 = vperm.xlu0 %4532, %v37
    %v4534 = vpop.permute.xlu0 %4533
    %4536 = vset.pattern.permute.xlu0 15
    %4537 = vperm.xlu0 %4536, %v38
    %v4538 = vpop.permute.xlu0 %4537
    %4540 = vset.pattern.permute.xlu0 15
    %4541 = vperm.xlu0 %4540, %v39
    %v4542 = vpop.permute.xlu0 %4541
    %4544 = vset.pattern.permute.xlu0 15
    %4545 = vperm.xlu0 %4544, %v40
    %v4546 = vpop.permute.xlu0 %4545
    %4548 = vset.pattern.permute.xlu0 15
    %4549 = vperm.xlu0 %4548, %v41
    %v4550 = vpop.permute.xlu0 %4549
    %4552 = vset.pattern.permute.xlu0 15
    %4553 = vperm.xlu0 %4552, %v42
    %v4554 = vpop.permute.xlu0 %4553
    %4556 = vset.pattern.permute.xlu0 15
    %4557 = vperm.xlu0 %4556, %v43
    %v4558 = vpop.permute.xlu0 %4557
    %4560 = vset.pattern.permute.xlu0 15
    %4561 = vperm.xlu0 %4560, %v44
    %v4562 = vpop.permute.xlu0 %4561
    %4564 = vset.pattern.permute.xlu0 15
    %4565 = vperm.xlu0 %4564, %v45
    %v4566 = vpop.permute.xlu0 %4565
    %4568 = vset.pattern.permute.xlu0 15
    %4569 = vperm.xlu0 %4568, %v46
    %v4570 = vpop.permute.xlu0 %4569
    %4572 = vset.pattern.permute.xlu0 15
    %4573 = vperm.xlu0 %4572, %v47
    %v4574 = vpop.permute.xlu0 %4573
    %4576 = vset.pattern.permute.xlu0 15
    %4577 = vperm.xlu0 %4576, %v48
    %v4578 = vpop.permute.xlu0 %4577
    %4580 = vset.pattern.permute.xlu0 15
    %4581 = vperm.xlu0 %4580, %v49
    %v4582 = vpop.permute.xlu0 %4581
    %4584 = vset.pattern.permute.xlu0 15
    %4585 = vperm.xlu0 %4584, %v50
    %v4586 = vpop.permute.xlu0 %4585
    %4588 = vset.pattern.permute.xlu0 15
    %4589 = vperm.xlu0 %4588, %v51
    %v4590 = vpop.permute.xlu0 %4589
    %4592 = vset.pattern.permute.xlu0 15
    %4593 = vperm.xlu0 %4592, %v52
    %v4594 = vpop.permute.xlu0 %4593
    %4596 = vset.pattern.permute.xlu0 15
    %4597 = vperm.xlu0 %4596, %v53
    %v4598 = vpop.permute.xlu0 %4597
    %4600 = vset.pattern.permute.xlu0 15
    %4601 = vperm.xlu0 %4600, %v54
    %v4602 = vpop.permute.xlu0 %4601
    %4604 = vset.pattern.permute.xlu0 15
    %4605 = vperm.xlu0 %4604, %v55
    %v4606 = vpop.permute.xlu0 %4605
    %4608 = vset.pattern.permute.xlu0 15
    %4609 = vperm.xlu0 %4608, %v56
    %v4610 = vpop.permute.xlu0 %4609
    %4612 = vset.pattern.permute.xlu0 15
    %4613 = vperm.xlu0 %4612, %v57
    %v4614 = vpop.permute.xlu0 %4613
    %4616 = vset.pattern.permute.xlu0 15
    %4617 = vperm.xlu0 %4616, %v58
    %v4618 = vpop.permute.xlu0 %4617
    %4620 = vset.pattern.permute.xlu0 15
    %4621 = vperm.xlu0 %4620, %v59
    %v4622 = vpop.permute.xlu0 %4621
    %4624 = vset.pattern.permute.xlu0 15
    %4625 = vperm.xlu0 %4624, %v60
    %v4626 = vpop.permute.xlu0 %4625
    %4628 = vset.pattern.permute.xlu0 15
    %4629 = vperm.xlu0 %4628, %v61
    %v4630 = vpop.permute.xlu0 %4629
    %4632 = vset.pattern.permute.xlu0 15
    %4633 = vperm.xlu0 %4632, %v62
    %v4634 = vpop.permute.xlu0 %4633
    %4636 = vset.pattern.permute.xlu0 15
    %4637 = vperm.xlu0 %4636, %v63
    %v4638 = vpop.permute.xlu0 %4637
    %4640 = vset.pattern.permute.xlu0 15
    %4641 = vperm.xlu0 %4640, %v64
    %v4642 = vpop.permute.xlu0 %4641
    %4644 = vset.pattern.permute.xlu0 15
    %4645 = vperm.xlu0 %4644, %v65
    %v4646 = vpop.permute.xlu0 %4645
    %4648 = vset.pattern.permute.xlu0 15
    %4649 = vperm.xlu0 %4648, %v66
    %v4650 = vpop.permute.xlu0 %4649
    %4652 = vset.pattern.permute.xlu0 15
    %4653 = vperm.xlu0 %4652, %v67
    %v4654 = vpop.permute.xlu0 %4653
    %4656 = vset.pattern.permute.xlu0 15
    %4657 = vperm.xlu0 %4656, %v68
    %v4658 = vpop.permute.xlu0 %4657
    %4660 = vset.pattern.permute.xlu0 15
    %4661 = vperm.xlu0 %4660, %v69
    %v4662 = vpop.permute.xlu0 %4661
    %4664 = vset.pattern.permute.xlu0 15
    %4665 = vperm.xlu0 %4664, %v70
    %v4666 = vpop.permute.xlu0 %4665
    %4668 = vset.pattern.permute.xlu0 15
    %4669 = vperm.xlu0 %4668, %v71
    %v4670 = vpop.permute.xlu0 %4669
    %4672 = vset.pattern.permute.xlu0 15
    %4673 = vperm.xlu0 %4672, %v72
    %v4674 = vpop.permute.xlu0 %4673
    %4676 = vset.pattern.permute.xlu0 15
    %4677 = vperm.xlu0 %4676, %v73
    %v4678 = vpop.permute.xlu0 %4677
    %4680 = vset.pattern.permute.xlu0 15
    %4681 = vperm.xlu0 %4680, %v74
    %v4682 = vpop.permute.xlu0 %4681
    %4684 = vset.pattern.permute.xlu0 15
    %4685 = vperm.xlu0 %4684, %v75
    %v4686 = vpop.permute.xlu0 %4685
    %4688 = vset.pattern.permute.xlu0 15
    %4689 = vperm.xlu0 %4688, %v76
    %v4690 = vpop.permute.xlu0 %4689
    %4692 = vset.pattern.permute.xlu0 15
    %4693 = vperm.xlu0 %4692, %v77
    %v4694 = vpop.permute.xlu0 %4693
    %4696 = vset.pattern.permute.xlu0 15
    %4697 = vperm.xlu0 %4696, %v78
    %v4698 = vpop.permute.xlu0 %4697
    %4700 = vset.pattern.permute.xlu0 15
    %4701 = vperm.xlu0 %4700, %v79
    %v4702 = vpop.permute.xlu0 %4701
    %4704 = vset.pattern.permute.xlu0 15
    %4705 = vperm.xlu0 %4704, %v80
    %v4706 = vpop.permute.xlu0 %4705
    %4708 = vset.pattern.permute.xlu0 15
    %4709 = vperm.xlu0 %4708, %v81
    %v4710 = vpop.permute.xlu0 %4709
    %4712 = vset.pattern.permute.xlu0 15
    %4713 = vperm.xlu0 %4712, %v82
    %v4714 = vpop.permute.xlu0 %4713
    %4716 = vset.pattern.permute.xlu0 15
    %4717 = vperm.xlu0 %4716, %v83
    %v4718 = vpop.permute.xlu0 %4717
    %v4720 = vlaneseq
    %v4721 = vshrl.u32 %v4720, 7
    %v4722 = vsub.s32 0, %v4721
    %v4723 = vrot.slane %v4527, %v4722
    %v4724 = vmul.f32 %v4530, %v4723
    %v4725 = vmul.f32 %v4534, %v4723
    %v4726 = vmul.f32 %v4538, %v4723
    %v4727 = vmul.f32 %v4542, %v4723
    %v4728 = vmul.f32 %v4546, %v4723
    %v4729 = vmul.f32 %v4550, %v4723
    %v4730 = vmul.f32 %v4554, %v4723
    %v4731 = vmul.f32 %v4558, %v4723
    %v4732 = vmul.f32 %v4562, %v4723
    %v4733 = vmul.f32 %v4566, %v4723
    %v4734 = vmul.f32 %v4570, %v4723
    %v4735 = vmul.f32 %v4574, %v4723
    %v4736 = vmul.f32 %v4578, %v4723
    %v4737 = vmul.f32 %v4582, %v4723
    %v4738 = vmul.f32 %v4586, %v4723
    %v4739 = vmul.f32 %v4590, %v4723
    %v4740 = vmul.f32 %v4594, %v4723
    %v4741 = vmul.f32 %v4598, %v4723
    %v4742 = vmul.f32 %v4602, %v4723
    %v4743 = vmul.f32 %v4606, %v4723
    %v4744 = vmul.f32 %v4610, %v4723
    %v4745 = vmul.f32 %v4614, %v4723
    %v4746 = vmul.f32 %v4618, %v4723
    %v4747 = vmul.f32 %v4622, %v4723
    %v4748 = vmul.f32 %v4626, %v4723
    %v4749 = vmul.f32 %v4630, %v4723
    %v4750 = vmul.f32 %v4634, %v4723
    %v4751 = vmul.f32 %v4638, %v4723
    %v4752 = vmul.f32 %v4642, %v4723
    %v4753 = vmul.f32 %v4646, %v4723
    %v4754 = vmul.f32 %v4650, %v4723
    %v4755 = vmul.f32 %v4654, %v4723
    %v4756 = vmul.f32 %v4658, %v4723
    %v4757 = vmul.f32 %v4662, %v4723
    %v4758 = vmul.f32 %v4666, %v4723
    %v4759 = vmul.f32 %v4670, %v4723
    %v4760 = vmul.f32 %v4674, %v4723
    %v4761 = vmul.f32 %v4678, %v4723
    %v4762 = vmul.f32 %v4682, %v4723
    %v4763 = vmul.f32 %v4686, %v4723
    %v4764 = vmul.f32 %v4690, %v4723
    %v4765 = vmul.f32 %v4694, %v4723
    %v4766 = vmul.f32 %v4698, %v4723
    %v4767 = vmul.f32 %v4702, %v4723
    %v4768 = vmul.f32 %v4706, %v4723
    %v4769 = vmul.f32 %v4710, %v4723
    %v4770 = vmul.f32 %v4714, %v4723
    %v4771 = vmul.f32 %v4718, %v4723
    %v4772 = vadd.f32 %v4479, %v4724
    %v4773 = vadd.f32 %v4480, %v4725
    %v4774 = vadd.f32 %v4481, %v4726
    %v4775 = vadd.f32 %v4482, %v4727
    %v4776 = vadd.f32 %v4483, %v4728
    %v4777 = vadd.f32 %v4484, %v4729
    %v4778 = vadd.f32 %v4485, %v4730
    %v4779 = vadd.f32 %v4486, %v4731
    %v4780 = vadd.f32 %v4487, %v4732
    %v4781 = vadd.f32 %v4488, %v4733
    %v4782 = vadd.f32 %v4489, %v4734
    %v4783 = vadd.f32 %v4490, %v4735
    %v4784 = vadd.f32 %v4491, %v4736
    %v4785 = vadd.f32 %v4492, %v4737
    %v4786 = vadd.f32 %v4493, %v4738
    %v4787 = vadd.f32 %v4494, %v4739
    %v4788 = vadd.f32 %v4495, %v4740
    %v4789 = vadd.f32 %v4496, %v4741
    %v4790 = vadd.f32 %v4497, %v4742
    %v4791 = vadd.f32 %v4498, %v4743
    %v4792 = vadd.f32 %v4499, %v4744
    %v4793 = vadd.f32 %v4500, %v4745
    %v4794 = vadd.f32 %v4501, %v4746
    %v4795 = vadd.f32 %v4502, %v4747
    %v4796 = vadd.f32 %v4503, %v4748
    %v4797 = vadd.f32 %v4504, %v4749
    %v4798 = vadd.f32 %v4505, %v4750
    %v4799 = vadd.f32 %v4506, %v4751
    %v4800 = vadd.f32 %v4507, %v4752
    %v4801 = vadd.f32 %v4508, %v4753
    %v4802 = vadd.f32 %v4509, %v4754
    %v4803 = vadd.f32 %v4510, %v4755
    %v4804 = vadd.f32 %v4511, %v4756
    %v4805 = vadd.f32 %v4512, %v4757
    %v4806 = vadd.f32 %v4513, %v4758
    %v4807 = vadd.f32 %v4514, %v4759
    %v4808 = vadd.f32 %v4515, %v4760
    %v4809 = vadd.f32 %v4516, %v4761
    %v4810 = vadd.f32 %v4517, %v4762
    %v4811 = vadd.f32 %v4518, %v4763
    %v4812 = vadd.f32 %v4519, %v4764
    %v4813 = vadd.f32 %v4520, %v4765
    %v4814 = vadd.f32 %v4521, %v4766
    %v4815 = vadd.f32 %v4522, %v4767
    %v4816 = vadd.f32 %v4523, %v4768
    %v4817 = vadd.f32 %v4524, %v4769
    %v4818 = vadd.f32 %v4525, %v4770
    %v4819 = vadd.f32 %v4526, %v4771
    %v4820 = vld [vmem:[%s2] sm:$0x1]
    %v4822 = vlaneseq
    %v4823 = vshrl.u32 %v4822, 7
    %v4824 = vsub.s32 0, %v4823
    %v4825 = vrot.slane %v4820, %v4824
    %v4827 = vadd.f32 %v4772, %v4825
    %v4828 = vadd.f32 %v4773, %v4825
    %v4829 = vadd.f32 %v4774, %v4825
    %v4830 = vadd.f32 %v4775, %v4825
    %v4831 = vadd.f32 %v4776, %v4825
    %v4832 = vadd.f32 %v4777, %v4825
    %v4833 = vadd.f32 %v4778, %v4825
    %v4834 = vadd.f32 %v4779, %v4825
    %v4835 = vadd.f32 %v4780, %v4825
    %v4836 = vadd.f32 %v4781, %v4825
    %v4837 = vadd.f32 %v4782, %v4825
    %v4838 = vadd.f32 %v4783, %v4825
    %v4839 = vadd.f32 %v4784, %v4825
    %v4840 = vadd.f32 %v4785, %v4825
    %v4841 = vadd.f32 %v4786, %v4825
    %v4842 = vadd.f32 %v4787, %v4825
    %v4843 = vadd.f32 %v4788, %v4825
    %v4844 = vadd.f32 %v4789, %v4825
    %v4845 = vadd.f32 %v4790, %v4825
    %v4846 = vadd.f32 %v4791, %v4825
    %v4847 = vadd.f32 %v4792, %v4825
    %v4848 = vadd.f32 %v4793, %v4825
    %v4849 = vadd.f32 %v4794, %v4825
    %v4850 = vadd.f32 %v4795, %v4825
    %v4851 = vadd.f32 %v4796, %v4825
    %v4852 = vadd.f32 %v4797, %v4825
    %v4853 = vadd.f32 %v4798, %v4825
    %v4854 = vadd.f32 %v4799, %v4825
    %v4855 = vadd.f32 %v4800, %v4825
    %v4856 = vadd.f32 %v4801, %v4825
    %v4857 = vadd.f32 %v4802, %v4825
    %v4858 = vadd.f32 %v4803, %v4825
    %v4859 = vadd.f32 %v4804, %v4825
    %v4860 = vadd.f32 %v4805, %v4825
    %v4861 = vadd.f32 %v4806, %v4825
    %v4862 = vadd.f32 %v4807, %v4825
    %v4863 = vadd.f32 %v4808, %v4825
    %v4864 = vadd.f32 %v4809, %v4825
    %v4865 = vadd.f32 %v4810, %v4825
    %v4866 = vadd.f32 %v4811, %v4825
    %v4867 = vadd.f32 %v4812, %v4825
    %v4868 = vadd.f32 %v4813, %v4825
    %v4869 = vadd.f32 %v4814, %v4825
    %v4870 = vadd.f32 %v4815, %v4825
    %v4871 = vadd.f32 %v4816, %v4825
    %v4872 = vadd.f32 %v4817, %v4825
    %v4873 = vadd.f32 %v4818, %v4825
    %v4874 = vadd.f32 %v4819, %v4825
    %v4875 = vmax.f32 %v4827, 0.0
    %v4876 = vmax.f32 %v4828, 0.0
    %v4877 = vmax.f32 %v4829, 0.0
    %v4878 = vmax.f32 %v4830, 0.0
    %v4879 = vmax.f32 %v4831, 0.0
    %v4880 = vmax.f32 %v4832, 0.0
    %v4881 = vmax.f32 %v4833, 0.0
    %v4882 = vmax.f32 %v4834, 0.0
    %v4883 = vmax.f32 %v4835, 0.0
    %v4884 = vmax.f32 %v4836, 0.0
    %v4885 = vmax.f32 %v4837, 0.0
    %v4886 = vmax.f32 %v4838, 0.0
    %v4887 = vmax.f32 %v4839, 0.0
    %v4888 = vmax.f32 %v4840, 0.0
    %v4889 = vmax.f32 %v4841, 0.0
    %v4890 = vmax.f32 %v4842, 0.0
    %v4891 = vmax.f32 %v4843, 0.0
    %v4892 = vmax.f32 %v4844, 0.0
    %v4893 = vmax.f32 %v4845, 0.0
    %v4894 = vmax.f32 %v4846, 0.0
    %v4895 = vmax.f32 %v4847, 0.0
    %v4896 = vmax.f32 %v4848, 0.0
    %v4897 = vmax.f32 %v4849, 0.0
    %v4898 = vmax.f32 %v4850, 0.0
    %v4899 = vmax.f32 %v4851, 0.0
    %v4900 = vmax.f32 %v4852, 0.0
    %v4901 = vmax.f32 %v4853, 0.0
    %v4902 = vmax.f32 %v4854, 0.0
    %v4903 = vmax.f32 %v4855, 0.0
    %v4904 = vmax.f32 %v4856, 0.0
    %v4905 = vmax.f32 %v4857, 0.0
    %v4906 = vmax.f32 %v4858, 0.0
    %v4907 = vmax.f32 %v4859, 0.0
    %v4908 = vmax.f32 %v4860, 0.0
    %v4909 = vmax.f32 %v4861, 0.0
    %v4910 = vmax.f32 %v4862, 0.0
    %v4911 = vmax.f32 %v4863, 0.0
    %v4912 = vmax.f32 %v4864, 0.0
    %v4913 = vmax.f32 %v4865, 0.0
    %v4914 = vmax.f32 %v4866, 0.0
    %v4915 = vmax.f32 %v4867, 0.0
    %v4916 = vmax.f32 %v4868, 0.0
    %v4917 = vmax.f32 %v4869, 0.0
    %v4918 = vmax.f32 %v4870, 0.0
    %v4919 = vmax.f32 %v4871, 0.0
    %v4920 = vmax.f32 %v4872, 0.0
    %v4921 = vmax.f32 %v4873, 0.0
    %v4922 = vmax.f32 %v4874, 0.0
    %vm4972 = vcmask 1040384
    %v4973 = vrot.slane 0.0, 7
    %v4974 = vsel %vm4972, %v4973, %v4973
    %v4975 = vrot.slane %v4875, 7
    %v4976 = vrot.slane %v4876, 7
    %v4977 = vsel %vm4972, %v4975, %v4976
    %v4978 = vrot.slane %v4877, 7
    %v4979 = vrot.slane %v4878, 7
    %v4980 = vsel %vm4972, %v4978, %v4979
    %v4981 = vrot.slane %v4879, 7
    %v4982 = vrot.slane %v4880, 7
    %v4983 = vsel %vm4972, %v4981, %v4982
    %v4984 = vrot.slane %v4881, 7
    %v4985 = vrot.slane %v4882, 7
    %v4986 = vsel %vm4972, %v4984, %v4985
    %v4987 = vrot.slane %v4883, 7
    %v4988 = vrot.slane %v4884, 7
    %v4989 = vsel %vm4972, %v4987, %v4988
    %v4990 = vrot.slane %v4885, 7
    %v4991 = vrot.slane %v4886, 7
    %v4992 = vsel %vm4972, %v4990, %v4991
    %v4993 = vrot.slane %v4887, 7
    %v4994 = vrot.slane %v4888, 7
    %v4995 = vsel %vm4972, %v4993, %v4994
    %v4996 = vrot.slane %v4889, 7
    %v4997 = vrot.slane %v4890, 7
    %v4998 = vsel %vm4972, %v4996, %v4997
    %v4999 = vrot.slane %v4891, 7
    %v5000 = vrot.slane %v4892, 7
    %v5001 = vsel %vm4972, %v4999, %v5000
    %v5002 = vrot.slane %v4893, 7
    %v5003 = vrot.slane %v4894, 7
    %v5004 = vsel %vm4972, %v5002, %v5003
    %v5005 = vrot.slane %v4895, 7
    %v5006 = vrot.slane %v4896, 7
    %v5007 = vsel %vm4972, %v5005, %v5006
    %v5008 = vrot.slane %v4897, 7
    %v5009 = vrot.slane %v4898, 7
    %v5010 = vsel %vm4972, %v5008, %v5009
    %v5011 = vrot.slane %v4899, 7
    %v5012 = vrot.slane %v4900, 7
    %v5013 = vsel %vm4972, %v5011, %v5012
    %v5014 = vrot.slane %v4901, 7
    %v5015 = vrot.slane %v4902, 7
    %v5016 = vsel %vm4972, %v5014, %v5015
    %v5017 = vrot.slane %v4903, 7
    %v5018 = vrot.slane %v4904, 7
    %v5019 = vsel %vm4972, %v5017, %v5018
    %v5020 = vrot.slane %v4905, 7
    %v5021 = vrot.slane %v4906, 7
    %v5022 = vsel %vm4972, %v5020, %v5021
    %v5023 = vrot.slane %v4907, 7
    %v5024 = vrot.slane %v4908, 7
    %v5025 = vsel %vm4972, %v5023, %v5024
    %v5026 = vrot.slane %v4909, 7
    %v5027 = vrot.slane %v4910, 7
    %v5028 = vsel %vm4972, %v5026, %v5027
    %v5029 = vrot.slane %v4911, 7
    %v5030 = vrot.slane %v4912, 7
    %v5031 = vsel %vm4972, %v5029, %v5030
    %v5032 = vrot.slane %v4913, 7
    %v5033 = vrot.slane %v4914, 7
    %v5034 = vsel %vm4972, %v5032, %v5033
    %v5035 = vrot.slane %v4915, 7
    %v5036 = vrot.slane %v4916, 7
    %v5037 = vsel %vm4972, %v5035, %v5036
    %v5038 = vrot.slane %v4917, 7
    %v5039 = vrot.slane %v4918, 7
    %v5040 = vsel %vm4972, %v5038, %v5039
    %v5041 = vrot.slane %v4919, 7
    %v5042 = vrot.slane %v4920, 7
    %v5043 = vsel %vm4972, %v5041, %v5042
    %v5044 = vrot.slane %v4921, 7
    %v5045 = vrot.slane %v4922, 7
    %v5046 = vsel %vm4972, %v5044, %v5045
    %v5097 = vsel %vm4972, 0.0, %v4973
    %v5098 = vsel %vm4972, 0.0, %v4975
    %v5099 = vsel %vm4972, 0.0, %v4978
    %v5100 = vsel %vm4972, 0.0, %v4981
    %v5101 = vsel %vm4972, 0.0, %v4984
    %v5102 = vsel %vm4972, 0.0, %v4987
    %v5103 = vsel %vm4972, 0.0, %v4990
    %v5104 = vsel %vm4972, 0.0, %v4993
    %v5105 = vsel %vm4972, 0.0, %v4996
    %v5106 = vsel %vm4972, 0.0, %v4999
    %v5107 = vsel %vm4972, 0.0, %v5002
    %v5108 = vsel %vm4972, 0.0, %v5005
    %v5109 = vsel %vm4972, 0.0, %v5008
    %v5110 = vsel %vm4972, 0.0, %v5011
    %v5111 = vsel %vm4972, 0.0, %v5014
    %v5112 = vsel %vm4972, 0.0, %v5017
    %v5113 = vsel %vm4972, 0.0, %v5020
    %v5114 = vsel %vm4972, 0.0, %v5023
    %v5115 = vsel %vm4972, 0.0, %v5026
    %v5116 = vsel %vm4972, 0.0, %v5029
    %v5117 = vsel %vm4972, 0.0, %v5032
    %v5118 = vsel %vm4972, 0.0, %v5035
    %v5119 = vsel %vm4972, 0.0, %v5038
    %v5120 = vsel %vm4972, 0.0, %v5041
    %v5121 = vsel %vm4972, 0.0, %v5044
    %vm5122 = vcmask 1044480
    %v5123 = vsel %vm5122, %v4974, 0.0
    %v5124 = vsel %vm5122, %v4977, 0.0
    %v5125 = vsel %vm5122, %v4980, 0.0
    %v5126 = vsel %vm5122, %v4983, 0.0
    %v5127 = vsel %vm5122, %v4986, 0.0
    %v5128 = vsel %vm5122, %v4989, 0.0
    %v5129 = vsel %vm5122, %v4992, 0.0
    %v5130 = vsel %vm5122, %v4995, 0.0
    %v5131 = vsel %vm5122, %v4998, 0.0
    %v5132 = vsel %vm5122, %v5001, 0.0
    %v5133 = vsel %vm5122, %v5004, 0.0
    %v5134 = vsel %vm5122, %v5007, 0.0
    %v5135 = vsel %vm5122, %v5010, 0.0
    %v5136 = vsel %vm5122, %v5013, 0.0
    %v5137 = vsel %vm5122, %v5016, 0.0
    %v5138 = vsel %vm5122, %v5019, 0.0
    %v5139 = vsel %vm5122, %v5022, 0.0
    %v5140 = vsel %vm5122, %v5025, 0.0
    %v5141 = vsel %vm5122, %v5028, 0.0
    %v5142 = vsel %vm5122, %v5031, 0.0
    %v5143 = vsel %vm5122, %v5034, 0.0
    %v5144 = vsel %vm5122, %v5037, 0.0
    %v5145 = vsel %vm5122, %v5040, 0.0
    %v5146 = vsel %vm5122, %v5043, 0.0
    %v5147 = vsel %vm5122, %v5046, 0.0
    %v5155 = vrot.slane %v5097, 2
    %v5156 = vrot.slane %v5100, 2
    %v5157 = vrot.slane %v5103, 2
    %v5158 = vrot.slane %v5106, 2
    %v5159 = vrot.slane %v5112, 2
    %v5160 = vrot.slane %v5115, 2
    %v5161 = vrot.slane %v5118, 2
    %v5169 = vrot.slane %v5097, 4
    %v5170 = vrot.slane %v5100, 4
    %v5171 = vrot.slane %v5103, 4
    %v5172 = vrot.slane %v5106, 4
    %v5173 = vrot.slane %v5112, 4
    %v5174 = vrot.slane %v5115, 4
    %v5175 = vrot.slane %v5118, 4
    %v5190 = vrot.slane %v5123, 6
    %v5191 = vrot.slane %v5126, 6
    %v5192 = vrot.slane %v5129, 6
    %v5193 = vrot.slane %v5132, 6
    %v5194 = vrot.slane %v5138, 6
    %v5195 = vrot.slane %v5141, 6
    %v5196 = vrot.slane %v5144, 6
    %v5204 = vsel %vm4972, %v5097, %v5155
    %v5205 = vsel %vm4972, %v5100, %v5156
    %v5206 = vsel %vm4972, %v5103, %v5157
    %v5207 = vsel %vm4972, %v5106, %v5158
    %v5208 = vsel %vm4972, %v5112, %v5159
    %v5209 = vsel %vm4972, %v5115, %v5160
    %v5210 = vsel %vm4972, %v5118, %v5161
    %vm5211 = vcmask 1041408
    %v5212 = vsel %vm5211, %v5204, %v5169
    %v5213 = vsel %vm5211, %v5205, %v5170
    %v5214 = vsel %vm5211, %v5206, %v5171
    %v5215 = vsel %vm5211, %v5207, %v5172
    %v5216 = vsel %vm5211, %v5208, %v5173
    %v5217 = vsel %vm5211, %v5209, %v5174
    %v5218 = vsel %vm5211, %v5210, %v5175
    %vm5219 = vcmask 1042432
    %v5220 = vsel %vm5219, %v5212, %v5190
    %v5221 = vsel %vm5219, %v5213, %v5191
    %v5222 = vsel %vm5219, %v5214, %v5192
    %v5223 = vsel %vm5219, %v5215, %v5193
    %v5224 = vsel %vm5219, %v5216, %v5194
    %v5225 = vsel %vm5219, %v5217, %v5195
    %v5226 = vsel %vm5219, %v5218, %v5196
    %v5227 = vrot.slane %v5097, 1
    %v5228 = vrot.slane %v5100, 1
    %v5229 = vrot.slane %v5103, 1
    %v5230 = vrot.slane %v5106, 1
    %v5231 = vrot.slane %v5112, 1
    %v5232 = vrot.slane %v5115, 1
    %v5233 = vrot.slane %v5118, 1
    %v5241 = vrot.slane %v5097, 3
    %v5242 = vrot.slane %v5100, 3
    %v5243 = vrot.slane %v5103, 3
    %v5244 = vrot.slane %v5106, 3
    %v5245 = vrot.slane %v5112, 3
    %v5246 = vrot.slane %v5115, 3
    %v5247 = vrot.slane %v5118, 3
    %v5255 = vrot.slane %v5097, 5
    %v5256 = vrot.slane %v5100, 5
    %v5257 = vrot.slane %v5103, 5
    %v5258 = vrot.slane %v5106, 5
    %v5259 = vrot.slane %v5112, 5
    %v5260 = vrot.slane %v5115, 5
    %v5261 = vrot.slane %v5118, 5
    %v5269 = vrot.slane %v5123, 7
    %v5270 = vrot.slane %v5126, 7
    %v5271 = vrot.slane %v5129, 7
    %v5272 = vrot.slane %v5132, 7
    %v5273 = vrot.slane %v5138, 7
    %v5274 = vrot.slane %v5141, 7
    %v5275 = vrot.slane %v5144, 7
    %v5283 = vsel %vm4972, %v5227, %v5241
    %v5284 = vsel %vm4972, %v5228, %v5242
    %v5285 = vsel %vm4972, %v5229, %v5243
    %v5286 = vsel %vm4972, %v5230, %v5244
    %v5287 = vsel %vm4972, %v5231, %v5245
    %v5288 = vsel %vm4972, %v5232, %v5246
    %v5289 = vsel %vm4972, %v5233, %v5247
    %v5290 = vsel %vm5211, %v5283, %v5255
    %v5291 = vsel %vm5211, %v5284, %v5256
    %v5292 = vsel %vm5211, %v5285, %v5257
    %v5293 = vsel %vm5211, %v5286, %v5258
    %v5294 = vsel %vm5211, %v5287, %v5259
    %v5295 = vsel %vm5211, %v5288, %v5260
    %v5296 = vsel %vm5211, %v5289, %v5261
    %v5297 = vsel %vm5219, %v5290, %v5269
    %v5298 = vsel %vm5219, %v5291, %v5270
    %v5299 = vsel %vm5219, %v5292, %v5271
    %v5300 = vsel %vm5219, %v5293, %v5272
    %v5301 = vsel %vm5219, %v5294, %v5273
    %v5302 = vsel %vm5219, %v5295, %v5274
    %v5303 = vsel %vm5219, %v5296, %v5275
    %v5304 = vsel %vm4972, %v5155, %v5169
    %v5305 = vsel %vm4972, %v5156, %v5170
    %v5306 = vsel %vm4972, %v5157, %v5171
    %v5307 = vsel %vm4972, %v5158, %v5172
    %v5308 = vsel %vm4972, %v5159, %v5173
    %v5309 = vsel %vm4972, %v5160, %v5174
    %v5310 = vsel %vm4972, %v5161, %v5175
    %v5311 = vsel %vm5211, %v5304, %v5190
    %v5312 = vsel %vm5211, %v5305, %v5191
    %v5313 = vsel %vm5211, %v5306, %v5192
    %v5314 = vsel %vm5211, %v5307, %v5193
    %v5315 = vsel %vm5211, %v5308, %v5194
    %v5316 = vsel %vm5211, %v5309, %v5195
    %v5317 = vsel %vm5211, %v5310, %v5196
    %v5318 = vsel %vm5219, %v5311, %v5123
    %v5319 = vsel %vm5219, %v5312, %v5126
    %v5320 = vsel %vm5219, %v5313, %v5129
    %v5321 = vsel %vm5219, %v5314, %v5132
    %v5322 = vsel %vm5219, %v5315, %v5138
    %v5323 = vsel %vm5219, %v5316, %v5141
    %v5324 = vsel %vm5219, %v5317, %v5144
    %v5325 = vrot.slane %v5123, 1
    %v5326 = vrot.slane %v5126, 1
    %v5327 = vrot.slane %v5129, 1
    %v5328 = vrot.slane %v5132, 1
    %v5329 = vrot.slane %v5138, 1
    %v5330 = vrot.slane %v5141, 1
    %v5331 = vrot.slane %v5144, 1
    %v5339 = vsel %vm4972, %v5241, %v5255
    %v5340 = vsel %vm4972, %v5242, %v5256
    %v5341 = vsel %vm4972, %v5243, %v5257
    %v5342 = vsel %vm4972, %v5244, %v5258
    %v5343 = vsel %vm4972, %v5245, %v5259
    %v5344 = vsel %vm4972, %v5246, %v5260
    %v5345 = vsel %vm4972, %v5247, %v5261
    %v5346 = vsel %vm5211, %v5339, %v5269
    %v5347 = vsel %vm5211, %v5340, %v5270
    %v5348 = vsel %vm5211, %v5341, %v5271
    %v5349 = vsel %vm5211, %v5342, %v5272
    %v5350 = vsel %vm5211, %v5343, %v5273
    %v5351 = vsel %vm5211, %v5344, %v5274
    %v5352 = vsel %vm5211, %v5345, %v5275
    %v5353 = vsel %vm5219, %v5346, %v5325
    %v5354 = vsel %vm5219, %v5347, %v5326
    %v5355 = vsel %vm5219, %v5348, %v5327
    %v5356 = vsel %vm5219, %v5349, %v5328
    %v5357 = vsel %vm5219, %v5350, %v5329
    %v5358 = vsel %vm5219, %v5351, %v5330
    %v5359 = vsel %vm5219, %v5352, %v5331
    %v5368 = vrot.slane %v5098, 2
    %v5369 = vrot.slane %v5101, 2
    %v5370 = vrot.slane %v5104, 2
    %v5371 = vrot.slane %v5107, 2
    %v5372 = vrot.slane %v5110, 2
    %v5373 = vrot.slane %v5113, 2
    %v5374 = vrot.slane %v5116, 2
    %v5375 = vrot.slane %v5119, 2
    %v5384 = vrot.slane %v5098, 4
    %v5385 = vrot.slane %v5101, 4
    %v5386 = vrot.slane %v5104, 4
    %v5387 = vrot.slane %v5107, 4
    %v5388 = vrot.slane %v5110, 4
    %v5389 = vrot.slane %v5113, 4
    %v5390 = vrot.slane %v5116, 4
    %v5391 = vrot.slane %v5119, 4
    %v5408 = vrot.slane %v5124, 6
    %v5409 = vrot.slane %v5127, 6
    %v5410 = vrot.slane %v5130, 6
    %v5411 = vrot.slane %v5133, 6
    %v5412 = vrot.slane %v5136, 6
    %v5413 = vrot.slane %v5139, 6
    %v5414 = vrot.slane %v5142, 6
    %v5415 = vrot.slane %v5145, 6
    %v5424 = vsel %vm4972, %v5098, %v5368
    %v5425 = vsel %vm4972, %v5101, %v5369
    %v5426 = vsel %vm4972, %v5104, %v5370
    %v5427 = vsel %vm4972, %v5107, %v5371
    %v5428 = vsel %vm4972, %v5110, %v5372
    %v5429 = vsel %vm4972, %v5113, %v5373
    %v5430 = vsel %vm4972, %v5116, %v5374
    %v5431 = vsel %vm4972, %v5119, %v5375
    %v5432 = vsel %vm5211, %v5424, %v5384
    %v5433 = vsel %vm5211, %v5425, %v5385
    %v5434 = vsel %vm5211, %v5426, %v5386
    %v5435 = vsel %vm5211, %v5427, %v5387
    %v5436 = vsel %vm5211, %v5428, %v5388
    %v5437 = vsel %vm5211, %v5429, %v5389
    %v5438 = vsel %vm5211, %v5430, %v5390
    %v5439 = vsel %vm5211, %v5431, %v5391
    %v5440 = vsel %vm5219, %v5432, %v5408
    %v5441 = vsel %vm5219, %v5433, %v5409
    %v5442 = vsel %vm5219, %v5434, %v5410
    %v5443 = vsel %vm5219, %v5435, %v5411
    %v5444 = vsel %vm5219, %v5436, %v5412
    %v5445 = vsel %vm5219, %v5437, %v5413
    %v5446 = vsel %vm5219, %v5438, %v5414
    %v5447 = vsel %vm5219, %v5439, %v5415
    %v5448 = vrot.slane %v5098, 1
    %v5449 = vrot.slane %v5101, 1
    %v5450 = vrot.slane %v5104, 1
    %v5451 = vrot.slane %v5107, 1
    %v5452 = vrot.slane %v5110, 1
    %v5453 = vrot.slane %v5113, 1
    %v5454 = vrot.slane %v5116, 1
    %v5455 = vrot.slane %v5119, 1
    %v5464 = vrot.slane %v5098, 3
    %v5465 = vrot.slane %v5101, 3
    %v5466 = vrot.slane %v5104, 3
    %v5467 = vrot.slane %v5107, 3
    %v5468 = vrot.slane %v5110, 3
    %v5469 = vrot.slane %v5113, 3
    %v5470 = vrot.slane %v5116, 3
    %v5471 = vrot.slane %v5119, 3
    %v5480 = vrot.slane %v5098, 5
    %v5481 = vrot.slane %v5101, 5
    %v5482 = vrot.slane %v5104, 5
    %v5483 = vrot.slane %v5107, 5
    %v5484 = vrot.slane %v5110, 5
    %v5485 = vrot.slane %v5113, 5
    %v5486 = vrot.slane %v5116, 5
    %v5487 = vrot.slane %v5119, 5
    %v5496 = vrot.slane %v5124, 7
    %v5497 = vrot.slane %v5127, 7
    %v5498 = vrot.slane %v5130, 7
    %v5499 = vrot.slane %v5133, 7
    %v5500 = vrot.slane %v5136, 7
    %v5501 = vrot.slane %v5139, 7
    %v5502 = vrot.slane %v5142, 7
    %v5503 = vrot.slane %v5145, 7
    %v5512 = vsel %vm4972, %v5448, %v5464
    %v5513 = vsel %vm4972, %v5449, %v5465
    %v5514 = vsel %vm4972, %v5450, %v5466
    %v5515 = vsel %vm4972, %v5451, %v5467
    %v5516 = vsel %vm4972, %v5452, %v5468
    %v5517 = vsel %vm4972, %v5453, %v5469
    %v5518 = vsel %vm4972, %v5454, %v5470
    %v5519 = vsel %vm4972, %v5455, %v5471
    %v5520 = vsel %vm5211, %v5512, %v5480
    %v5521 = vsel %vm5211, %v5513, %v5481
    %v5522 = vsel %vm5211, %v5514, %v5482
    %v5523 = vsel %vm5211, %v5515, %v5483
    %v5524 = vsel %vm5211, %v5516, %v5484
    %v5525 = vsel %vm5211, %v5517, %v5485
    %v5526 = vsel %vm5211, %v5518, %v5486
    %v5527 = vsel %vm5211, %v5519, %v5487
    %v5528 = vsel %vm5219, %v5520, %v5496
    %v5529 = vsel %vm5219, %v5521, %v5497
    %v5530 = vsel %vm5219, %v5522, %v5498
    %v5531 = vsel %vm5219, %v5523, %v5499
    %v5532 = vsel %vm5219, %v5524, %v5500
    %v5533 = vsel %vm5219, %v5525, %v5501
    %v5534 = vsel %vm5219, %v5526, %v5502
    %v5535 = vsel %vm5219, %v5527, %v5503
    %v5536 = vsel %vm4972, %v5368, %v5384
    %v5537 = vsel %vm4972, %v5369, %v5385
    %v5538 = vsel %vm4972, %v5370, %v5386
    %v5539 = vsel %vm4972, %v5371, %v5387
    %v5540 = vsel %vm4972, %v5372, %v5388
    %v5541 = vsel %vm4972, %v5373, %v5389
    %v5542 = vsel %vm4972, %v5374, %v5390
    %v5543 = vsel %vm4972, %v5375, %v5391
    %v5544 = vsel %vm5211, %v5536, %v5408
    %v5545 = vsel %vm5211, %v5537, %v5409
    %v5546 = vsel %vm5211, %v5538, %v5410
    %v5547 = vsel %vm5211, %v5539, %v5411
    %v5548 = vsel %vm5211, %v5540, %v5412
    %v5549 = vsel %vm5211, %v5541, %v5413
    %v5550 = vsel %vm5211, %v5542, %v5414
    %v5551 = vsel %vm5211, %v5543, %v5415
    %v5552 = vsel %vm5219, %v5544, %v5124
    %v5553 = vsel %vm5219, %v5545, %v5127
    %v5554 = vsel %vm5219, %v5546, %v5130
    %v5555 = vsel %vm5219, %v5547, %v5133
    %v5556 = vsel %vm5219, %v5548, %v5136
    %v5557 = vsel %vm5219, %v5549, %v5139
    %v5558 = vsel %vm5219, %v5550, %v5142
    %v5559 = vsel %vm5219, %v5551, %v5145
    %v5560 = vrot.slane %v5124, 1
    %v5561 = vrot.slane %v5127, 1
    %v5562 = vrot.slane %v5130, 1
    %v5563 = vrot.slane %v5133, 1
    %v5564 = vrot.slane %v5136, 1
    %v5565 = vrot.slane %v5139, 1
    %v5566 = vrot.slane %v5142, 1
    %v5567 = vrot.slane %v5145, 1
    %v5576 = vsel %vm4972, %v5464, %v5480
    %v5577 = vsel %vm4972, %v5465, %v5481
    %v5578 = vsel %vm4972, %v5466, %v5482
    %v5579 = vsel %vm4972, %v5467, %v5483
    %v5580 = vsel %vm4972, %v5468, %v5484
    %v5581 = vsel %vm4972, %v5469, %v5485
    %v5582 = vsel %vm4972, %v5470, %v5486
    %v5583 = vsel %vm4972, %v5471, %v5487
    %v5584 = vsel %vm5211, %v5576, %v5496
    %v5585 = vsel %vm5211, %v5577, %v5497
    %v5586 = vsel %vm5211, %v5578, %v5498
    %v5587 = vsel %vm5211, %v5579, %v5499
    %v5588 = vsel %vm5211, %v5580, %v5500
    %v5589 = vsel %vm5211, %v5581, %v5501
    %v5590 = vsel %vm5211, %v5582, %v5502
    %v5591 = vsel %vm5211, %v5583, %v5503
    %v5592 = vsel %vm5219, %v5584, %v5560
    %v5593 = vsel %vm5219, %v5585, %v5561
    %v5594 = vsel %vm5219, %v5586, %v5562
    %v5595 = vsel %vm5219, %v5587, %v5563
    %v5596 = vsel %vm5219, %v5588, %v5564
    %v5597 = vsel %vm5219, %v5589, %v5565
    %v5598 = vsel %vm5219, %v5590, %v5566
    %v5599 = vsel %vm5219, %v5591, %v5567
    %v5608 = vrot.slane %v5099, 2
    %v5609 = vrot.slane %v5102, 2
    %v5610 = vrot.slane %v5105, 2
    %v5611 = vrot.slane %v5108, 2
    %v5612 = vrot.slane %v5111, 2
    %v5613 = vrot.slane %v5114, 2
    %v5614 = vrot.slane %v5117, 2
    %v5615 = vrot.slane %v5120, 2
    %v5624 = vrot.slane %v5099, 4
    %v5625 = vrot.slane %v5102, 4
    %v5626 = vrot.slane %v5105, 4
    %v5627 = vrot.slane %v5108, 4
    %v5628 = vrot.slane %v5111, 4
    %v5629 = vrot.slane %v5114, 4
    %v5630 = vrot.slane %v5117, 4
    %v5631 = vrot.slane %v5120, 4
    %v5648 = vrot.slane %v5125, 6
    %v5649 = vrot.slane %v5128, 6
    %v5650 = vrot.slane %v5131, 6
    %v5651 = vrot.slane %v5134, 6
    %v5652 = vrot.slane %v5137, 6
    %v5653 = vrot.slane %v5140, 6
    %v5654 = vrot.slane %v5143, 6
    %v5655 = vrot.slane %v5146, 6
    %v5664 = vsel %vm4972, %v5099, %v5608
    %v5665 = vsel %vm4972, %v5102, %v5609
    %v5666 = vsel %vm4972, %v5105, %v5610
    %v5667 = vsel %vm4972, %v5108, %v5611
    %v5668 = vsel %vm4972, %v5111, %v5612
    %v5669 = vsel %vm4972, %v5114, %v5613
    %v5670 = vsel %vm4972, %v5117, %v5614
    %v5671 = vsel %vm4972, %v5120, %v5615
    %v5672 = vsel %vm5211, %v5664, %v5624
    %v5673 = vsel %vm5211, %v5665, %v5625
    %v5674 = vsel %vm5211, %v5666, %v5626
    %v5675 = vsel %vm5211, %v5667, %v5627
    %v5676 = vsel %vm5211, %v5668, %v5628
    %v5677 = vsel %vm5211, %v5669, %v5629
    %v5678 = vsel %vm5211, %v5670, %v5630
    %v5679 = vsel %vm5211, %v5671, %v5631
    %v5680 = vsel %vm5219, %v5672, %v5648
    %v5681 = vsel %vm5219, %v5673, %v5649
    %v5682 = vsel %vm5219, %v5674, %v5650
    %v5683 = vsel %vm5219, %v5675, %v5651
    %v5684 = vsel %vm5219, %v5676, %v5652
    %v5685 = vsel %vm5219, %v5677, %v5653
    %v5686 = vsel %vm5219, %v5678, %v5654
    %v5687 = vsel %vm5219, %v5679, %v5655
    %v5688 = vrot.slane %v5099, 1
    %v5689 = vrot.slane %v5102, 1
    %v5690 = vrot.slane %v5105, 1
    %v5691 = vrot.slane %v5108, 1
    %v5692 = vrot.slane %v5111, 1
    %v5693 = vrot.slane %v5114, 1
    %v5694 = vrot.slane %v5117, 1
    %v5695 = vrot.slane %v5120, 1
    %v5704 = vrot.slane %v5099, 3
    %v5705 = vrot.slane %v5102, 3
    %v5706 = vrot.slane %v5105, 3
    %v5707 = vrot.slane %v5108, 3
    %v5708 = vrot.slane %v5111, 3
    %v5709 = vrot.slane %v5114, 3
    %v5710 = vrot.slane %v5117, 3
    %v5711 = vrot.slane %v5120, 3
    %v5720 = vrot.slane %v5099, 5
    %v5721 = vrot.slane %v5102, 5
    %v5722 = vrot.slane %v5105, 5
    %v5723 = vrot.slane %v5108, 5
    %v5724 = vrot.slane %v5111, 5
    %v5725 = vrot.slane %v5114, 5
    %v5726 = vrot.slane %v5117, 5
    %v5727 = vrot.slane %v5120, 5
    %v5736 = vrot.slane %v5125, 7
    %v5737 = vrot.slane %v5128, 7
    %v5738 = vrot.slane %v5131, 7
    %v5739 = vrot.slane %v5134, 7
    %v5740 = vrot.slane %v5137, 7
    %v5741 = vrot.slane %v5140, 7
    %v5742 = vrot.slane %v5143, 7
    %v5743 = vrot.slane %v5146, 7
    %v5752 = vsel %vm4972, %v5688, %v5704
    %v5753 = vsel %vm4972, %v5689, %v5705
    %v5754 = vsel %vm4972, %v5690, %v5706
    %v5755 = vsel %vm4972, %v5691, %v5707
    %v5756 = vsel %vm4972, %v5692, %v5708
    %v5757 = vsel %vm4972, %v5693, %v5709
    %v5758 = vsel %vm4972, %v5694, %v5710
    %v5759 = vsel %vm4972, %v5695, %v5711
    %v5760 = vsel %vm5211, %v5752, %v5720
    %v5761 = vsel %vm5211, %v5753, %v5721
    %v5762 = vsel %vm5211, %v5754, %v5722
    %v5763 = vsel %vm5211, %v5755, %v5723
    %v5764 = vsel %vm5211, %v5756, %v5724
    %v5765 = vsel %vm5211, %v5757, %v5725
    %v5766 = vsel %vm5211, %v5758, %v5726
    %v5767 = vsel %vm5211, %v5759, %v5727
    %v5768 = vsel %vm5219, %v5760, %v5736
    %v5769 = vsel %vm5219, %v5761, %v5737
    %v5770 = vsel %vm5219, %v5762, %v5738
    %v5771 = vsel %vm5219, %v5763, %v5739
    %v5772 = vsel %vm5219, %v5764, %v5740
    %v5773 = vsel %vm5219, %v5765, %v5741
    %v5774 = vsel %vm5219, %v5766, %v5742
    %v5775 = vsel %vm5219, %v5767, %v5743
    %v5776 = vsel %vm4972, %v5608, %v5624
    %v5777 = vsel %vm4972, %v5609, %v5625
    %v5778 = vsel %vm4972, %v5610, %v5626
    %v5779 = vsel %vm4972, %v5611, %v5627
    %v5780 = vsel %vm4972, %v5612, %v5628
    %v5781 = vsel %vm4972, %v5613, %v5629
    %v5782 = vsel %vm4972, %v5614, %v5630
    %v5783 = vsel %vm4972, %v5615, %v5631
    %v5784 = vsel %vm5211, %v5776, %v5648
    %v5785 = vsel %vm5211, %v5777, %v5649
    %v5786 = vsel %vm5211, %v5778, %v5650
    %v5787 = vsel %vm5211, %v5779, %v5651
    %v5788 = vsel %vm5211, %v5780, %v5652
    %v5789 = vsel %vm5211, %v5781, %v5653
    %v5790 = vsel %vm5211, %v5782, %v5654
    %v5791 = vsel %vm5211, %v5783, %v5655
    %v5792 = vsel %vm5219, %v5784, %v5125
    %v5793 = vsel %vm5219, %v5785, %v5128
    %v5794 = vsel %vm5219, %v5786, %v5131
    %v5795 = vsel %vm5219, %v5787, %v5134
    %v5796 = vsel %vm5219, %v5788, %v5137
    %v5797 = vsel %vm5219, %v5789, %v5140
    %v5798 = vsel %vm5219, %v5790, %v5143
    %v5799 = vsel %vm5219, %v5791, %v5146
    %v5800 = vrot.slane %v5125, 1
    %v5801 = vrot.slane %v5128, 1
    %v5802 = vrot.slane %v5131, 1
    %v5803 = vrot.slane %v5134, 1
    %v5804 = vrot.slane %v5137, 1
    %v5805 = vrot.slane %v5140, 1
    %v5806 = vrot.slane %v5143, 1
    %v5807 = vrot.slane %v5146, 1
    %v5816 = vsel %vm4972, %v5704, %v5720
    %v5817 = vsel %vm4972, %v5705, %v5721
    %v5818 = vsel %vm4972, %v5706, %v5722
    %v5819 = vsel %vm4972, %v5707, %v5723
    %v5820 = vsel %vm4972, %v5708, %v5724
    %v5821 = vsel %vm4972, %v5709, %v5725
    %v5822 = vsel %vm4972, %v5710, %v5726
    %v5823 = vsel %vm4972, %v5711, %v5727
    %v5824 = vsel %vm5211, %v5816, %v5736
    %v5825 = vsel %vm5211, %v5817, %v5737
    %v5826 = vsel %vm5211, %v5818, %v5738
    %v5827 = vsel %vm5211, %v5819, %v5739
    %v5828 = vsel %vm5211, %v5820, %v5740
    %v5829 = vsel %vm5211, %v5821, %v5741
    %v5830 = vsel %vm5211, %v5822, %v5742
    %v5831 = vsel %vm5211, %v5823, %v5743
    %v5832 = vsel %vm5219, %v5824, %v5800
    %v5833 = vsel %vm5219, %v5825, %v5801
    %v5834 = vsel %vm5219, %v5826, %v5802
    %v5835 = vsel %vm5219, %v5827, %v5803
    %v5836 = vsel %vm5219, %v5828, %v5804
    %v5837 = vsel %vm5219, %v5829, %v5805
    %v5838 = vsel %vm5219, %v5830, %v5806
    %v5839 = vsel %vm5219, %v5831, %v5807
    %v5842 = vrot.slane %v5109, 2
    %v5843 = vrot.slane %v5121, 2
    %v5846 = vrot.slane %v5109, 4
    %v5847 = vrot.slane %v5121, 4
    %v5852 = vrot.slane %v5135, 6
    %v5853 = vrot.slane %v5147, 6
    %v5856 = vsel %vm4972, %v5109, %v5842
    %v5857 = vsel %vm4972, %v5121, %v5843
    %v5858 = vsel %vm5211, %v5856, %v5846
    %v5859 = vsel %vm5211, %v5857, %v5847
    %v5860 = vsel %vm5219, %v5858, %v5852
    %v5861 = vsel %vm5219, %v5859, %v5853
    %v5862 = vrot.slane %v5109, 1
    %v5863 = vrot.slane %v5121, 1
    %v5866 = vrot.slane %v5109, 3
    %v5867 = vrot.slane %v5121, 3
    %v5870 = vrot.slane %v5109, 5
    %v5871 = vrot.slane %v5121, 5
    %v5874 = vrot.slane %v5135, 7
    %v5875 = vrot.slane %v5147, 7
    %v5878 = vsel %vm4972, %v5862, %v5866
    %v5879 = vsel %vm4972, %v5863, %v5867
    %v5880 = vsel %vm5211, %v5878, %v5870
    %v5881 = vsel %vm5211, %v5879, %v5871
    %v5882 = vsel %vm5219, %v5880, %v5874
    %v5883 = vsel %vm5219, %v5881, %v5875
    %v5884 = vsel %vm4972, %v5842, %v5846
    %v5885 = vsel %vm4972, %v5843, %v5847
    %v5886 = vsel %vm5211, %v5884, %v5852
    %v5887 = vsel %vm5211, %v5885, %v5853
    %v5888 = vsel %vm5219, %v5886, %v5135
    %v5889 = vsel %vm5219, %v5887, %v5147
    %v5890 = vrot.slane %v5135, 1
    %v5891 = vrot.slane %v5147, 1
    %v5894 = vsel %vm4972, %v5866, %v5870
    %v5895 = vsel %vm4972, %v5867, %v5871
    %v5896 = vsel %vm5211, %v5894, %v5874
    %v5897 = vsel %vm5211, %v5895, %v5875
    %v5898 = vsel %vm5219, %v5896, %v5890
    %v5899 = vsel %vm5219, %v5897, %v5891
    %5907 = vrot.lane.b32.xlu0 %v5297, 32
    %v5908 = vpop.permute.xlu0 %5907
    %5909 = vrot.lane.b32.xlu0 %v5298, 32
    %v5910 = vpop.permute.xlu0 %5909
    %5911 = vrot.lane.b32.xlu0 %v5299, 32
    %v5912 = vpop.permute.xlu0 %5911
    %5913 = vrot.lane.b32.xlu0 %v5300, 32
    %v5914 = vpop.permute.xlu0 %5913
    %5915 = vrot.lane.b32.xlu0 %v5301, 32
    %v5916 = vpop.permute.xlu0 %5915
    %5917 = vrot.lane.b32.xlu0 %v5302, 32
    %v5918 = vpop.permute.xlu0 %5917
    %5919 = vrot.lane.b32.xlu0 %v5303, 32
    %v5920 = vpop.permute.xlu0 %5919
    %5935 = vrot.lane.b32.xlu0 %v5318, 64
    %v5936 = vpop.permute.xlu0 %5935
    %5937 = vrot.lane.b32.xlu0 %v5319, 64
    %v5938 = vpop.permute.xlu0 %5937
    %5939 = vrot.lane.b32.xlu0 %v5320, 64
    %v5940 = vpop.permute.xlu0 %5939
    %5941 = vrot.lane.b32.xlu0 %v5321, 64
    %v5942 = vpop.permute.xlu0 %5941
    %5943 = vrot.lane.b32.xlu0 %v5322, 64
    %v5944 = vpop.permute.xlu0 %5943
    %5945 = vrot.lane.b32.xlu0 %v5323, 64
    %v5946 = vpop.permute.xlu0 %5945
    %5947 = vrot.lane.b32.xlu0 %v5324, 64
    %v5948 = vpop.permute.xlu0 %5947
    %5963 = vrot.lane.b32.xlu0 %v5353, 96
    %v5964 = vpop.permute.xlu0 %5963
    %5965 = vrot.lane.b32.xlu0 %v5354, 96
    %v5966 = vpop.permute.xlu0 %5965
    %5967 = vrot.lane.b32.xlu0 %v5355, 96
    %v5968 = vpop.permute.xlu0 %5967
    %5969 = vrot.lane.b32.xlu0 %v5356, 96
    %v5970 = vpop.permute.xlu0 %5969
    %5971 = vrot.lane.b32.xlu0 %v5357, 96
    %v5972 = vpop.permute.xlu0 %5971
    %5973 = vrot.lane.b32.xlu0 %v5358, 96
    %v5974 = vpop.permute.xlu0 %5973
    %5975 = vrot.lane.b32.xlu0 %v5359, 96
    %v5976 = vpop.permute.xlu0 %5975
    %5992 = vrot.lane.b32.xlu0 %v5528, 32
    %v5993 = vpop.permute.xlu0 %5992
    %5994 = vrot.lane.b32.xlu0 %v5529, 32
    %v5995 = vpop.permute.xlu0 %5994
    %5996 = vrot.lane.b32.xlu0 %v5530, 32
    %v5997 = vpop.permute.xlu0 %5996
    %5998 = vrot.lane.b32.xlu0 %v5531, 32
    %v5999 = vpop.permute.xlu0 %5998
    %6000 = vrot.lane.b32.xlu0 %v5532, 32
    %v6001 = vpop.permute.xlu0 %6000
    %6002 = vrot.lane.b32.xlu0 %v5533, 32
    %v6003 = vpop.permute.xlu0 %6002
    %6004 = vrot.lane.b32.xlu0 %v5534, 32
    %v6005 = vpop.permute.xlu0 %6004
    %6006 = vrot.lane.b32.xlu0 %v5535, 32
    %v6007 = vpop.permute.xlu0 %6006
    %6024 = vrot.lane.b32.xlu0 %v5552, 64
    %v6025 = vpop.permute.xlu0 %6024
    %6026 = vrot.lane.b32.xlu0 %v5553, 64
    %v6027 = vpop.permute.xlu0 %6026
    %6028 = vrot.lane.b32.xlu0 %v5554, 64
    %v6029 = vpop.permute.xlu0 %6028
    %6030 = vrot.lane.b32.xlu0 %v5555, 64
    %v6031 = vpop.permute.xlu0 %6030
    %6032 = vrot.lane.b32.xlu0 %v5556, 64
    %v6033 = vpop.permute.xlu0 %6032
    %6034 = vrot.lane.b32.xlu0 %v5557, 64
    %v6035 = vpop.permute.xlu0 %6034
    %6036 = vrot.lane.b32.xlu0 %v5558, 64
    %v6037 = vpop.permute.xlu0 %6036
    %6038 = vrot.lane.b32.xlu0 %v5559, 64
    %v6039 = vpop.permute.xlu0 %6038
    %6056 = vrot.lane.b32.xlu0 %v5592, 96
    %v6057 = vpop.permute.xlu0 %6056
    %6058 = vrot.lane.b32.xlu0 %v5593, 96
    %v6059 = vpop.permute.xlu0 %6058
    %6060 = vrot.lane.b32.xlu0 %v5594, 96
    %v6061 = vpop.permute.xlu0 %6060
    %6062 = vrot.lane.b32.xlu0 %v5595, 96
    %v6063 = vpop.permute.xlu0 %6062
    %6064 = vrot.lane.b32.xlu0 %v5596, 96
    %v6065 = vpop.permute.xlu0 %6064
    %6066 = vrot.lane.b32.xlu0 %v5597, 96
    %v6067 = vpop.permute.xlu0 %6066
    %6068 = vrot.lane.b32.xlu0 %v5598, 96
    %v6069 = vpop.permute.xlu0 %6068
    %6070 = vrot.lane.b32.xlu0 %v5599, 96
    %v6071 = vpop.permute.xlu0 %6070
    %6088 = vrot.lane.b32.xlu0 %v5768, 32
    %v6089 = vpop.permute.xlu0 %6088
    %6090 = vrot.lane.b32.xlu0 %v5769, 32
    %v6091 = vpop.permute.xlu0 %6090
    %6092 = vrot.lane.b32.xlu0 %v5770, 32
    %v6093 = vpop.permute.xlu0 %6092
    %6094 = vrot.lane.b32.xlu0 %v5771, 32
    %v6095 = vpop.permute.xlu0 %6094
    %6096 = vrot.lane.b32.xlu0 %v5772, 32
    %v6097 = vpop.permute.xlu0 %6096
    %6098 = vrot.lane.b32.xlu0 %v5773, 32
    %v6099 = vpop.permute.xlu0 %6098
    %6100 = vrot.lane.b32.xlu0 %v5774, 32
    %v6101 = vpop.permute.xlu0 %6100
    %6102 = vrot.lane.b32.xlu0 %v5775, 32
    %v6103 = vpop.permute.xlu0 %6102
    %6120 = vrot.lane.b32.xlu0 %v5792, 64
    %v6121 = vpop.permute.xlu0 %6120
    %6122 = vrot.lane.b32.xlu0 %v5793, 64
    %v6123 = vpop.permute.xlu0 %6122
    %6124 = vrot.lane.b32.xlu0 %v5794, 64
    %v6125 = vpop.permute.xlu0 %6124
    %6126 = vrot.lane.b32.xlu0 %v5795, 64
    %v6127 = vpop.permute.xlu0 %6126
    %6128 = vrot.lane.b32.xlu0 %v5796, 64
    %v6129 = vpop.permute.xlu0 %6128
    %6130 = vrot.lane.b32.xlu0 %v5797, 64
    %v6131 = vpop.permute.xlu0 %6130
    %6132 = vrot.lane.b32.xlu0 %v5798, 64
    %v6133 = vpop.permute.xlu0 %6132
    %6134 = vrot.lane.b32.xlu0 %v5799, 64
    %v6135 = vpop.permute.xlu0 %6134
    %6152 = vrot.lane.b32.xlu0 %v5832, 96
    %v6153 = vpop.permute.xlu0 %6152
    %6154 = vrot.lane.b32.xlu0 %v5833, 96
    %v6155 = vpop.permute.xlu0 %6154
    %6156 = vrot.lane.b32.xlu0 %v5834, 96
    %v6157 = vpop.permute.xlu0 %6156
    %6158 = vrot.lane.b32.xlu0 %v5835, 96
    %v6159 = vpop.permute.xlu0 %6158
    %6160 = vrot.lane.b32.xlu0 %v5836, 96
    %v6161 = vpop.permute.xlu0 %6160
    %6162 = vrot.lane.b32.xlu0 %v5837, 96
    %v6163 = vpop.permute.xlu0 %6162
    %6164 = vrot.lane.b32.xlu0 %v5838, 96
    %v6165 = vpop.permute.xlu0 %6164
    %6166 = vrot.lane.b32.xlu0 %v5839, 96
    %v6167 = vpop.permute.xlu0 %6166
    %6178 = vrot.lane.b32.xlu0 %v5882, 32
    %v6179 = vpop.permute.xlu0 %6178
    %6180 = vrot.lane.b32.xlu0 %v5883, 32
    %v6181 = vpop.permute.xlu0 %6180
    %6186 = vrot.lane.b32.xlu0 %v5888, 64
    %v6187 = vpop.permute.xlu0 %6186
    %6188 = vrot.lane.b32.xlu0 %v5889, 64
    %v6189 = vpop.permute.xlu0 %6188
    %6194 = vrot.lane.b32.xlu0 %v5898, 96
    %v6195 = vpop.permute.xlu0 %6194
    %6196 = vrot.lane.b32.xlu0 %v5899, 96
    %v6197 = vpop.permute.xlu0 %6196
    %vm6200 = vcmask 261120
    %v6201 = vsel %vm6200, %v5220, %v5908
    %v6202 = vsel %vm6200, %v5221, %v5910
    %v6203 = vsel %vm6200, %v5222, %v5912
    %v6204 = vsel %vm6200, %v5223, %v5914
    %v6205 = vsel %vm6200, %v5224, %v5916
    %v6206 = vsel %vm6200, %v5225, %v5918
    %v6207 = vsel %vm6200, %v5226, %v5920
    %vm6208 = vcmask 523264
    %v6209 = vsel %vm6208, %v6201, %v5936
    %v6210 = vsel %vm6208, %v6202, %v5938
    %v6211 = vsel %vm6208, %v6203, %v5940
    %v6212 = vsel %vm6208, %v6204, %v5942
    %v6213 = vsel %vm6208, %v6205, %v5944
    %v6214 = vsel %vm6208, %v6206, %v5946
    %v6215 = vsel %vm6208, %v6207, %v5948
    %vm6216 = vcmask 785408
    %v6217 = vsel %vm6216, %v6209, %v5964
    %v6218 = vsel %vm6216, %v6210, %v5966
    %v6219 = vsel %vm6216, %v6211, %v5968
    %v6220 = vsel %vm6216, %v6212, %v5970
    %v6221 = vsel %vm6216, %v6213, %v5972
    %v6222 = vsel %vm6216, %v6214, %v5974
    %v6223 = vsel %vm6216, %v6215, %v5976
    %v6224 = vsel %vm6200, %v5440, %v5993
    %v6225 = vsel %vm6200, %v5441, %v5995
    %v6226 = vsel %vm6200, %v5442, %v5997
    %v6227 = vsel %vm6200, %v5443, %v5999
    %v6228 = vsel %vm6200, %v5444, %v6001
    %v6229 = vsel %vm6200, %v5445, %v6003
    %v6230 = vsel %vm6200, %v5446, %v6005
    %v6231 = vsel %vm6200, %v5447, %v6007
    %v6232 = vsel %vm6208, %v6224, %v6025
    %v6233 = vsel %vm6208, %v6225, %v6027
    %v6234 = vsel %vm6208, %v6226, %v6029
    %v6235 = vsel %vm6208, %v6227, %v6031
    %v6236 = vsel %vm6208, %v6228, %v6033
    %v6237 = vsel %vm6208, %v6229, %v6035
    %v6238 = vsel %vm6208, %v6230, %v6037
    %v6239 = vsel %vm6208, %v6231, %v6039
    %v6240 = vsel %vm6216, %v6232, %v6057
    %v6241 = vsel %vm6216, %v6233, %v6059
    %v6242 = vsel %vm6216, %v6234, %v6061
    %v6243 = vsel %vm6216, %v6235, %v6063
    %v6244 = vsel %vm6216, %v6236, %v6065
    %v6245 = vsel %vm6216, %v6237, %v6067
    %v6246 = vsel %vm6216, %v6238, %v6069
    %v6247 = vsel %vm6216, %v6239, %v6071
    %v6248 = vsel %vm6200, %v5680, %v6089
    %v6249 = vsel %vm6200, %v5681, %v6091
    %v6250 = vsel %vm6200, %v5682, %v6093
    %v6251 = vsel %vm6200, %v5683, %v6095
    %v6252 = vsel %vm6200, %v5684, %v6097
    %v6253 = vsel %vm6200, %v5685, %v6099
    %v6254 = vsel %vm6200, %v5686, %v6101
    %v6255 = vsel %vm6200, %v5687, %v6103
    %v6256 = vsel %vm6208, %v6248, %v6121
    %v6257 = vsel %vm6208, %v6249, %v6123
    %v6258 = vsel %vm6208, %v6250, %v6125
    %v6259 = vsel %vm6208, %v6251, %v6127
    %v6260 = vsel %vm6208, %v6252, %v6129
    %v6261 = vsel %vm6208, %v6253, %v6131
    %v6262 = vsel %vm6208, %v6254, %v6133
    %v6263 = vsel %vm6208, %v6255, %v6135
    %v6264 = vsel %vm6216, %v6256, %v6153
    %v6265 = vsel %vm6216, %v6257, %v6155
    %v6266 = vsel %vm6216, %v6258, %v6157
    %v6267 = vsel %vm6216, %v6259, %v6159
    %v6268 = vsel %vm6216, %v6260, %v6161
    %v6269 = vsel %vm6216, %v6261, %v6163
    %v6270 = vsel %vm6216, %v6262, %v6165
    %v6271 = vsel %vm6216, %v6263, %v6167
    %v6272 = vsel %vm6200, %v5860, %v6179
    %v6273 = vsel %vm6200, %v5861, %v6181
    %v6274 = vsel %vm6208, %v6272, %v6187
    %v6275 = vsel %vm6208, %v6273, %v6189
    %v6276 = vsel %vm6216, %v6274, %v6195
    %v6277 = vsel %vm6216, %v6275, %v6197
    %v6303 = vcombine.low %v6217, %v6240
    %v6304 = vcombine.low %v6264, %v6218
    %v6305 = vcombine.low %v6218, %v6241
    %v6306 = vcombine.low %v6265, %v6219
    %v6307 = vcombine.low %v6219, %v6242
    %v6308 = vcombine.low %v6266, %v6220
    %v6309 = vcombine.low %v6220, %v6243
    %v6310 = vcombine.low %v6267, %v6276
    %v6311 = vcombine.low %v6217, %v6244
    %v6312 = vcombine.low %v6268, %v6221
    %v6313 = vcombine.low %v6221, %v6245
    %v6314 = vcombine.low %v6269, %v6222
    %v6315 = vcombine.low %v6222, %v6246
    %v6316 = vcombine.low %v6270, %v6223
    %v6317 = vcombine.low %v6223, %v6247
    %v6318 = vcombine.low %v6271, %v6277
    %v6319 = vld [vmem:[%s3] sm:$0xff]
    %v6320 = vld [vmem:[%s3 + $0x8] sm:$0xff]
    %v6321 = vld [vmem:[%s3 + $0x10] sm:$0xff]
    %v6322 = vld [vmem:[%s3 + $0x18] sm:$0xff]
    %v6323 = vld [vmem:[%s3 + $0x20] sm:$0xff]
    %v6324 = vld [vmem:[%s3 + $0x28] sm:$0xff]
    %v6325 = vld [vmem:[%s3 + $0x30] sm:$0xff]
    %v6326 = vld [vmem:[%s3 + $0x38] sm:$0xff]
    %v6327 = vld [vmem:[%s3 + $0x40] sm:$0xff]
    %v6328 = vld [vmem:[%s3 + $0x48] sm:$0xff]
    %v6329 = vld [vmem:[%s3 + $0x50] sm:$0xff]
    %v6330 = vld [vmem:[%s3 + $0x58] sm:$0xff]
    %v6331 = vld [vmem:[%s3 + $0x60] sm:$0xff]
    %v6332 = vld [vmem:[%s3 + $0x68] sm:$0xff]
    %v6333 = vld [vmem:[%s3 + $0x70] sm:$0xff]
    %v6334 = vld [vmem:[%s3 + $0x78] sm:$0xff]
    %v6335 = vld [vmem:[%s3 + $0x80] sm:$0xff]
    %v6336 = vld [vmem:[%s3 + $0x88] sm:$0xff]
    %v6337 = vld [vmem:[%s3 + $0x90] sm:$0xff]
    %v6338 = vld [vmem:[%s3 + $0x98] sm:$0xff]
    %v6339 = vld [vmem:[%s3 + $0xa0] sm:$0xff]
    %v6340 = vld [vmem:[%s3 + $0xa8] sm:$0xff]
    %v6341 = vld [vmem:[%s3 + $0xb0] sm:$0xff]
    %v6342 = vld [vmem:[%s3 + $0xb8] sm:$0xff]
    %v6343 = vld [vmem:[%s3 + $0xc0] sm:$0xff]
    %v6344 = vld [vmem:[%s3 + $0xc8] sm:$0xff]
    %v6345 = vld [vmem:[%s3 + $0xd0] sm:$0xff]
    %v6346 = vld [vmem:[%s3 + $0xd8] sm:$0xff]
    %v6347 = vld [vmem:[%s3 + $0xe0] sm:$0xff]
    %v6348 = vld [vmem:[%s3 + $0xe8] sm:$0xff]
    %v6349 = vld [vmem:[%s3 + $0xf0] sm:$0xff]
    %v6350 = vld [vmem:[%s3 + $0xf8] sm:$0xff]
    %v6351 = vld [vmem:[%s3 + $0x100] sm:$0xff]
    %v6352 = vld [vmem:[%s3 + $0x108] sm:$0xff]
    %v6353 = vld [vmem:[%s3 + $0x110] sm:$0xff]
    %v6354 = vld [vmem:[%s3 + $0x118] sm:$0xff]
    %v6355 = vld [vmem:[%s3 + $0x120] sm:$0xff]
    %v6356 = vld [vmem:[%s3 + $0x128] sm:$0xff]
    %v6357 = vld [vmem:[%s3 + $0x130] sm:$0xff]
    %v6358 = vld [vmem:[%s3 + $0x138] sm:$0xff]
    %v6359 = vld [vmem:[%s3 + $0x140] sm:$0xff]
    %v6360 = vld [vmem:[%s3 + $0x148] sm:$0xff]
    %v6361 = vld [vmem:[%s3 + $0x150] sm:$0xff]
    %v6362 = vld [vmem:[%s3 + $0x158] sm:$0xff]
    %v6363 = vld [vmem:[%s3 + $0x160] sm:$0xff]
    %v6364 = vld [vmem:[%s3 + $0x168] sm:$0xff]
    %v6365 = vld [vmem:[%s3 + $0x170] sm:$0xff]
    %v6366 = vld [vmem:[%s3 + $0x178] sm:$0xff]
    %v6367 = vld [vmem:[%s3 + $0x180] sm:$0xff]
    %v6368 = vld [vmem:[%s3 + $0x188] sm:$0xff]
    %v6369 = vld [vmem:[%s3 + $0x190] sm:$0xff]
    %v6370 = vld [vmem:[%s3 + $0x198] sm:$0xff]
    %v6371 = vld [vmem:[%s3 + $0x1a0] sm:$0xff]
    %v6372 = vld [vmem:[%s3 + $0x1a8] sm:$0xff]
    %v6373 = vld [vmem:[%s3 + $0x1b0] sm:$0xff]
    %v6374 = vld [vmem:[%s3 + $0x1b8] sm:$0xff]
    %v6375 = vld [vmem:[%s3 + $0x1c0] sm:$0xff]
    %v6376 = vld [vmem:[%s3 + $0x1c8] sm:$0xff]
    %v6377 = vld [vmem:[%s3 + $0x1d0] sm:$0xff]
    %v6378 = vld [vmem:[%s3 + $0x1d8] sm:$0xff]
    %v6379 = vld [vmem:[%s3 + $0x1e0] sm:$0xff]
    %v6380 = vld [vmem:[%s3 + $0x1e8] sm:$0xff]
    %v6381 = vld [vmem:[%s3 + $0x1f0] sm:$0xff]
    %v6382 = vld [vmem:[%s3 + $0x1f8] sm:$0xff]
    %v6383 = vld [vmem:[%s4] sm:$0x1]
    %v6385 = vlaneseq
    %v6386 = vshrl.u32 %v6385, 7
    %v6387 = vsub.s32 0, %v6386
    %v6388 = vrot.slane %v6383, %v6387
    %v6390 = vcombine.low %v6303, %v6305
    %v6391 = vcombine.high %v6303, %v6305
    %v6392 = vcombine.low %v6304, %v6306
    %v6393 = vcombine.high %v6304, %v6306
    %v6394 = vcombine.low %v6307, %v6309
    %v6395 = vcombine.high %v6307, %v6309
    %v6396 = vcombine.low %v6308, %v6310
    %v6397 = vcombine.high %v6308, %v6310
    %v6398 = vcombine.low %v6311, %v6313
    %v6399 = vcombine.high %v6311, %v6313
    %v6400 = vcombine.low %v6312, %v6314
    %v6401 = vcombine.high %v6312, %v6314
    %v6402 = vcombine.low %v6315, %v6317
    %v6403 = vcombine.high %v6315, %v6317
    %v6404 = vcombine.low %v6316, %v6318
    %v6405 = vcombine.high %v6316, %v6318
    %6422 = vmatprep.subr.mxu0 0.0
    %6423 = vmatpush1.msra.mxu0 %v6319
    %6424 = vmatprep.subr.mxu0 0.0
    %6425 = vmatpush1.msra.mxu0 %v6320
    %6426 = vmatprep.subr.mxu0 0.0
    %6427 = vmatpush1.msra.mxu0 %v6321
    %6428 = vmatprep.subr.mxu0 0.0
    %6429 = vmatpush1.msra.mxu0 %v6322
    %6430 = vmatprep.subr.mxu0 0.0
    %6431 = vmatpush1.msra.mxu0 %v6323
    %6432 = vmatprep.subr.mxu0 0.0
    %6433 = vmatpush1.msra.mxu0 %v6324
    %6434 = vmatprep.subr.mxu0 0.0
    %6435 = vmatpush1.msra.mxu0 %v6325
    %6436 = vmatprep.subr.mxu0 0.0
    %6437 = vmatpush1.msra.mxu0 %v6326
    %6438 = vmatprep.subr.mxu0 0.0
    %6439 = vmatpush1.msra.mxu0 %v6327
    %6440 = vmatprep.subr.mxu0 0.0
    %6441 = vmatpush1.msra.mxu0 %v6328
    %6442 = vmatprep.subr.mxu0 0.0
    %6443 = vmatpush1.msra.mxu0 %v6329
    %6444 = vmatprep.subr.mxu0 0.0
    %6445 = vmatpush1.msra.mxu0 %v6330
    %6446 = vmatprep.subr.mxu0 0.0
    %6447 = vmatpush1.msra.mxu0 %v6331
    %6448 = vmatprep.subr.mxu0 0.0
    %6449 = vmatpush1.msra.mxu0 %v6332
    %6450 = vmatprep.subr.mxu0 0.0
    %6451 = vmatpush1.msra.mxu0 %v6333
    %6452 = vmatprep.subr.mxu0 0.0
    %6453 = vmatpush1.msra.mxu0 %v6334
    %6454 = vmatprep.subr.mxu0 0.0
    %6455 = vmatpush1.msra.mxu0 %v6335
    %6456 = vmatprep.subr.mxu0 0.0
    %6457 = vmatpush1.msra.mxu0 %v6336
    %6458 = vmatprep.subr.mxu0 0.0
    %6459 = vmatpush1.msra.mxu0 %v6337
    %6460 = vmatprep.subr.mxu0 0.0
    %6461 = vmatpush1.msra.mxu0 %v6338
    %6462 = vmatprep.subr.mxu0 0.0
    %6463 = vmatpush1.msra.mxu0 %v6339
    %6464 = vmatprep.subr.mxu0 0.0
    %6465 = vmatpush1.msra.mxu0 %v6340
    %6466 = vmatprep.subr.mxu0 0.0
    %6467 = vmatpush1.msra.mxu0 %v6341
    %6468 = vmatprep.subr.mxu0 0.0
    %6469 = vmatpush1.msra.mxu0 %v6342
    %6470 = vmatprep.subr.mxu0 0.0
    %6471 = vmatpush1.msra.mxu0 %v6343
    %6472 = vmatprep.subr.mxu0 0.0
    %6473 = vmatpush1.msra.mxu0 %v6344
    %6474 = vmatprep.subr.mxu0 0.0
    %6475 = vmatpush1.msra.mxu0 %v6345
    %6476 = vmatprep.subr.mxu0 0.0
    %6477 = vmatpush1.msra.mxu0 %v6346
    %6478 = vmatprep.subr.mxu0 0.0
    %6479 = vmatpush1.msra.mxu0 %v6347
    %6480 = vmatprep.subr.mxu0 0.0
    %6481 = vmatpush1.msra.mxu0 %v6348
    %6482 = vmatprep.subr.mxu0 0.0
    %6483 = vmatpush1.msra.mxu0 %v6349
    %6484 = vmatprep.subr.mxu0 0.0
    %6485 = vmatpush1.msra.mxu0 %v6350
    %6486 = vmatprep.mubr.f32.mxu0 %v6391
    %6487 = vmatmul.mubr.f32.gmra.mrb[0].mxu0 %v6390
    %v6488 = vpop.f32.mrb[0].mxu0
    %v6489 = vadd.f32 %v6388, %v6488
    %v6490 = vpop.f32.mrb[0].mxu0
    %6491 = vmatprep.mubr.f32.mxu0 %v6395
    %6492 = vmatmul.mubr.f32.gmra.mrb[0].mxu0 %v6394
    %v6493 = vpop.f32.mrb[0].mxu0
    %v6494 = vadd.f32 %v6388, %v6493
    %v6495 = vpop.f32.mrb[0].mxu0
    %6496 = vmatprep.mubr.f32.mxu0 %v6399
    %6497 = vmatmul.mubr.f32.gmra.mrb[0].mxu0 %v6398
    %v6498 = vpop.f32.mrb[0].mxu0
    %v6499 = vadd.f32 %v6388, %v6498
    %v6500 = vpop.f32.mrb[0].mxu0
    %6501 = vmatprep.mubr.f32.mxu0 %v6403
    %6502 = vmatmul.mubr.f32.gmra.mrb[0].mxu0 %v6402
    %v6503 = vpop.f32.mrb[0].mxu0
    %v6504 = vadd.f32 %v6388, %v6503
    %v6505 = vpop.f32.mrb[0].mxu0
    %6506 = vdwg.mxu0
    %6507 = vmatprep.subr.mxu0 0.0
    %6508 = vmatpush1.msra.mxu0 %v6351
    %6509 = vmatprep.subr.mxu0 0.0
    %6510 = vmatpush1.msra.mxu0 %v6352
    %6511 = vmatprep.subr.mxu0 0.0
    %6512 = vmatpush1.msra.mxu0 %v6353
    %6513 = vmatprep.subr.mxu0 0.0
    %6514 = vmatpush1.msra.mxu0 %v6354
    %6515 = vmatprep.subr.mxu0 0.0
    %6516 = vmatpush1.msra.mxu0 %v6355
    %6517 = vmatprep.subr.mxu0 0.0
    %6518 = vmatpush1.msra.mxu0 %v6356
    %6519 = vmatprep.subr.mxu0 0.0
    %6520 = vmatpush1.msra.mxu0 %v6357
    %6521 = vmatprep.subr.mxu0 0.0
    %6522 = vmatpush1.msra.mxu0 %v6358
    %6523 = vmatprep.subr.mxu0 0.0
    %6524 = vmatpush1.msra.mxu0 %v6359
    %6525 = vmatprep.subr.mxu0 0.0
    %6526 = vmatpush1.msra.mxu0 %v6360
    %6527 = vmatprep.subr.mxu0 0.0
    %6528 = vmatpush1.msra.mxu0 %v6361
    %6529 = vmatprep.subr.mxu0 0.0
    %6530 = vmatpush1.msra.mxu0 %v6362
    %6531 = vmatprep.subr.mxu0 0.0
    %6532 = vmatpush1.msra.mxu0 %v6363
    %6533 = vmatprep.subr.mxu0 0.0
    %6534 = vmatpush1.msra.mxu0 %v6364
    %6535 = vmatprep.subr.mxu0 0.0
    %6536 = vmatpush1.msra.mxu0 %v6365
    %6537 = vmatprep.subr.mxu0 0.0
    %6538 = vmatpush1.msra.mxu0 %v6366
    %6539 = vmatprep.subr.mxu0 0.0
    %6540 = vmatpush1.msra.mxu0 %v6367
    %6541 = vmatprep.subr.mxu0 0.0
    %6542 = vmatpush1.msra.mxu0 %v6368
    %6543 = vmatprep.subr.mxu0 0.0
    %6544 = vmatpush1.msra.mxu0 %v6369
    %6545 = vmatprep.subr.mxu0 0.0
    %6546 = vmatpush1.msra.mxu0 %v6370
    %6547 = vmatprep.subr.mxu0 0.0
    %6548 = vmatpush1.msra.mxu0 %v6371
    %6549 = vmatprep.subr.mxu0 0.0
    %6550 = vmatpush1.msra.mxu0 %v6372
    %6551 = vmatprep.subr.mxu0 0.0
    %6552 = vmatpush1.msra.mxu0 %v6373
    %6553 = vmatprep.subr.mxu0 0.0
    %6554 = vmatpush1.msra.mxu0 %v6374
    %6555 = vmatprep.subr.mxu0 0.0
    %6556 = vmatpush1.msra.mxu0 %v6375
    %6557 = vmatprep.subr.mxu0 0.0
    %6558 = vmatpush1.msra.mxu0 %v6376
    %6559 = vmatprep.subr.mxu0 0.0
    %6560 = vmatpush1.msra.mxu0 %v6377
    %6561 = vmatprep.subr.mxu0 0.0
    %6562 = vmatpush1.msra.mxu0 %v6378
    %6563 = vmatprep.subr.mxu0 0.0
    %6564 = vmatpush1.msra.mxu0 %v6379
    %6565 = vmatprep.subr.mxu0 0.0
    %6566 = vmatpush1.msra.mxu0 %v6380
    %6567 = vmatprep.subr.mxu0 0.0
    %6568 = vmatpush1.msra.mxu0 %v6381
    %6569 = vmatprep.subr.mxu0 0.0
    %6570 = vmatpush1.msra.mxu0 %v6382
    %6571 = vmatprep.mubr.f32.mxu0 %v6393
    %6572 = vmatmul.mubr.f32.gmra.mrb[0].mxu0 %v6392
    %v6573 = vpop.f32.mrb[0].mxu0
    %v6574 = vadd.f32 %v6489, %v6573
    %v6575 = vpop.f32.mrb[0].mxu0
    %6576 = vmatprep.mubr.f32.mxu0 %v6397
    %6577 = vmatmul.mubr.f32.gmra.mrb[0].mxu0 %v6396
    %v6578 = vpop.f32.mrb[0].mxu0
    %v6579 = vadd.f32 %v6494, %v6578
    %v6580 = vpop.f32.mrb[0].mxu0
    %6581 = vmatprep.mubr.f32.mxu0 %v6401
    %6582 = vmatmul.mubr.f32.gmra.mrb[0].mxu0 %v6400
    %v6583 = vpop.f32.mrb[0].mxu0
    %v6584 = vadd.f32 %v6499, %v6583
    %v6585 = vpop.f32.mrb[0].mxu0
    %6586 = vmatprep.mubr.f32.mxu0 %v6405
    %6587 = vmatmul.mubr.f32.gmra.mrb[0].mxu0 %v6404
    %v6588 = vpop.f32.mrb[0].mxu0
    %v6589 = vadd.f32 %v6504, %v6588
    %v6590 = vpop.f32.mrb[0].mxu0
    %6591 = vdwg.mxu0
    %v6592 = vmax.f32 %v6574, 0.0
    %v6593 = vmax.f32 %v6579, 0.0
    %v6594 = vmax.f32 %v6584, 0.0
    %v6595 = vmax.f32 %v6589, 0.0
    %v6600 = vcombine.high %v6592, %v6592
    %v6601 = vcombine.high %v6593, %v6593
    %v6602 = vcombine.high %v6594, %v6594
    %v6603 = vcombine.high %v6595, %v6595
    %v6608 = vrot.slane %v6592, 5
    %v6609 = vrot.slane %v6608, 4
    %v6610 = vrot.slane %v6594, 5
    %v6611 = vrot.slane %v6610, 4
    %v6614 = vmax.f32 %v6592, %v6609
    %v6615 = vmax.f32 %v6594, %v6611
    %v6616 = vrot.slane %v6600, 5
    %v6617 = vrot.slane %v6616, 4
    %v6618 = vrot.slane %v6602, 5
    %v6619 = vrot.slane %v6618, 4
    %v6622 = vmax.f32 %v6600, %v6617
    %v6623 = vmax.f32 %v6602, %v6619
    %v6624 = vmax.f32 %v6614, %v6622
    %v6625 = vmax.f32 %v6615, %v6623
    %v6626 = vrot.slane %v6593, 5
    %v6627 = vrot.slane %v6626, 4
    %v6628 = vrot.slane %v6595, 5
    %v6629 = vrot.slane %v6628, 4
    %v6632 = vmax.f32 %v6593, %v6627
    %v6633 = vmax.f32 %v6595, %v6629
    %v6634 = vrot.slane %v6601, 5
    %v6635 = vrot.slane %v6634, 4
    %v6636 = vrot.slane %v6603, 5
    %v6637 = vrot.slane %v6636, 4
    %v6640 = vmax.f32 %v6601, %v6635
    %v6641 = vmax.f32 %v6603, %v6637
    %v6642 = vmax.f32 %v6632, %v6640
    %v6643 = vmax.f32 %v6633, %v6641
    %v6646 = vlaneseq
    %v6647 = vshrl.u32 %v6646, 7
    %v6648 = vsub.s32 0, %v6647
    %v6649 = vrot.slane %v6624, %v6648
    %v6650 = vlaneseq
    %v6651 = vshrl.u32 %v6650, 7
    %v6652 = vsub.s32 0, %v6651
    %v6653 = vrot.slane %v6625, %v6652
    %vm6654 = vcmask 1041409
    %v6655 = vsel %vm6654, %v6653, %v6649
    %v6657 = vlaneseq
    %v6658 = vshrl.u32 %v6657, 7
    %v6659 = vsub.s32 2, %v6658
    %v6660 = vrot.slane %v6624, %v6659
    %v6661 = vlaneseq
    %v6662 = vshrl.u32 %v6661, 7
    %v6663 = vsub.s32 2, %v6662
    %v6664 = vrot.slane %v6625, %v6663
    %v6665 = vsel %vm6654, %v6664, %v6660
    %6666 = vrot.lane.b32.xlu0 %v6665, 64
    %v6667 = vpop.permute.xlu0 %6666
    %v6671 = vlaneseq
    %v6672 = vshrl.u32 %v6671, 7
    %v6673 = vsub.s32 0, %v6672
    %v6674 = vrot.slane %v6642, %v6673
    %v6675 = vlaneseq
    %v6676 = vshrl.u32 %v6675, 7
    %v6677 = vsub.s32 0, %v6676
    %v6678 = vrot.slane %v6643, %v6677
    %v6679 = vsel %vm6654, %v6678, %v6674
    %v6681 = vlaneseq
    %v6682 = vshrl.u32 %v6681, 7
    %v6683 = vsub.s32 2, %v6682
    %v6684 = vrot.slane %v6642, %v6683
    %v6685 = vlaneseq
    %v6686 = vshrl.u32 %v6685, 7
    %v6687 = vsub.s32 2, %v6686
    %v6688 = vrot.slane %v6643, %v6687
    %v6689 = vsel %vm6654, %v6688, %v6684
    %6690 = vrot.lane.b32.xlu0 %v6689, 64
    %v6691 = vpop.permute.xlu0 %6690
    %v6693 = vsel %vm6208, %v6655, %v6667
    %v6694 = vsel %vm6208, %v6679, %v6691
    %v6695 = vld [vmem:[%s5] sm:$0xff]
    %v6696 = vld [vmem:[%s5 + $0x8] sm:$0xff]
    %v6697 = vld [vmem:[%s5 + $0x10] sm:$0xff]
    %v6698 = vld [vmem:[%s5 + $0x18] sm:$0xff]
    %v6699 = vld [vmem:[%s5 + $0x20] sm:$0xff]
    %v6700 = vld [vmem:[%s5 + $0x28] sm:$0xff]
    %v6701 = vld [vmem:[%s5 + $0x30] sm:$0xff]
    %v6702 = vld [vmem:[%s5 + $0x38] sm:$0xff]
    %v6703 = vld [vmem:[%s5 + $0x40] sm:$0xff]
    %v6704 = vld [vmem:[%s5 + $0x48] sm:$0xff]
    %v6705 = vld [vmem:[%s5 + $0x50] sm:$0xff]
    %v6706 = vld [vmem:[%s5 + $0x58] sm:$0xff]
    %v6707 = vld [vmem:[%s5 + $0x60] sm:$0xff]
    %v6708 = vld [vmem:[%s5 + $0x68] sm:$0xff]
    %v6709 = vld [vmem:[%s5 + $0x70] sm:$0xff]
    %v6710 = vld [vmem:[%s5 + $0x78] sm:$0xff]
    %v6711 = vld [vmem:[%s5 + $0x80] sm:$0xff]
    %v6712 = vld [vmem:[%s5 + $0x88] sm:$0xff]
    %v6713 = vld [vmem:[%s5 + $0x90] sm:$0xff]
    %v6714 = vld [vmem:[%s5 + $0x98] sm:$0xff]
    %v6715 = vld [vmem:[%s5 + $0xa0] sm:$0xff]
    %v6716 = vld [vmem:[%s5 + $0xa8] sm:$0xff]
    %v6717 = vld [vmem:[%s5 + $0xb0] sm:$0xff]
    %v6718 = vld [vmem:[%s5 + $0xb8] sm:$0xff]
    %v6719 = vld [vmem:[%s5 + $0xc0] sm:$0xff]
    %v6720 = vld [vmem:[%s5 + $0xc8] sm:$0xff]
    %v6721 = vld [vmem:[%s5 + $0xd0] sm:$0xff]
    %v6722 = vld [vmem:[%s5 + $0xd8] sm:$0xff]
    %v6723 = vld [vmem:[%s5 + $0xe0] sm:$0xff]
    %v6724 = vld [vmem:[%s5 + $0xe8] sm:$0xff]
    %v6725 = vld [vmem:[%s5 + $0xf0] sm:$0xff]
    %v6726 = vld [vmem:[%s5 + $0xf8] sm:$0xff]
    %v6727 = vld [vmem:[%s5 + $0x100] sm:$0xff]
    %v6728 = vld [vmem:[%s5 + $0x108] sm:$0xff]
    %v6729 = vld [vmem:[%s5 + $0x110] sm:$0xff]
    %v6730 = vld [vmem:[%s5 + $0x118] sm:$0xff]
    %v6731 = vld [vmem:[%s5 + $0x120] sm:$0xff]
    %v6732 = vld [vmem:[%s5 + $0x128] sm:$0xff]
    %v6733 = vld [vmem:[%s5 + $0x130] sm:$0xff]
    %v6734 = vld [vmem:[%s5 + $0x138] sm:$0xff]
    %v6735 = vld [vmem:[%s5 + $0x140] sm:$0xff]
    %v6736 = vld [vmem:[%s5 + $0x148] sm:$0xff]
    %v6737 = vld [vmem:[%s5 + $0x150] sm:$0xff]
    %v6738 = vld [vmem:[%s5 + $0x158] sm:$0xff]
    %v6739 = vld [vmem:[%s5 + $0x160] sm:$0xff]
    %v6740 = vld [vmem:[%s5 + $0x168] sm:$0xff]
    %v6741 = vld [vmem:[%s5 + $0x170] sm:$0xff]
    %v6742 = vld [vmem:[%s5 + $0x178] sm:$0xff]
    %v6743 = vld [vmem:[%s5 + $0x180] sm:$0xff]
    %v6744 = vld [vmem:[%s5 + $0x188] sm:$0xff]
    %v6745 = vld [vmem:[%s5 + $0x190] sm:$0xff]
    %v6746 = vld [vmem:[%s5 + $0x198] sm:$0xff]
    %v6747 = vld [vmem:[%s5 + $0x1a0] sm:$0xff]
    %v6748 = vld [vmem:[%s5 + $0x1a8] sm:$0xff]
    %v6749 = vld [vmem:[%s5 + $0x1b0] sm:$0xff]
    %v6750 = vld [vmem:[%s5 + $0x1b8] sm:$0xff]
    %v6751 = vld [vmem:[%s5 + $0x1c0] sm:$0xff]
    %v6752 = vld [vmem:[%s5 + $0x1c8] sm:$0xff]
    %v6753 = vld [vmem:[%s5 + $0x1d0] sm:$0xff]
    %v6754 = vld [vmem:[%s5 + $0x1d8] sm:$0xff]
    %v6755 = vld [vmem:[%s5 + $0x1e0] sm:$0xff]
    %v6756 = vld [vmem:[%s5 + $0x1e8] sm:$0xff]
    %v6757 = vld [vmem:[%s5 + $0x1f0] sm:$0xff]
    %v6758 = vld [vmem:[%s5 + $0x1f8] sm:$0xff]
    %v6759 = vld [vmem:[%s5 + $0x200] sm:$0xff]
    %v6760 = vld [vmem:[%s5 + $0x208] sm:$0xff]
    %v6761 = vld [vmem:[%s5 + $0x210] sm:$0xff]
    %v6762 = vld [vmem:[%s5 + $0x218] sm:$0xff]
    %v6763 = vld [vmem:[%s5 + $0x220] sm:$0xff]
    %v6764 = vld [vmem:[%s5 + $0x228] sm:$0xff]
    %v6765 = vld [vmem:[%s5 + $0x230] sm:$0xff]
    %v6766 = vld [vmem:[%s5 + $0x238] sm:$0xff]
    %v6767 = vld [vmem:[%s5 + $0x240] sm:$0xff]
    %v6768 = vld [vmem:[%s5 + $0x248] sm:$0xff]
    %v6769 = vld [vmem:[%s5 + $0x250] sm:$0xff]
    %v6770 = vld [vmem:[%s5 + $0x258] sm:$0xff]
    %v6771 = vld [vmem:[%s5 + $0x260] sm:$0xff]
    %v6772 = vld [vmem:[%s5 + $0x268] sm:$0xff]
    %v6773 = vld [vmem:[%s5 + $0x270] sm:$0xff]
    %v6774 = vld [vmem:[%s5 + $0x278] sm:$0xff]
    %v6775 = vld [vmem:[%s5 + $0x280] sm:$0xff]
    %v6776 = vld [vmem:[%s5 + $0x288] sm:$0xff]
    %v6777 = vld [vmem:[%s5 + $0x290] sm:$0xff]
    %v6778 = vld [vmem:[%s5 + $0x298] sm:$0xff]
    %v6779 = vld [vmem:[%s5 + $0x2a0] sm:$0xff]
    %v6780 = vld [vmem:[%s5 + $0x2a8] sm:$0xff]
    %v6781 = vld [vmem:[%s5 + $0x2b0] sm:$0xff]
    %v6782 = vld [vmem:[%s5 + $0x2b8] sm:$0xff]
    %v6783 = vld [vmem:[%s5 + $0x2c0] sm:$0xff]
    %v6784 = vld [vmem:[%s5 + $0x2c8] sm:$0xff]
    %v6785 = vld [vmem:[%s5 + $0x2d0] sm:$0xff]
    %v6786 = vld [vmem:[%s5 + $0x2d8] sm:$0xff]
    %v6787 = vld [vmem:[%s5 + $0x2e0] sm:$0xff]
    %v6788 = vld [vmem:[%s5 + $0x2e8] sm:$0xff]
    %v6789 = vld [vmem:[%s5 + $0x2f0] sm:$0xff]
    %v6790 = vld [vmem:[%s5 + $0x2f8] sm:$0xff]
    %v6791 = vld [vmem:[%s5 + $0x300] sm:$0xff]
    %v6792 = vld [vmem:[%s5 + $0x308] sm:$0xff]
    %v6793 = vld [vmem:[%s5 + $0x310] sm:$0xff]
    %v6794 = vld [vmem:[%s5 + $0x318] sm:$0xff]
    %v6795 = vld [vmem:[%s5 + $0x320] sm:$0xff]
    %v6796 = vld [vmem:[%s5 + $0x328] sm:$0xff]
    %v6797 = vld [vmem:[%s5 + $0x330] sm:$0xff]
    %v6798 = vld [vmem:[%s5 + $0x338] sm:$0xff]
    %v6799 = vld [vmem:[%s5 + $0x340] sm:$0xff]
    %v6800 = vld [vmem:[%s5 + $0x348] sm:$0xff]
    %v6801 = vld [vmem:[%s5 + $0x350] sm:$0xff]
    %v6802 = vld [vmem:[%s5 + $0x358] sm:$0xff]
    %v6803 = vld [vmem:[%s5 + $0x360] sm:$0xff]
    %v6804 = vld [vmem:[%s5 + $0x368] sm:$0xff]
    %v6805 = vld [vmem:[%s5 + $0x370] sm:$0xff]
    %v6806 = vld [vmem:[%s5 + $0x378] sm:$0xff]
    %v6807 = vld [vmem:[%s5 + $0x380] sm:$0xff]
    %v6808 = vld [vmem:[%s5 + $0x388] sm:$0xff]
    %v6809 = vld [vmem:[%s5 + $0x390] sm:$0xff]
    %v6810 = vld [vmem:[%s5 + $0x398] sm:$0xff]
    %v6811 = vld [vmem:[%s5 + $0x3a0] sm:$0xff]
    %v6812 = vld [vmem:[%s5 + $0x3a8] sm:$0xff]
    %v6813 = vld [vmem:[%s5 + $0x3b0] sm:$0xff]
    %v6814 = vld [vmem:[%s5 + $0x3b8] sm:$0xff]
    %v6815 = vld [vmem:[%s5 + $0x3c0] sm:$0xff]
    %v6816 = vld [vmem:[%s5 + $0x3c8] sm:$0xff]
    %v6817 = vld [vmem:[%s5 + $0x3d0] sm:$0xff]
    %v6818 = vld [vmem:[%s5 + $0x3d8] sm:$0xff]
    %v6819 = vld [vmem:[%s5 + $0x3e0] sm:$0xff]
    %v6820 = vld [vmem:[%s5 + $0x3e8] sm:$0xff]
    %v6821 = vld [vmem:[%s5 + $0x3f0] sm:$0xff]
    %v6822 = vld [vmem:[%s5 + $0x3f8] sm:$0xff]
    %v6823 = vld [vmem:[%s5 + $0x400] sm:$0xff]
    %v6824 = vld [vmem:[%s5 + $0x408] sm:$0xff]
    %v6825 = vld [vmem:[%s5 + $0x410] sm:$0xff]
    %v6826 = vld [vmem:[%s5 + $0x418] sm:$0xff]
    %v6827 = vld [vmem:[%s5 + $0x420] sm:$0xff]
    %v6828 = vld [vmem:[%s5 + $0x428] sm:$0xff]
    %v6829 = vld [vmem:[%s5 + $0x430] sm:$0xff]
    %v6830 = vld [vmem:[%s5 + $0x438] sm:$0xff]
    %v6831 = vld [vmem:[%s5 + $0x440] sm:$0xff]
    %v6832 = vld [vmem:[%s5 + $0x448] sm:$0xff]
    %v6833 = vld [vmem:[%s5 + $0x450] sm:$0xff]
    %v6834 = vld [vmem:[%s5 + $0x458] sm:$0xff]
    %v6835 = vld [vmem:[%s5 + $0x460] sm:$0xff]
    %v6836 = vld [vmem:[%s5 + $0x468] sm:$0xff]
    %v6837 = vld [vmem:[%s5 + $0x470] sm:$0xff]
    %v6838 = vld [vmem:[%s5 + $0x478] sm:$0xff]
    %v6839 = vld [vmem:[%s5 + $0x480] sm:$0xff]
    %v6840 = vld [vmem:[%s5 + $0x488] sm:$0xff]
    %v6841 = vld [vmem:[%s5 + $0x490] sm:$0xff]
    %v6842 = vld [vmem:[%s5 + $0x498] sm:$0xff]
    %v6843 = vld [vmem:[%s5 + $0x4a0] sm:$0xff]
    %v6844 = vld [vmem:[%s5 + $0x4a8] sm:$0xff]
    %v6845 = vld [vmem:[%s5 + $0x4b0] sm:$0xff]
    %v6846 = vld [vmem:[%s5 + $0x4b8] sm:$0xff]
    %v6847 = vld [vmem:[%s5 + $0x4c0] sm:$0xff]
    %v6848 = vld [vmem:[%s5 + $0x4c8] sm:$0xff]
    %v6849 = vld [vmem:[%s5 + $0x4d0] sm:$0xff]
    %v6850 = vld [vmem:[%s5 + $0x4d8] sm:$0xff]
    %v6851 = vld [vmem:[%s5 + $0x4e0] sm:$0xff]
    %v6852 = vld [vmem:[%s5 + $0x4e8] sm:$0xff]
    %v6853 = vld [vmem:[%s5 + $0x4f0] sm:$0xff]
    %v6854 = vld [vmem:[%s5 + $0x4f8] sm:$0xff]
    %v6855 = vld [vmem:[%s5 + $0x500] sm:$0xff]
    %v6856 = vld [vmem:[%s5 + $0x508] sm:$0xff]
    %v6857 = vld [vmem:[%s5 + $0x510] sm:$0xff]
    %v6858 = vld [vmem:[%s5 + $0x518] sm:$0xff]
    %v6859 = vld [vmem:[%s5 + $0x520] sm:$0xff]
    %v6860 = vld [vmem:[%s5 + $0x528] sm:$0xff]
    %v6861 = vld [vmem:[%s5 + $0x530] sm:$0xff]
    %v6862 = vld [vmem:[%s5 + $0x538] sm:$0xff]
    %v6863 = vld [vmem:[%s5 + $0x540] sm:$0xff]
    %v6864 = vld [vmem:[%s5 + $0x548] sm:$0xff]
    %v6865 = vld [vmem:[%s5 + $0x550] sm:$0xff]
    %v6866 = vld [vmem:[%s5 + $0x558] sm:$0xff]
    %v6867 = vld [vmem:[%s5 + $0x560] sm:$0xff]
    %v6868 = vld [vmem:[%s5 + $0x568] sm:$0xff]
    %v6869 = vld [vmem:[%s5 + $0x570] sm:$0xff]
    %v6870 = vld [vmem:[%s5 + $0x578] sm:$0xff]
    %v6871 = vld [vmem:[%s5 + $0x580] sm:$0xff]
    %v6872 = vld [vmem:[%s5 + $0x588] sm:$0xff]
    %v6873 = vld [vmem:[%s5 + $0x590] sm:$0xff]
    %v6874 = vld [vmem:[%s5 + $0x598] sm:$0xff]
    %v6875 = vld [vmem:[%s5 + $0x5a0] sm:$0xff]
    %v6876 = vld [vmem:[%s5 + $0x5a8] sm:$0xff]
    %v6877 = vld [vmem:[%s5 + $0x5b0] sm:$0xff]
    %v6878 = vld [vmem:[%s5 + $0x5b8] sm:$0xff]
    %v6879 = vld [vmem:[%s5 + $0x5c0] sm:$0xff]
    %v6880 = vld [vmem:[%s5 + $0x5c8] sm:$0xff]
    %v6881 = vld [vmem:[%s5 + $0x5d0] sm:$0xff]
    %v6882 = vld [vmem:[%s5 + $0x5d8] sm:$0xff]
    %v6883 = vld [vmem:[%s5 + $0x5e0] sm:$0xff]
    %v6884 = vld [vmem:[%s5 + $0x5e8] sm:$0xff]
    %v6885 = vld [vmem:[%s5 + $0x5f0] sm:$0xff]
    %v6886 = vld [vmem:[%s5 + $0x5f8] sm:$0xff]
    %v6887 = vld [vmem:[%s5 + $0x600] sm:$0xff]
    %v6888 = vld [vmem:[%s5 + $0x608] sm:$0xff]
    %v6889 = vld [vmem:[%s5 + $0x610] sm:$0xff]
    %v6890 = vld [vmem:[%s5 + $0x618] sm:$0xff]
    %v6891 = vld [vmem:[%s5 + $0x620] sm:$0xff]
    %v6892 = vld [vmem:[%s5 + $0x628] sm:$0xff]
    %v6893 = vld [vmem:[%s5 + $0x630] sm:$0xff]
    %v6894 = vld [vmem:[%s5 + $0x638] sm:$0xff]
    %v6895 = vld [vmem:[%s5 + $0x640] sm:$0xff]
    %v6896 = vld [vmem:[%s5 + $0x648] sm:$0xff]
    %v6897 = vld [vmem:[%s5 + $0x650] sm:$0xff]
    %v6898 = vld [vmem:[%s5 + $0x658] sm:$0xff]
    %v6899 = vld [vmem:[%s5 + $0x660] sm:$0xff]
    %v6900 = vld [vmem:[%s5 + $0x668] sm:$0xff]
    %v6901 = vld [vmem:[%s5 + $0x670] sm:$0xff]
    %v6902 = vld [vmem:[%s5 + $0x678] sm:$0xff]
    %v6903 = vld [vmem:[%s5 + $0x680] sm:$0xff]
    %v6904 = vld [vmem:[%s5 + $0x688] sm:$0xff]
    %v6905 = vld [vmem:[%s5 + $0x690] sm:$0xff]
    %v6906 = vld [vmem:[%s5 + $0x698] sm:$0xff]
    %v6907 = vld [vmem:[%s5 + $0x6a0] sm:$0xff]
    %v6908 = vld [vmem:[%s5 + $0x6a8] sm:$0xff]
    %v6909 = vld [vmem:[%s5 + $0x6b0] sm:$0xff]
    %v6910 = vld [vmem:[%s5 + $0x6b8] sm:$0xff]
    %v6911 = vld [vmem:[%s5 + $0x6c0] sm:$0xff]
    %v6912 = vld [vmem:[%s5 + $0x6c8] sm:$0xff]
    %v6913 = vld [vmem:[%s5 + $0x6d0] sm:$0xff]
    %v6914 = vld [vmem:[%s5 + $0x6d8] sm:$0xff]
    %v6915 = vld [vmem:[%s5 + $0x6e0] sm:$0xff]
    %v6916 = vld [vmem:[%s5 + $0x6e8] sm:$0xff]
    %v6917 = vld [vmem:[%s5 + $0x6f0] sm:$0xff]
    %v6918 = vld [vmem:[%s5 + $0x6f8] sm:$0xff]
    %v6919 = vld [vmem:[%s5 + $0x700] sm:$0xff]
    %v6920 = vld [vmem:[%s5 + $0x708] sm:$0xff]
    %v6921 = vld [vmem:[%s5 + $0x710] sm:$0xff]
    %v6922 = vld [vmem:[%s5 + $0x718] sm:$0xff]
    %v6923 = vld [vmem:[%s5 + $0x720] sm:$0xff]
    %v6924 = vld [vmem:[%s5 + $0x728] sm:$0xff]
    %v6925 = vld [vmem:[%s5 + $0x730] sm:$0xff]
    %v6926 = vld [vmem:[%s5 + $0x738] sm:$0xff]
    %v6927 = vld [vmem:[%s5 + $0x740] sm:$0xff]
    %v6928 = vld [vmem:[%s5 + $0x748] sm:$0xff]
    %v6929 = vld [vmem:[%s5 + $0x750] sm:$0xff]
    %v6930 = vld [vmem:[%s5 + $0x758] sm:$0xff]
    %v6931 = vld [vmem:[%s5 + $0x760] sm:$0xff]
    %v6932 = vld [vmem:[%s5 + $0x768] sm:$0xff]
    %v6933 = vld [vmem:[%s5 + $0x770] sm:$0xff]
    %v6934 = vld [vmem:[%s5 + $0x778] sm:$0xff]
    %v6935 = vld [vmem:[%s5 + $0x780] sm:$0xff]
    %v6936 = vld [vmem:[%s5 + $0x788] sm:$0xff]
    %v6937 = vld [vmem:[%s5 + $0x790] sm:$0xff]
    %v6938 = vld [vmem:[%s5 + $0x798] sm:$0xff]
    %v6939 = vld [vmem:[%s5 + $0x7a0] sm:$0xff]
    %v6940 = vld [vmem:[%s5 + $0x7a8] sm:$0xff]
    %v6941 = vld [vmem:[%s5 + $0x7b0] sm:$0xff]
    %v6942 = vld [vmem:[%s5 + $0x7b8] sm:$0xff]
    %v6943 = vld [vmem:[%s5 + $0x7c0] sm:$0xff]
    %v6944 = vld [vmem:[%s5 + $0x7c8] sm:$0xff]
    %v6945 = vld [vmem:[%s5 + $0x7d0] sm:$0xff]
    %v6946 = vld [vmem:[%s5 + $0x7d8] sm:$0xff]
    %v6947 = vld [vmem:[%s5 + $0x7e0] sm:$0xff]
    %v6948 = vld [vmem:[%s5 + $0x7e8] sm:$0xff]
    %v6949 = vld [vmem:[%s5 + $0x7f0] sm:$0xff]
    %v6950 = vld [vmem:[%s5 + $0x7f8] sm:$0xff]
    %v6951 = vld [vmem:[%s6] sm:$0xff]
    %v6953 = vlaneseq
    %v6954 = vshrl.u32 %v6953, 7
    %v6955 = vsub.s32 0, %v6954
    %v6956 = vrot.slane %v6951, %v6955
    %v6957 = vlaneseq
    %v6958 = vshrl.u32 %v6957, 7
    %v6959 = vsub.s32 1, %v6958
    %v6960 = vrot.slane %v6951, %v6959
    %v6961 = vlaneseq
    %v6962 = vshrl.u32 %v6961, 7
    %v6963 = vsub.s32 2, %v6962
    %v6964 = vrot.slane %v6951, %v6963
    %v6965 = vlaneseq
    %v6966 = vshrl.u32 %v6965, 7
    %v6967 = vsub.s32 3, %v6966
    %v6968 = vrot.slane %v6951, %v6967
    %v6969 = vlaneseq
    %v6970 = vshrl.u32 %v6969, 7
    %v6971 = vsub.s32 4, %v6970
    %v6972 = vrot.slane %v6951, %v6971
    %v6973 = vlaneseq
    %v6974 = vshrl.u32 %v6973, 7
    %v6975 = vsub.s32 5, %v6974
    %v6976 = vrot.slane %v6951, %v6975
    %v6977 = vlaneseq
    %v6978 = vshrl.u32 %v6977, 7
    %v6979 = vsub.s32 6, %v6978
    %v6980 = vrot.slane %v6951, %v6979
    %v6981 = vlaneseq
    %v6982 = vshrl.u32 %v6981, 7
    %v6983 = vsub.s32 7, %v6982
    %v6984 = vrot.slane %v6951, %v6983
    %6993 = vmatprep.subr.mxu0 %v6696
    %6994 = vmatpush1.msra.mxu0 %v6695
    %6995 = vmatprep.subr.mxu0 %v6704
    %6996 = vmatpush1.msra.mxu0 %v6703
    %6997 = vmatprep.subr.mxu0 %v6712
    %6998 = vmatpush1.msra.mxu0 %v6711
    %6999 = vmatprep.subr.mxu0 %v6720
    %7000 = vmatpush1.msra.mxu0 %v6719
    %7001 = vmatprep.subr.mxu0 %v6728
    %7002 = vmatpush1.msra.mxu0 %v6727
    %7003 = vmatprep.subr.mxu0 %v6736
    %7004 = vmatpush1.msra.mxu0 %v6735
    %7005 = vmatprep.subr.mxu0 %v6744
    %7006 = vmatpush1.msra.mxu0 %v6743
    %7007 = vmatprep.subr.mxu0 %v6752
    %7008 = vmatpush1.msra.mxu0 %v6751
    %7009 = vmatprep.subr.mxu0 %v6760
    %7010 = vmatpush1.msra.mxu0 %v6759
    %7011 = vmatprep.subr.mxu0 %v6768
    %7012 = vmatpush1.msra.mxu0 %v6767
    %7013 = vmatprep.subr.mxu0 %v6776
    %7014 = vmatpush1.msra.mxu0 %v6775
    %7015 = vmatprep.subr.mxu0 %v6784
    %7016 = vmatpush1.msra.mxu0 %v6783
    %7017 = vmatprep.subr.mxu0 %v6792
    %7018 = vmatpush1.msra.mxu0 %v6791
    %7019 = vmatprep.subr.mxu0 %v6800
    %7020 = vmatpush1.msra.mxu0 %v6799
    %7021 = vmatprep.subr.mxu0 %v6808
    %7022 = vmatpush1.msra.mxu0 %v6807
    %7023 = vmatprep.subr.mxu0 %v6816
    %7024 = vmatpush1.msra.mxu0 %v6815
    %7025 = vmatprep.subr.mxu0 %v6824
    %7026 = vmatpush1.msra.mxu0 %v6823
    %7027 = vmatprep.subr.mxu0 %v6832
    %7028 = vmatpush1.msra.mxu0 %v6831
    %7029 = vmatprep.subr.mxu0 %v6840
    %7030 = vmatpush1.msra.mxu0 %v6839
    %7031 = vmatprep.subr.mxu0 %v6848
    %7032 = vmatpush1.msra.mxu0 %v6847
    %7033 = vmatprep.subr.mxu0 %v6856
    %7034 = vmatpush1.msra.mxu0 %v6855
    %7035 = vmatprep.subr.mxu0 %v6864
    %7036 = vmatpush1.msra.mxu0 %v6863
    %7037 = vmatprep.subr.mxu0 %v6872
    %7038 = vmatpush1.msra.mxu0 %v6871
    %7039 = vmatprep.subr.mxu0 %v6880
    %7040 = vmatpush1.msra.mxu0 %v6879
    %7041 = vmatprep.subr.mxu0 %v6888
    %7042 = vmatpush1.msra.mxu0 %v6887
    %7043 = vmatprep.subr.mxu0 %v6896
    %7044 = vmatpush1.msra.mxu0 %v6895
    %7045 = vmatprep.subr.mxu0 %v6904
    %7046 = vmatpush1.msra.mxu0 %v6903
    %7047 = vmatprep.subr.mxu0 %v6912
    %7048 = vmatpush1.msra.mxu0 %v6911
    %7049 = vmatprep.subr.mxu0 %v6920
    %7050 = vmatpush1.msra.mxu0 %v6919
    %7051 = vmatprep.subr.mxu0 %v6928
    %7052 = vmatpush1.msra.mxu0 %v6927
    %7053 = vmatprep.subr.mxu0 %v6936
    %7054 = vmatpush1.msra.mxu0 %v6935
    %7055 = vmatprep.subr.mxu0 %v6944
    %7056 = vmatpush1.msra.mxu0 %v6943
    %7057 = vmatprep.mubr.f32.mxu0 %v6694
    %7058 = vmatmul.mubr.f32.gmra.mrb[0].mxu0 %v6693
    %v7059 = vpop.f32.mrb[0].mxu0
    %v7060 = vadd.f32 %v6956, %v7059
    %v7061 = vpop.f32.mrb[0].mxu0
    %v7062 = vadd.f32 %v6960, %v7061
    %7063 = vdwg.mxu0
    %7064 = vmatprep.subr.mxu0 %v6698
    %7065 = vmatpush1.msra.mxu0 %v6697
    %7066 = vmatprep.subr.mxu0 %v6706
    %7067 = vmatpush1.msra.mxu0 %v6705
    %7068 = vmatprep.subr.mxu0 %v6714
    %7069 = vmatpush1.msra.mxu0 %v6713
    %7070 = vmatprep.subr.mxu0 %v6722
    %7071 = vmatpush1.msra.mxu0 %v6721
    %7072 = vmatprep.subr.mxu0 %v6730
    %7073 = vmatpush1.msra.mxu0 %v6729
    %7074 = vmatprep.subr.mxu0 %v6738
    %7075 = vmatpush1.msra.mxu0 %v6737
    %7076 = vmatprep.subr.mxu0 %v6746
    %7077 = vmatpush1.msra.mxu0 %v6745
    %7078 = vmatprep.subr.mxu0 %v6754
    %7079 = vmatpush1.msra.mxu0 %v6753
    %7080 = vmatprep.subr.mxu0 %v6762
    %7081 = vmatpush1.msra.mxu0 %v6761
    %7082 = vmatprep.subr.mxu0 %v6770
    %7083 = vmatpush1.msra.mxu0 %v6769
    %7084 = vmatprep.subr.mxu0 %v6778
    %7085 = vmatpush1.msra.mxu0 %v6777
    %7086 = vmatprep.subr.mxu0 %v6786
    %7087 = vmatpush1.msra.mxu0 %v6785
    %7088 = vmatprep.subr.mxu0 %v6794
    %7089 = vmatpush1.msra.mxu0 %v6793
    %7090 = vmatprep.subr.mxu0 %v6802
    %7091 = vmatpush1.msra.mxu0 %v6801
    %7092 = vmatprep.subr.mxu0 %v6810
    %7093 = vmatpush1.msra.mxu0 %v6809
    %7094 = vmatprep.subr.mxu0 %v6818
    %7095 = vmatpush1.msra.mxu0 %v6817
    %7096 = vmatprep.subr.mxu0 %v6826
    %7097 = vmatpush1.msra.mxu0 %v6825
    %7098 = vmatprep.subr.mxu0 %v6834
    %7099 = vmatpush1.msra.mxu0 %v6833
    %7100 = vmatprep.subr.mxu0 %v6842
    %7101 = vmatpush1.msra.mxu0 %v6841
    %7102 = vmatprep.subr.mxu0 %v6850
    %7103 = vmatpush1.msra.mxu0 %v6849
    %7104 = vmatprep.subr.mxu0 %v6858
    %7105 = vmatpush1.msra.mxu0 %v6857
    %7106 = vmatprep.subr.mxu0 %v6866
    %7107 = vmatpush1.msra.mxu0 %v6865
    %7108 = vmatprep.subr.mxu0 %v6874
    %7109 = vmatpush1.msra.mxu0 %v6873
    %7110 = vmatprep.subr.mxu0 %v6882
    %7111 = vmatpush1.msra.mxu0 %v6881
    %7112 = vmatprep.subr.mxu0 %v6890
    %7113 = vmatpush1.msra.mxu0 %v6889
    %7114 = vmatprep.subr.mxu0 %v6898
    %7115 = vmatpush1.msra.mxu0 %v6897
    %7116 = vmatprep.subr.mxu0 %v6906
    %7117 = vmatpush1.msra.mxu0 %v6905
    %7118 = vmatprep.subr.mxu0 %v6914
    %7119 = vmatpush1.msra.mxu0 %v6913
    %7120 = vmatprep.subr.mxu0 %v6922
    %7121 = vmatpush1.msra.mxu0 %v6921
    %7122 = vmatprep.subr.mxu0 %v6930
    %7123 = vmatpush1.msra.mxu0 %v6929
    %7124 = vmatprep.subr.mxu0 %v6938
    %7125 = vmatpush1.msra.mxu0 %v6937
    %7126 = vmatprep.subr.mxu0 %v6946
    %7127 = vmatpush1.msra.mxu0 %v6945
    %7128 = vmatprep.mubr.f32.mxu0 %v6694
    %7129 = vmatmul.mubr.f32.gmra.mrb[0].mxu0 %v6693
    %v7130 = vpop.f32.mrb[0].mxu0
    %v7131 = vadd.f32 %v6964, %v7130
    %v7132 = vpop.f32.mrb[0].mxu0
    %v7133 = vadd.f32 %v6968, %v7132
    %7134 = vdwg.mxu0
    %7135 = vmatprep.subr.mxu0 %v6700
    %7136 = vmatpush1.msra.mxu0 %v6699
    %7137 = vmatprep.subr.mxu0 %v6708
    %7138 = vmatpush1.msra.mxu0 %v6707
    %7139 = vmatprep.subr.mxu0 %v6716
    %7140 = vmatpush1.msra.mxu0 %v6715
    %7141 = vmatprep.subr.mxu0 %v6724
    %7142 = vmatpush1.msra.mxu0 %v6723
    %7143 = vmatprep.subr.mxu0 %v6732
    %7144 = vmatpush1.msra.mxu0 %v6731
    %7145 = vmatprep.subr.mxu0 %v6740
    %7146 = vmatpush1.msra.mxu0 %v6739
    %7147 = vmatprep.subr.mxu0 %v6748
    %7148 = vmatpush1.msra.mxu0 %v6747
    %7149 = vmatprep.subr.mxu0 %v6756
    %7150 = vmatpush1.msra.mxu0 %v6755
    %7151 = vmatprep.subr.mxu0 %v6764
    %7152 = vmatpush1.msra.mxu0 %v6763
    %7153 = vmatprep.subr.mxu0 %v6772
    %7154 = vmatpush1.msra.mxu0 %v6771
    %7155 = vmatprep.subr.mxu0 %v6780
    %7156 = vmatpush1.msra.mxu0 %v6779
    %7157 = vmatprep.subr.mxu0 %v6788
    %7158 = vmatpush1.msra.mxu0 %v6787
    %7159 = vmatprep.subr.mxu0 %v6796
    %7160 = vmatpush1.msra.mxu0 %v6795
    %7161 = vmatprep.subr.mxu0 %v6804
    %7162 = vmatpush1.msra.mxu0 %v6803
    %7163 = vmatprep.subr.mxu0 %v6812
    %7164 = vmatpush1.msra.mxu0 %v6811
    %7165 = vmatprep.subr.mxu0 %v6820
    %7166 = vmatpush1.msra.mxu0 %v6819
    %7167 = vmatprep.subr.mxu0 %v6828
    %7168 = vmatpush1.msra.mxu0 %v6827
    %7169 = vmatprep.subr.mxu0 %v6836
    %7170 = vmatpush1.msra.mxu0 %v6835
    %7171 = vmatprep.subr.mxu0 %v6844
    %7172 = vmatpush1.msra.mxu0 %v6843
    %7173 = vmatprep.subr.mxu0 %v6852
    %7174 = vmatpush1.msra.mxu0 %v6851
    %7175 = vmatprep.subr.mxu0 %v6860
    %7176 = vmatpush1.msra.mxu0 %v6859
    %7177 = vmatprep.subr.mxu0 %v6868
    %7178 = vmatpush1.msra.mxu0 %v6867
    %7179 = vmatprep.subr.mxu0 %v6876
    %7180 = vmatpush1.msra.mxu0 %v6875
    %7181 = vmatprep.subr.mxu0 %v6884
    %7182 = vmatpush1.msra.mxu0 %v6883
    %7183 = vmatprep.subr.mxu0 %v6892
    %7184 = vmatpush1.msra.mxu0 %v6891
    %7185 = vmatprep.subr.mxu0 %v6900
    %7186 = vmatpush1.msra.mxu0 %v6899
    %7187 = vmatprep.subr.mxu0 %v6908
    %7188 = vmatpush1.msra.mxu0 %v6907
    %7189 = vmatprep.subr.mxu0 %v6916
    %7190 = vmatpush1.msra.mxu0 %v6915
    %7191 = vmatprep.subr.mxu0 %v6924
    %7192 = vmatpush1.msra.mxu0 %v6923
    %7193 = vmatprep.subr.mxu0 %v6932
    %7194 = vmatpush1.msra.mxu0 %v6931
    %7195 = vmatprep.subr.mxu0 %v6940
    %7196 = vmatpush1.msra.mxu0 %v6939
    %7197 = vmatprep.subr.mxu0 %v6948
    %7198 = vmatpush1.msra.mxu0 %v6947
    %7199 = vmatprep.mubr.f32.mxu0 %v6694
    %7200 = vmatmul.mubr.f32.gmra.mrb[0].mxu0 %v6693
    %v7201 = vpop.f32.mrb[0].mxu0
    %v7202 = vadd.f32 %v6972, %v7201
    %v7203 = vpop.f32.mrb[0].mxu0
    %v7204 = vadd.f32 %v6976, %v7203
    %7205 = vdwg.mxu0
    %7206 = vmatprep.subr.mxu0 %v6702
    %7207 = vmatpush1.msra.mxu0 %v6701
    %7208 = vmatprep.subr.mxu0 %v6710
    %7209 = vmatpush1.msra.mxu0 %v6709
    %7210 = vmatprep.subr.mxu0 %v6718
    %7211 = vmatpush1.msra.mxu0 %v6717
    %7212 = vmatprep.subr.mxu0 %v6726
    %7213 = vmatpush1.msra.mxu0 %v6725
    %7214 = vmatprep.subr.mxu0 %v6734
    %7215 = vmatpush1.msra.mxu0 %v6733
    %7216 = vmatprep.subr.mxu0 %v6742
    %7217 = vmatpush1.msra.mxu0 %v6741
    %7218 = vmatprep.subr.mxu0 %v6750
    %7219 = vmatpush1.msra.mxu0 %v6749
    %7220 = vmatprep.subr.mxu0 %v6758
    %7221 = vmatpush1.msra.mxu0 %v6757
    %7222 = vmatprep.subr.mxu0 %v6766
    %7223 = vmatpush1.msra.mxu0 %v6765
    %7224 = vmatprep.subr.mxu0 %v6774
    %7225 = vmatpush1.msra.mxu0 %v6773
    %7226 = vmatprep.subr.mxu0 %v6782
    %7227 = vmatpush1.msra.mxu0 %v6781
    %7228 = vmatprep.subr.mxu0 %v6790
    %7229 = vmatpush1.msra.mxu0 %v6789
    %7230 = vmatprep.subr.mxu0 %v6798
    %7231 = vmatpush1.msra.mxu0 %v6797
    %7232 = vmatprep.subr.mxu0 %v6806
    %7233 = vmatpush1.msra.mxu0 %v6805
    %7234 = vmatprep.subr.mxu0 %v6814
    %7235 = vmatpush1.msra.mxu0 %v6813
    %7236 = vmatprep.subr.mxu0 %v6822
    %7237 = vmatpush1.msra.mxu0 %v6821
    %7238 = vmatprep.subr.mxu0 %v6830
    %7239 = vmatpush1.msra.mxu0 %v6829
    %7240 = vmatprep.subr.mxu0 %v6838
    %7241 = vmatpush1.msra.mxu0 %v6837
    %7242 = vmatprep.subr.mxu0 %v6846
    %7243 = vmatpush1.msra.mxu0 %v6845
    %7244 = vmatprep.subr.mxu0 %v6854
    %7245 = vmatpush1.msra.mxu0 %v6853
    %7246 = vmatprep.subr.mxu0 %v6862
    %7247 = vmatpush1.msra.mxu0 %v6861
    %7248 = vmatprep.subr.mxu0 %v6870
    %7249 = vmatpush1.msra.mxu0 %v6869
    %7250 = vmatprep.subr.mxu0 %v6878
    %7251 = vmatpush1.msra.mxu0 %v6877
    %7252 = vmatprep.subr.mxu0 %v6886
    %7253 = vmatpush1.msra.mxu0 %v6885
    %7254 = vmatprep.subr.mxu0 %v6894
    %7255 = vmatpush1.msra.mxu0 %v6893
    %7256 = vmatprep.subr.mxu0 %v6902
    %7257 = vmatpush1.msra.mxu0 %v6901
    %7258 = vmatprep.subr.mxu0 %v6910
    %7259 = vmatpush1.msra.mxu0 %v6909
    %7260 = vmatprep.subr.mxu0 %v6918
    %7261 = vmatpush1.msra.mxu0 %v6917
    %7262 = vmatprep.subr.mxu0 %v6926
    %7263 = vmatpush1.msra.mxu0 %v6925
    %7264 = vmatprep.subr.mxu0 %v6934
    %7265 = vmatpush1.msra.mxu0 %v6933
    %7266 = vmatprep.subr.mxu0 %v6942
    %7267 = vmatpush1.msra.mxu0 %v6941
    %7268 = vmatprep.subr.mxu0 %v6950
    %7269 = vmatpush1.msra.mxu0 %v6949
    %7270 = vmatprep.mubr.f32.mxu0 %v6694
    %7271 = vmatmul.mubr.f32.gmra.mrb[0].mxu0 %v6693
    %v7272 = vpop.f32.mrb[0].mxu0
    %v7273 = vadd.f32 %v6980, %v7272
    %v7274 = vpop.f32.mrb[0].mxu0
    %v7275 = vadd.f32 %v6984, %v7274
    %7276 = vdwg.mxu0
    %v7277 = vmax.f32 %v7060, 0.0
    %v7278 = vmax.f32 %v7062, 0.0
    %v7279 = vmax.f32 %v7131, 0.0
    %v7280 = vmax.f32 %v7133, 0.0
    %v7281 = vmax.f32 %v7202, 0.0
    %v7282 = vmax.f32 %v7204, 0.0
    %v7283 = vmax.f32 %v7273, 0.0
    %v7284 = vmax.f32 %v7275, 0.0
    %v7285 = vld [vmem:[%s7] sm:$0xff]
    %v7286 = vld [vmem:[%s7 + $0x8] sm:$0xff]
    %v7287 = vld [vmem:[%s7 + $0x10] sm:$0xff]
    %v7288 = vld [vmem:[%s7 + $0x18] sm:$0xff]
    %v7289 = vld [vmem:[%s7 + $0x20] sm:$0xff]
    %v7290 = vld [vmem:[%s7 + $0x28] sm:$0xff]
    %v7291 = vld [vmem:[%s7 + $0x30] sm:$0xff]
    %v7292 = vld [vmem:[%s7 + $0x38] sm:$0xff]
    %v7293 = vld [vmem:[%s7 + $0x40] sm:$0xff]
    %v7294 = vld [vmem:[%s7 + $0x48] sm:$0xff]
    %v7295 = vld [vmem:[%s7 + $0x50] sm:$0xff]
    %v7296 = vld [vmem:[%s7 + $0x58] sm:$0xff]
    %v7297 = vld [vmem:[%s7 + $0x60] sm:$0xff]
    %v7298 = vld [vmem:[%s7 + $0x68] sm:$0xff]
    %v7299 = vld [vmem:[%s7 + $0x70] sm:$0xff]
    %v7300 = vld [vmem:[%s7 + $0x78] sm:$0xff]
    %v7301 = vld [vmem:[%s7 + $0x80] sm:$0xff]
    %v7302 = vld [vmem:[%s7 + $0x88] sm:$0xff]
    %v7303 = vld [vmem:[%s7 + $0x90] sm:$0xff]
    %v7304 = vld [vmem:[%s7 + $0x98] sm:$0xff]
    %v7305 = vld [vmem:[%s7 + $0xa0] sm:$0xff]
    %v7306 = vld [vmem:[%s7 + $0xa8] sm:$0xff]
    %v7307 = vld [vmem:[%s7 + $0xb0] sm:$0xff]
    %v7308 = vld [vmem:[%s7 + $0xb8] sm:$0xff]
    %v7309 = vld [vmem:[%s7 + $0xc0] sm:$0xff]
    %v7310 = vld [vmem:[%s7 + $0xc8] sm:$0xff]
    %v7311 = vld [vmem:[%s7 + $0xd0] sm:$0xff]
    %v7312 = vld [vmem:[%s7 + $0xd8] sm:$0xff]
    %v7313 = vld [vmem:[%s7 + $0xe0] sm:$0xff]
    %v7314 = vld [vmem:[%s7 + $0xe8] sm:$0xff]
    %v7315 = vld [vmem:[%s7 + $0xf0] sm:$0xff]
    %v7316 = vld [vmem:[%s7 + $0xf8] sm:$0xff]
    %v7317 = vld [vmem:[%s7 + $0x100] sm:$0xff]
    %v7318 = vld [vmem:[%s7 + $0x108] sm:$0xff]
    %v7319 = vld [vmem:[%s7 + $0x110] sm:$0xff]
    %v7320 = vld [vmem:[%s7 + $0x118] sm:$0xff]
    %v7321 = vld [vmem:[%s7 + $0x120] sm:$0xff]
    %v7322 = vld [vmem:[%s7 + $0x128] sm:$0xff]
    %v7323 = vld [vmem:[%s7 + $0x130] sm:$0xff]
    %v7324 = vld [vmem:[%s7 + $0x138] sm:$0xff]
    %v7325 = vld [vmem:[%s7 + $0x140] sm:$0xff]
    %v7326 = vld [vmem:[%s7 + $0x148] sm:$0xff]
    %v7327 = vld [vmem:[%s7 + $0x150] sm:$0xff]
    %v7328 = vld [vmem:[%s7 + $0x158] sm:$0xff]
    %v7329 = vld [vmem:[%s7 + $0x160] sm:$0xff]
    %v7330 = vld [vmem:[%s7 + $0x168] sm:$0xff]
    %v7331 = vld [vmem:[%s7 + $0x170] sm:$0xff]
    %v7332 = vld [vmem:[%s7 + $0x178] sm:$0xff]
    %v7333 = vld [vmem:[%s7 + $0x180] sm:$0xff]
    %v7334 = vld [vmem:[%s7 + $0x188] sm:$0xff]
    %v7335 = vld [vmem:[%s7 + $0x190] sm:$0xff]
    %v7336 = vld [vmem:[%s7 + $0x198] sm:$0xff]
    %v7337 = vld [vmem:[%s7 + $0x1a0] sm:$0xff]
    %v7338 = vld [vmem:[%s7 + $0x1a8] sm:$0xff]
    %v7339 = vld [vmem:[%s7 + $0x1b0] sm:$0xff]
    %v7340 = vld [vmem:[%s7 + $0x1b8] sm:$0xff]
    %v7341 = vld [vmem:[%s7 + $0x1c0] sm:$0xff]
    %v7342 = vld [vmem:[%s7 + $0x1c8] sm:$0xff]
    %v7343 = vld [vmem:[%s7 + $0x1d0] sm:$0xff]
    %v7344 = vld [vmem:[%s7 + $0x1d8] sm:$0xff]
    %v7345 = vld [vmem:[%s7 + $0x1e0] sm:$0xff]
    %v7346 = vld [vmem:[%s7 + $0x1e8] sm:$0xff]
    %v7347 = vld [vmem:[%s7 + $0x1f0] sm:$0xff]
    %v7348 = vld [vmem:[%s7 + $0x1f8] sm:$0xff]
    %v7349 = vld [vmem:[%s7 + $0x200] sm:$0xff]
    %v7350 = vld [vmem:[%s7 + $0x208] sm:$0xff]
    %v7351 = vld [vmem:[%s7 + $0x210] sm:$0xff]
    %v7352 = vld [vmem:[%s7 + $0x218] sm:$0xff]
    %v7353 = vld [vmem:[%s7 + $0x220] sm:$0xff]
    %v7354 = vld [vmem:[%s7 + $0x228] sm:$0xff]
    %v7355 = vld [vmem:[%s7 + $0x230] sm:$0xff]
    %v7356 = vld [vmem:[%s7 + $0x238] sm:$0xff]
    %v7357 = vld [vmem:[%s7 + $0x240] sm:$0xff]
    %v7358 = vld [vmem:[%s7 + $0x248] sm:$0xff]
    %v7359 = vld [vmem:[%s7 + $0x250] sm:$0xff]
    %v7360 = vld [vmem:[%s7 + $0x258] sm:$0xff]
    %v7361 = vld [vmem:[%s7 + $0x260] sm:$0xff]
    %v7362 = vld [vmem:[%s7 + $0x268] sm:$0xff]
    %v7363 = vld [vmem:[%s7 + $0x270] sm:$0xff]
    %v7364 = vld [vmem:[%s7 + $0x278] sm:$0xff]
    %v7365 = vld [vmem:[%s7 + $0x280] sm:$0xff]
    %v7366 = vld [vmem:[%s7 + $0x288] sm:$0xff]
    %v7367 = vld [vmem:[%s7 + $0x290] sm:$0xff]
    %v7368 = vld [vmem:[%s7 + $0x298] sm:$0xff]
    %v7369 = vld [vmem:[%s7 + $0x2a0] sm:$0xff]
    %v7370 = vld [vmem:[%s7 + $0x2a8] sm:$0xff]
    %v7371 = vld [vmem:[%s7 + $0x2b0] sm:$0xff]
    %v7372 = vld [vmem:[%s7 + $0x2b8] sm:$0xff]
    %v7373 = vld [vmem:[%s7 + $0x2c0] sm:$0xff]
    %v7374 = vld [vmem:[%s7 + $0x2c8] sm:$0xff]
    %v7375 = vld [vmem:[%s7 + $0x2d0] sm:$0xff]
    %v7376 = vld [vmem:[%s7 + $0x2d8] sm:$0xff]
    %v7377 = vld [vmem:[%s7 + $0x2e0] sm:$0xff]
    %v7378 = vld [vmem:[%s7 + $0x2e8] sm:$0xff]
    %v7379 = vld [vmem:[%s7 + $0x2f0] sm:$0xff]
    %v7380 = vld [vmem:[%s7 + $0x2f8] sm:$0xff]
    %v7381 = vld [vmem:[%s7 + $0x300] sm:$0xff]
    %v7382 = vld [vmem:[%s7 + $0x308] sm:$0xff]
    %v7383 = vld [vmem:[%s7 + $0x310] sm:$0xff]
    %v7384 = vld [vmem:[%s7 + $0x318] sm:$0xff]
    %v7385 = vld [vmem:[%s7 + $0x320] sm:$0xff]
    %v7386 = vld [vmem:[%s7 + $0x328] sm:$0xff]
    %v7387 = vld [vmem:[%s7 + $0x330] sm:$0xff]
    %v7388 = vld [vmem:[%s7 + $0x338] sm:$0xff]
    %v7389 = vld [vmem:[%s7 + $0x340] sm:$0xff]
    %v7390 = vld [vmem:[%s7 + $0x348] sm:$0xff]
    %v7391 = vld [vmem:[%s7 + $0x350] sm:$0xff]
    %v7392 = vld [vmem:[%s7 + $0x358] sm:$0xff]
    %v7393 = vld [vmem:[%s7 + $0x360] sm:$0xff]
    %v7394 = vld [vmem:[%s7 + $0x368] sm:$0xff]
    %v7395 = vld [vmem:[%s7 + $0x370] sm:$0xff]
    %v7396 = vld [vmem:[%s7 + $0x378] sm:$0xff]
    %v7397 = vld [vmem:[%s7 + $0x380] sm:$0xff]
    %v7398 = vld [vmem:[%s7 + $0x388] sm:$0xff]
    %v7399 = vld [vmem:[%s7 + $0x390] sm:$0xff]
    %v7400 = vld [vmem:[%s7 + $0x398] sm:$0xff]
    %v7401 = vld [vmem:[%s7 + $0x3a0] sm:$0xff]
    %v7402 = vld [vmem:[%s7 + $0x3a8] sm:$0xff]
    %v7403 = vld [vmem:[%s7 + $0x3b0] sm:$0xff]
    %v7404 = vld [vmem:[%s7 + $0x3b8] sm:$0xff]
    %v7405 = vld [vmem:[%s7 + $0x3c0] sm:$0xff]
    %v7406 = vld [vmem:[%s7 + $0x3c8] sm:$0xff]
    %v7407 = vld [vmem:[%s7 + $0x3d0] sm:$0xff]
    %v7408 = vld [vmem:[%s7 + $0x3d8] sm:$0xff]
    %v7409 = vld [vmem:[%s7 + $0x3e0] sm:$0xff]
    %v7410 = vld [vmem:[%s7 + $0x3e8] sm:$0xff]
    %v7411 = vld [vmem:[%s7 + $0x3f0] sm:$0xff]
    %v7412 = vld [vmem:[%s7 + $0x3f8] sm:$0xff]
    %v7413 = vld [vmem:[%s8] sm:$0x1]
    %v7415 = vlaneseq
    %v7416 = vshrl.u32 %v7415, 7
    %v7417 = vsub.s32 0, %v7416
    %v7418 = vrot.slane %v7413, %v7417
    %7420 = vmatprep.subr.mxu0 0.0
    %7421 = vmatpush1.msra.mxu0 %v7285
    %7422 = vmatprep.subr.mxu0 0.0
    %7423 = vmatpush1.msra.mxu0 %v7286
    %7424 = vmatprep.subr.mxu0 0.0
    %7425 = vmatpush1.msra.mxu0 %v7287
    %7426 = vmatprep.subr.mxu0 0.0
    %7427 = vmatpush1.msra.mxu0 %v7288
    %7428 = vmatprep.subr.mxu0 0.0
    %7429 = vmatpush1.msra.mxu0 %v7289
    %7430 = vmatprep.subr.mxu0 0.0
    %7431 = vmatpush1.msra.mxu0 %v7290
    %7432 = vmatprep.subr.mxu0 0.0
    %7433 = vmatpush1.msra.mxu0 %v7291
    %7434 = vmatprep.subr.mxu0 0.0
    %7435 = vmatpush1.msra.mxu0 %v7292
    %7436 = vmatprep.subr.mxu0 0.0
    %7437 = vmatpush1.msra.mxu0 %v7293
    %7438 = vmatprep.subr.mxu0 0.0
    %7439 = vmatpush1.msra.mxu0 %v7294
    %7440 = vmatprep.subr.mxu0 0.0
    %7441 = vmatpush1.msra.mxu0 %v7295
    %7442 = vmatprep.subr.mxu0 0.0
    %7443 = vmatpush1.msra.mxu0 %v7296
    %7444 = vmatprep.subr.mxu0 0.0
    %7445 = vmatpush1.msra.mxu0 %v7297
    %7446 = vmatprep.subr.mxu0 0.0
    %7447 = vmatpush1.msra.mxu0 %v7298
    %7448 = vmatprep.subr.mxu0 0.0
    %7449 = vmatpush1.msra.mxu0 %v7299
    %7450 = vmatprep.subr.mxu0 0.0
    %7451 = vmatpush1.msra.mxu0 %v7300
    %7452 = vmatprep.subr.mxu0 0.0
    %7453 = vmatpush1.msra.mxu0 %v7301
    %7454 = vmatprep.subr.mxu0 0.0
    %7455 = vmatpush1.msra.mxu0 %v7302
    %7456 = vmatprep.subr.mxu0 0.0
    %7457 = vmatpush1.msra.mxu0 %v7303
    %7458 = vmatprep.subr.mxu0 0.0
    %7459 = vmatpush1.msra.mxu0 %v7304
    %7460 = vmatprep.subr.mxu0 0.0
    %7461 = vmatpush1.msra.mxu0 %v7305
    %7462 = vmatprep.subr.mxu0 0.0
    %7463 = vmatpush1.msra.mxu0 %v7306
    %7464 = vmatprep.subr.mxu0 0.0
    %7465 = vmatpush1.msra.mxu0 %v7307
    %7466 = vmatprep.subr.mxu0 0.0
    %7467 = vmatpush1.msra.mxu0 %v7308
    %7468 = vmatprep.subr.mxu0 0.0
    %7469 = vmatpush1.msra.mxu0 %v7309
    %7470 = vmatprep.subr.mxu0 0.0
    %7471 = vmatpush1.msra.mxu0 %v7310
    %7472 = vmatprep.subr.mxu0 0.0
    %7473 = vmatpush1.msra.mxu0 %v7311
    %7474 = vmatprep.subr.mxu0 0.0
    %7475 = vmatpush1.msra.mxu0 %v7312
    %7476 = vmatprep.subr.mxu0 0.0
    %7477 = vmatpush1.msra.mxu0 %v7313
    %7478 = vmatprep.subr.mxu0 0.0
    %7479 = vmatpush1.msra.mxu0 %v7314
    %7480 = vmatprep.subr.mxu0 0.0
    %7481 = vmatpush1.msra.mxu0 %v7315
    %7482 = vmatprep.subr.mxu0 0.0
    %7483 = vmatpush1.msra.mxu0 %v7316
    %7484 = vmatprep.mubr.f32.mxu0 %v7278
    %7485 = vmatmul.mubr.f32.gmra.mrb[0].mxu0 %v7277
    %v7486 = vpop.f32.mrb[0].mxu0
    %v7487 = vadd.f32 %v7418, %v7486
    %v7488 = vpop.f32.mrb[0].mxu0
    %7489 = vdwg.mxu0
    %7490 = vmatprep.subr.mxu0 0.0
    %7491 = vmatpush1.msra.mxu0 %v7317
    %7492 = vmatprep.subr.mxu0 0.0
    %7493 = vmatpush1.msra.mxu0 %v7318
    %7494 = vmatprep.subr.mxu0 0.0
    %7495 = vmatpush1.msra.mxu0 %v7319
    %7496 = vmatprep.subr.mxu0 0.0
    %7497 = vmatpush1.msra.mxu0 %v7320
    %7498 = vmatprep.subr.mxu0 0.0
    %7499 = vmatpush1.msra.mxu0 %v7321
    %7500 = vmatprep.subr.mxu0 0.0
    %7501 = vmatpush1.msra.mxu0 %v7322
    %7502 = vmatprep.subr.mxu0 0.0
    %7503 = vmatpush1.msra.mxu0 %v7323
    %7504 = vmatprep.subr.mxu0 0.0
    %7505 = vmatpush1.msra.mxu0 %v7324
    %7506 = vmatprep.subr.mxu0 0.0
    %7507 = vmatpush1.msra.mxu0 %v7325
    %7508 = vmatprep.subr.mxu0 0.0
    %7509 = vmatpush1.msra.mxu0 %v7326
    %7510 = vmatprep.subr.mxu0 0.0
    %7511 = vmatpush1.msra.mxu0 %v7327
    %7512 = vmatprep.subr.mxu0 0.0
    %7513 = vmatpush1.msra.mxu0 %v7328
    %7514 = vmatprep.subr.mxu0 0.0
    %7515 = vmatpush1.msra.mxu0 %v7329
    %7516 = vmatprep.subr.mxu0 0.0
    %7517 = vmatpush1.msra.mxu0 %v7330
    %7518 = vmatprep.subr.mxu0 0.0
    %7519 = vmatpush1.msra.mxu0 %v7331
    %7520 = vmatprep.subr.mxu0 0.0
    %7521 = vmatpush1.msra.mxu0 %v7332
    %7522 = vmatprep.subr.mxu0 0.0
    %7523 = vmatpush1.msra.mxu0 %v7333
    %7524 = vmatprep.subr.mxu0 0.0
    %7525 = vmatpush1.msra.mxu0 %v7334
    %7526 = vmatprep.subr.mxu0 0.0
    %7527 = vmatpush1.msra.mxu0 %v7335
    %7528 = vmatprep.subr.mxu0 0.0
    %7529 = vmatpush1.msra.mxu0 %v7336
    %7530 = vmatprep.subr.mxu0 0.0
    %7531 = vmatpush1.msra.mxu0 %v7337
    %7532 = vmatprep.subr.mxu0 0.0
    %7533 = vmatpush1.msra.mxu0 %v7338
    %7534 = vmatprep.subr.mxu0 0.0
    %7535 = vmatpush1.msra.mxu0 %v7339
    %7536 = vmatprep.subr.mxu0 0.0
    %7537 = vmatpush1.msra.mxu0 %v7340
    %7538 = vmatprep.subr.mxu0 0.0
    %7539 = vmatpush1.msra.mxu0 %v7341
    %7540 = vmatprep.subr.mxu0 0.0
    %7541 = vmatpush1.msra.mxu0 %v7342
    %7542 = vmatprep.subr.mxu0 0.0
    %7543 = vmatpush1.msra.mxu0 %v7343
    %7544 = vmatprep.subr.mxu0 0.0
    %7545 = vmatpush1.msra.mxu0 %v7344
    %7546 = vmatprep.subr.mxu0 0.0
    %7547 = vmatpush1.msra.mxu0 %v7345
    %7548 = vmatprep.subr.mxu0 0.0
    %7549 = vmatpush1.msra.mxu0 %v7346
    %7550 = vmatprep.subr.mxu0 0.0
    %7551 = vmatpush1.msra.mxu0 %v7347
    %7552 = vmatprep.subr.mxu0 0.0
    %7553 = vmatpush1.msra.mxu0 %v7348
    %7554 = vmatprep.mubr.f32.mxu0 %v7280
    %7555 = vmatmul.mubr.f32.gmra.mrb[0].mxu0 %v7279
    %v7556 = vpop.f32.mrb[0].mxu0
    %v7557 = vadd.f32 %v7487, %v7556
    %v7558 = vpop.f32.mrb[0].mxu0
    %7559 = vdwg.mxu0
    %7560 = vmatprep.subr.mxu0 0.0
    %7561 = vmatpush1.msra.mxu0 %v7349
    %7562 = vmatprep.subr.mxu0 0.0
    %7563 = vmatpush1.msra.mxu0 %v7350
    %7564 = vmatprep.subr.mxu0 0.0
    %7565 = vmatpush1.msra.mxu0 %v7351
    %7566 = vmatprep.subr.mxu0 0.0
    %7567 = vmatpush1.msra.mxu0 %v7352
    %7568 = vmatprep.subr.mxu0 0.0
    %7569 = vmatpush1.msra.mxu0 %v7353
    %7570 = vmatprep.subr.mxu0 0.0
    %7571 = vmatpush1.msra.mxu0 %v7354
    %7572 = vmatprep.subr.mxu0 0.0
    %7573 = vmatpush1.msra.mxu0 %v7355
    %7574 = vmatprep.subr.mxu0 0.0
    %7575 = vmatpush1.msra.mxu0 %v7356
    %7576 = vmatprep.subr.mxu0 0.0
    %7577 = vmatpush1.msra.mxu0 %v7357
    %7578 = vmatprep.subr.mxu0 0.0
    %7579 = vmatpush1.msra.mxu0 %v7358
    %7580 = vmatprep.subr.mxu0 0.0
    %7581 = vmatpush1.msra.mxu0 %v7359
    %7582 = vmatprep.subr.mxu0 0.0
    %7583 = vmatpush1.msra.mxu0 %v7360
    %7584 = vmatprep.subr.mxu0 0.0
    %7585 = vmatpush1.msra.mxu0 %v7361
    %7586 = vmatprep.subr.mxu0 0.0
    %7587 = vmatpush1.msra.mxu0 %v7362
    %7588 = vmatprep.subr.mxu0 0.0
    %7589 = vmatpush1.msra.mxu0 %v7363
    %7590 = vmatprep.subr.mxu0 0.0
    %7591 = vmatpush1.msra.mxu0 %v7364
    %7592 = vmatprep.subr.mxu0 0.0
    %7593 = vmatpush1.msra.mxu0 %v7365
    %7594 = vmatprep.subr.mxu0 0.0
    %7595 = vmatpush1.msra.mxu0 %v7366
    %7596 = vmatprep.subr.mxu0 0.0
    %7597 = vmatpush1.msra.mxu0 %v7367
    %7598 = vmatprep.subr.mxu0 0.0
    %7599 = vmatpush1.msra.mxu0 %v7368
    %7600 = vmatprep.subr.mxu0 0.0
    %7601 = vmatpush1.msra.mxu0 %v7369
    %7602 = vmatprep.subr.mxu0 0.0
    %7603 = vmatpush1.msra.mxu0 %v7370
    %7604 = vmatprep.subr.mxu0 0.0
    %7605 = vmatpush1.msra.mxu0 %v7371
    %7606 = vmatprep.subr.mxu0 0.0
    %7607 = vmatpush1.msra.mxu0 %v7372
    %7608 = vmatprep.subr.mxu0 0.0
    %7609 = vmatpush1.msra.mxu0 %v7373
    %7610 = vmatprep.subr.mxu0 0.0
    %7611 = vmatpush1.msra.mxu0 %v7374
    %7612 = vmatprep.subr.mxu0 0.0
    %7613 = vmatpush1.msra.mxu0 %v7375
    %7614 = vmatprep.subr.mxu0 0.0
    %7615 = vmatpush1.msra.mxu0 %v7376
    %7616 = vmatprep.subr.mxu0 0.0
    %7617 = vmatpush1.msra.mxu0 %v7377
    %7618 = vmatprep.subr.mxu0 0.0
    %7619 = vmatpush1.msra.mxu0 %v7378
    %7620 = vmatprep.subr.mxu0 0.0
    %7621 = vmatpush1.msra.mxu0 %v7379
    %7622 = vmatprep.subr.mxu0 0.0
    %7623 = vmatpush1.msra.mxu0 %v7380
    %7624 = vmatprep.mubr.f32.mxu0 %v7282
    %7625 = vmatmul.mubr.f32.gmra.mrb[0].mxu0 %v7281
    %v7626 = vpop.f32.mrb[0].mxu0
    %v7627 = vadd.f32 %v7557, %v7626
    %v7628 = vpop.f32.mrb[0].mxu0
    %7629 = vdwg.mxu0
    %7630 = vmatprep.subr.mxu0 0.0
    %7631 = vmatpush1.msra.mxu0 %v7381
    %7632 = vmatprep.subr.mxu0 0.0
    %7633 = vmatpush1.msra.mxu0 %v7382
    %7634 = vmatprep.subr.mxu0 0.0
    %7635 = vmatpush1.msra.mxu0 %v7383
    %7636 = vmatprep.subr.mxu0 0.0
    %7637 = vmatpush1.msra.mxu0 %v7384
    %7638 = vmatprep.subr.mxu0 0.0
    %7639 = vmatpush1.msra.mxu0 %v7385
    %7640 = vmatprep.subr.mxu0 0.0
    %7641 = vmatpush1.msra.mxu0 %v7386
    %7642 = vmatprep.subr.mxu0 0.0
    %7643 = vmatpush1.msra.mxu0 %v7387
    %7644 = vmatprep.subr.mxu0 0.0
    %7645 = vmatpush1.msra.mxu0 %v7388
    %7646 = vmatprep.subr.mxu0 0.0
    %7647 = vmatpush1.msra.mxu0 %v7389
    %7648 = vmatprep.subr.mxu0 0.0
    %7649 = vmatpush1.msra.mxu0 %v7390
    %7650 = vmatprep.subr.mxu0 0.0
    %7651 = vmatpush1.msra.mxu0 %v7391
    %7652 = vmatprep.subr.mxu0 0.0
    %7653 = vmatpush1.msra.mxu0 %v7392
    %7654 = vmatprep.subr.mxu0 0.0
    %7655 = vmatpush1.msra.mxu0 %v7393
    %7656 = vmatprep.subr.mxu0 0.0
    %7657 = vmatpush1.msra.mxu0 %v7394
    %7658 = vmatprep.subr.mxu0 0.0
    %7659 = vmatpush1.msra.mxu0 %v7395
    %7660 = vmatprep.subr.mxu0 0.0
    %7661 = vmatpush1.msra.mxu0 %v7396
    %7662 = vmatprep.subr.mxu0 0.0
    %7663 = vmatpush1.msra.mxu0 %v7397
    %7664 = vmatprep.subr.mxu0 0.0
    %7665 = vmatpush1.msra.mxu0 %v7398
    %7666 = vmatprep.subr.mxu0 0.0
    %7667 = vmatpush1.msra.mxu0 %v7399
    %7668 = vmatprep.subr.mxu0 0.0
    %7669 = vmatpush1.msra.mxu0 %v7400
    %7670 = vmatprep.subr.mxu0 0.0
    %7671 = vmatpush1.msra.mxu0 %v7401
    %7672 = vmatprep.subr.mxu0 0.0
    %7673 = vmatpush1.msra.mxu0 %v7402
    %7674 = vmatprep.subr.mxu0 0.0
    %7675 = vmatpush1.msra.mxu0 %v7403
    %7676 = vmatprep.subr.mxu0 0.0
    %7677 = vmatpush1.msra.mxu0 %v7404
    %7678 = vmatprep.subr.mxu0 0.0
    %7679 = vmatpush1.msra.mxu0 %v7405
    %7680 = vmatprep.subr.mxu0 0.0
    %7681 = vmatpush1.msra.mxu0 %v7406
    %7682 = vmatprep.subr.mxu0 0.0
    %7683 = vmatpush1.msra.mxu0 %v7407
    %7684 = vmatprep.subr.mxu0 0.0
    %7685 = vmatpush1.msra.mxu0 %v7408
    %7686 = vmatprep.subr.mxu0 0.0
    %7687 = vmatpush1.msra.mxu0 %v7409
    %7688 = vmatprep.subr.mxu0 0.0
    %7689 = vmatpush1.msra.mxu0 %v7410
    %7690 = vmatprep.subr.mxu0 0.0
    %7691 = vmatpush1.msra.mxu0 %v7411
    %7692 = vmatprep.subr.mxu0 0.0
    %7693 = vmatpush1.msra.mxu0 %v7412
    %7694 = vmatprep.mubr.f32.mxu0 %v7284
    %7695 = vmatmul.mubr.f32.gmra.mrb[0].mxu0 %v7283
    %v7696 = vpop.f32.mrb[0].mxu0
    %v7697 = vadd.f32 %v7627, %v7696
    %v7698 = vpop.f32.mrb[0].mxu0
    %7699 = vdwg.mxu0
    %vm7700 = vcmask 74752
    %7701 = vst.msk [vmem:[#allocation2] sm:$0x3] %vm7700, %v7697
    %v7702 = vsel %vm5211, %v7697, -inf
    %7703 = vmax.xlane.f32.xlu0 %v7702
    %v7704 = vpop.xlane.xlu0 %7703
    %v7705 = vsub.f32 %v7697, %v7704
    %v7706 = vmul.f32 %v7705, 1.442695
    %v7707 = vpow.pop %v7706
    %v7708 = vsel %vm5211, %v7707, 0.0
    %7709 = vadd.xlane.f32.xlu0 %v7708
    %v7710 = vpop.xlane.xlu0 %7709
    %v7711 = vrcp.pop %v7710
    %v7712 = vmul.f32 %v7707, %v7711
    %7713 = vst.msk [vmem:[#allocation4] sm:$0x3] %vm7700, %v7712
    // Predicated region
    $region38: #{net_forward.1} parent=1 // pred_check
      _
    $region39: #{net_forward.1} parent=1 // pred_check_branch
      %7715 = sbr.rel (0) target = $region41
    $region40: #{net_forward.1} parent=1 // pred_region
      %s7717 = ssub.s32 32, 32
      %7718 = vsyncadd [#allocation3], %s7717
      %s7720 = sshll.u32 [#allocation2], 4
      %s7721 = int_to_ptr.vmem [resolvable:$true] %s7720
      %7723 = dma.vmem_to_hbm [thread:$0]  %s7721, 32, %s9, [#allocation3]
    $region41: #{net_forward.1} parent=1 // pred_fallthru
      _
    // Predicated region
    $region42: #{net_forward.1} parent=1 // pred_check
      _
    $region43: #{net_forward.1} parent=1 // pred_check_branch
      %7725 = sbr.rel (0) target = $region45
    $region44: #{net_forward.1} parent=1 // pred_region
      %s7727 = ssub.s32 32, 32
      %7728 = vsyncadd [#allocation5], %s7727
      %s7730 = sshll.u32 [#allocation4], 4
      %s7731 = int_to_ptr.vmem [resolvable:$true] %s7730
      %7733 = dma.vmem_to_hbm [thread:$0]  %s7731, 32, %s10, [#allocation5]
    $region45: #{net_forward.1} parent=1 // pred_fallthru
      _
    // Predicated region
    $region46: #{net_forward.1} parent=1 // pred_check
      _
    $region47: #{net_forward.1} parent=1 // pred_check_branch
      %7735 = sbr.rel (0) target = $region49
    $region48: #{net_forward.1} parent=1 // pred_region
      %7736 = dma.done [#allocation3], 32
    $region49: #{net_forward.1} parent=1 // pred_fallthru
      _
    // Predicated region
    $region50: #{net_forward.1} parent=1 // pred_check
      _
    $region51: #{net_forward.1} parent=1 // pred_check_branch
      %7738 = sbr.rel (0) target = $region53
    $region52: #{net_forward.1} parent=1 // pred_region
      %7739 = dma.done [#allocation5], 32
    $region53: #{net_forward.1} parent=1 // pred_fallthru
      _
    %7740 = vsyncpa [#allocation3], 1
    %7741 = vsyncpa [#allocation5], 1

</llo_original>
